<compile_context>
chip_gen: v6e
topology: v6e:2x2x1
jax: 0.10.0
libtpu: 0.0.40
codegen_flags: <defaults>
</compile_context>

<pallas_src>
import jax
import jax.numpy as jnp
from jax.experimental import pallas as pl
from jax.experimental.pallas import tpu as pltpu

EPS = 1e-5                     # nn.BatchNorm2d default eps
USE_BF16_MATMUL = False        # v6e/v7x MXU fast path; off to keep the 2e-3 check vs f32 ref


# ------------------------------ small helpers -------------------------------- #

def _dot(a, b):
    if USE_BF16_MATMUL:
        a = a.astype(jnp.bfloat16)
        b = b.astype(jnp.bfloat16)
    # NOTE: default TPU matmul precision; empirically within the 2e-3 tolerance vs the
    # HIGHEST-precision f32 reference for these layer shapes.
    return jnp.dot(a, b, preferred_element_type=jnp.float32)


def _stride2_taps(x, kh):
    """Stride-2 / pad-1 taps along H: tap[k][j] == x_padded[2*j + k]; each (h_out, P, C).

    The zero-padded rows are parity-split (reshape of the outer dim only), so tap
    extraction is pure outer-dim slicing -- no strided slices, no lane shuffles."""
    h_in, p, c = x.shape
    h_pad = h_in + 2
    h_out = (h_pad - kh) // 2 + 1
    h_pad_even = h_pad + (h_pad % 2)
    top = jnp.zeros((1, p, c), x.dtype)
    bot = jnp.zeros((h_pad_even - h_in - 1, p, c), x.dtype)
    r = jnp.concatenate([top, x, bot], axis=0).reshape(h_pad_even // 2, 2, p, c)
    return [r[k // 2: k // 2 + h_out, k % 2] for k in range(kh)], h_out


def _conv_s2_concat(x, w_cat, shift, *, kh):
    """im2col conv (one matmul, taps concatenated along K).  Use only when Cin is a
    multiple of 128 so the lane concat is aligned (free)."""
    h_in, p, cin = x.shape
    cout = w_cat.shape[-1]
    taps, h_out = _stride2_taps(x, kh)
    a = jnp.concatenate(taps, axis=-1).reshape(h_out * p, kh * cin)
    y = _dot(a, w_cat) + shift
    return jnp.maximum(y, 0.0).reshape(h_out, p, cout)


def _conv_s2_accum(x, w_ref, shift, *, kh):
    """Accumulate-style conv: kh matmuls summed.  Used for Cin=64 to avoid
    64-lane-misaligned concatenates (XLU relayouts)."""
    h_in, p, cin = x.shape
    cout = shift.shape[-1]
    taps, h_out = _stride2_taps(x, kh)
    y = shift
    for k in range(kh):
        y = y + _dot(taps[k].reshape(h_out * p, cin), w_ref[k])
    return jnp.maximum(y, 0.0).reshape(h_out, p, cout)


def _convt_s2_concat(x, w_e, w_o, shift):
    """kh=3, stride-2, pad-1 ConvTranspose (polyphase over output-row parity) + ReLU.
    y[2j] = x[j] @ W1 ; y[2j+1] = x[j] @ W2 + x[j+1] @ W0 ; out length = 2*h_in - 1.
    Lane concats here are 128-aligned (Cin = 128 / 256) -> free."""
    h_in, p, cin = x.shape
    cout = w_e.shape[-1]
    zrow = jnp.zeros((1, p, cin), x.dtype)
    x_up = jnp.concatenate([x[1:], zrow], axis=0)                  # x[j+1]
    a_e = x.reshape(h_in * p, cin)
    a_o = jnp.concatenate([x, x_up], axis=-1).reshape(h_in * p, 2 * cin)
    y_e = jnp.maximum(_dot(a_e, w_e) + shift, 0.0).reshape(h_in, p, cout)
    y_o = jnp.maximum(_dot(a_o, w_o) + shift, 0.0).reshape(h_in, p, cout)
    y = jnp.stack([y_e, y_o], axis=1).reshape(2 * h_in, p, cout)   # interleave rows
    return y[: 2 * h_in - 1]


def _convt_s2_final(x, w_e_ref, w_o_ref, shift):
    """kh=4, stride-2, pad-1 ConvTranspose (final layer, no BN / no ReLU), accumulate
    style (Cin=64).  Cout is pre-padded 6->128 so the result transpose is fully
    (8,128)-aligned and the HBM store is lane-dense.
      y[2j]   = x[j] @ W1 + x[j-1] @ W3
      y[2j+1] = x[j] @ W2 + x[j+1] @ W0
    Returns (even_rows.T, odd_rows.T), each (128, h_in * p), channel-major."""
    h_in, p, cin = x.shape
    zrow = jnp.zeros((1, p, cin), x.dtype)
    x_dn = jnp.concatenate([zrow, x[:-1]], axis=0)                 # x[j-1]
    x_up = jnp.concatenate([x[1:], zrow], axis=0)                  # x[j+1]
    xf = x.reshape(h_in * p, cin)
    y_e = _dot(xf, w_e_ref[0]) + _dot(x_dn.reshape(h_in * p, cin), w_e_ref[1]) + shift
    y_o = _dot(xf, w_o_ref[0]) + _dot(x_up.reshape(h_in * p, cin), w_o_ref[1]) + shift
    # (h_in*p, 128) -> (128, h_in*p): both dims are multiples of (8, 128) -> native
    # XLU transpose; enables an unmasked, lane-dense output store.
    return y_e.T, y_o.T


# ------------------------------ fused kernel -------------------------------- #

def _vertice_net_kernel(a1_ref,
                        w1_ref, s1_ref, w2_ref, s2_ref, w3_ref, s3_ref,
                        w4e_ref, w4o_ref, s4_ref,
                        w5e_ref, w5o_ref, s5_ref,
                        w6e_ref, w6o_ref, s6_ref,
                        oe_ref, oo_ref):
    h1, p, k1 = a1_ref.shape
    # L1: H-pad + im2col already done in the wrapper (Cin=6 is too lane-sparse to
    # shuffle in-kernel) -> single matmul, K = 4*6 = 24.
    y = _dot(a1_ref[...].reshape(h1 * p, k1), w1_ref[...]) + s1_ref[...]
    x = jnp.maximum(y, 0.0).reshape(h1, p, w1_ref.shape[-1])
    # L2 (Cin=64): accumulate over taps -> no misaligned 64-lane concat.
    x = _conv_s2_accum(x, w2_ref, s2_ref[...], kh=3)
    # L3 (Cin=128): concatenated im2col (128-lane-aligned tap boundaries).
    x = _conv_s2_concat(x, w3_ref[...], s3_ref[...], kh=3)
    # L4 / L5: polyphase ConvTranspose, lane-aligned concats.
    x = _convt_s2_concat(x, w4e_ref[...], w4o_ref[...], s4_ref[...])
    x = _convt_s2_concat(x, w5e_ref[...], w5o_ref[...], s5_ref[...])
    # L6 (Cout padded 6->128): accumulate-style, results transposed to channel-major.
    y_e_t, y_o_t = _convt_s2_final(x, w6e_ref, w6o_ref, s6_ref[...])
    oe_ref[...] = y_e_t[: oe_ref.shape[0]].astype(oe_ref.dtype)
    oo_ref[...] = y_o_t[: oo_ref.shape[0]].astype(oo_ref.dtype)


# ----------------------- one-time parameter preparation ---------------------- #

def prepare_params(p):
    """PyTorch-layout params -> kernel-ready tensors (hoisted out of forward):
    eval-mode BN folded into weights + per-channel shift; conv taps concatenated
    (Cin 128-aligned) or stacked per tap (Cin=64); final ConvT Cout padded 6->128."""
    def bn_fold(name, cout):
        if name is None:
            return jnp.ones((cout,), jnp.float32), jnp.zeros((cout,), jnp.float32)
        scale = p[name + '_g'] / jnp.sqrt(p[name + '_v'] + EPS)
        shift = p[name + '_b'] - p[name + '_m'] * scale
        return scale, shift

    def conv_cat(wname, bname, bnname):
        w = p[wname][:, :, :, 0]                              # (Cout, Cin, kh)
        cout = w.shape[0]
        scale, bn_shift = bn_fold(bnname, cout)
        w_kio = jnp.transpose(w, (2, 1, 0)) * scale           # (kh, Cin, Cout), BN-scaled
        shift = (p[bname] * scale + bn_shift).reshape(1, cout)
        return w_kio.reshape(-1, cout), shift                 # (kh*Cin, Cout) tap-major

    def conv_taps(wname, bname, bnname):
        w = p[wname][:, :, :, 0]
        cout = w.shape[0]
        scale, bn_shift = bn_fold(bnname, cout)
        w_kio = jnp.transpose(w, (2, 1, 0)) * scale           # (kh, Cin, Cout)
        shift = (p[bname] * scale + bn_shift).reshape(1, cout)
        return w_kio, shift

    def convt_cat(wname, bname, bnname):
        w = p[wname][:, :, :, 0]                              # (Cin, Cout, kh=3)
        cout = w.shape[1]
        scale, bn_shift = bn_fold(bnname, cout)
        w = w * scale[None, :, None]
        w_e = w[:, :, 1]                                      # x[j]   -> even rows
        w_o = jnp.concatenate([w[:, :, 2], w[:, :, 0]], 0)    # x[j], x[j+1] -> odd rows
        shift = (p[bname] * scale + bn_shift).reshape(1, cout)
        return w_e, w_o, shift

    def convt_final(wname, bname, cout_pad):
        w = p[wname][:, :, :, 0]                              # (Cin, Cout=6, kh=4)
        cout = w.shape[1]
        w_e = jnp.stack([w[:, :, 1], w[:, :, 3]], axis=0)     # x[j], x[j-1]
        w_o = jnp.stack([w[:, :, 2], w[:, :, 0]], axis=0)     # x[j], x[j+1]
        shift = p[bname].reshape(1, cout)
        padc = (0, cout_pad - cout)
        return (jnp.pad(w_e, ((0, 0), (0, 0), padc)),
                jnp.pad(w_o, ((0, 0), (0, 0), padc)),
                jnp.pad(shift, ((0, 0), padc)))

    w1, s1 = conv_cat('conv1_w', 'conv1_b', 'bn1')            # (24, 64)
    w2, s2 = conv_taps('conv2_w', 'conv2_b', 'bn2')           # (3, 64, 128)
    w3, s3 = conv_cat('conv3_w', 'conv3_b', 'bn3')            # (384, 256)
    w4e, w4o, s4 = convt_cat('upconv1_w', 'upconv1_b', 'upbn1')
    w5e, w5o, s5 = convt_cat('upconv2_w', 'upconv2_b', 'upbn2')
    w6e, w6o, s6 = convt_final('upconv3_w', 'upconv3_b', 128)
    return dict(w1=w1, s1=s1, w2=w2, s2=s2, w3=w3, s3=s3,
                w4e=w4e, w4o=w4o, s4=s4, w5e=w5e, w5o=w5o, s5=s5,
                w6e=w6e, w6o=w6o, s6=s6)


# ------------------------------ tiling policy -------------------------------- #

def _vmem_and_tile_cap():
    """Generation-aware scoped-VMEM limit and p_tile cap (v5e/v6e: 128 MiB physical
    VMEM; v7x: 64 MiB)."""
    vmem_bytes = None
    try:
        vmem_bytes = getattr(pltpu.get_tpu_info(), "vmem_capacity_bytes", None)
    except Exception:
        vmem_bytes = None
    if vmem_bytes is not None and vmem_bytes >= 100 * 1024 * 1024:
        return 96 * 1024 * 1024, 2048            # v5e / v6e
    return 48 * 1024 * 1024, 1024                # v7x or unknown (conservative)


def _choose_p_tile(p_total, cap):
    p_pad = ((p_total + 127) // 128) * 128       # multiple of 128 -> dense stores
    cap = max(128, min(cap, p_pad))
    best = 128
    for t in range(128, cap + 1, 128):
        if p_pad % t == 0:
            best = t
    # Prefer >= 2 grid steps so both v7x TensorCores get work.
    if best == p_pad and p_pad >= 256 and (p_pad // 2) % 128 == 0:
        best = p_pad // 2
    return best, p_pad


# ------------------------------ full forward -------------------------------- #

def vertice_net_forward(x_nchw, prep):
    # TODO(synk): BatchNorm is eval-mode (running stats folded); training-mode batch
    # statistics are not reproduced.
    n, c_in, h_in, w_dim = x_nchw.shape
    p_total = n * w_dim

    vmem_limit, tile_cap = _vmem_and_tile_cap()
    p_tile, p_pad = _choose_p_tile(p_total, tile_cap)
    nt = p_pad // p_tile

    # (N, C, H, W) -> (H, P, C) with P = N*W (the conv W axis is pointwise -> folded into P)
    x_hpc = jnp.transpose(x_nchw, (2, 0, 3, 1)).reshape(h_in, p_total, c_in)
    if p_pad != p_total:
        x_hpc = jnp.pad(x_hpc, ((0, 0), (0, p_pad - p_total), (0, 0)))

    # Layer-1 H-pad + im2col in the wrapper (kh=4, stride 2, pad 1): (h1, P, 24)
    h1 = (h_in + 2 - 4) // 2 + 1
    xp = jnp.pad(x_hpc, ((1, 1), (0, 0), (0, 0)))
    a1 = jnp.concatenate([xp[k: k + 2 * h1: 2] for k in range(4)], axis=-1)

    # Static H chain (must match the kernel's layer chain)
    h2 = (h1 + 2 - 3) // 2 + 1
    h3 = (h2 + 2 - 3) // 2 + 1
    h4 = 2 * h3 - 1
    h5 = 2 * h4 - 1
    h6 = 2 * h5
    c_out, c_store = 6, 8

    def _full(arr):
        zeros = (0,) * arr.ndim
        return pl.BlockSpec(arr.shape, lambda i, _z=zeros: _z)

    weights = (prep['w1'], prep['s1'], prep['w2'], prep['s2'], prep['w3'], prep['s3'],
               prep['w4e'], prep['w4o'], prep['s4'],
               prep['w5e'], prep['w5o'], prep['s5'],
               prep['w6e'], prep['w6o'], prep['s6'])

    out_shape = (jax.ShapeDtypeStruct((c_store, nt * h5 * p_tile), jnp.float32),
                 jax.ShapeDtypeStruct((c_store, nt * h5 * p_tile), jnp.float32))
    out_spec = pl.BlockSpec((c_store, h5 * p_tile), lambda i: (0, i))

    out_e, out_o = pl.pallas_call(
        _vertice_net_kernel,
        out_shape=out_shape,
        grid=(nt,),
        in_specs=[pl.BlockSpec((h1, p_tile, 4 * c_in), lambda i: (0, i, 0))]
                 + [_full(a) for a in weights],
        out_specs=(out_spec, out_spec),
        compiler_params=pltpu.CompilerParams(
            dimension_semantics=("parallel",),
            vmem_limit_bytes=vmem_limit),
    )(a1, *weights)

    def _unpack(o):  # (8, nt*h5*p_tile) -> (6, h5, p_total)
        o = o.reshape(c_store, nt, h5, p_tile).transpose(0, 2, 1, 3)
        return o.reshape(c_store, h5, p_pad)[:c_out, :, :p_total]

    y_e, y_o = _unpack(out_e), _unpack(out_o)
    y = jnp.stack([y_e, y_o], axis=2).reshape(c_out, h6, p_total)  # interleave even/odd rows
    y = y.reshape(c_out, h6, n, w_dim)
    return jnp.transpose(y, (2, 0, 1, 3))                          # NCHW


# ------------------------------ parameters ----------------------------------- #

def init_params(key):
    keys = iter(jax.random.split(key, 40))

    def uni(shape, fan_in):
        bound = 1.0 / (fan_in ** 0.5)
        return jax.random.uniform(next(keys), shape, jnp.float32, -bound, bound)

    p = {}
    # Conv2d weights: (Cout, Cin, kH, kW)
    p['conv1_w'] = uni((64, 6, 4, 1), 6 * 4);        p['conv1_b'] = uni((64,), 6 * 4)
    p['conv2_w'] = uni((128, 64, 3, 1), 64 * 3);     p['conv2_b'] = uni((128,), 64 * 3)
    p['conv3_w'] = uni((256, 128, 3, 1), 128 * 3);   p['conv3_b'] = uni((256,), 128 * 3)
    # ConvTranspose2d weights: (Cin, Cout, kH, kW)
    p['upconv1_w'] = uni((256, 128, 3, 1), 256 * 3); p['upconv1_b'] = uni((128,), 256 * 3)
    p['upconv2_w'] = uni((128, 64, 3, 1), 128 * 3);  p['upconv2_b'] = uni((64,), 128 * 3)
    p['upconv3_w'] = uni((64, 6, 4, 1), 64 * 4);     p['upconv3_b'] = uni((6,), 64 * 4)

    def bn(c, name):
        p[name + '_g'] = 1.0 + 0.1 * jax.random.normal(next(keys), (c,), jnp.float32)
        p[name + '_b'] = 0.1 * jax.random.normal(next(keys), (c,), jnp.float32)
        p[name + '_m'] = 0.1 * jax.random.normal(next(keys), (c,), jnp.float32)
        p[name + '_v'] = jax.random.uniform(next(keys), (c,), jnp.float32, 0.5, 1.5)

    bn(64, 'bn1'); bn(128, 'bn2'); bn(256, 'bn3'); bn(128, 'upbn1'); bn(64, 'upbn2')
    return p


# ----------------------- pure-JAX reference (NCHW) --------------------------- #

def ref_forward(x, p):
    hp = jax.lax.Precision.HIGHEST

    def bn(x, name):
        g, b, m, v = p[name + '_g'], p[name + '_b'], p[name + '_m'], p[name + '_v']
        inv = g / jnp.sqrt(v + EPS)
        return (x - m[None, :, None, None]) * inv[None, :, None, None] + b[None, :, None, None]

    def conv(x, w, b, stride, pad):
        y = jax.lax.conv_general_dilated(
            x, w, (stride, 1), ((pad, pad), (0, 0)),
            dimension_numbers=('NCHW', 'OIHW', 'NCHW'), precision=hp)
        return y + b[None, :, None, None]

    def convT(x, w, b, stride, pad):
        k = w.shape[2]
        w2 = jnp.transpose(jnp.flip(w, axis=2), (1, 0, 2, 3))   # -> OIHW
        y = jax.lax.conv_general_dilated(
            x, w2, (1, 1), ((k - 1 - pad, k - 1 - pad), (0, 0)),
            lhs_dilation=(stride, 1),
            dimension_numbers=('NCHW', 'OIHW', 'NCHW'), precision=hp)
        return y + b[None, :, None, None]

    x = jax.nn.relu(bn(conv(x, p['conv1_w'], p['conv1_b'], 2, 1), 'bn1'))
    x = jax.nn.relu(bn(conv(x, p['conv2_w'], p['conv2_b'], 2, 1), 'bn2'))
    x = jax.nn.relu(bn(conv(x, p['conv3_w'], p['conv3_b'], 2, 1), 'bn3'))
    x = jax.nn.relu(bn(convT(x, p['upconv1_w'], p['upconv1_b'], 2, 1), 'upbn1'))
    x = jax.nn.relu(bn(convT(x, p['upconv2_w'], p['upconv2_b'], 2, 1), 'upbn2'))
    x = convT(x, p['upconv3_w'], p['upconv3_b'], 2, 1)
    return x


# ---------------------------------- main ------------------------------------ #

if __name__ == "__main__":
    key = jax.random.PRNGKey(0)
    kx, kp = jax.random.split(key)
    x = jax.random.normal(kx, (2, 6, 16, 8), jnp.float32)   # (N, C=6, H, W)
    params = init_params(kp)

    prep = prepare_params(params)            # one-time weight prep, hoisted out of forward
    fwd = jax.jit(vertice_net_forward)
    out = jax.block_until_ready(fwd(x, prep))

    ref = ref_forward(x, params)
    assert out.shape == ref.shape, (out.shape, ref.shape)
    max_err = float(jnp.max(jnp.abs(out - ref)))
    if not jnp.allclose(out, ref, atol=2e-3, rtol=2e-3):
        raise AssertionError(f"Pallas output mismatch vs reference, max abs err {max_err}")
    print("KERNEL_OK")
</pallas_src>

<mosaic_0001>
module attributes {stable_mosaic.version = 11 : i64} {
  func.func @_vertice_net_kernel(%arg0: i32, %arg1: memref<8x128x24xf32, #tpu.memory_space<vmem>>, %arg2: memref<24x64xf32, #tpu.memory_space<vmem>>, %arg3: memref<1x64xf32, #tpu.memory_space<vmem>>, %arg4: memref<3x64x128xf32, #tpu.memory_space<vmem>>, %arg5: memref<1x128xf32, #tpu.memory_space<vmem>>, %arg6: memref<384x256xf32, #tpu.memory_space<vmem>>, %arg7: memref<1x256xf32, #tpu.memory_space<vmem>>, %arg8: memref<256x128xf32, #tpu.memory_space<vmem>>, %arg9: memref<512x128xf32, #tpu.memory_space<vmem>>, %arg10: memref<1x128xf32, #tpu.memory_space<vmem>>, %arg11: memref<128x64xf32, #tpu.memory_space<vmem>>, %arg12: memref<256x64xf32, #tpu.memory_space<vmem>>, %arg13: memref<1x64xf32, #tpu.memory_space<vmem>>, %arg14: memref<2x64x128xf32, #tpu.memory_space<vmem>>, %arg15: memref<2x64x128xf32, #tpu.memory_space<vmem>>, %arg16: memref<1x128xf32, #tpu.memory_space<vmem>>, %arg17: memref<8x640xf32, #tpu.memory_space<vmem>>, %arg18: memref<8x640xf32, #tpu.memory_space<vmem>>) attributes {dimension_semantics = [#tpu.dimension_semantics<parallel>], iteration_bounds = array<i64: 1>, scalar_prefetch = 0 : i64, scratch_operands = 0 : i64, tpu.core_type = #tpu.core_type<tc>, window_params = [{transform_indices = @transform_0, window_bounds = array<i64: 8, 128, 24>}, {pipeline_mode = #tpu.pipeline_mode<synchronous>, transform_indices = @transform_1, window_bounds = array<i64: 24, 64>}, {pipeline_mode = #tpu.pipeline_mode<synchronous>, transform_indices = @transform_2, window_bounds = array<i64: 1, 64>}, {pipeline_mode = #tpu.pipeline_mode<synchronous>, transform_indices = @transform_3, window_bounds = array<i64: 3, 64, 128>}, {pipeline_mode = #tpu.pipeline_mode<synchronous>, transform_indices = @transform_4, window_bounds = array<i64: 1, 128>}, {pipeline_mode = #tpu.pipeline_mode<synchronous>, transform_indices = @transform_5, window_bounds = array<i64: 384, 256>}, {pipeline_mode = #tpu.pipeline_mode<synchronous>, transform_indices = @transform_6, window_bounds = array<i64: 1, 256>}, {pipeline_mode = #tpu.pipeline_mode<synchronous>, transform_indices = @transform_7, window_bounds = array<i64: 256, 128>}, {pipeline_mode = #tpu.pipeline_mode<synchronous>, transform_indices = @transform_8, window_bounds = array<i64: 512, 128>}, {pipeline_mode = #tpu.pipeline_mode<synchronous>, transform_indices = @transform_9, window_bounds = array<i64: 1, 128>}, {pipeline_mode = #tpu.pipeline_mode<synchronous>, transform_indices = @transform_10, window_bounds = array<i64: 128, 64>}, {pipeline_mode = #tpu.pipeline_mode<synchronous>, transform_indices = @transform_11, window_bounds = array<i64: 256, 64>}, {pipeline_mode = #tpu.pipeline_mode<synchronous>, transform_indices = @transform_12, window_bounds = array<i64: 1, 64>}, {pipeline_mode = #tpu.pipeline_mode<synchronous>, transform_indices = @transform_13, window_bounds = array<i64: 2, 64, 128>}, {pipeline_mode = #tpu.pipeline_mode<synchronous>, transform_indices = @transform_14, window_bounds = array<i64: 2, 64, 128>}, {pipeline_mode = #tpu.pipeline_mode<synchronous>, transform_indices = @transform_15, window_bounds = array<i64: 1, 128>}, {transform_indices = @transform_16, window_bounds = array<i64: 8, 640>}, {transform_indices = @transform_17, window_bounds = array<i64: 8, 640>}]} {
    %c0 = arith.constant 0 : index
    %c0_0 = arith.constant 0 : index
    %c0_1 = arith.constant 0 : index
    %0 = vector.load %arg1[%c0, %c0_0, %c0_1] : memref<8x128x24xf32, #tpu.memory_space<vmem>>, vector<8x128x24xf32>
    %1 = vector.shape_cast %0 : vector<8x128x24xf32> to vector<1024x24xf32>
    %c0_2 = arith.constant 0 : index
    %c0_3 = arith.constant 0 : index
    %2 = vector.load %arg2[%c0_2, %c0_3] : memref<24x64xf32, #tpu.memory_space<vmem>>, vector<24x64xf32>
    %cst = arith.constant dense<0.000000e+00> : vector<1024x64xf32>
    %3 = tpu.matmul %1, %2, %cst {dimension_numbers = #tpu.dot_dimension_numbers<[1], [0], [0], [1], [0, 0, 1, 1], [], []>} : vector<1024x24xf32>, vector<24x64xf32>, vector<1024x64xf32> -> vector<1024x64xf32>
    %c0_4 = arith.constant 0 : index
    %c0_5 = arith.constant 0 : index
    %4 = vector.load %arg3[%c0_4, %c0_5] : memref<1x64xf32, #tpu.memory_space<vmem>>, vector<1x64xf32>
    %5 = vector.broadcast %4 : vector<1x64xf32> to vector<1024x64xf32>
    %6 = arith.addf %3, %5 : vector<1024x64xf32>
    %cst_6 = arith.constant 0.000000e+00 : f32
    %7 = vector.broadcast %cst_6 : f32 to vector<1024x64xf32>
    %8 = arith.maximumf %6, %7 : vector<1024x64xf32>
    %9 = vector.shape_cast %8 : vector<1024x64xf32> to vector<8x128x64xf32>
    %c0_7 = arith.constant 0 : index
    %c0_8 = arith.constant 0 : index
    %10 = vector.load %arg5[%c0_7, %c0_8] : memref<1x128xf32, #tpu.memory_space<vmem>>, vector<1x128xf32>
    %cst_9 = arith.constant 0.000000e+00 : f32
    %11 = vector.broadcast %cst_9 : f32 to vector<1x128x64xf32>
    %cst_10 = arith.constant 0.000000e+00 : f32
    %12 = vector.broadcast %cst_10 : f32 to vector<1x128x64xf32>
    %13 = tpu.concatenate %11, %9, %12 in 0 : vector<1x128x64xf32>, vector<8x128x64xf32>, vector<1x128x64xf32> -> vector<10x128x64xf32>
    %14 = vector.shape_cast %13 : vector<10x128x64xf32> to vector<5x2x128x64xf32>
    %15 = vector.extract_strided_slice %14 {offsets = [0, 0, 0, 0], sizes = [4, 1, 128, 64], strides = [1, 1, 1, 1]} : vector<5x2x128x64xf32> to vector<4x1x128x64xf32>
    %16 = vector.shape_cast %15 : vector<4x1x128x64xf32> to vector<4x128x64xf32>
    %17 = vector.extract_strided_slice %14 {offsets = [0, 1, 0, 0], sizes = [4, 1, 128, 64], strides = [1, 1, 1, 1]} : vector<5x2x128x64xf32> to vector<4x1x128x64xf32>
    %18 = vector.shape_cast %17 : vector<4x1x128x64xf32> to vector<4x128x64xf32>
    %19 = vector.extract_strided_slice %14 {offsets = [1, 0, 0, 0], sizes = [4, 1, 128, 64], strides = [1, 1, 1, 1]} : vector<5x2x128x64xf32> to vector<4x1x128x64xf32>
    %20 = vector.shape_cast %19 : vector<4x1x128x64xf32> to vector<4x128x64xf32>
    %21 = vector.shape_cast %16 : vector<4x128x64xf32> to vector<512x64xf32>
    %c0_11 = arith.constant 0 : index
    %c0_12 = arith.constant 0 : index
    %c0_13 = arith.constant 0 : index
    %22 = vector.load %arg4[%c0_11, %c0_12, %c0_13] : memref<3x64x128xf32, #tpu.memory_space<vmem>>, vector<1x64x128xf32>
    %23 = vector.shape_cast %22 : vector<1x64x128xf32> to vector<64x128xf32>
    %cst_14 = arith.constant dense<0.000000e+00> : vector<512x128xf32>
    %24 = tpu.matmul %21, %23, %cst_14 {dimension_numbers = #tpu.dot_dimension_numbers<[1], [0], [0], [1], [0, 0, 1, 1], [], []>} : vector<512x64xf32>, vector<64x128xf32>, vector<512x128xf32> -> vector<512x128xf32>
    %25 = vector.broadcast %10 : vector<1x128xf32> to vector<512x128xf32>
    %26 = arith.addf %25, %24 : vector<512x128xf32>
    %27 = vector.shape_cast %18 : vector<4x128x64xf32> to vector<512x64xf32>
    %c1 = arith.constant 1 : index
    %c0_15 = arith.constant 0 : index
    %c0_16 = arith.constant 0 : index
    %28 = vector.load %arg4[%c1, %c0_15, %c0_16] : memref<3x64x128xf32, #tpu.memory_space<vmem>>, vector<1x64x128xf32>
    %29 = vector.shape_cast %28 : vector<1x64x128xf32> to vector<64x128xf32>
    %cst_17 = arith.constant dense<0.000000e+00> : vector<512x128xf32>
    %30 = tpu.matmul %27, %29, %cst_17 {dimension_numbers = #tpu.dot_dimension_numbers<[1], [0], [0], [1], [0, 0, 1, 1], [], []>} : vector<512x64xf32>, vector<64x128xf32>, vector<512x128xf32> -> vector<512x128xf32>
    %31 = arith.addf %26, %30 : vector<512x128xf32>
    %32 = vector.shape_cast %20 : vector<4x128x64xf32> to vector<512x64xf32>
    %c2 = arith.constant 2 : index
    %c0_18 = arith.constant 0 : index
    %c0_19 = arith.constant 0 : index
    %33 = vector.load %arg4[%c2, %c0_18, %c0_19] : memref<3x64x128xf32, #tpu.memory_space<vmem>>, vector<1x64x128xf32>
    %34 = vector.shape_cast %33 : vector<1x64x128xf32> to vector<64x128xf32>
    %cst_20 = arith.constant dense<0.000000e+00> : vector<512x128xf32>
    %35 = tpu.matmul %32, %34, %cst_20 {dimension_numbers = #tpu.dot_dimension_numbers<[1], [0], [0], [1], [0, 0, 1, 1], [], []>} : vector<512x64xf32>, vector<64x128xf32>, vector<512x128xf32> -> vector<512x128xf32>
    %36 = arith.addf %31, %35 : vector<512x128xf32>
    %cst_21 = arith.constant 0.000000e+00 : f32
    %37 = vector.broadcast %cst_21 : f32 to vector<512x128xf32>
    %38 = arith.maximumf %36, %37 : vector<512x128xf32>
    %39 = vector.shape_cast %38 : vector<512x128xf32> to vector<4x128x128xf32>
    %c0_22 = arith.constant 0 : index
    %c0_23 = arith.constant 0 : index
    %40 = vector.load %arg6[%c0_22, %c0_23] : memref<384x256xf32, #tpu.memory_space<vmem>>, vector<384x256xf32>
    %c0_24 = arith.constant 0 : index
    %c0_25 = arith.constant 0 : index
    %41 = vector.load %arg7[%c0_24, %c0_25] : memref<1x256xf32, #tpu.memory_space<vmem>>, vector<1x256xf32>
    %cst_26 = arith.constant 0.000000e+00 : f32
    %42 = vector.broadcast %cst_26 : f32 to vector<1x128x128xf32>
    %cst_27 = arith.constant 0.000000e+00 : f32
    %43 = vector.broadcast %cst_27 : f32 to vector<1x128x128xf32>
    %44 = tpu.concatenate %42, %39, %43 in 0 : vector<1x128x128xf32>, vector<4x128x128xf32>, vector<1x128x128xf32> -> vector<6x128x128xf32>
    %45 = vector.shape_cast %44 : vector<6x128x128xf32> to vector<3x2x128x128xf32>
    %46 = vector.extract_strided_slice %45 {offsets = [0, 0, 0, 0], sizes = [2, 1, 128, 128], strides = [1, 1, 1, 1]} : vector<3x2x128x128xf32> to vector<2x1x128x128xf32>
    %47 = vector.shape_cast %46 : vector<2x1x128x128xf32> to vector<2x128x128xf32>
    %48 = vector.extract_strided_slice %45 {offsets = [0, 1, 0, 0], sizes = [2, 1, 128, 128], strides = [1, 1, 1, 1]} : vector<3x2x128x128xf32> to vector<2x1x128x128xf32>
    %49 = vector.shape_cast %48 : vector<2x1x128x128xf32> to vector<2x128x128xf32>
    %50 = vector.extract_strided_slice %45 {offsets = [1, 0, 0, 0], sizes = [2, 1, 128, 128], strides = [1, 1, 1, 1]} : vector<3x2x128x128xf32> to vector<2x1x128x128xf32>
    %51 = vector.shape_cast %50 : vector<2x1x128x128xf32> to vector<2x128x128xf32>
    %52 = tpu.concatenate %47, %49, %51 in 2 : vector<2x128x128xf32>, vector<2x128x128xf32>, vector<2x128x128xf32> -> vector<2x128x384xf32>
    %53 = vector.shape_cast %52 : vector<2x128x384xf32> to vector<256x384xf32>
    %cst_28 = arith.constant dense<0.000000e+00> : vector<256x256xf32>
    %54 = tpu.matmul %53, %40, %cst_28 {dimension_numbers = #tpu.dot_dimension_numbers<[1], [0], [0], [1], [0, 0, 1, 1], [], []>} : vector<256x384xf32>, vector<384x256xf32>, vector<256x256xf32> -> vector<256x256xf32>
    %55 = vector.broadcast %41 : vector<1x256xf32> to vector<256x256xf32>
    %56 = arith.addf %54, %55 : vector<256x256xf32>
    %cst_29 = arith.constant 0.000000e+00 : f32
    %57 = vector.broadcast %cst_29 : f32 to vector<256x256xf32>
    %58 = arith.maximumf %56, %57 : vector<256x256xf32>
    %59 = vector.shape_cast %58 : vector<256x256xf32> to vector<2x128x256xf32>
    %c0_30 = arith.constant 0 : index
    %c0_31 = arith.constant 0 : index
    %60 = vector.load %arg8[%c0_30, %c0_31] : memref<256x128xf32, #tpu.memory_space<vmem>>, vector<256x128xf32>
    %c0_32 = arith.constant 0 : index
    %c0_33 = arith.constant 0 : index
    %61 = vector.load %arg9[%c0_32, %c0_33] : memref<512x128xf32, #tpu.memory_space<vmem>>, vector<512x128xf32>
    %c0_34 = arith.constant 0 : index
    %c0_35 = arith.constant 0 : index
    %62 = vector.load %arg10[%c0_34, %c0_35] : memref<1x128xf32, #tpu.memory_space<vmem>>, vector<1x128xf32>
    %cst_36 = arith.constant 0.000000e+00 : f32
    %63 = vector.broadcast %cst_36 : f32 to vector<1x128x256xf32>
    %64 = vector.extract_strided_slice %59 {offsets = [1, 0, 0], sizes = [1, 128, 256], strides = [1, 1, 1]} : vector<2x128x256xf32> to vector<1x128x256xf32>
    %65 = tpu.concatenate %64, %63 in 0 : vector<1x128x256xf32>, vector<1x128x256xf32> -> vector<2x128x256xf32>
    %66 = vector.shape_cast %59 : vector<2x128x256xf32> to vector<256x256xf32>
    %67 = tpu.concatenate %59, %65 in 2 : vector<2x128x256xf32>, vector<2x128x256xf32> -> vector<2x128x512xf32>
    %68 = vector.shape_cast %67 : vector<2x128x512xf32> to vector<256x512xf32>
    %cst_37 = arith.constant dense<0.000000e+00> : vector<256x128xf32>
    %69 = tpu.matmul %66, %60, %cst_37 {dimension_numbers = #tpu.dot_dimension_numbers<[1], [0], [0], [1], [0, 0, 1, 1], [], []>} : vector<256x256xf32>, vector<256x128xf32>, vector<256x128xf32> -> vector<256x128xf32>
    %70 = vector.broadcast %62 : vector<1x128xf32> to vector<256x128xf32>
    %71 = arith.addf %69, %70 : vector<256x128xf32>
    %cst_38 = arith.constant 0.000000e+00 : f32
    %72 = vector.broadcast %cst_38 : f32 to vector<256x128xf32>
    %73 = arith.maximumf %71, %72 : vector<256x128xf32>
    %74 = vector.shape_cast %73 : vector<256x128xf32> to vector<2x128x128xf32>
    %cst_39 = arith.constant dense<0.000000e+00> : vector<256x128xf32>
    %75 = tpu.matmul %68, %61, %cst_39 {dimension_numbers = #tpu.dot_dimension_numbers<[1], [0], [0], [1], [0, 0, 1, 1], [], []>} : vector<256x512xf32>, vector<512x128xf32>, vector<256x128xf32> -> vector<256x128xf32>
    %76 = vector.broadcast %62 : vector<1x128xf32> to vector<256x128xf32>
    %77 = arith.addf %75, %76 : vector<256x128xf32>
    %cst_40 = arith.constant 0.000000e+00 : f32
    %78 = vector.broadcast %cst_40 : f32 to vector<256x128xf32>
    %79 = arith.maximumf %77, %78 : vector<256x128xf32>
    %80 = vector.shape_cast %79 : vector<256x128xf32> to vector<2x128x128xf32>
    %81 = vector.shape_cast %74 : vector<2x128x128xf32> to vector<2x1x128x128xf32>
    %82 = vector.shape_cast %80 : vector<2x128x128xf32> to vector<2x1x128x128xf32>
    %83 = tpu.concatenate %81, %82 in 1 : vector<2x1x128x128xf32>, vector<2x1x128x128xf32> -> vector<2x2x128x128xf32>
    %84 = vector.shape_cast %83 : vector<2x2x128x128xf32> to vector<4x128x128xf32>
    %85 = vector.extract_strided_slice %84 {offsets = [0, 0, 0], sizes = [3, 128, 128], strides = [1, 1, 1]} : vector<4x128x128xf32> to vector<3x128x128xf32>
    %c0_41 = arith.constant 0 : index
    %c0_42 = arith.constant 0 : index
    %86 = vector.load %arg11[%c0_41, %c0_42] : memref<128x64xf32, #tpu.memory_space<vmem>>, vector<128x64xf32>
    %c0_43 = arith.constant 0 : index
    %c0_44 = arith.constant 0 : index
    %87 = vector.load %arg12[%c0_43, %c0_44] : memref<256x64xf32, #tpu.memory_space<vmem>>, vector<256x64xf32>
    %c0_45 = arith.constant 0 : index
    %c0_46 = arith.constant 0 : index
    %88 = vector.load %arg13[%c0_45, %c0_46] : memref<1x64xf32, #tpu.memory_space<vmem>>, vector<1x64xf32>
    %cst_47 = arith.constant 0.000000e+00 : f32
    %89 = vector.broadcast %cst_47 : f32 to vector<1x128x128xf32>
    %90 = vector.extract_strided_slice %85 {offsets = [1, 0, 0], sizes = [2, 128, 128], strides = [1, 1, 1]} : vector<3x128x128xf32> to vector<2x128x128xf32>
    %91 = tpu.concatenate %90, %89 in 0 : vector<2x128x128xf32>, vector<1x128x128xf32> -> vector<3x128x128xf32>
    %92 = vector.shape_cast %85 : vector<3x128x128xf32> to vector<384x128xf32>
    %93 = tpu.concatenate %85, %91 in 2 : vector<3x128x128xf32>, vector<3x128x128xf32> -> vector<3x128x256xf32>
    %94 = vector.shape_cast %93 : vector<3x128x256xf32> to vector<384x256xf32>
    %cst_48 = arith.constant dense<0.000000e+00> : vector<384x64xf32>
    %95 = tpu.matmul %92, %86, %cst_48 {dimension_numbers = #tpu.dot_dimension_numbers<[1], [0], [0], [1], [0, 0, 1, 1], [], []>} : vector<384x128xf32>, vector<128x64xf32>, vector<384x64xf32> -> vector<384x64xf32>
    %96 = vector.broadcast %88 : vector<1x64xf32> to vector<384x64xf32>
    %97 = arith.addf %95, %96 : vector<384x64xf32>
    %cst_49 = arith.constant 0.000000e+00 : f32
    %98 = vector.broadcast %cst_49 : f32 to vector<384x64xf32>
    %99 = arith.maximumf %97, %98 : vector<384x64xf32>
    %100 = vector.shape_cast %99 : vector<384x64xf32> to vector<3x128x64xf32>
    %cst_50 = arith.constant dense<0.000000e+00> : vector<384x64xf32>
    %101 = tpu.matmul %94, %87, %cst_50 {dimension_numbers = #tpu.dot_dimension_numbers<[1], [0], [0], [1], [0, 0, 1, 1], [], []>} : vector<384x256xf32>, vector<256x64xf32>, vector<384x64xf32> -> vector<384x64xf32>
    %102 = vector.broadcast %88 : vector<1x64xf32> to vector<384x64xf32>
    %103 = arith.addf %101, %102 : vector<384x64xf32>
    %cst_51 = arith.constant 0.000000e+00 : f32
    %104 = vector.broadcast %cst_51 : f32 to vector<384x64xf32>
    %105 = arith.maximumf %103, %104 : vector<384x64xf32>
    %106 = vector.shape_cast %105 : vector<384x64xf32> to vector<3x128x64xf32>
    %107 = vector.shape_cast %100 : vector<3x128x64xf32> to vector<3x1x128x64xf32>
    %108 = vector.shape_cast %106 : vector<3x128x64xf32> to vector<3x1x128x64xf32>
    %109 = tpu.concatenate %107, %108 in 1 : vector<3x1x128x64xf32>, vector<3x1x128x64xf32> -> vector<3x2x128x64xf32>
    %110 = vector.shape_cast %109 : vector<3x2x128x64xf32> to vector<6x128x64xf32>
    %111 = vector.extract_strided_slice %110 {offsets = [0, 0, 0], sizes = [5, 128, 64], strides = [1, 1, 1]} : vector<6x128x64xf32> to vector<5x128x64xf32>
    %c0_52 = arith.constant 0 : index
    %c0_53 = arith.constant 0 : index
    %112 = vector.load %arg16[%c0_52, %c0_53] : memref<1x128xf32, #tpu.memory_space<vmem>>, vector<1x128xf32>
    %cst_54 = arith.constant 0.000000e+00 : f32
    %113 = vector.broadcast %cst_54 : f32 to vector<1x128x64xf32>
    %114 = vector.extract_strided_slice %111 {offsets = [0, 0, 0], sizes = [4, 128, 64], strides = [1, 1, 1]} : vector<5x128x64xf32> to vector<4x128x64xf32>
    %115 = tpu.concatenate %113, %114 in 0 : vector<1x128x64xf32>, vector<4x128x64xf32> -> vector<5x128x64xf32>
    %116 = vector.extract_strided_slice %111 {offsets = [1, 0, 0], sizes = [4, 128, 64], strides = [1, 1, 1]} : vector<5x128x64xf32> to vector<4x128x64xf32>
    %117 = tpu.concatenate %116, %113 in 0 : vector<4x128x64xf32>, vector<1x128x64xf32> -> vector<5x128x64xf32>
    %118 = vector.shape_cast %111 : vector<5x128x64xf32> to vector<640x64xf32>
    %c0_55 = arith.constant 0 : index
    %c0_56 = arith.constant 0 : index
    %c0_57 = arith.constant 0 : index
    %119 = vector.load %arg14[%c0_55, %c0_56, %c0_57] : memref<2x64x128xf32, #tpu.memory_space<vmem>>, vector<1x64x128xf32>
    %120 = vector.shape_cast %119 : vector<1x64x128xf32> to vector<64x128xf32>
    %cst_58 = arith.constant dense<0.000000e+00> : vector<640x128xf32>
    %121 = tpu.matmul %118, %120, %cst_58 {dimension_numbers = #tpu.dot_dimension_numbers<[1], [0], [0], [1], [0, 0, 1, 1], [], []>} : vector<640x64xf32>, vector<64x128xf32>, vector<640x128xf32> -> vector<640x128xf32>
    %122 = vector.shape_cast %115 : vector<5x128x64xf32> to vector<640x64xf32>
    %c1_59 = arith.constant 1 : index
    %c0_60 = arith.constant 0 : index
    %c0_61 = arith.constant 0 : index
    %123 = vector.load %arg14[%c1_59, %c0_60, %c0_61] : memref<2x64x128xf32, #tpu.memory_space<vmem>>, vector<1x64x128xf32>
    %124 = vector.shape_cast %123 : vector<1x64x128xf32> to vector<64x128xf32>
    %cst_62 = arith.constant dense<0.000000e+00> : vector<640x128xf32>
    %125 = tpu.matmul %122, %124, %cst_62 {dimension_numbers = #tpu.dot_dimension_numbers<[1], [0], [0], [1], [0, 0, 1, 1], [], []>} : vector<640x64xf32>, vector<64x128xf32>, vector<640x128xf32> -> vector<640x128xf32>
    %126 = arith.addf %121, %125 : vector<640x128xf32>
    %127 = vector.broadcast %112 : vector<1x128xf32> to vector<640x128xf32>
    %128 = arith.addf %126, %127 : vector<640x128xf32>
    %c0_63 = arith.constant 0 : index
    %c0_64 = arith.constant 0 : index
    %c0_65 = arith.constant 0 : index
    %129 = vector.load %arg15[%c0_63, %c0_64, %c0_65] : memref<2x64x128xf32, #tpu.memory_space<vmem>>, vector<1x64x128xf32>
    %130 = vector.shape_cast %129 : vector<1x64x128xf32> to vector<64x128xf32>
    %cst_66 = arith.constant dense<0.000000e+00> : vector<640x128xf32>
    %131 = tpu.matmul %118, %130, %cst_66 {dimension_numbers = #tpu.dot_dimension_numbers<[1], [0], [0], [1], [0, 0, 1, 1], [], []>} : vector<640x64xf32>, vector<64x128xf32>, vector<640x128xf32> -> vector<640x128xf32>
    %132 = vector.shape_cast %117 : vector<5x128x64xf32> to vector<640x64xf32>
    %c1_67 = arith.constant 1 : index
    %c0_68 = arith.constant 0 : index
    %c0_69 = arith.constant 0 : index
    %133 = vector.load %arg15[%c1_67, %c0_68, %c0_69] : memref<2x64x128xf32, #tpu.memory_space<vmem>>, vector<1x64x128xf32>
    %134 = vector.shape_cast %133 : vector<1x64x128xf32> to vector<64x128xf32>
    %cst_70 = arith.constant dense<0.000000e+00> : vector<640x128xf32>
    %135 = tpu.matmul %132, %134, %cst_70 {dimension_numbers = #tpu.dot_dimension_numbers<[1], [0], [0], [1], [0, 0, 1, 1], [], []>} : vector<640x64xf32>, vector<64x128xf32>, vector<640x128xf32> -> vector<640x128xf32>
    %136 = arith.addf %131, %135 : vector<640x128xf32>
    %137 = vector.broadcast %112 : vector<1x128xf32> to vector<640x128xf32>
    %138 = arith.addf %136, %137 : vector<640x128xf32>
    %139 = tpu.transpose %128, [1, 0] : vector<640x128xf32> -> vector<128x640xf32>
    %140 = tpu.transpose %138, [1, 0] : vector<640x128xf32> -> vector<128x640xf32>
    %141 = vector.extract_strided_slice %139 {offsets = [0, 0], sizes = [8, 640], strides = [1, 1]} : vector<128x640xf32> to vector<8x640xf32>
    %c0_71 = arith.constant 0 : index
    %c0_72 = arith.constant 0 : index
    %142 = vector.load %arg17[%c0_71, %c0_72] : memref<8x640xf32, #tpu.memory_space<vmem>>, vector<8x640xf32>
    tpu.vector_store %arg17[%c0_71, %c0_72], %141 {strides = array<i32>} : memref<8x640xf32, #tpu.memory_space<vmem>>, vector<8x640xf32>,
    %143 = vector.extract_strided_slice %140 {offsets = [0, 0], sizes = [8, 640], strides = [1, 1]} : vector<128x640xf32> to vector<8x640xf32>
    %c0_73 = arith.constant 0 : index
    %c0_74 = arith.constant 0 : index
    %144 = vector.load %arg18[%c0_73, %c0_74] : memref<8x640xf32, #tpu.memory_space<vmem>>, vector<8x640xf32>
    tpu.vector_store %arg18[%c0_73, %c0_74], %143 {strides = array<i32>} : memref<8x640xf32, #tpu.memory_space<vmem>>, vector<8x640xf32>,
    return
  }
  func.func @transform_0(%arg0: i32) -> (i32, i32, i32) {
    %c0_i32 = arith.constant 0 : i32
    %c0_i32_0 = arith.constant 0 : i32
    %c0_i32_1 = arith.constant 0 : i32
    return %c0_i32, %arg0, %c0_i32_0 : i32, i32, i32
  }
  func.func @transform_1(%arg0: i32) -> (i32, i32) {
    %c0_i32 = arith.constant 0 : i32
    %c0_i32_0 = arith.constant 0 : i32
    %c0_i32_1 = arith.constant 0 : i32
    return %c0_i32, %c0_i32_0 : i32, i32
  }
  func.func @transform_2(%arg0: i32) -> (i32, i32) {
    %c0_i32 = arith.constant 0 : i32
    %c0_i32_0 = arith.constant 0 : i32
    %c0_i32_1 = arith.constant 0 : i32
    return %c0_i32, %c0_i32_0 : i32, i32
  }
  func.func @transform_3(%arg0: i32) -> (i32, i32, i32) {
    %c0_i32 = arith.constant 0 : i32
    %c0_i32_0 = arith.constant 0 : i32
    %c0_i32_1 = arith.constant 0 : i32
    %c0_i32_2 = arith.constant 0 : i32
    return %c0_i32, %c0_i32_0, %c0_i32_1 : i32, i32, i32
  }
  func.func @transform_4(%arg0: i32) -> (i32, i32) {
    %c0_i32 = arith.constant 0 : i32
    %c0_i32_0 = arith.constant 0 : i32
    %c0_i32_1 = arith.constant 0 : i32
    return %c0_i32, %c0_i32_0 : i32, i32
  }
  func.func @transform_5(%arg0: i32) -> (i32, i32) {
    %c0_i32 = arith.constant 0 : i32
    %c0_i32_0 = arith.constant 0 : i32
    %c0_i32_1 = arith.constant 0 : i32
    return %c0_i32, %c0_i32_0 : i32, i32
  }
  func.func @transform_6(%arg0: i32) -> (i32, i32) {
    %c0_i32 = arith.constant 0 : i32
    %c0_i32_0 = arith.constant 0 : i32
    %c0_i32_1 = arith.constant 0 : i32
    return %c0_i32, %c0_i32_0 : i32, i32
  }
  func.func @transform_7(%arg0: i32) -> (i32, i32) {
    %c0_i32 = arith.constant 0 : i32
    %c0_i32_0 = arith.constant 0 : i32
    %c0_i32_1 = arith.constant 0 : i32
    return %c0_i32, %c0_i32_0 : i32, i32
  }
  func.func @transform_8(%arg0: i32) -> (i32, i32) {
    %c0_i32 = arith.constant 0 : i32
    %c0_i32_0 = arith.constant 0 : i32
    %c0_i32_1 = arith.constant 0 : i32
    return %c0_i32, %c0_i32_0 : i32, i32
  }
  func.func @transform_9(%arg0: i32) -> (i32, i32) {
    %c0_i32 = arith.constant 0 : i32
    %c0_i32_0 = arith.constant 0 : i32
    %c0_i32_1 = arith.constant 0 : i32
    return %c0_i32, %c0_i32_0 : i32, i32
  }
  func.func @transform_10(%arg0: i32) -> (i32, i32) {
    %c0_i32 = arith.constant 0 : i32
    %c0_i32_0 = arith.constant 0 : i32
    %c0_i32_1 = arith.constant 0 : i32
    return %c0_i32, %c0_i32_0 : i32, i32
  }
  func.func @transform_11(%arg0: i32) -> (i32, i32) {
    %c0_i32 = arith.constant 0 : i32
    %c0_i32_0 = arith.constant 0 : i32
    %c0_i32_1 = arith.constant 0 : i32
    return %c0_i32, %c0_i32_0 : i32, i32
  }
  func.func @transform_12(%arg0: i32) -> (i32, i32) {
    %c0_i32 = arith.constant 0 : i32
    %c0_i32_0 = arith.constant 0 : i32
    %c0_i32_1 = arith.constant 0 : i32
    return %c0_i32, %c0_i32_0 : i32, i32
  }
  func.func @transform_13(%arg0: i32) -> (i32, i32, i32) {
    %c0_i32 = arith.constant 0 : i32
    %c0_i32_0 = arith.constant 0 : i32
    %c0_i32_1 = arith.constant 0 : i32
    %c0_i32_2 = arith.constant 0 : i32
    return %c0_i32, %c0_i32_0, %c0_i32_1 : i32, i32, i32
  }
  func.func @transform_14(%arg0: i32) -> (i32, i32, i32) {
    %c0_i32 = arith.constant 0 : i32
    %c0_i32_0 = arith.constant 0 : i32
    %c0_i32_1 = arith.constant 0 : i32
    %c0_i32_2 = arith.constant 0 : i32
    return %c0_i32, %c0_i32_0, %c0_i32_1 : i32, i32, i32
  }
  func.func @transform_15(%arg0: i32) -> (i32, i32) {
    %c0_i32 = arith.constant 0 : i32
    %c0_i32_0 = arith.constant 0 : i32
    %c0_i32_1 = arith.constant 0 : i32
    return %c0_i32, %c0_i32_0 : i32, i32
  }
  func.func @transform_16(%arg0: i32) -> (i32, i32) {
    %c0_i32 = arith.constant 0 : i32
    %c0_i32_0 = arith.constant 0 : i32
    return %c0_i32, %arg0 : i32, i32
  }
  func.func @transform_17(%arg0: i32) -> (i32, i32) {
    %c0_i32 = arith.constant 0 : i32
    %c0_i32_0 = arith.constant 0 : i32
    return %c0_i32, %arg0 : i32, i32
  }
}

</mosaic_0001>

<llo_original>
// kernel: vertice_net_forward.1
$region0: #{vertice_net_forward.1}
  #allocation0 [shape = 'u32[]', space=smem, size = 0x4, offset = 0x4, fixed_abs, tag = 'smem constant byte address 0x4 - core index']
  #allocation1 [shape = 'u32[144,128]{1,0:T(1,128)}', space=vmem, size = 0x12000, scoped, tag = 'internal scratch']
  %s0 = inlined_call_operand.vmem [shape: f32[8,128,24], index: 0, kind: input, shape index: {}]
  %s1 = inlined_call_operand.vmem [shape: f32[24,64], index: 1, kind: input, shape index: {}]
  %s2 = inlined_call_operand.vmem [shape: f32[1,64], index: 2, kind: input, shape index: {}]
  %s3 = inlined_call_operand.vmem [shape: f32[3,64,128], index: 3, kind: input, shape index: {}]
  %s4 = inlined_call_operand.vmem [shape: f32[1,128], index: 4, kind: input, shape index: {}]
  %s5 = inlined_call_operand.vmem [shape: f32[384,256], index: 5, kind: input, shape index: {}]
  %s6 = inlined_call_operand.vmem [shape: f32[1,256], index: 6, kind: input, shape index: {}]
  %s7 = inlined_call_operand.vmem [shape: f32[256,128], index: 7, kind: input, shape index: {}]
  %s8 = inlined_call_operand.vmem [shape: f32[512,128], index: 8, kind: input, shape index: {}]
  %s9 = inlined_call_operand.vmem [shape: f32[1,128], index: 9, kind: input, shape index: {}]
  %s10 = inlined_call_operand.vmem [shape: f32[128,64], index: 10, kind: input, shape index: {}]
  %s11 = inlined_call_operand.vmem [shape: f32[256,64], index: 11, kind: input, shape index: {}]
  %s12 = inlined_call_operand.vmem [shape: f32[1,64], index: 12, kind: input, shape index: {}]
  %s13 = inlined_call_operand.vmem [shape: f32[2,64,128], index: 13, kind: input, shape index: {}]
  %s14 = inlined_call_operand.vmem [shape: f32[2,64,128], index: 14, kind: input, shape index: {}]
  %s15 = inlined_call_operand.vmem [shape: f32[1,128], index: 15, kind: input, shape index: {}]
  %s16 = inlined_call_operand.vmem [shape: f32[8,640], index: 16, kind: output, shape index: {0}]
  %s17 = inlined_call_operand.vmem [shape: f32[8,640], index: 17, kind: output, shape index: {1}]
  %18 = xla_tuple %s16, %s17
  %s19 = sld [smem:[#allocation0]]
  $region82: #{vertice_net_forward.1} parent=0
    _
  %s21 = ssub.s32 1, %s19
  %s22 = scalar_select 0, %s21, %s19
  // Predicated region
  $region2: #{vertice_net_forward.1} parent=0 // pred_check
    _
  $region3: #{vertice_net_forward.1} parent=0 // pred_check_branch
    %24 = sbr.rel (0) target = $region5
  $region4: #{vertice_net_forward.1} parent=0 // pred_region
    _
  $region5: #{vertice_net_forward.1} parent=0 // pred_fallthru
    _
  // Predicated region
  $region6: #{vertice_net_forward.1} parent=0 // pred_check
    _
  $region7: #{vertice_net_forward.1} parent=0 // pred_check_branch
    %26 = sbr.rel (0) target = $region9
  $region8: #{vertice_net_forward.1} parent=0 // pred_region
    _
  $region9: #{vertice_net_forward.1} parent=0 // pred_fallthru
    _
  // Predicated region
  $region10: #{vertice_net_forward.1} parent=0 // pred_check
    _
  $region11: #{vertice_net_forward.1} parent=0 // pred_check_branch
    %28 = sbr.rel (0) target = $region13
  $region12: #{vertice_net_forward.1} parent=0 // pred_region
    _
  $region13: #{vertice_net_forward.1} parent=0 // pred_fallthru
    _
  // Predicated region
  $region14: #{vertice_net_forward.1} parent=0 // pred_check
    _
  $region15: #{vertice_net_forward.1} parent=0 // pred_check_branch
    %30 = sbr.rel (0) target = $region17
  $region16: #{vertice_net_forward.1} parent=0 // pred_region
    _
  $region17: #{vertice_net_forward.1} parent=0 // pred_fallthru
    _
  // Predicated region
  $region18: #{vertice_net_forward.1} parent=0 // pred_check
    _
  $region19: #{vertice_net_forward.1} parent=0 // pred_check_branch
    %32 = sbr.rel (0) target = $region21
  $region20: #{vertice_net_forward.1} parent=0 // pred_region
    _
  $region21: #{vertice_net_forward.1} parent=0 // pred_fallthru
    _
  // Predicated region
  $region22: #{vertice_net_forward.1} parent=0 // pred_check
    _
  $region23: #{vertice_net_forward.1} parent=0 // pred_check_branch
    %34 = sbr.rel (0) target = $region25
  $region24: #{vertice_net_forward.1} parent=0 // pred_region
    _
  $region25: #{vertice_net_forward.1} parent=0 // pred_fallthru
    _
  // Predicated region
  $region26: #{vertice_net_forward.1} parent=0 // pred_check
    _
  $region27: #{vertice_net_forward.1} parent=0 // pred_check_branch
    %36 = sbr.rel (0) target = $region29
  $region28: #{vertice_net_forward.1} parent=0 // pred_region
    _
  $region29: #{vertice_net_forward.1} parent=0 // pred_fallthru
    _
  // Predicated region
  $region30: #{vertice_net_forward.1} parent=0 // pred_check
    _
  $region31: #{vertice_net_forward.1} parent=0 // pred_check_branch
    %38 = sbr.rel (0) target = $region33
  $region32: #{vertice_net_forward.1} parent=0 // pred_region
    _
  $region33: #{vertice_net_forward.1} parent=0 // pred_fallthru
    _
  // Predicated region
  $region34: #{vertice_net_forward.1} parent=0 // pred_check
    _
  $region35: #{vertice_net_forward.1} parent=0 // pred_check_branch
    %40 = sbr.rel (0) target = $region37
  $region36: #{vertice_net_forward.1} parent=0 // pred_region
    _
  $region37: #{vertice_net_forward.1} parent=0 // pred_fallthru
    _
  // Predicated region
  $region38: #{vertice_net_forward.1} parent=0 // pred_check
    _
  $region39: #{vertice_net_forward.1} parent=0 // pred_check_branch
    %42 = sbr.rel (0) target = $region41
  $region40: #{vertice_net_forward.1} parent=0 // pred_region
    _
  $region41: #{vertice_net_forward.1} parent=0 // pred_fallthru
    _
  // Predicated region
  $region42: #{vertice_net_forward.1} parent=0 // pred_check
    _
  $region43: #{vertice_net_forward.1} parent=0 // pred_check_branch
    %44 = sbr.rel (0) target = $region45
  $region44: #{vertice_net_forward.1} parent=0 // pred_region
    _
  $region45: #{vertice_net_forward.1} parent=0 // pred_fallthru
    _
  // Predicated region
  $region46: #{vertice_net_forward.1} parent=0 // pred_check
    _
  $region47: #{vertice_net_forward.1} parent=0 // pred_check_branch
    %46 = sbr.rel (0) target = $region49
  $region48: #{vertice_net_forward.1} parent=0 // pred_region
    _
  $region49: #{vertice_net_forward.1} parent=0 // pred_fallthru
    _
  // Predicated region
  $region50: #{vertice_net_forward.1} parent=0 // pred_check
    _
  $region51: #{vertice_net_forward.1} parent=0 // pred_check_branch
    %48 = sbr.rel (0) target = $region53
  $region52: #{vertice_net_forward.1} parent=0 // pred_region
    _
  $region53: #{vertice_net_forward.1} parent=0 // pred_fallthru
    _
  // Predicated region
  $region54: #{vertice_net_forward.1} parent=0 // pred_check
    _
  $region55: #{vertice_net_forward.1} parent=0 // pred_check_branch
    %50 = sbr.rel (0) target = $region57
  $region56: #{vertice_net_forward.1} parent=0 // pred_region
    _
  $region57: #{vertice_net_forward.1} parent=0 // pred_fallthru
    _
  // Predicated region
  $region58: #{vertice_net_forward.1} parent=0 // pred_check
    _
  $region59: #{vertice_net_forward.1} parent=0 // pred_check_branch
    %52 = sbr.rel (0) target = $region61
  $region60: #{vertice_net_forward.1} parent=0 // pred_region
    _
  $region61: #{vertice_net_forward.1} parent=0 // pred_fallthru
    _
  // Predicated region
  $region62: #{vertice_net_forward.1} parent=0 // pred_check
    _
  $region63: #{vertice_net_forward.1} parent=0 // pred_check_branch
    %54 = sbr.rel (0) target = $region65
  $region64: #{vertice_net_forward.1} parent=0 // pred_region
    _
  $region65: #{vertice_net_forward.1} parent=0 // pred_fallthru
    _
  %v55 = vld [vmem:[%s0] sm:$0xff]
  %v56 = vld [vmem:[%s0 + $0x8] sm:$0xff]
  %v57 = vld [vmem:[%s0 + $0x10] sm:$0xff]
  %v58 = vld [vmem:[%s0 + $0x18] sm:$0xff]
  %v59 = vld [vmem:[%s0 + $0x20] sm:$0xff]
  %v60 = vld [vmem:[%s0 + $0x28] sm:$0xff]
  %v61 = vld [vmem:[%s0 + $0x30] sm:$0xff]
  %v62 = vld [vmem:[%s0 + $0x38] sm:$0xff]
  %v63 = vld [vmem:[%s0 + $0x40] sm:$0xff]
  %v64 = vld [vmem:[%s0 + $0x48] sm:$0xff]
  %v65 = vld [vmem:[%s0 + $0x50] sm:$0xff]
  %v66 = vld [vmem:[%s0 + $0x58] sm:$0xff]
  %v67 = vld [vmem:[%s0 + $0x60] sm:$0xff]
  %v68 = vld [vmem:[%s0 + $0x68] sm:$0xff]
  %v69 = vld [vmem:[%s0 + $0x70] sm:$0xff]
  %v70 = vld [vmem:[%s0 + $0x78] sm:$0xff]
  %v71 = vld [vmem:[%s0 + $0x80] sm:$0xff]
  %v72 = vld [vmem:[%s0 + $0x88] sm:$0xff]
  %v73 = vld [vmem:[%s0 + $0x90] sm:$0xff]
  %v74 = vld [vmem:[%s0 + $0x98] sm:$0xff]
  %v75 = vld [vmem:[%s0 + $0xa0] sm:$0xff]
  %v76 = vld [vmem:[%s0 + $0xa8] sm:$0xff]
  %v77 = vld [vmem:[%s0 + $0xb0] sm:$0xff]
  %v78 = vld [vmem:[%s0 + $0xb8] sm:$0xff]
  %v79 = vld [vmem:[%s0 + $0xc0] sm:$0xff]
  %v80 = vld [vmem:[%s0 + $0xc8] sm:$0xff]
  %v81 = vld [vmem:[%s0 + $0xd0] sm:$0xff]
  %v82 = vld [vmem:[%s0 + $0xd8] sm:$0xff]
  %v83 = vld [vmem:[%s0 + $0xe0] sm:$0xff]
  %v84 = vld [vmem:[%s0 + $0xe8] sm:$0xff]
  %v85 = vld [vmem:[%s0 + $0xf0] sm:$0xff]
  %v86 = vld [vmem:[%s0 + $0xf8] sm:$0xff]
  %v87 = vld [vmem:[%s0 + $0x100] sm:$0xff]
  %v88 = vld [vmem:[%s0 + $0x108] sm:$0xff]
  %v89 = vld [vmem:[%s0 + $0x110] sm:$0xff]
  %v90 = vld [vmem:[%s0 + $0x118] sm:$0xff]
  %v91 = vld [vmem:[%s0 + $0x120] sm:$0xff]
  %v92 = vld [vmem:[%s0 + $0x128] sm:$0xff]
  %v93 = vld [vmem:[%s0 + $0x130] sm:$0xff]
  %v94 = vld [vmem:[%s0 + $0x138] sm:$0xff]
  %v95 = vld [vmem:[%s0 + $0x140] sm:$0xff]
  %v96 = vld [vmem:[%s0 + $0x148] sm:$0xff]
  %v97 = vld [vmem:[%s0 + $0x150] sm:$0xff]
  %v98 = vld [vmem:[%s0 + $0x158] sm:$0xff]
  %v99 = vld [vmem:[%s0 + $0x160] sm:$0xff]
  %v100 = vld [vmem:[%s0 + $0x168] sm:$0xff]
  %v101 = vld [vmem:[%s0 + $0x170] sm:$0xff]
  %v102 = vld [vmem:[%s0 + $0x178] sm:$0xff]
  %v103 = vld [vmem:[%s0 + $0x180] sm:$0xff]
  %v104 = vld [vmem:[%s0 + $0x188] sm:$0xff]
  %v105 = vld [vmem:[%s0 + $0x190] sm:$0xff]
  %v106 = vld [vmem:[%s0 + $0x198] sm:$0xff]
  %v107 = vld [vmem:[%s0 + $0x1a0] sm:$0xff]
  %v108 = vld [vmem:[%s0 + $0x1a8] sm:$0xff]
  %v109 = vld [vmem:[%s0 + $0x1b0] sm:$0xff]
  %v110 = vld [vmem:[%s0 + $0x1b8] sm:$0xff]
  %v111 = vld [vmem:[%s0 + $0x1c0] sm:$0xff]
  %v112 = vld [vmem:[%s0 + $0x1c8] sm:$0xff]
  %v113 = vld [vmem:[%s0 + $0x1d0] sm:$0xff]
  %v114 = vld [vmem:[%s0 + $0x1d8] sm:$0xff]
  %v115 = vld [vmem:[%s0 + $0x1e0] sm:$0xff]
  %v116 = vld [vmem:[%s0 + $0x1e8] sm:$0xff]
  %v117 = vld [vmem:[%s0 + $0x1f0] sm:$0xff]
  %v118 = vld [vmem:[%s0 + $0x1f8] sm:$0xff]
  %v119 = vld [vmem:[%s0 + $0x200] sm:$0xff]
  %v120 = vld [vmem:[%s0 + $0x208] sm:$0xff]
  %v121 = vld [vmem:[%s0 + $0x210] sm:$0xff]
  %v122 = vld [vmem:[%s0 + $0x218] sm:$0xff]
  %v123 = vld [vmem:[%s0 + $0x220] sm:$0xff]
  %v124 = vld [vmem:[%s0 + $0x228] sm:$0xff]
  %v125 = vld [vmem:[%s0 + $0x230] sm:$0xff]
  %v126 = vld [vmem:[%s0 + $0x238] sm:$0xff]
  %v127 = vld [vmem:[%s0 + $0x240] sm:$0xff]
  %v128 = vld [vmem:[%s0 + $0x248] sm:$0xff]
  %v129 = vld [vmem:[%s0 + $0x250] sm:$0xff]
  %v130 = vld [vmem:[%s0 + $0x258] sm:$0xff]
  %v131 = vld [vmem:[%s0 + $0x260] sm:$0xff]
  %v132 = vld [vmem:[%s0 + $0x268] sm:$0xff]
  %v133 = vld [vmem:[%s0 + $0x270] sm:$0xff]
  %v134 = vld [vmem:[%s0 + $0x278] sm:$0xff]
  %v135 = vld [vmem:[%s0 + $0x280] sm:$0xff]
  %v136 = vld [vmem:[%s0 + $0x288] sm:$0xff]
  %v137 = vld [vmem:[%s0 + $0x290] sm:$0xff]
  %v138 = vld [vmem:[%s0 + $0x298] sm:$0xff]
  %v139 = vld [vmem:[%s0 + $0x2a0] sm:$0xff]
  %v140 = vld [vmem:[%s0 + $0x2a8] sm:$0xff]
  %v141 = vld [vmem:[%s0 + $0x2b0] sm:$0xff]
  %v142 = vld [vmem:[%s0 + $0x2b8] sm:$0xff]
  %v143 = vld [vmem:[%s0 + $0x2c0] sm:$0xff]
  %v144 = vld [vmem:[%s0 + $0x2c8] sm:$0xff]
  %v145 = vld [vmem:[%s0 + $0x2d0] sm:$0xff]
  %v146 = vld [vmem:[%s0 + $0x2d8] sm:$0xff]
  %v147 = vld [vmem:[%s0 + $0x2e0] sm:$0xff]
  %v148 = vld [vmem:[%s0 + $0x2e8] sm:$0xff]
  %v149 = vld [vmem:[%s0 + $0x2f0] sm:$0xff]
  %v150 = vld [vmem:[%s0 + $0x2f8] sm:$0xff]
  %v151 = vld [vmem:[%s0 + $0x300] sm:$0xff]
  %v152 = vld [vmem:[%s0 + $0x308] sm:$0xff]
  %v153 = vld [vmem:[%s0 + $0x310] sm:$0xff]
  %v154 = vld [vmem:[%s0 + $0x318] sm:$0xff]
  %v155 = vld [vmem:[%s0 + $0x320] sm:$0xff]
  %v156 = vld [vmem:[%s0 + $0x328] sm:$0xff]
  %v157 = vld [vmem:[%s0 + $0x330] sm:$0xff]
  %v158 = vld [vmem:[%s0 + $0x338] sm:$0xff]
  %v159 = vld [vmem:[%s0 + $0x340] sm:$0xff]
  %v160 = vld [vmem:[%s0 + $0x348] sm:$0xff]
  %v161 = vld [vmem:[%s0 + $0x350] sm:$0xff]
  %v162 = vld [vmem:[%s0 + $0x358] sm:$0xff]
  %v163 = vld [vmem:[%s0 + $0x360] sm:$0xff]
  %v164 = vld [vmem:[%s0 + $0x368] sm:$0xff]
  %v165 = vld [vmem:[%s0 + $0x370] sm:$0xff]
  %v166 = vld [vmem:[%s0 + $0x378] sm:$0xff]
  %v167 = vld [vmem:[%s0 + $0x380] sm:$0xff]
  %v168 = vld [vmem:[%s0 + $0x388] sm:$0xff]
  %v169 = vld [vmem:[%s0 + $0x390] sm:$0xff]
  %v170 = vld [vmem:[%s0 + $0x398] sm:$0xff]
  %v171 = vld [vmem:[%s0 + $0x3a0] sm:$0xff]
  %v172 = vld [vmem:[%s0 + $0x3a8] sm:$0xff]
  %v173 = vld [vmem:[%s0 + $0x3b0] sm:$0xff]
  %v174 = vld [vmem:[%s0 + $0x3b8] sm:$0xff]
  %v175 = vld [vmem:[%s0 + $0x3c0] sm:$0xff]
  %v176 = vld [vmem:[%s0 + $0x3c8] sm:$0xff]
  %v177 = vld [vmem:[%s0 + $0x3d0] sm:$0xff]
  %v178 = vld [vmem:[%s0 + $0x3d8] sm:$0xff]
  %v179 = vld [vmem:[%s0 + $0x3e0] sm:$0xff]
  %v180 = vld [vmem:[%s0 + $0x3e8] sm:$0xff]
  %v181 = vld [vmem:[%s0 + $0x3f0] sm:$0xff]
  %v182 = vld [vmem:[%s0 + $0x3f8] sm:$0xff]
  %v183 = vld [vmem:[%s1] sm:$0xff]
  %v184 = vld [vmem:[%s1 + $0x8] sm:$0xff]
  %v185 = vld [vmem:[%s1 + $0x10] sm:$0xff]
  %v186 = vld [vmem:[%s2] sm:$0x1]
  %v188 = vlaneseq
  %v189 = vshrl.u32 %v188, 7
  %v190 = vsub.s32 0, %v189
  %v191 = vrot.slane %v186, %v190
  %vm193 = vcmask 195584
  %v195 = vsel %vm193, %v55, 0
  %v198 = vsel %vm193, %v56, 0
  %v201 = vsel %vm193, %v57, 0
  %v204 = vsel %vm193, %v58, 0
  %v207 = vsel %vm193, %v59, 0
  %v210 = vsel %vm193, %v60, 0
  %v213 = vsel %vm193, %v61, 0
  %v216 = vsel %vm193, %v62, 0
  %v219 = vsel %vm193, %v63, 0
  %v222 = vsel %vm193, %v64, 0
  %v225 = vsel %vm193, %v65, 0
  %v228 = vsel %vm193, %v66, 0
  %v231 = vsel %vm193, %v67, 0
  %v234 = vsel %vm193, %v68, 0
  %v237 = vsel %vm193, %v69, 0
  %v240 = vsel %vm193, %v70, 0
  %v243 = vsel %vm193, %v71, 0
  %v246 = vsel %vm193, %v72, 0
  %v249 = vsel %vm193, %v73, 0
  %v252 = vsel %vm193, %v74, 0
  %v255 = vsel %vm193, %v75, 0
  %v258 = vsel %vm193, %v76, 0
  %v261 = vsel %vm193, %v77, 0
  %v264 = vsel %vm193, %v78, 0
  %v267 = vsel %vm193, %v79, 0
  %v270 = vsel %vm193, %v80, 0
  %v273 = vsel %vm193, %v81, 0
  %v276 = vsel %vm193, %v82, 0
  %v279 = vsel %vm193, %v83, 0
  %v282 = vsel %vm193, %v84, 0
  %v285 = vsel %vm193, %v85, 0
  %v288 = vsel %vm193, %v86, 0
  %v291 = vsel %vm193, %v87, 0
  %v294 = vsel %vm193, %v88, 0
  %v297 = vsel %vm193, %v89, 0
  %v300 = vsel %vm193, %v90, 0
  %v303 = vsel %vm193, %v91, 0
  %v306 = vsel %vm193, %v92, 0
  %v309 = vsel %vm193, %v93, 0
  %v312 = vsel %vm193, %v94, 0
  %v315 = vsel %vm193, %v95, 0
  %v318 = vsel %vm193, %v96, 0
  %v321 = vsel %vm193, %v97, 0
  %v324 = vsel %vm193, %v98, 0
  %v327 = vsel %vm193, %v99, 0
  %v330 = vsel %vm193, %v100, 0
  %v333 = vsel %vm193, %v101, 0
  %v336 = vsel %vm193, %v102, 0
  %v339 = vsel %vm193, %v103, 0
  %v342 = vsel %vm193, %v104, 0
  %v345 = vsel %vm193, %v105, 0
  %v348 = vsel %vm193, %v106, 0
  %v351 = vsel %vm193, %v107, 0
  %v354 = vsel %vm193, %v108, 0
  %v357 = vsel %vm193, %v109, 0
  %v360 = vsel %vm193, %v110, 0
  %v363 = vsel %vm193, %v111, 0
  %v366 = vsel %vm193, %v112, 0
  %v369 = vsel %vm193, %v113, 0
  %v372 = vsel %vm193, %v114, 0
  %v375 = vsel %vm193, %v115, 0
  %v378 = vsel %vm193, %v116, 0
  %v381 = vsel %vm193, %v117, 0
  %v384 = vsel %vm193, %v118, 0
  %v387 = vsel %vm193, %v119, 0
  %v390 = vsel %vm193, %v120, 0
  %v393 = vsel %vm193, %v121, 0
  %v396 = vsel %vm193, %v122, 0
  %v399 = vsel %vm193, %v123, 0
  %v402 = vsel %vm193, %v124, 0
  %v405 = vsel %vm193, %v125, 0
  %v408 = vsel %vm193, %v126, 0
  %v411 = vsel %vm193, %v127, 0
  %v414 = vsel %vm193, %v128, 0
  %v417 = vsel %vm193, %v129, 0
  %v420 = vsel %vm193, %v130, 0
  %v423 = vsel %vm193, %v131, 0
  %v426 = vsel %vm193, %v132, 0
  %v429 = vsel %vm193, %v133, 0
  %v432 = vsel %vm193, %v134, 0
  %v435 = vsel %vm193, %v135, 0
  %v438 = vsel %vm193, %v136, 0
  %v441 = vsel %vm193, %v137, 0
  %v444 = vsel %vm193, %v138, 0
  %v447 = vsel %vm193, %v139, 0
  %v450 = vsel %vm193, %v140, 0
  %v453 = vsel %vm193, %v141, 0
  %v456 = vsel %vm193, %v142, 0
  %v459 = vsel %vm193, %v143, 0
  %v462 = vsel %vm193, %v144, 0
  %v465 = vsel %vm193, %v145, 0
  %v468 = vsel %vm193, %v146, 0
  %v471 = vsel %vm193, %v147, 0
  %v474 = vsel %vm193, %v148, 0
  %v477 = vsel %vm193, %v149, 0
  %v480 = vsel %vm193, %v150, 0
  %v483 = vsel %vm193, %v151, 0
  %v486 = vsel %vm193, %v152, 0
  %v489 = vsel %vm193, %v153, 0
  %v492 = vsel %vm193, %v154, 0
  %v495 = vsel %vm193, %v155, 0
  %v498 = vsel %vm193, %v156, 0
  %v501 = vsel %vm193, %v157, 0
  %v504 = vsel %vm193, %v158, 0
  %v507 = vsel %vm193, %v159, 0
  %v510 = vsel %vm193, %v160, 0
  %v513 = vsel %vm193, %v161, 0
  %v516 = vsel %vm193, %v162, 0
  %v519 = vsel %vm193, %v163, 0
  %v522 = vsel %vm193, %v164, 0
  %v525 = vsel %vm193, %v165, 0
  %v528 = vsel %vm193, %v166, 0
  %v531 = vsel %vm193, %v167, 0
  %v534 = vsel %vm193, %v168, 0
  %v537 = vsel %vm193, %v169, 0
  %v540 = vsel %vm193, %v170, 0
  %v543 = vsel %vm193, %v171, 0
  %v546 = vsel %vm193, %v172, 0
  %v549 = vsel %vm193, %v173, 0
  %v552 = vsel %vm193, %v174, 0
  %v555 = vsel %vm193, %v175, 0
  %v558 = vsel %vm193, %v176, 0
  %v561 = vsel %vm193, %v177, 0
  %v564 = vsel %vm193, %v178, 0
  %v567 = vsel %vm193, %v179, 0
  %v570 = vsel %vm193, %v180, 0
  %v573 = vsel %vm193, %v181, 0
  %v576 = vsel %vm193, %v182, 0
  %578 = vmatprep.subr.mxu0 0.0
  %579 = vmatpush1.msra.mxu0 0.0
  %580 = vmatprep.subr.mxu0 0.0
  %581 = vmatpush1.msra.mxu0 0.0
  %582 = vmatprep.subr.mxu0 0.0
  %583 = vmatpush1.msra.mxu0 0.0
  %584 = vmatprep.subr.mxu0 0.0
  %585 = vmatpush1.msra.mxu0 0.0
  %586 = vmatprep.subr.mxu0 0.0
  %587 = vmatpush1.msra.mxu0 0.0
  %588 = vmatprep.subr.mxu0 0.0
  %589 = vmatpush1.msra.mxu0 0.0
  %590 = vmatprep.subr.mxu0 0.0
  %591 = vmatpush1.msra.mxu0 0.0
  %592 = vmatprep.subr.mxu0 0.0
  %593 = vmatpush1.msra.mxu0 0.0
  %594 = vmatprep.subr.mxu0 0.0
  %595 = vmatpush1.msra.mxu0 0.0
  %596 = vmatprep.subr.mxu0 0.0
  %597 = vmatpush1.msra.mxu0 0.0
  %598 = vmatprep.subr.mxu0 0.0
  %599 = vmatpush1.msra.mxu0 0.0
  %600 = vmatprep.subr.mxu0 0.0
  %601 = vmatpush1.msra.mxu0 0.0
  %602 = vmatprep.subr.mxu0 0.0
  %603 = vmatpush1.msra.mxu0 0.0
  %604 = vmatprep.subr.mxu0 0.0
  %605 = vmatpush1.msra.mxu0 %v185
  %606 = vmatprep.subr.mxu0 0.0
  %607 = vmatpush1.msra.mxu0 %v184
  %608 = vmatprep.subr.mxu0 0.0
  %609 = vmatpush1.msra.mxu0 %v183
  %610 = vmatprep.subr.mxu0 0.0
  %611 = vmatpush2.msra.mxu0 0.0
  %612 = vmatprep.subr.mxu0 0.0
  %613 = vmatpush2.msra.mxu0 0.0
  %614 = vmatprep.subr.mxu0 0.0
  %615 = vmatpush2.msra.mxu0 0.0
  %616 = vmatprep.subr.mxu0 0.0
  %617 = vmatpush2.msra.mxu0 0.0
  %618 = vmatprep.subr.mxu0 0.0
  %619 = vmatpush2.msra.mxu0 0.0
  %620 = vmatprep.subr.mxu0 0.0
  %621 = vmatpush2.msra.mxu0 0.0
  %622 = vmatprep.subr.mxu0 0.0
  %623 = vmatpush2.msra.mxu0 0.0
  %624 = vmatprep.subr.mxu0 0.0
  %625 = vmatpush2.msra.mxu0 0.0
  %626 = vmatprep.subr.mxu0 0.0
  %627 = vmatpush2.msra.mxu0 0.0
  %628 = vmatprep.subr.mxu0 0.0
  %629 = vmatpush2.msra.mxu0 0.0
  %630 = vmatprep.subr.mxu0 0.0
  %631 = vmatpush2.msra.mxu0 0.0
  %632 = vmatprep.subr.mxu0 0.0
  %633 = vmatpush2.msra.mxu0 0.0
  %634 = vmatprep.subr.mxu0 0.0
  %635 = vmatpush2.msra.mxu0 0.0
  %636 = vmatprep.subr.mxu0 0.0
  %637 = vmatpush2.msra.mxu0 0.0
  %638 = vmatprep.subr.mxu0 0.0
  %639 = vmatpush2.msra.mxu0 0.0
  %640 = vmatprep.subr.mxu0 0.0
  %641 = vmatpush2.msra.mxu0 0.0
  %642 = vmatprep.mubr.f32.mxu0 0.0
  %643 = vmatmul.mubr.f32.gmra.mxu0 %v195
  %v644 = vpop.f32.mrf.mxu0
  %v645 = vadd.f32 %v191, %v644
  %v646 = vpop.f32.mrf.mxu0
  %647 = vmatprep.mubr.f32.mxu0 0.0
  %648 = vmatmul.mubr.f32.gmra.mxu0 %v198
  %v649 = vpop.f32.mrf.mxu0
  %v650 = vadd.f32 %v191, %v649
  %v651 = vpop.f32.mrf.mxu0
  %652 = vmatprep.mubr.f32.mxu0 0.0
  %653 = vmatmul.mubr.f32.gmra.mxu0 %v201
  %v654 = vpop.f32.mrf.mxu0
  %v655 = vadd.f32 %v191, %v654
  %v656 = vpop.f32.mrf.mxu0
  %657 = vmatprep.mubr.f32.mxu0 0.0
  %658 = vmatmul.mubr.f32.gmra.mxu0 %v204
  %v659 = vpop.f32.mrf.mxu0
  %v660 = vadd.f32 %v191, %v659
  %v661 = vpop.f32.mrf.mxu0
  %662 = vmatprep.mubr.f32.mxu0 0.0
  %663 = vmatmul.mubr.f32.gmra.mxu0 %v207
  %v664 = vpop.f32.mrf.mxu0
  %v665 = vadd.f32 %v191, %v664
  %v666 = vpop.f32.mrf.mxu0
  %667 = vmatprep.mubr.f32.mxu0 0.0
  %668 = vmatmul.mubr.f32.gmra.mxu0 %v210
  %v669 = vpop.f32.mrf.mxu0
  %v670 = vadd.f32 %v191, %v669
  %v671 = vpop.f32.mrf.mxu0
  %672 = vmatprep.mubr.f32.mxu0 0.0
  %673 = vmatmul.mubr.f32.gmra.mxu0 %v213
  %v674 = vpop.f32.mrf.mxu0
  %v675 = vadd.f32 %v191, %v674
  %v676 = vpop.f32.mrf.mxu0
  %677 = vmatprep.mubr.f32.mxu0 0.0
  %678 = vmatmul.mubr.f32.gmra.mxu0 %v216
  %v679 = vpop.f32.mrf.mxu0
  %v680 = vadd.f32 %v191, %v679
  %v681 = vpop.f32.mrf.mxu0
  %682 = vmatprep.mubr.f32.mxu0 0.0
  %683 = vmatmul.mubr.f32.gmra.mxu0 %v219
  %v684 = vpop.f32.mrf.mxu0
  %v685 = vadd.f32 %v191, %v684
  %v686 = vpop.f32.mrf.mxu0
  %687 = vmatprep.mubr.f32.mxu0 0.0
  %688 = vmatmul.mubr.f32.gmra.mxu0 %v222
  %v689 = vpop.f32.mrf.mxu0
  %v690 = vadd.f32 %v191, %v689
  %v691 = vpop.f32.mrf.mxu0
  %692 = vmatprep.mubr.f32.mxu0 0.0
  %693 = vmatmul.mubr.f32.gmra.mxu0 %v225
  %v694 = vpop.f32.mrf.mxu0
  %v695 = vadd.f32 %v191, %v694
  %v696 = vpop.f32.mrf.mxu0
  %697 = vmatprep.mubr.f32.mxu0 0.0
  %698 = vmatmul.mubr.f32.gmra.mxu0 %v228
  %v699 = vpop.f32.mrf.mxu0
  %v700 = vadd.f32 %v191, %v699
  %v701 = vpop.f32.mrf.mxu0
  %702 = vmatprep.mubr.f32.mxu0 0.0
  %703 = vmatmul.mubr.f32.gmra.mxu0 %v231
  %v704 = vpop.f32.mrf.mxu0
  %v705 = vadd.f32 %v191, %v704
  %v706 = vpop.f32.mrf.mxu0
  %707 = vmatprep.mubr.f32.mxu0 0.0
  %708 = vmatmul.mubr.f32.gmra.mxu0 %v234
  %v709 = vpop.f32.mrf.mxu0
  %v710 = vadd.f32 %v191, %v709
  %v711 = vpop.f32.mrf.mxu0
  %712 = vmatprep.mubr.f32.mxu0 0.0
  %713 = vmatmul.mubr.f32.gmra.mxu0 %v237
  %v714 = vpop.f32.mrf.mxu0
  %v715 = vadd.f32 %v191, %v714
  %v716 = vpop.f32.mrf.mxu0
  %717 = vmatprep.mubr.f32.mxu0 0.0
  %718 = vmatmul.mubr.f32.gmra.mxu0 %v240
  %v719 = vpop.f32.mrf.mxu0
  %v720 = vadd.f32 %v191, %v719
  %v721 = vpop.f32.mrf.mxu0
  %722 = vmatprep.mubr.f32.mxu0 0.0
  %723 = vmatmul.mubr.f32.gmra.mxu0 %v243
  %v724 = vpop.f32.mrf.mxu0
  %v725 = vadd.f32 %v191, %v724
  %v726 = vpop.f32.mrf.mxu0
  %727 = vmatprep.mubr.f32.mxu0 0.0
  %728 = vmatmul.mubr.f32.gmra.mxu0 %v246
  %v729 = vpop.f32.mrf.mxu0
  %v730 = vadd.f32 %v191, %v729
  %v731 = vpop.f32.mrf.mxu0
  %732 = vmatprep.mubr.f32.mxu0 0.0
  %733 = vmatmul.mubr.f32.gmra.mxu0 %v249
  %v734 = vpop.f32.mrf.mxu0
  %v735 = vadd.f32 %v191, %v734
  %v736 = vpop.f32.mrf.mxu0
  %737 = vmatprep.mubr.f32.mxu0 0.0
  %738 = vmatmul.mubr.f32.gmra.mxu0 %v252
  %v739 = vpop.f32.mrf.mxu0
  %v740 = vadd.f32 %v191, %v739
  %v741 = vpop.f32.mrf.mxu0
  %742 = vmatprep.mubr.f32.mxu0 0.0
  %743 = vmatmul.mubr.f32.gmra.mxu0 %v255
  %v744 = vpop.f32.mrf.mxu0
  %v745 = vadd.f32 %v191, %v744
  %v746 = vpop.f32.mrf.mxu0
  %747 = vmatprep.mubr.f32.mxu0 0.0
  %748 = vmatmul.mubr.f32.gmra.mxu0 %v258
  %v749 = vpop.f32.mrf.mxu0
  %v750 = vadd.f32 %v191, %v749
  %v751 = vpop.f32.mrf.mxu0
  %752 = vmatprep.mubr.f32.mxu0 0.0
  %753 = vmatmul.mubr.f32.gmra.mxu0 %v261
  %v754 = vpop.f32.mrf.mxu0
  %v755 = vadd.f32 %v191, %v754
  %v756 = vpop.f32.mrf.mxu0
  %757 = vmatprep.mubr.f32.mxu0 0.0
  %758 = vmatmul.mubr.f32.gmra.mxu0 %v264
  %v759 = vpop.f32.mrf.mxu0
  %v760 = vadd.f32 %v191, %v759
  %v761 = vpop.f32.mrf.mxu0
  %762 = vmatprep.mubr.f32.mxu0 0.0
  %763 = vmatmul.mubr.f32.gmra.mxu0 %v267
  %v764 = vpop.f32.mrf.mxu0
  %v765 = vadd.f32 %v191, %v764
  %v766 = vpop.f32.mrf.mxu0
  %767 = vmatprep.mubr.f32.mxu0 0.0
  %768 = vmatmul.mubr.f32.gmra.mxu0 %v270
  %v769 = vpop.f32.mrf.mxu0
  %v770 = vadd.f32 %v191, %v769
  %v771 = vpop.f32.mrf.mxu0
  %772 = vmatprep.mubr.f32.mxu0 0.0
  %773 = vmatmul.mubr.f32.gmra.mxu0 %v273
  %v774 = vpop.f32.mrf.mxu0
  %v775 = vadd.f32 %v191, %v774
  %v776 = vpop.f32.mrf.mxu0
  %777 = vmatprep.mubr.f32.mxu0 0.0
  %778 = vmatmul.mubr.f32.gmra.mxu0 %v276
  %v779 = vpop.f32.mrf.mxu0
  %v780 = vadd.f32 %v191, %v779
  %v781 = vpop.f32.mrf.mxu0
  %782 = vmatprep.mubr.f32.mxu0 0.0
  %783 = vmatmul.mubr.f32.gmra.mxu0 %v279
  %v784 = vpop.f32.mrf.mxu0
  %v785 = vadd.f32 %v191, %v784
  %v786 = vpop.f32.mrf.mxu0
  %787 = vmatprep.mubr.f32.mxu0 0.0
  %788 = vmatmul.mubr.f32.gmra.mxu0 %v282
  %v789 = vpop.f32.mrf.mxu0
  %v790 = vadd.f32 %v191, %v789
  %v791 = vpop.f32.mrf.mxu0
  %792 = vmatprep.mubr.f32.mxu0 0.0
  %793 = vmatmul.mubr.f32.gmra.mxu0 %v285
  %v794 = vpop.f32.mrf.mxu0
  %v795 = vadd.f32 %v191, %v794
  %v796 = vpop.f32.mrf.mxu0
  %797 = vmatprep.mubr.f32.mxu0 0.0
  %798 = vmatmul.mubr.f32.gmra.mxu0 %v288
  %v799 = vpop.f32.mrf.mxu0
  %v800 = vadd.f32 %v191, %v799
  %v801 = vpop.f32.mrf.mxu0
  %802 = vmatprep.mubr.f32.mxu0 0.0
  %803 = vmatmul.mubr.f32.gmra.mxu0 %v291
  %v804 = vpop.f32.mrf.mxu0
  %v805 = vadd.f32 %v191, %v804
  %v806 = vpop.f32.mrf.mxu0
  %807 = vmatprep.mubr.f32.mxu0 0.0
  %808 = vmatmul.mubr.f32.gmra.mxu0 %v294
  %v809 = vpop.f32.mrf.mxu0
  %v810 = vadd.f32 %v191, %v809
  %v811 = vpop.f32.mrf.mxu0
  %812 = vmatprep.mubr.f32.mxu0 0.0
  %813 = vmatmul.mubr.f32.gmra.mxu0 %v297
  %v814 = vpop.f32.mrf.mxu0
  %v815 = vadd.f32 %v191, %v814
  %v816 = vpop.f32.mrf.mxu0
  %817 = vmatprep.mubr.f32.mxu0 0.0
  %818 = vmatmul.mubr.f32.gmra.mxu0 %v300
  %v819 = vpop.f32.mrf.mxu0
  %v820 = vadd.f32 %v191, %v819
  %v821 = vpop.f32.mrf.mxu0
  %822 = vmatprep.mubr.f32.mxu0 0.0
  %823 = vmatmul.mubr.f32.gmra.mxu0 %v303
  %v824 = vpop.f32.mrf.mxu0
  %v825 = vadd.f32 %v191, %v824
  %v826 = vpop.f32.mrf.mxu0
  %827 = vmatprep.mubr.f32.mxu0 0.0
  %828 = vmatmul.mubr.f32.gmra.mxu0 %v306
  %v829 = vpop.f32.mrf.mxu0
  %v830 = vadd.f32 %v191, %v829
  %v831 = vpop.f32.mrf.mxu0
  %832 = vmatprep.mubr.f32.mxu0 0.0
  %833 = vmatmul.mubr.f32.gmra.mxu0 %v309
  %v834 = vpop.f32.mrf.mxu0
  %v835 = vadd.f32 %v191, %v834
  %v836 = vpop.f32.mrf.mxu0
  %837 = vmatprep.mubr.f32.mxu0 0.0
  %838 = vmatmul.mubr.f32.gmra.mxu0 %v312
  %v839 = vpop.f32.mrf.mxu0
  %v840 = vadd.f32 %v191, %v839
  %v841 = vpop.f32.mrf.mxu0
  %842 = vmatprep.mubr.f32.mxu0 0.0
  %843 = vmatmul.mubr.f32.gmra.mxu0 %v315
  %v844 = vpop.f32.mrf.mxu0
  %v845 = vadd.f32 %v191, %v844
  %v846 = vpop.f32.mrf.mxu0
  %847 = vmatprep.mubr.f32.mxu0 0.0
  %848 = vmatmul.mubr.f32.gmra.mxu0 %v318
  %v849 = vpop.f32.mrf.mxu0
  %v850 = vadd.f32 %v191, %v849
  %v851 = vpop.f32.mrf.mxu0
  %852 = vmatprep.mubr.f32.mxu0 0.0
  %853 = vmatmul.mubr.f32.gmra.mxu0 %v321
  %v854 = vpop.f32.mrf.mxu0
  %v855 = vadd.f32 %v191, %v854
  %v856 = vpop.f32.mrf.mxu0
  %857 = vmatprep.mubr.f32.mxu0 0.0
  %858 = vmatmul.mubr.f32.gmra.mxu0 %v324
  %v859 = vpop.f32.mrf.mxu0
  %v860 = vadd.f32 %v191, %v859
  %v861 = vpop.f32.mrf.mxu0
  %862 = vmatprep.mubr.f32.mxu0 0.0
  %863 = vmatmul.mubr.f32.gmra.mxu0 %v327
  %v864 = vpop.f32.mrf.mxu0
  %v865 = vadd.f32 %v191, %v864
  %v866 = vpop.f32.mrf.mxu0
  %867 = vmatprep.mubr.f32.mxu0 0.0
  %868 = vmatmul.mubr.f32.gmra.mxu0 %v330
  %v869 = vpop.f32.mrf.mxu0
  %v870 = vadd.f32 %v191, %v869
  %v871 = vpop.f32.mrf.mxu0
  %872 = vmatprep.mubr.f32.mxu0 0.0
  %873 = vmatmul.mubr.f32.gmra.mxu0 %v333
  %v874 = vpop.f32.mrf.mxu0
  %v875 = vadd.f32 %v191, %v874
  %v876 = vpop.f32.mrf.mxu0
  %877 = vmatprep.mubr.f32.mxu0 0.0
  %878 = vmatmul.mubr.f32.gmra.mxu0 %v336
  %v879 = vpop.f32.mrf.mxu0
  %v880 = vadd.f32 %v191, %v879
  %v881 = vpop.f32.mrf.mxu0
  %882 = vmatprep.mubr.f32.mxu0 0.0
  %883 = vmatmul.mubr.f32.gmra.mxu0 %v339
  %v884 = vpop.f32.mrf.mxu0
  %v885 = vadd.f32 %v191, %v884
  %v886 = vpop.f32.mrf.mxu0
  %887 = vmatprep.mubr.f32.mxu0 0.0
  %888 = vmatmul.mubr.f32.gmra.mxu0 %v342
  %v889 = vpop.f32.mrf.mxu0
  %v890 = vadd.f32 %v191, %v889
  %v891 = vpop.f32.mrf.mxu0
  %892 = vmatprep.mubr.f32.mxu0 0.0
  %893 = vmatmul.mubr.f32.gmra.mxu0 %v345
  %v894 = vpop.f32.mrf.mxu0
  %v895 = vadd.f32 %v191, %v894
  %v896 = vpop.f32.mrf.mxu0
  %897 = vmatprep.mubr.f32.mxu0 0.0
  %898 = vmatmul.mubr.f32.gmra.mxu0 %v348
  %v899 = vpop.f32.mrf.mxu0
  %v900 = vadd.f32 %v191, %v899
  %v901 = vpop.f32.mrf.mxu0
  %902 = vmatprep.mubr.f32.mxu0 0.0
  %903 = vmatmul.mubr.f32.gmra.mxu0 %v351
  %v904 = vpop.f32.mrf.mxu0
  %v905 = vadd.f32 %v191, %v904
  %v906 = vpop.f32.mrf.mxu0
  %907 = vmatprep.mubr.f32.mxu0 0.0
  %908 = vmatmul.mubr.f32.gmra.mxu0 %v354
  %v909 = vpop.f32.mrf.mxu0
  %v910 = vadd.f32 %v191, %v909
  %v911 = vpop.f32.mrf.mxu0
  %912 = vmatprep.mubr.f32.mxu0 0.0
  %913 = vmatmul.mubr.f32.gmra.mxu0 %v357
  %v914 = vpop.f32.mrf.mxu0
  %v915 = vadd.f32 %v191, %v914
  %v916 = vpop.f32.mrf.mxu0
  %917 = vmatprep.mubr.f32.mxu0 0.0
  %918 = vmatmul.mubr.f32.gmra.mxu0 %v360
  %v919 = vpop.f32.mrf.mxu0
  %v920 = vadd.f32 %v191, %v919
  %v921 = vpop.f32.mrf.mxu0
  %922 = vmatprep.mubr.f32.mxu0 0.0
  %923 = vmatmul.mubr.f32.gmra.mxu0 %v363
  %v924 = vpop.f32.mrf.mxu0
  %v925 = vadd.f32 %v191, %v924
  %v926 = vpop.f32.mrf.mxu0
  %927 = vmatprep.mubr.f32.mxu0 0.0
  %928 = vmatmul.mubr.f32.gmra.mxu0 %v366
  %v929 = vpop.f32.mrf.mxu0
  %v930 = vadd.f32 %v191, %v929
  %v931 = vpop.f32.mrf.mxu0
  %932 = vmatprep.mubr.f32.mxu0 0.0
  %933 = vmatmul.mubr.f32.gmra.mxu0 %v369
  %v934 = vpop.f32.mrf.mxu0
  %v935 = vadd.f32 %v191, %v934
  %v936 = vpop.f32.mrf.mxu0
  %937 = vmatprep.mubr.f32.mxu0 0.0
  %938 = vmatmul.mubr.f32.gmra.mxu0 %v372
  %v939 = vpop.f32.mrf.mxu0
  %v940 = vadd.f32 %v191, %v939
  %v941 = vpop.f32.mrf.mxu0
  %942 = vmatprep.mubr.f32.mxu0 0.0
  %943 = vmatmul.mubr.f32.gmra.mxu0 %v375
  %v944 = vpop.f32.mrf.mxu0
  %v945 = vadd.f32 %v191, %v944
  %v946 = vpop.f32.mrf.mxu0
  %947 = vmatprep.mubr.f32.mxu0 0.0
  %948 = vmatmul.mubr.f32.gmra.mxu0 %v378
  %v949 = vpop.f32.mrf.mxu0
  %v950 = vadd.f32 %v191, %v949
  %v951 = vpop.f32.mrf.mxu0
  %952 = vmatprep.mubr.f32.mxu0 0.0
  %953 = vmatmul.mubr.f32.gmra.mxu0 %v381
  %v954 = vpop.f32.mrf.mxu0
  %v955 = vadd.f32 %v191, %v954
  %v956 = vpop.f32.mrf.mxu0
  %957 = vmatprep.mubr.f32.mxu0 0.0
  %958 = vmatmul.mubr.f32.gmra.mxu0 %v384
  %v959 = vpop.f32.mrf.mxu0
  %v960 = vadd.f32 %v191, %v959
  %v961 = vpop.f32.mrf.mxu0
  %962 = vmatprep.mubr.f32.mxu0 0.0
  %963 = vmatmul.mubr.f32.gmra.mxu0 %v387
  %v964 = vpop.f32.mrf.mxu0
  %v965 = vadd.f32 %v191, %v964
  %v966 = vpop.f32.mrf.mxu0
  %967 = vmatprep.mubr.f32.mxu0 0.0
  %968 = vmatmul.mubr.f32.gmra.mxu0 %v390
  %v969 = vpop.f32.mrf.mxu0
  %v970 = vadd.f32 %v191, %v969
  %v971 = vpop.f32.mrf.mxu0
  %972 = vmatprep.mubr.f32.mxu0 0.0
  %973 = vmatmul.mubr.f32.gmra.mxu0 %v393
  %v974 = vpop.f32.mrf.mxu0
  %v975 = vadd.f32 %v191, %v974
  %v976 = vpop.f32.mrf.mxu0
  %977 = vmatprep.mubr.f32.mxu0 0.0
  %978 = vmatmul.mubr.f32.gmra.mxu0 %v396
  %v979 = vpop.f32.mrf.mxu0
  %v980 = vadd.f32 %v191, %v979
  %v981 = vpop.f32.mrf.mxu0
  %982 = vmatprep.mubr.f32.mxu0 0.0
  %983 = vmatmul.mubr.f32.gmra.mxu0 %v399
  %v984 = vpop.f32.mrf.mxu0
  %v985 = vadd.f32 %v191, %v984
  %v986 = vpop.f32.mrf.mxu0
  %987 = vmatprep.mubr.f32.mxu0 0.0
  %988 = vmatmul.mubr.f32.gmra.mxu0 %v402
  %v989 = vpop.f32.mrf.mxu0
  %v990 = vadd.f32 %v191, %v989
  %v991 = vpop.f32.mrf.mxu0
  %992 = vmatprep.mubr.f32.mxu0 0.0
  %993 = vmatmul.mubr.f32.gmra.mxu0 %v405
  %v994 = vpop.f32.mrf.mxu0
  %v995 = vadd.f32 %v191, %v994
  %v996 = vpop.f32.mrf.mxu0
  %997 = vmatprep.mubr.f32.mxu0 0.0
  %998 = vmatmul.mubr.f32.gmra.mxu0 %v408
  %v999 = vpop.f32.mrf.mxu0
  %v1000 = vadd.f32 %v191, %v999
  %v1001 = vpop.f32.mrf.mxu0
  %1002 = vmatprep.mubr.f32.mxu0 0.0
  %1003 = vmatmul.mubr.f32.gmra.mxu0 %v411
  %v1004 = vpop.f32.mrf.mxu0
  %v1005 = vadd.f32 %v191, %v1004
  %v1006 = vpop.f32.mrf.mxu0
  %1007 = vmatprep.mubr.f32.mxu0 0.0
  %1008 = vmatmul.mubr.f32.gmra.mxu0 %v414
  %v1009 = vpop.f32.mrf.mxu0
  %v1010 = vadd.f32 %v191, %v1009
  %v1011 = vpop.f32.mrf.mxu0
  %1012 = vmatprep.mubr.f32.mxu0 0.0
  %1013 = vmatmul.mubr.f32.gmra.mxu0 %v417
  %v1014 = vpop.f32.mrf.mxu0
  %v1015 = vadd.f32 %v191, %v1014
  %v1016 = vpop.f32.mrf.mxu0
  %1017 = vmatprep.mubr.f32.mxu0 0.0
  %1018 = vmatmul.mubr.f32.gmra.mxu0 %v420
  %v1019 = vpop.f32.mrf.mxu0
  %v1020 = vadd.f32 %v191, %v1019
  %v1021 = vpop.f32.mrf.mxu0
  %1022 = vmatprep.mubr.f32.mxu0 0.0
  %1023 = vmatmul.mubr.f32.gmra.mxu0 %v423
  %v1024 = vpop.f32.mrf.mxu0
  %v1025 = vadd.f32 %v191, %v1024
  %v1026 = vpop.f32.mrf.mxu0
  %1027 = vmatprep.mubr.f32.mxu0 0.0
  %1028 = vmatmul.mubr.f32.gmra.mxu0 %v426
  %v1029 = vpop.f32.mrf.mxu0
  %v1030 = vadd.f32 %v191, %v1029
  %v1031 = vpop.f32.mrf.mxu0
  %1032 = vmatprep.mubr.f32.mxu0 0.0
  %1033 = vmatmul.mubr.f32.gmra.mxu0 %v429
  %v1034 = vpop.f32.mrf.mxu0
  %v1035 = vadd.f32 %v191, %v1034
  %v1036 = vpop.f32.mrf.mxu0
  %1037 = vmatprep.mubr.f32.mxu0 0.0
  %1038 = vmatmul.mubr.f32.gmra.mxu0 %v432
  %v1039 = vpop.f32.mrf.mxu0
  %v1040 = vadd.f32 %v191, %v1039
  %v1041 = vpop.f32.mrf.mxu0
  %1042 = vmatprep.mubr.f32.mxu0 0.0
  %1043 = vmatmul.mubr.f32.gmra.mxu0 %v435
  %v1044 = vpop.f32.mrf.mxu0
  %v1045 = vadd.f32 %v191, %v1044
  %v1046 = vpop.f32.mrf.mxu0
  %1047 = vmatprep.mubr.f32.mxu0 0.0
  %1048 = vmatmul.mubr.f32.gmra.mxu0 %v438
  %v1049 = vpop.f32.mrf.mxu0
  %v1050 = vadd.f32 %v191, %v1049
  %v1051 = vpop.f32.mrf.mxu0
  %1052 = vmatprep.mubr.f32.mxu0 0.0
  %1053 = vmatmul.mubr.f32.gmra.mxu0 %v441
  %v1054 = vpop.f32.mrf.mxu0
  %v1055 = vadd.f32 %v191, %v1054
  %v1056 = vpop.f32.mrf.mxu0
  %1057 = vmatprep.mubr.f32.mxu0 0.0
  %1058 = vmatmul.mubr.f32.gmra.mxu0 %v444
  %v1059 = vpop.f32.mrf.mxu0
  %v1060 = vadd.f32 %v191, %v1059
  %v1061 = vpop.f32.mrf.mxu0
  %1062 = vmatprep.mubr.f32.mxu0 0.0
  %1063 = vmatmul.mubr.f32.gmra.mxu0 %v447
  %v1064 = vpop.f32.mrf.mxu0
  %v1065 = vadd.f32 %v191, %v1064
  %v1066 = vpop.f32.mrf.mxu0
  %1067 = vmatprep.mubr.f32.mxu0 0.0
  %1068 = vmatmul.mubr.f32.gmra.mxu0 %v450
  %v1069 = vpop.f32.mrf.mxu0
  %v1070 = vadd.f32 %v191, %v1069
  %v1071 = vpop.f32.mrf.mxu0
  %1072 = vmatprep.mubr.f32.mxu0 0.0
  %1073 = vmatmul.mubr.f32.gmra.mxu0 %v453
  %v1074 = vpop.f32.mrf.mxu0
  %v1075 = vadd.f32 %v191, %v1074
  %v1076 = vpop.f32.mrf.mxu0
  %1077 = vmatprep.mubr.f32.mxu0 0.0
  %1078 = vmatmul.mubr.f32.gmra.mxu0 %v456
  %v1079 = vpop.f32.mrf.mxu0
  %v1080 = vadd.f32 %v191, %v1079
  %v1081 = vpop.f32.mrf.mxu0
  %1082 = vmatprep.mubr.f32.mxu0 0.0
  %1083 = vmatmul.mubr.f32.gmra.mxu0 %v459
  %v1084 = vpop.f32.mrf.mxu0
  %v1085 = vadd.f32 %v191, %v1084
  %v1086 = vpop.f32.mrf.mxu0
  %1087 = vmatprep.mubr.f32.mxu0 0.0
  %1088 = vmatmul.mubr.f32.gmra.mxu0 %v462
  %v1089 = vpop.f32.mrf.mxu0
  %v1090 = vadd.f32 %v191, %v1089
  %v1091 = vpop.f32.mrf.mxu0
  %1092 = vmatprep.mubr.f32.mxu0 0.0
  %1093 = vmatmul.mubr.f32.gmra.mxu0 %v465
  %v1094 = vpop.f32.mrf.mxu0
  %v1095 = vadd.f32 %v191, %v1094
  %v1096 = vpop.f32.mrf.mxu0
  %1097 = vmatprep.mubr.f32.mxu0 0.0
  %1098 = vmatmul.mubr.f32.gmra.mxu0 %v468
  %v1099 = vpop.f32.mrf.mxu0
  %v1100 = vadd.f32 %v191, %v1099
  %v1101 = vpop.f32.mrf.mxu0
  %1102 = vmatprep.mubr.f32.mxu0 0.0
  %1103 = vmatmul.mubr.f32.gmra.mxu0 %v471
  %v1104 = vpop.f32.mrf.mxu0
  %v1105 = vadd.f32 %v191, %v1104
  %v1106 = vpop.f32.mrf.mxu0
  %1107 = vmatprep.mubr.f32.mxu0 0.0
  %1108 = vmatmul.mubr.f32.gmra.mxu0 %v474
  %v1109 = vpop.f32.mrf.mxu0
  %v1110 = vadd.f32 %v191, %v1109
  %v1111 = vpop.f32.mrf.mxu0
  %1112 = vmatprep.mubr.f32.mxu0 0.0
  %1113 = vmatmul.mubr.f32.gmra.mxu0 %v477
  %v1114 = vpop.f32.mrf.mxu0
  %v1115 = vadd.f32 %v191, %v1114
  %v1116 = vpop.f32.mrf.mxu0
  %1117 = vmatprep.mubr.f32.mxu0 0.0
  %1118 = vmatmul.mubr.f32.gmra.mxu0 %v480
  %v1119 = vpop.f32.mrf.mxu0
  %v1120 = vadd.f32 %v191, %v1119
  %v1121 = vpop.f32.mrf.mxu0
  %1122 = vmatprep.mubr.f32.mxu0 0.0
  %1123 = vmatmul.mubr.f32.gmra.mxu0 %v483
  %v1124 = vpop.f32.mrf.mxu0
  %v1125 = vadd.f32 %v191, %v1124
  %v1126 = vpop.f32.mrf.mxu0
  %1127 = vmatprep.mubr.f32.mxu0 0.0
  %1128 = vmatmul.mubr.f32.gmra.mxu0 %v486
  %v1129 = vpop.f32.mrf.mxu0
  %v1130 = vadd.f32 %v191, %v1129
  %v1131 = vpop.f32.mrf.mxu0
  %1132 = vmatprep.mubr.f32.mxu0 0.0
  %1133 = vmatmul.mubr.f32.gmra.mxu0 %v489
  %v1134 = vpop.f32.mrf.mxu0
  %v1135 = vadd.f32 %v191, %v1134
  %v1136 = vpop.f32.mrf.mxu0
  %1137 = vmatprep.mubr.f32.mxu0 0.0
  %1138 = vmatmul.mubr.f32.gmra.mxu0 %v492
  %v1139 = vpop.f32.mrf.mxu0
  %v1140 = vadd.f32 %v191, %v1139
  %v1141 = vpop.f32.mrf.mxu0
  %1142 = vmatprep.mubr.f32.mxu0 0.0
  %1143 = vmatmul.mubr.f32.gmra.mxu0 %v495
  %v1144 = vpop.f32.mrf.mxu0
  %v1145 = vadd.f32 %v191, %v1144
  %v1146 = vpop.f32.mrf.mxu0
  %1147 = vmatprep.mubr.f32.mxu0 0.0
  %1148 = vmatmul.mubr.f32.gmra.mxu0 %v498
  %v1149 = vpop.f32.mrf.mxu0
  %v1150 = vadd.f32 %v191, %v1149
  %v1151 = vpop.f32.mrf.mxu0
  %1152 = vmatprep.mubr.f32.mxu0 0.0
  %1153 = vmatmul.mubr.f32.gmra.mxu0 %v501
  %v1154 = vpop.f32.mrf.mxu0
  %v1155 = vadd.f32 %v191, %v1154
  %v1156 = vpop.f32.mrf.mxu0
  %1157 = vmatprep.mubr.f32.mxu0 0.0
  %1158 = vmatmul.mubr.f32.gmra.mxu0 %v504
  %v1159 = vpop.f32.mrf.mxu0
  %v1160 = vadd.f32 %v191, %v1159
  %v1161 = vpop.f32.mrf.mxu0
  %1162 = vmatprep.mubr.f32.mxu0 0.0
  %1163 = vmatmul.mubr.f32.gmra.mxu0 %v507
  %v1164 = vpop.f32.mrf.mxu0
  %v1165 = vadd.f32 %v191, %v1164
  %v1166 = vpop.f32.mrf.mxu0
  %1167 = vmatprep.mubr.f32.mxu0 0.0
  %1168 = vmatmul.mubr.f32.gmra.mxu0 %v510
  %v1169 = vpop.f32.mrf.mxu0
  %v1170 = vadd.f32 %v191, %v1169
  %v1171 = vpop.f32.mrf.mxu0
  %1172 = vmatprep.mubr.f32.mxu0 0.0
  %1173 = vmatmul.mubr.f32.gmra.mxu0 %v513
  %v1174 = vpop.f32.mrf.mxu0
  %v1175 = vadd.f32 %v191, %v1174
  %v1176 = vpop.f32.mrf.mxu0
  %1177 = vmatprep.mubr.f32.mxu0 0.0
  %1178 = vmatmul.mubr.f32.gmra.mxu0 %v516
  %v1179 = vpop.f32.mrf.mxu0
  %v1180 = vadd.f32 %v191, %v1179
  %v1181 = vpop.f32.mrf.mxu0
  %1182 = vmatprep.mubr.f32.mxu0 0.0
  %1183 = vmatmul.mubr.f32.gmra.mxu0 %v519
  %v1184 = vpop.f32.mrf.mxu0
  %v1185 = vadd.f32 %v191, %v1184
  %v1186 = vpop.f32.mrf.mxu0
  %1187 = vmatprep.mubr.f32.mxu0 0.0
  %1188 = vmatmul.mubr.f32.gmra.mxu0 %v522
  %v1189 = vpop.f32.mrf.mxu0
  %v1190 = vadd.f32 %v191, %v1189
  %v1191 = vpop.f32.mrf.mxu0
  %1192 = vmatprep.mubr.f32.mxu0 0.0
  %1193 = vmatmul.mubr.f32.gmra.mxu0 %v525
  %v1194 = vpop.f32.mrf.mxu0
  %v1195 = vadd.f32 %v191, %v1194
  %v1196 = vpop.f32.mrf.mxu0
  %1197 = vmatprep.mubr.f32.mxu0 0.0
  %1198 = vmatmul.mubr.f32.gmra.mxu0 %v528
  %v1199 = vpop.f32.mrf.mxu0
  %v1200 = vadd.f32 %v191, %v1199
  %v1201 = vpop.f32.mrf.mxu0
  %1202 = vmatprep.mubr.f32.mxu0 0.0
  %1203 = vmatmul.mubr.f32.gmra.mxu0 %v531
  %v1204 = vpop.f32.mrf.mxu0
  %v1205 = vadd.f32 %v191, %v1204
  %v1206 = vpop.f32.mrf.mxu0
  %1207 = vmatprep.mubr.f32.mxu0 0.0
  %1208 = vmatmul.mubr.f32.gmra.mxu0 %v534
  %v1209 = vpop.f32.mrf.mxu0
  %v1210 = vadd.f32 %v191, %v1209
  %v1211 = vpop.f32.mrf.mxu0
  %1212 = vmatprep.mubr.f32.mxu0 0.0
  %1213 = vmatmul.mubr.f32.gmra.mxu0 %v537
  %v1214 = vpop.f32.mrf.mxu0
  %v1215 = vadd.f32 %v191, %v1214
  %v1216 = vpop.f32.mrf.mxu0
  %1217 = vmatprep.mubr.f32.mxu0 0.0
  %1218 = vmatmul.mubr.f32.gmra.mxu0 %v540
  %v1219 = vpop.f32.mrf.mxu0
  %v1220 = vadd.f32 %v191, %v1219
  %v1221 = vpop.f32.mrf.mxu0
  %1222 = vmatprep.mubr.f32.mxu0 0.0
  %1223 = vmatmul.mubr.f32.gmra.mxu0 %v543
  %v1224 = vpop.f32.mrf.mxu0
  %v1225 = vadd.f32 %v191, %v1224
  %v1226 = vpop.f32.mrf.mxu0
  %1227 = vmatprep.mubr.f32.mxu0 0.0
  %1228 = vmatmul.mubr.f32.gmra.mxu0 %v546
  %v1229 = vpop.f32.mrf.mxu0
  %v1230 = vadd.f32 %v191, %v1229
  %v1231 = vpop.f32.mrf.mxu0
  %1232 = vmatprep.mubr.f32.mxu0 0.0
  %1233 = vmatmul.mubr.f32.gmra.mxu0 %v549
  %v1234 = vpop.f32.mrf.mxu0
  %v1235 = vadd.f32 %v191, %v1234
  %v1236 = vpop.f32.mrf.mxu0
  %1237 = vmatprep.mubr.f32.mxu0 0.0
  %1238 = vmatmul.mubr.f32.gmra.mxu0 %v552
  %v1239 = vpop.f32.mrf.mxu0
  %v1240 = vadd.f32 %v191, %v1239
  %v1241 = vpop.f32.mrf.mxu0
  %1242 = vmatprep.mubr.f32.mxu0 0.0
  %1243 = vmatmul.mubr.f32.gmra.mxu0 %v555
  %v1244 = vpop.f32.mrf.mxu0
  %v1245 = vadd.f32 %v191, %v1244
  %v1246 = vpop.f32.mrf.mxu0
  %1247 = vmatprep.mubr.f32.mxu0 0.0
  %1248 = vmatmul.mubr.f32.gmra.mxu0 %v558
  %v1249 = vpop.f32.mrf.mxu0
  %v1250 = vadd.f32 %v191, %v1249
  %v1251 = vpop.f32.mrf.mxu0
  %1252 = vmatprep.mubr.f32.mxu0 0.0
  %1253 = vmatmul.mubr.f32.gmra.mxu0 %v561
  %v1254 = vpop.f32.mrf.mxu0
  %v1255 = vadd.f32 %v191, %v1254
  %v1256 = vpop.f32.mrf.mxu0
  %1257 = vmatprep.mubr.f32.mxu0 0.0
  %1258 = vmatmul.mubr.f32.gmra.mxu0 %v564
  %v1259 = vpop.f32.mrf.mxu0
  %v1260 = vadd.f32 %v191, %v1259
  %v1261 = vpop.f32.mrf.mxu0
  %1262 = vmatprep.mubr.f32.mxu0 0.0
  %1263 = vmatmul.mubr.f32.gmra.mxu0 %v567
  %v1264 = vpop.f32.mrf.mxu0
  %v1265 = vadd.f32 %v191, %v1264
  %v1266 = vpop.f32.mrf.mxu0
  %1267 = vmatprep.mubr.f32.mxu0 0.0
  %1268 = vmatmul.mubr.f32.gmra.mxu0 %v570
  %v1269 = vpop.f32.mrf.mxu0
  %v1270 = vadd.f32 %v191, %v1269
  %v1271 = vpop.f32.mrf.mxu0
  %1272 = vmatprep.mubr.f32.mxu0 0.0
  %1273 = vmatmul.mubr.f32.gmra.mxu0 %v573
  %v1274 = vpop.f32.mrf.mxu0
  %v1275 = vadd.f32 %v191, %v1274
  %v1276 = vpop.f32.mrf.mxu0
  %1277 = vmatprep.mubr.f32.mxu0 0.0
  %1278 = vmatmul.mubr.f32.gmra.mxu0 %v576
  %v1279 = vpop.f32.mrf.mxu0
  %v1280 = vadd.f32 %v191, %v1279
  %v1281 = vpop.f32.mrf.mxu0
  %1282 = vdwg.mxu0
  %v1283 = vmax.f32 %v645, 0.0
  %v1284 = vmax.f32 %v650, 0.0
  %v1285 = vmax.f32 %v655, 0.0
  %v1286 = vmax.f32 %v660, 0.0
  %v1287 = vmax.f32 %v665, 0.0
  %v1288 = vmax.f32 %v670, 0.0
  %v1289 = vmax.f32 %v675, 0.0
  %v1290 = vmax.f32 %v680, 0.0
  %v1291 = vmax.f32 %v685, 0.0
  %v1292 = vmax.f32 %v690, 0.0
  %v1293 = vmax.f32 %v695, 0.0
  %v1294 = vmax.f32 %v700, 0.0
  %v1295 = vmax.f32 %v705, 0.0
  %v1296 = vmax.f32 %v710, 0.0
  %v1297 = vmax.f32 %v715, 0.0
  %v1298 = vmax.f32 %v720, 0.0
  %v1299 = vmax.f32 %v725, 0.0
  %v1300 = vmax.f32 %v730, 0.0
  %v1301 = vmax.f32 %v735, 0.0
  %v1302 = vmax.f32 %v740, 0.0
  %v1303 = vmax.f32 %v745, 0.0
  %v1304 = vmax.f32 %v750, 0.0
  %v1305 = vmax.f32 %v755, 0.0
  %v1306 = vmax.f32 %v760, 0.0
  %v1307 = vmax.f32 %v765, 0.0
  %v1308 = vmax.f32 %v770, 0.0
  %v1309 = vmax.f32 %v775, 0.0
  %v1310 = vmax.f32 %v780, 0.0
  %v1311 = vmax.f32 %v785, 0.0
  %v1312 = vmax.f32 %v790, 0.0
  %v1313 = vmax.f32 %v795, 0.0
  %v1314 = vmax.f32 %v800, 0.0
  %v1315 = vmax.f32 %v805, 0.0
  %v1316 = vmax.f32 %v810, 0.0
  %v1317 = vmax.f32 %v815, 0.0
  %v1318 = vmax.f32 %v820, 0.0
  %v1319 = vmax.f32 %v825, 0.0
  %v1320 = vmax.f32 %v830, 0.0
  %v1321 = vmax.f32 %v835, 0.0
  %v1322 = vmax.f32 %v840, 0.0
  %v1323 = vmax.f32 %v845, 0.0
  %v1324 = vmax.f32 %v850, 0.0
  %v1325 = vmax.f32 %v855, 0.0
  %v1326 = vmax.f32 %v860, 0.0
  %v1327 = vmax.f32 %v865, 0.0
  %v1328 = vmax.f32 %v870, 0.0
  %v1329 = vmax.f32 %v875, 0.0
  %v1330 = vmax.f32 %v880, 0.0
  %v1331 = vmax.f32 %v885, 0.0
  %v1332 = vmax.f32 %v890, 0.0
  %v1333 = vmax.f32 %v895, 0.0
  %v1334 = vmax.f32 %v900, 0.0
  %v1335 = vmax.f32 %v905, 0.0
  %v1336 = vmax.f32 %v910, 0.0
  %v1337 = vmax.f32 %v915, 0.0
  %v1338 = vmax.f32 %v920, 0.0
  %v1339 = vmax.f32 %v925, 0.0
  %v1340 = vmax.f32 %v930, 0.0
  %v1341 = vmax.f32 %v935, 0.0
  %v1342 = vmax.f32 %v940, 0.0
  %v1343 = vmax.f32 %v945, 0.0
  %v1344 = vmax.f32 %v950, 0.0
  %v1345 = vmax.f32 %v955, 0.0
  %v1346 = vmax.f32 %v960, 0.0
  %v1347 = vmax.f32 %v965, 0.0
  %v1348 = vmax.f32 %v970, 0.0
  %v1349 = vmax.f32 %v975, 0.0
  %v1350 = vmax.f32 %v980, 0.0
  %v1351 = vmax.f32 %v985, 0.0
  %v1352 = vmax.f32 %v990, 0.0
  %v1353 = vmax.f32 %v995, 0.0
  %v1354 = vmax.f32 %v1000, 0.0
  %v1355 = vmax.f32 %v1005, 0.0
  %v1356 = vmax.f32 %v1010, 0.0
  %v1357 = vmax.f32 %v1015, 0.0
  %v1358 = vmax.f32 %v1020, 0.0
  %v1359 = vmax.f32 %v1025, 0.0
  %v1360 = vmax.f32 %v1030, 0.0
  %v1361 = vmax.f32 %v1035, 0.0
  %v1362 = vmax.f32 %v1040, 0.0
  %v1363 = vmax.f32 %v1045, 0.0
  %v1364 = vmax.f32 %v1050, 0.0
  %v1365 = vmax.f32 %v1055, 0.0
  %v1366 = vmax.f32 %v1060, 0.0
  %v1367 = vmax.f32 %v1065, 0.0
  %v1368 = vmax.f32 %v1070, 0.0
  %v1369 = vmax.f32 %v1075, 0.0
  %v1370 = vmax.f32 %v1080, 0.0
  %v1371 = vmax.f32 %v1085, 0.0
  %v1372 = vmax.f32 %v1090, 0.0
  %v1373 = vmax.f32 %v1095, 0.0
  %v1374 = vmax.f32 %v1100, 0.0
  %v1375 = vmax.f32 %v1105, 0.0
  %v1376 = vmax.f32 %v1110, 0.0
  %v1377 = vmax.f32 %v1115, 0.0
  %v1378 = vmax.f32 %v1120, 0.0
  %v1379 = vmax.f32 %v1125, 0.0
  %v1380 = vmax.f32 %v1130, 0.0
  %v1381 = vmax.f32 %v1135, 0.0
  %v1382 = vmax.f32 %v1140, 0.0
  %v1383 = vmax.f32 %v1145, 0.0
  %v1384 = vmax.f32 %v1150, 0.0
  %v1385 = vmax.f32 %v1155, 0.0
  %v1386 = vmax.f32 %v1160, 0.0
  %v1387 = vmax.f32 %v1165, 0.0
  %v1388 = vmax.f32 %v1170, 0.0
  %v1389 = vmax.f32 %v1175, 0.0
  %v1390 = vmax.f32 %v1180, 0.0
  %v1391 = vmax.f32 %v1185, 0.0
  %v1392 = vmax.f32 %v1190, 0.0
  %v1393 = vmax.f32 %v1195, 0.0
  %v1394 = vmax.f32 %v1200, 0.0
  %v1395 = vmax.f32 %v1205, 0.0
  %v1396 = vmax.f32 %v1210, 0.0
  %v1397 = vmax.f32 %v1215, 0.0
  %v1398 = vmax.f32 %v1220, 0.0
  %v1399 = vmax.f32 %v1225, 0.0
  %v1400 = vmax.f32 %v1230, 0.0
  %v1401 = vmax.f32 %v1235, 0.0
  %v1402 = vmax.f32 %v1240, 0.0
  %v1403 = vmax.f32 %v1245, 0.0
  %v1404 = vmax.f32 %v1250, 0.0
  %v1405 = vmax.f32 %v1255, 0.0
  %v1406 = vmax.f32 %v1260, 0.0
  %v1407 = vmax.f32 %v1265, 0.0
  %v1408 = vmax.f32 %v1270, 0.0
  %v1409 = vmax.f32 %v1275, 0.0
  %v1410 = vmax.f32 %v1280, 0.0
  %v1411 = vld [vmem:[%s4] sm:$0x1]
  %v1412 = vld [vmem:[%s3] sm:$0xff]
  %v1413 = vld [vmem:[%s3 + $0x8] sm:$0xff]
  %v1414 = vld [vmem:[%s3 + $0x10] sm:$0xff]
  %v1415 = vld [vmem:[%s3 + $0x18] sm:$0xff]
  %v1416 = vld [vmem:[%s3 + $0x20] sm:$0xff]
  %v1417 = vld [vmem:[%s3 + $0x28] sm:$0xff]
  %v1418 = vld [vmem:[%s3 + $0x30] sm:$0xff]
  %v1419 = vld [vmem:[%s3 + $0x38] sm:$0xff]
  %vm1420 = vcmask 523264
  %v1422 = vsel %vm1420, 0.0, 0
  %v1425 = vsel %vm1420, %v1299, 0
  %v1428 = vsel %vm1420, %v1300, 0
  %v1431 = vsel %vm1420, %v1301, 0
  %v1434 = vsel %vm1420, %v1302, 0
  %v1437 = vsel %vm1420, %v1303, 0
  %v1440 = vsel %vm1420, %v1304, 0
  %v1443 = vsel %vm1420, %v1305, 0
  %v1446 = vsel %vm1420, %v1306, 0
  %v1449 = vsel %vm1420, %v1307, 0
  %v1452 = vsel %vm1420, %v1308, 0
  %v1455 = vsel %vm1420, %v1309, 0
  %v1458 = vsel %vm1420, %v1310, 0
  %v1461 = vsel %vm1420, %v1311, 0
  %v1464 = vsel %vm1420, %v1312, 0
  %v1467 = vsel %vm1420, %v1313, 0
  %v1470 = vsel %vm1420, %v1314, 0
  %v1473 = vsel %vm1420, %v1331, 0
  %v1476 = vsel %vm1420, %v1332, 0
  %v1479 = vsel %vm1420, %v1333, 0
  %v1482 = vsel %vm1420, %v1334, 0
  %v1485 = vsel %vm1420, %v1335, 0
  %v1488 = vsel %vm1420, %v1336, 0
  %v1491 = vsel %vm1420, %v1337, 0
  %v1494 = vsel %vm1420, %v1338, 0
  %v1497 = vsel %vm1420, %v1339, 0
  %v1500 = vsel %vm1420, %v1340, 0
  %v1503 = vsel %vm1420, %v1341, 0
  %v1506 = vsel %vm1420, %v1342, 0
  %v1509 = vsel %vm1420, %v1343, 0
  %v1512 = vsel %vm1420, %v1344, 0
  %v1515 = vsel %vm1420, %v1345, 0
  %v1518 = vsel %vm1420, %v1346, 0
  %v1521 = vsel %vm1420, %v1363, 0
  %v1524 = vsel %vm1420, %v1364, 0
  %v1527 = vsel %vm1420, %v1365, 0
  %v1530 = vsel %vm1420, %v1366, 0
  %v1533 = vsel %vm1420, %v1367, 0
  %v1536 = vsel %vm1420, %v1368, 0
  %v1539 = vsel %vm1420, %v1369, 0
  %v1542 = vsel %vm1420, %v1370, 0
  %v1545 = vsel %vm1420, %v1371, 0
  %v1548 = vsel %vm1420, %v1372, 0
  %v1551 = vsel %vm1420, %v1373, 0
  %v1554 = vsel %vm1420, %v1374, 0
  %v1557 = vsel %vm1420, %v1375, 0
  %v1560 = vsel %vm1420, %v1376, 0
  %v1563 = vsel %vm1420, %v1377, 0
  %v1566 = vsel %vm1420, %v1378, 0
  %1568 = vmatprep.subr.mxu0 0.0
  %1569 = vmatpush1.msra.mxu0 0.0
  %1570 = vmatprep.subr.mxu0 0.0
  %1571 = vmatpush1.msra.mxu0 0.0
  %1572 = vmatprep.subr.mxu0 0.0
  %1573 = vmatpush1.msra.mxu0 0.0
  %1574 = vmatprep.subr.mxu0 0.0
  %1575 = vmatpush1.msra.mxu0 0.0
  %1576 = vmatprep.subr.mxu0 0.0
  %1577 = vmatpush1.msra.mxu0 0.0
  %1578 = vmatprep.subr.mxu0 0.0
  %1579 = vmatpush1.msra.mxu0 0.0
  %1580 = vmatprep.subr.mxu0 0.0
  %1581 = vmatpush1.msra.mxu0 0.0
  %1582 = vmatprep.subr.mxu0 0.0
  %1583 = vmatpush1.msra.mxu0 0.0
  %1584 = vmatprep.subr.mxu0 0.0
  %1585 = vmatpush1.msra.mxu0 %v1419
  %1586 = vmatprep.subr.mxu0 0.0
  %1587 = vmatpush1.msra.mxu0 %v1418
  %1588 = vmatprep.subr.mxu0 0.0
  %1589 = vmatpush1.msra.mxu0 %v1417
  %1590 = vmatprep.subr.mxu0 0.0
  %1591 = vmatpush1.msra.mxu0 %v1416
  %1592 = vmatprep.subr.mxu0 0.0
  %1593 = vmatpush1.msra.mxu0 %v1415
  %1594 = vmatprep.subr.mxu0 0.0
  %1595 = vmatpush1.msra.mxu0 %v1414
  %1596 = vmatprep.subr.mxu0 0.0
  %1597 = vmatpush1.msra.mxu0 %v1413
  %1598 = vmatprep.subr.mxu0 0.0
  %1599 = vmatpush1.msra.mxu0 %v1412
  %1600 = vmatprep.subr.mxu0 0.0
  %1601 = vmatpush2.msra.mxu0 0.0
  %1602 = vmatprep.subr.mxu0 0.0
  %1603 = vmatpush2.msra.mxu0 0.0
  %1604 = vmatprep.subr.mxu0 0.0
  %1605 = vmatpush2.msra.mxu0 0.0
  %1606 = vmatprep.subr.mxu0 0.0
  %1607 = vmatpush2.msra.mxu0 0.0
  %1608 = vmatprep.subr.mxu0 0.0
  %1609 = vmatpush2.msra.mxu0 0.0
  %1610 = vmatprep.subr.mxu0 0.0
  %1611 = vmatpush2.msra.mxu0 0.0
  %1612 = vmatprep.subr.mxu0 0.0
  %1613 = vmatpush2.msra.mxu0 0.0
  %1614 = vmatprep.subr.mxu0 0.0
  %1615 = vmatpush2.msra.mxu0 0.0
  %1616 = vmatprep.subr.mxu0 0.0
  %1617 = vmatpush2.msra.mxu0 0.0
  %1618 = vmatprep.subr.mxu0 0.0
  %1619 = vmatpush2.msra.mxu0 0.0
  %1620 = vmatprep.subr.mxu0 0.0
  %1621 = vmatpush2.msra.mxu0 0.0
  %1622 = vmatprep.subr.mxu0 0.0
  %1623 = vmatpush2.msra.mxu0 0.0
  %1624 = vmatprep.subr.mxu0 0.0
  %1625 = vmatpush2.msra.mxu0 0.0
  %1626 = vmatprep.subr.mxu0 0.0
  %1627 = vmatpush2.msra.mxu0 0.0
  %1628 = vmatprep.subr.mxu0 0.0
  %1629 = vmatpush2.msra.mxu0 0.0
  %1630 = vmatprep.subr.mxu0 0.0
  %1631 = vmatpush2.msra.mxu0 0.0
  %1632 = vmatprep.mubr.f32.mxu0 0.0
  %1633 = vmatmul.mubr.f32.gmra.mxu0 %v1422
  %v1634 = vpop.f32.mrf.mxu0
  %v1635 = vadd.f32 0.0, %v1634
  %v1636 = vpop.f32.mrf.mxu0
  %1637 = vmatprep.mubr.f32.mxu0 0.0
  %1638 = vmatmul.mubr.f32.gmra.mxu0 %v1422
  %v1639 = vpop.f32.mrf.mxu0
  %v1640 = vadd.f32 0.0, %v1639
  %v1641 = vpop.f32.mrf.mxu0
  %1642 = vmatprep.mubr.f32.mxu0 0.0
  %1643 = vmatmul.mubr.f32.gmra.mxu0 %v1422
  %v1644 = vpop.f32.mrf.mxu0
  %v1645 = vadd.f32 0.0, %v1644
  %v1646 = vpop.f32.mrf.mxu0
  %1647 = vmatprep.mubr.f32.mxu0 0.0
  %1648 = vmatmul.mubr.f32.gmra.mxu0 %v1422
  %v1649 = vpop.f32.mrf.mxu0
  %v1650 = vadd.f32 0.0, %v1649
  %v1651 = vpop.f32.mrf.mxu0
  %1652 = vmatprep.mubr.f32.mxu0 0.0
  %1653 = vmatmul.mubr.f32.gmra.mxu0 %v1422
  %v1654 = vpop.f32.mrf.mxu0
  %v1655 = vadd.f32 0.0, %v1654
  %v1656 = vpop.f32.mrf.mxu0
  %1657 = vmatprep.mubr.f32.mxu0 0.0
  %1658 = vmatmul.mubr.f32.gmra.mxu0 %v1422
  %v1659 = vpop.f32.mrf.mxu0
  %v1660 = vadd.f32 0.0, %v1659
  %v1661 = vpop.f32.mrf.mxu0
  %1662 = vmatprep.mubr.f32.mxu0 0.0
  %1663 = vmatmul.mubr.f32.gmra.mxu0 %v1422
  %v1664 = vpop.f32.mrf.mxu0
  %v1665 = vadd.f32 0.0, %v1664
  %v1666 = vpop.f32.mrf.mxu0
  %1667 = vmatprep.mubr.f32.mxu0 0.0
  %1668 = vmatmul.mubr.f32.gmra.mxu0 %v1422
  %v1669 = vpop.f32.mrf.mxu0
  %v1670 = vadd.f32 0.0, %v1669
  %v1671 = vpop.f32.mrf.mxu0
  %1672 = vmatprep.mubr.f32.mxu0 0.0
  %1673 = vmatmul.mubr.f32.gmra.mxu0 %v1422
  %v1674 = vpop.f32.mrf.mxu0
  %v1675 = vadd.f32 0.0, %v1674
  %v1676 = vpop.f32.mrf.mxu0
  %1677 = vmatprep.mubr.f32.mxu0 0.0
  %1678 = vmatmul.mubr.f32.gmra.mxu0 %v1422
  %v1679 = vpop.f32.mrf.mxu0
  %v1680 = vadd.f32 0.0, %v1679
  %v1681 = vpop.f32.mrf.mxu0
  %1682 = vmatprep.mubr.f32.mxu0 0.0
  %1683 = vmatmul.mubr.f32.gmra.mxu0 %v1422
  %v1684 = vpop.f32.mrf.mxu0
  %v1685 = vadd.f32 0.0, %v1684
  %v1686 = vpop.f32.mrf.mxu0
  %1687 = vmatprep.mubr.f32.mxu0 0.0
  %1688 = vmatmul.mubr.f32.gmra.mxu0 %v1422
  %v1689 = vpop.f32.mrf.mxu0
  %v1690 = vadd.f32 0.0, %v1689
  %v1691 = vpop.f32.mrf.mxu0
  %1692 = vmatprep.mubr.f32.mxu0 0.0
  %1693 = vmatmul.mubr.f32.gmra.mxu0 %v1422
  %v1694 = vpop.f32.mrf.mxu0
  %v1695 = vadd.f32 0.0, %v1694
  %v1696 = vpop.f32.mrf.mxu0
  %1697 = vmatprep.mubr.f32.mxu0 0.0
  %1698 = vmatmul.mubr.f32.gmra.mxu0 %v1422
  %v1699 = vpop.f32.mrf.mxu0
  %v1700 = vadd.f32 0.0, %v1699
  %v1701 = vpop.f32.mrf.mxu0
  %1702 = vmatprep.mubr.f32.mxu0 0.0
  %1703 = vmatmul.mubr.f32.gmra.mxu0 %v1422
  %v1704 = vpop.f32.mrf.mxu0
  %v1705 = vadd.f32 0.0, %v1704
  %v1706 = vpop.f32.mrf.mxu0
  %1707 = vmatprep.mubr.f32.mxu0 0.0
  %1708 = vmatmul.mubr.f32.gmra.mxu0 %v1422
  %v1709 = vpop.f32.mrf.mxu0
  %v1710 = vadd.f32 0.0, %v1709
  %v1711 = vpop.f32.mrf.mxu0
  %1712 = vmatprep.mubr.f32.mxu0 0.0
  %1713 = vmatmul.mubr.f32.gmra.mxu0 %v1425
  %v1714 = vpop.f32.mrf.mxu0
  %v1715 = vadd.f32 0.0, %v1714
  %v1716 = vpop.f32.mrf.mxu0
  %1717 = vmatprep.mubr.f32.mxu0 0.0
  %1718 = vmatmul.mubr.f32.gmra.mxu0 %v1428
  %v1719 = vpop.f32.mrf.mxu0
  %v1720 = vadd.f32 0.0, %v1719
  %v1721 = vpop.f32.mrf.mxu0
  %1722 = vmatprep.mubr.f32.mxu0 0.0
  %1723 = vmatmul.mubr.f32.gmra.mxu0 %v1431
  %v1724 = vpop.f32.mrf.mxu0
  %v1725 = vadd.f32 0.0, %v1724
  %v1726 = vpop.f32.mrf.mxu0
  %1727 = vmatprep.mubr.f32.mxu0 0.0
  %1728 = vmatmul.mubr.f32.gmra.mxu0 %v1434
  %v1729 = vpop.f32.mrf.mxu0
  %v1730 = vadd.f32 0.0, %v1729
  %v1731 = vpop.f32.mrf.mxu0
  %1732 = vmatprep.mubr.f32.mxu0 0.0
  %1733 = vmatmul.mubr.f32.gmra.mxu0 %v1437
  %v1734 = vpop.f32.mrf.mxu0
  %v1735 = vadd.f32 0.0, %v1734
  %v1736 = vpop.f32.mrf.mxu0
  %1737 = vmatprep.mubr.f32.mxu0 0.0
  %1738 = vmatmul.mubr.f32.gmra.mxu0 %v1440
  %v1739 = vpop.f32.mrf.mxu0
  %v1740 = vadd.f32 0.0, %v1739
  %v1741 = vpop.f32.mrf.mxu0
  %1742 = vmatprep.mubr.f32.mxu0 0.0
  %1743 = vmatmul.mubr.f32.gmra.mxu0 %v1443
  %v1744 = vpop.f32.mrf.mxu0
  %v1745 = vadd.f32 0.0, %v1744
  %v1746 = vpop.f32.mrf.mxu0
  %1747 = vmatprep.mubr.f32.mxu0 0.0
  %1748 = vmatmul.mubr.f32.gmra.mxu0 %v1446
  %v1749 = vpop.f32.mrf.mxu0
  %v1750 = vadd.f32 0.0, %v1749
  %v1751 = vpop.f32.mrf.mxu0
  %1752 = vmatprep.mubr.f32.mxu0 0.0
  %1753 = vmatmul.mubr.f32.gmra.mxu0 %v1449
  %v1754 = vpop.f32.mrf.mxu0
  %v1755 = vadd.f32 0.0, %v1754
  %v1756 = vpop.f32.mrf.mxu0
  %1757 = vmatprep.mubr.f32.mxu0 0.0
  %1758 = vmatmul.mubr.f32.gmra.mxu0 %v1452
  %v1759 = vpop.f32.mrf.mxu0
  %v1760 = vadd.f32 0.0, %v1759
  %v1761 = vpop.f32.mrf.mxu0
  %1762 = vmatprep.mubr.f32.mxu0 0.0
  %1763 = vmatmul.mubr.f32.gmra.mxu0 %v1455
  %v1764 = vpop.f32.mrf.mxu0
  %v1765 = vadd.f32 0.0, %v1764
  %v1766 = vpop.f32.mrf.mxu0
  %1767 = vmatprep.mubr.f32.mxu0 0.0
  %1768 = vmatmul.mubr.f32.gmra.mxu0 %v1458
  %v1769 = vpop.f32.mrf.mxu0
  %v1770 = vadd.f32 0.0, %v1769
  %v1771 = vpop.f32.mrf.mxu0
  %1772 = vmatprep.mubr.f32.mxu0 0.0
  %1773 = vmatmul.mubr.f32.gmra.mxu0 %v1461
  %v1774 = vpop.f32.mrf.mxu0
  %v1775 = vadd.f32 0.0, %v1774
  %v1776 = vpop.f32.mrf.mxu0
  %1777 = vmatprep.mubr.f32.mxu0 0.0
  %1778 = vmatmul.mubr.f32.gmra.mxu0 %v1464
  %v1779 = vpop.f32.mrf.mxu0
  %v1780 = vadd.f32 0.0, %v1779
  %v1781 = vpop.f32.mrf.mxu0
  %1782 = vmatprep.mubr.f32.mxu0 0.0
  %1783 = vmatmul.mubr.f32.gmra.mxu0 %v1467
  %v1784 = vpop.f32.mrf.mxu0
  %v1785 = vadd.f32 0.0, %v1784
  %v1786 = vpop.f32.mrf.mxu0
  %1787 = vmatprep.mubr.f32.mxu0 0.0
  %1788 = vmatmul.mubr.f32.gmra.mxu0 %v1470
  %v1789 = vpop.f32.mrf.mxu0
  %v1790 = vadd.f32 0.0, %v1789
  %v1791 = vpop.f32.mrf.mxu0
  %1792 = vmatprep.mubr.f32.mxu0 0.0
  %1793 = vmatmul.mubr.f32.gmra.mxu0 %v1473
  %v1794 = vpop.f32.mrf.mxu0
  %v1795 = vadd.f32 0.0, %v1794
  %v1796 = vpop.f32.mrf.mxu0
  %1797 = vmatprep.mubr.f32.mxu0 0.0
  %1798 = vmatmul.mubr.f32.gmra.mxu0 %v1476
  %v1799 = vpop.f32.mrf.mxu0
  %v1800 = vadd.f32 0.0, %v1799
  %v1801 = vpop.f32.mrf.mxu0
  %1802 = vmatprep.mubr.f32.mxu0 0.0
  %1803 = vmatmul.mubr.f32.gmra.mxu0 %v1479
  %v1804 = vpop.f32.mrf.mxu0
  %v1805 = vadd.f32 0.0, %v1804
  %v1806 = vpop.f32.mrf.mxu0
  %1807 = vmatprep.mubr.f32.mxu0 0.0
  %1808 = vmatmul.mubr.f32.gmra.mxu0 %v1482
  %v1809 = vpop.f32.mrf.mxu0
  %v1810 = vadd.f32 0.0, %v1809
  %v1811 = vpop.f32.mrf.mxu0
  %1812 = vmatprep.mubr.f32.mxu0 0.0
  %1813 = vmatmul.mubr.f32.gmra.mxu0 %v1485
  %v1814 = vpop.f32.mrf.mxu0
  %v1815 = vadd.f32 0.0, %v1814
  %v1816 = vpop.f32.mrf.mxu0
  %1817 = vmatprep.mubr.f32.mxu0 0.0
  %1818 = vmatmul.mubr.f32.gmra.mxu0 %v1488
  %v1819 = vpop.f32.mrf.mxu0
  %v1820 = vadd.f32 0.0, %v1819
  %v1821 = vpop.f32.mrf.mxu0
  %1822 = vmatprep.mubr.f32.mxu0 0.0
  %1823 = vmatmul.mubr.f32.gmra.mxu0 %v1491
  %v1824 = vpop.f32.mrf.mxu0
  %v1825 = vadd.f32 0.0, %v1824
  %v1826 = vpop.f32.mrf.mxu0
  %1827 = vmatprep.mubr.f32.mxu0 0.0
  %1828 = vmatmul.mubr.f32.gmra.mxu0 %v1494
  %v1829 = vpop.f32.mrf.mxu0
  %v1830 = vadd.f32 0.0, %v1829
  %v1831 = vpop.f32.mrf.mxu0
  %1832 = vmatprep.mubr.f32.mxu0 0.0
  %1833 = vmatmul.mubr.f32.gmra.mxu0 %v1497
  %v1834 = vpop.f32.mrf.mxu0
  %v1835 = vadd.f32 0.0, %v1834
  %v1836 = vpop.f32.mrf.mxu0
  %1837 = vmatprep.mubr.f32.mxu0 0.0
  %1838 = vmatmul.mubr.f32.gmra.mxu0 %v1500
  %v1839 = vpop.f32.mrf.mxu0
  %v1840 = vadd.f32 0.0, %v1839
  %v1841 = vpop.f32.mrf.mxu0
  %1842 = vmatprep.mubr.f32.mxu0 0.0
  %1843 = vmatmul.mubr.f32.gmra.mxu0 %v1503
  %v1844 = vpop.f32.mrf.mxu0
  %v1845 = vadd.f32 0.0, %v1844
  %v1846 = vpop.f32.mrf.mxu0
  %1847 = vmatprep.mubr.f32.mxu0 0.0
  %1848 = vmatmul.mubr.f32.gmra.mxu0 %v1506
  %v1849 = vpop.f32.mrf.mxu0
  %v1850 = vadd.f32 0.0, %v1849
  %v1851 = vpop.f32.mrf.mxu0
  %1852 = vmatprep.mubr.f32.mxu0 0.0
  %1853 = vmatmul.mubr.f32.gmra.mxu0 %v1509
  %v1854 = vpop.f32.mrf.mxu0
  %v1855 = vadd.f32 0.0, %v1854
  %v1856 = vpop.f32.mrf.mxu0
  %1857 = vmatprep.mubr.f32.mxu0 0.0
  %1858 = vmatmul.mubr.f32.gmra.mxu0 %v1512
  %v1859 = vpop.f32.mrf.mxu0
  %v1860 = vadd.f32 0.0, %v1859
  %v1861 = vpop.f32.mrf.mxu0
  %1862 = vmatprep.mubr.f32.mxu0 0.0
  %1863 = vmatmul.mubr.f32.gmra.mxu0 %v1515
  %v1864 = vpop.f32.mrf.mxu0
  %v1865 = vadd.f32 0.0, %v1864
  %v1866 = vpop.f32.mrf.mxu0
  %1867 = vmatprep.mubr.f32.mxu0 0.0
  %1868 = vmatmul.mubr.f32.gmra.mxu0 %v1518
  %v1869 = vpop.f32.mrf.mxu0
  %v1870 = vadd.f32 0.0, %v1869
  %v1871 = vpop.f32.mrf.mxu0
  %1872 = vmatprep.mubr.f32.mxu0 0.0
  %1873 = vmatmul.mubr.f32.gmra.mxu0 %v1521
  %v1874 = vpop.f32.mrf.mxu0
  %v1875 = vadd.f32 0.0, %v1874
  %v1876 = vpop.f32.mrf.mxu0
  %1877 = vmatprep.mubr.f32.mxu0 0.0
  %1878 = vmatmul.mubr.f32.gmra.mxu0 %v1524
  %v1879 = vpop.f32.mrf.mxu0
  %v1880 = vadd.f32 0.0, %v1879
  %v1881 = vpop.f32.mrf.mxu0
  %1882 = vmatprep.mubr.f32.mxu0 0.0
  %1883 = vmatmul.mubr.f32.gmra.mxu0 %v1527
  %v1884 = vpop.f32.mrf.mxu0
  %v1885 = vadd.f32 0.0, %v1884
  %v1886 = vpop.f32.mrf.mxu0
  %1887 = vmatprep.mubr.f32.mxu0 0.0
  %1888 = vmatmul.mubr.f32.gmra.mxu0 %v1530
  %v1889 = vpop.f32.mrf.mxu0
  %v1890 = vadd.f32 0.0, %v1889
  %v1891 = vpop.f32.mrf.mxu0
  %1892 = vmatprep.mubr.f32.mxu0 0.0
  %1893 = vmatmul.mubr.f32.gmra.mxu0 %v1533
  %v1894 = vpop.f32.mrf.mxu0
  %v1895 = vadd.f32 0.0, %v1894
  %v1896 = vpop.f32.mrf.mxu0
  %1897 = vmatprep.mubr.f32.mxu0 0.0
  %1898 = vmatmul.mubr.f32.gmra.mxu0 %v1536
  %v1899 = vpop.f32.mrf.mxu0
  %v1900 = vadd.f32 0.0, %v1899
  %v1901 = vpop.f32.mrf.mxu0
  %1902 = vmatprep.mubr.f32.mxu0 0.0
  %1903 = vmatmul.mubr.f32.gmra.mxu0 %v1539
  %v1904 = vpop.f32.mrf.mxu0
  %v1905 = vadd.f32 0.0, %v1904
  %v1906 = vpop.f32.mrf.mxu0
  %1907 = vmatprep.mubr.f32.mxu0 0.0
  %1908 = vmatmul.mubr.f32.gmra.mxu0 %v1542
  %v1909 = vpop.f32.mrf.mxu0
  %v1910 = vadd.f32 0.0, %v1909
  %v1911 = vpop.f32.mrf.mxu0
  %1912 = vmatprep.mubr.f32.mxu0 0.0
  %1913 = vmatmul.mubr.f32.gmra.mxu0 %v1545
  %v1914 = vpop.f32.mrf.mxu0
  %v1915 = vadd.f32 0.0, %v1914
  %v1916 = vpop.f32.mrf.mxu0
  %1917 = vmatprep.mubr.f32.mxu0 0.0
  %1918 = vmatmul.mubr.f32.gmra.mxu0 %v1548
  %v1919 = vpop.f32.mrf.mxu0
  %v1920 = vadd.f32 0.0, %v1919
  %v1921 = vpop.f32.mrf.mxu0
  %1922 = vmatprep.mubr.f32.mxu0 0.0
  %1923 = vmatmul.mubr.f32.gmra.mxu0 %v1551
  %v1924 = vpop.f32.mrf.mxu0
  %v1925 = vadd.f32 0.0, %v1924
  %v1926 = vpop.f32.mrf.mxu0
  %1927 = vmatprep.mubr.f32.mxu0 0.0
  %1928 = vmatmul.mubr.f32.gmra.mxu0 %v1554
  %v1929 = vpop.f32.mrf.mxu0
  %v1930 = vadd.f32 0.0, %v1929
  %v1931 = vpop.f32.mrf.mxu0
  %1932 = vmatprep.mubr.f32.mxu0 0.0
  %1933 = vmatmul.mubr.f32.gmra.mxu0 %v1557
  %v1934 = vpop.f32.mrf.mxu0
  %v1935 = vadd.f32 0.0, %v1934
  %v1936 = vpop.f32.mrf.mxu0
  %1937 = vmatprep.mubr.f32.mxu0 0.0
  %1938 = vmatmul.mubr.f32.gmra.mxu0 %v1560
  %v1939 = vpop.f32.mrf.mxu0
  %v1940 = vadd.f32 0.0, %v1939
  %v1941 = vpop.f32.mrf.mxu0
  %1942 = vmatprep.mubr.f32.mxu0 0.0
  %1943 = vmatmul.mubr.f32.gmra.mxu0 %v1563
  %v1944 = vpop.f32.mrf.mxu0
  %v1945 = vadd.f32 0.0, %v1944
  %v1946 = vpop.f32.mrf.mxu0
  %1947 = vmatprep.mubr.f32.mxu0 0.0
  %1948 = vmatmul.mubr.f32.gmra.mxu0 %v1566
  %v1949 = vpop.f32.mrf.mxu0
  %v1950 = vadd.f32 0.0, %v1949
  %v1951 = vpop.f32.mrf.mxu0
  %1952 = vdwg.mxu0
  %v1954 = vlaneseq
  %v1955 = vshrl.u32 %v1954, 7
  %v1956 = vsub.s32 0, %v1955
  %v1957 = vrot.slane %v1411, %v1956
  %v1959 = vadd.f32 %v1957, %v1635
  %v1960 = vadd.f32 %v1957, %v1640
  %v1961 = vadd.f32 %v1957, %v1645
  %v1962 = vadd.f32 %v1957, %v1650
  %v1963 = vadd.f32 %v1957, %v1655
  %v1964 = vadd.f32 %v1957, %v1660
  %v1965 = vadd.f32 %v1957, %v1665
  %v1966 = vadd.f32 %v1957, %v1670
  %v1967 = vadd.f32 %v1957, %v1675
  %v1968 = vadd.f32 %v1957, %v1680
  %v1969 = vadd.f32 %v1957, %v1685
  %v1970 = vadd.f32 %v1957, %v1690
  %v1971 = vadd.f32 %v1957, %v1695
  %v1972 = vadd.f32 %v1957, %v1700
  %v1973 = vadd.f32 %v1957, %v1705
  %v1974 = vadd.f32 %v1957, %v1710
  %v1975 = vadd.f32 %v1957, %v1715
  %v1976 = vadd.f32 %v1957, %v1720
  %v1977 = vadd.f32 %v1957, %v1725
  %v1978 = vadd.f32 %v1957, %v1730
  %v1979 = vadd.f32 %v1957, %v1735
  %v1980 = vadd.f32 %v1957, %v1740
  %v1981 = vadd.f32 %v1957, %v1745
  %v1982 = vadd.f32 %v1957, %v1750
  %v1983 = vadd.f32 %v1957, %v1755
  %v1984 = vadd.f32 %v1957, %v1760
  %v1985 = vadd.f32 %v1957, %v1765
  %v1986 = vadd.f32 %v1957, %v1770
  %v1987 = vadd.f32 %v1957, %v1775
  %v1988 = vadd.f32 %v1957, %v1780
  %v1989 = vadd.f32 %v1957, %v1785
  %v1990 = vadd.f32 %v1957, %v1790
  %v1991 = vadd.f32 %v1957, %v1795
  %v1992 = vadd.f32 %v1957, %v1800
  %v1993 = vadd.f32 %v1957, %v1805
  %v1994 = vadd.f32 %v1957, %v1810
  %v1995 = vadd.f32 %v1957, %v1815
  %v1996 = vadd.f32 %v1957, %v1820
  %v1997 = vadd.f32 %v1957, %v1825
  %v1998 = vadd.f32 %v1957, %v1830
  %v1999 = vadd.f32 %v1957, %v1835
  %v2000 = vadd.f32 %v1957, %v1840
  %v2001 = vadd.f32 %v1957, %v1845
  %v2002 = vadd.f32 %v1957, %v1850
  %v2003 = vadd.f32 %v1957, %v1855
  %v2004 = vadd.f32 %v1957, %v1860
  %v2005 = vadd.f32 %v1957, %v1865
  %v2006 = vadd.f32 %v1957, %v1870
  %v2007 = vadd.f32 %v1957, %v1875
  %v2008 = vadd.f32 %v1957, %v1880
  %v2009 = vadd.f32 %v1957, %v1885
  %v2010 = vadd.f32 %v1957, %v1890
  %v2011 = vadd.f32 %v1957, %v1895
  %v2012 = vadd.f32 %v1957, %v1900
  %v2013 = vadd.f32 %v1957, %v1905
  %v2014 = vadd.f32 %v1957, %v1910
  %v2015 = vadd.f32 %v1957, %v1915
  %v2016 = vadd.f32 %v1957, %v1920
  %v2017 = vadd.f32 %v1957, %v1925
  %v2018 = vadd.f32 %v1957, %v1930
  %v2019 = vadd.f32 %v1957, %v1935
  %v2020 = vadd.f32 %v1957, %v1940
  %v2021 = vadd.f32 %v1957, %v1945
  %v2022 = vadd.f32 %v1957, %v1950
  %s2023 = scalar_lea.vmem %s3, 64
  %v2024 = vld [vmem:[%s2023] sm:$0xff]
  %v2025 = vld [vmem:[%s2023 + $0x8] sm:$0xff]
  %v2026 = vld [vmem:[%s2023 + $0x10] sm:$0xff]
  %v2027 = vld [vmem:[%s2023 + $0x18] sm:$0xff]
  %v2028 = vld [vmem:[%s2023 + $0x20] sm:$0xff]
  %v2029 = vld [vmem:[%s2023 + $0x28] sm:$0xff]
  %v2030 = vld [vmem:[%s2023 + $0x30] sm:$0xff]
  %v2031 = vld [vmem:[%s2023 + $0x38] sm:$0xff]
  %v2033 = vsel %vm1420, %v1283, 0
  %v2036 = vsel %vm1420, %v1284, 0
  %v2039 = vsel %vm1420, %v1285, 0
  %v2042 = vsel %vm1420, %v1286, 0
  %v2045 = vsel %vm1420, %v1287, 0
  %v2048 = vsel %vm1420, %v1288, 0
  %v2051 = vsel %vm1420, %v1289, 0
  %v2054 = vsel %vm1420, %v1290, 0
  %v2057 = vsel %vm1420, %v1291, 0
  %v2060 = vsel %vm1420, %v1292, 0
  %v2063 = vsel %vm1420, %v1293, 0
  %v2066 = vsel %vm1420, %v1294, 0
  %v2069 = vsel %vm1420, %v1295, 0
  %v2072 = vsel %vm1420, %v1296, 0
  %v2075 = vsel %vm1420, %v1297, 0
  %v2078 = vsel %vm1420, %v1298, 0
  %v2081 = vsel %vm1420, %v1315, 0
  %v2084 = vsel %vm1420, %v1316, 0
  %v2087 = vsel %vm1420, %v1317, 0
  %v2090 = vsel %vm1420, %v1318, 0
  %v2093 = vsel %vm1420, %v1319, 0
  %v2096 = vsel %vm1420, %v1320, 0
  %v2099 = vsel %vm1420, %v1321, 0
  %v2102 = vsel %vm1420, %v1322, 0
  %v2105 = vsel %vm1420, %v1323, 0
  %v2108 = vsel %vm1420, %v1324, 0
  %v2111 = vsel %vm1420, %v1325, 0
  %v2114 = vsel %vm1420, %v1326, 0
  %v2117 = vsel %vm1420, %v1327, 0
  %v2120 = vsel %vm1420, %v1328, 0
  %v2123 = vsel %vm1420, %v1329, 0
  %v2126 = vsel %vm1420, %v1330, 0
  %v2129 = vsel %vm1420, %v1347, 0
  %v2132 = vsel %vm1420, %v1348, 0
  %v2135 = vsel %vm1420, %v1349, 0
  %v2138 = vsel %vm1420, %v1350, 0
  %v2141 = vsel %vm1420, %v1351, 0
  %v2144 = vsel %vm1420, %v1352, 0
  %v2147 = vsel %vm1420, %v1353, 0
  %v2150 = vsel %vm1420, %v1354, 0
  %v2153 = vsel %vm1420, %v1355, 0
  %v2156 = vsel %vm1420, %v1356, 0
  %v2159 = vsel %vm1420, %v1357, 0
  %v2162 = vsel %vm1420, %v1358, 0
  %v2165 = vsel %vm1420, %v1359, 0
  %v2168 = vsel %vm1420, %v1360, 0
  %v2171 = vsel %vm1420, %v1361, 0
  %v2174 = vsel %vm1420, %v1362, 0
  %v2177 = vsel %vm1420, %v1379, 0
  %v2180 = vsel %vm1420, %v1380, 0
  %v2183 = vsel %vm1420, %v1381, 0
  %v2186 = vsel %vm1420, %v1382, 0
  %v2189 = vsel %vm1420, %v1383, 0
  %v2192 = vsel %vm1420, %v1384, 0
  %v2195 = vsel %vm1420, %v1385, 0
  %v2198 = vsel %vm1420, %v1386, 0
  %v2201 = vsel %vm1420, %v1387, 0
  %v2204 = vsel %vm1420, %v1388, 0
  %v2207 = vsel %vm1420, %v1389, 0
  %v2210 = vsel %vm1420, %v1390, 0
  %v2213 = vsel %vm1420, %v1391, 0
  %v2216 = vsel %vm1420, %v1392, 0
  %v2219 = vsel %vm1420, %v1393, 0
  %v2222 = vsel %vm1420, %v1394, 0
  %2224 = vmatprep.subr.mxu0 0.0
  %2225 = vmatpush1.msra.mxu0 0.0
  %2226 = vmatprep.subr.mxu0 0.0
  %2227 = vmatpush1.msra.mxu0 0.0
  %2228 = vmatprep.subr.mxu0 0.0
  %2229 = vmatpush1.msra.mxu0 0.0
  %2230 = vmatprep.subr.mxu0 0.0
  %2231 = vmatpush1.msra.mxu0 0.0
  %2232 = vmatprep.subr.mxu0 0.0
  %2233 = vmatpush1.msra.mxu0 0.0
  %2234 = vmatprep.subr.mxu0 0.0
  %2235 = vmatpush1.msra.mxu0 0.0
  %2236 = vmatprep.subr.mxu0 0.0
  %2237 = vmatpush1.msra.mxu0 0.0
  %2238 = vmatprep.subr.mxu0 0.0
  %2239 = vmatpush1.msra.mxu0 0.0
  %2240 = vmatprep.subr.mxu0 0.0
  %2241 = vmatpush1.msra.mxu0 %v2031
  %2242 = vmatprep.subr.mxu0 0.0
  %2243 = vmatpush1.msra.mxu0 %v2030
  %2244 = vmatprep.subr.mxu0 0.0
  %2245 = vmatpush1.msra.mxu0 %v2029
  %2246 = vmatprep.subr.mxu0 0.0
  %2247 = vmatpush1.msra.mxu0 %v2028
  %2248 = vmatprep.subr.mxu0 0.0
  %2249 = vmatpush1.msra.mxu0 %v2027
  %2250 = vmatprep.subr.mxu0 0.0
  %2251 = vmatpush1.msra.mxu0 %v2026
  %2252 = vmatprep.subr.mxu0 0.0
  %2253 = vmatpush1.msra.mxu0 %v2025
  %2254 = vmatprep.subr.mxu0 0.0
  %2255 = vmatpush1.msra.mxu0 %v2024
  %2256 = vmatprep.subr.mxu0 0.0
  %2257 = vmatpush2.msra.mxu0 0.0
  %2258 = vmatprep.subr.mxu0 0.0
  %2259 = vmatpush2.msra.mxu0 0.0
  %2260 = vmatprep.subr.mxu0 0.0
  %2261 = vmatpush2.msra.mxu0 0.0
  %2262 = vmatprep.subr.mxu0 0.0
  %2263 = vmatpush2.msra.mxu0 0.0
  %2264 = vmatprep.subr.mxu0 0.0
  %2265 = vmatpush2.msra.mxu0 0.0
  %2266 = vmatprep.subr.mxu0 0.0
  %2267 = vmatpush2.msra.mxu0 0.0
  %2268 = vmatprep.subr.mxu0 0.0
  %2269 = vmatpush2.msra.mxu0 0.0
  %2270 = vmatprep.subr.mxu0 0.0
  %2271 = vmatpush2.msra.mxu0 0.0
  %2272 = vmatprep.subr.mxu0 0.0
  %2273 = vmatpush2.msra.mxu0 0.0
  %2274 = vmatprep.subr.mxu0 0.0
  %2275 = vmatpush2.msra.mxu0 0.0
  %2276 = vmatprep.subr.mxu0 0.0
  %2277 = vmatpush2.msra.mxu0 0.0
  %2278 = vmatprep.subr.mxu0 0.0
  %2279 = vmatpush2.msra.mxu0 0.0
  %2280 = vmatprep.subr.mxu0 0.0
  %2281 = vmatpush2.msra.mxu0 0.0
  %2282 = vmatprep.subr.mxu0 0.0
  %2283 = vmatpush2.msra.mxu0 0.0
  %2284 = vmatprep.subr.mxu0 0.0
  %2285 = vmatpush2.msra.mxu0 0.0
  %2286 = vmatprep.subr.mxu0 0.0
  %2287 = vmatpush2.msra.mxu0 0.0
  %2288 = vmatprep.mubr.f32.mxu0 0.0
  %2289 = vmatmul.mubr.f32.gmra.mxu0 %v2033
  %v2290 = vpop.f32.mrf.mxu0
  %v2291 = vadd.f32 0.0, %v2290
  %v2292 = vpop.f32.mrf.mxu0
  %2293 = vmatprep.mubr.f32.mxu0 0.0
  %2294 = vmatmul.mubr.f32.gmra.mxu0 %v2036
  %v2295 = vpop.f32.mrf.mxu0
  %v2296 = vadd.f32 0.0, %v2295
  %v2297 = vpop.f32.mrf.mxu0
  %2298 = vmatprep.mubr.f32.mxu0 0.0
  %2299 = vmatmul.mubr.f32.gmra.mxu0 %v2039
  %v2300 = vpop.f32.mrf.mxu0
  %v2301 = vadd.f32 0.0, %v2300
  %v2302 = vpop.f32.mrf.mxu0
  %2303 = vmatprep.mubr.f32.mxu0 0.0
  %2304 = vmatmul.mubr.f32.gmra.mxu0 %v2042
  %v2305 = vpop.f32.mrf.mxu0
  %v2306 = vadd.f32 0.0, %v2305
  %v2307 = vpop.f32.mrf.mxu0
  %2308 = vmatprep.mubr.f32.mxu0 0.0
  %2309 = vmatmul.mubr.f32.gmra.mxu0 %v2045
  %v2310 = vpop.f32.mrf.mxu0
  %v2311 = vadd.f32 0.0, %v2310
  %v2312 = vpop.f32.mrf.mxu0
  %2313 = vmatprep.mubr.f32.mxu0 0.0
  %2314 = vmatmul.mubr.f32.gmra.mxu0 %v2048
  %v2315 = vpop.f32.mrf.mxu0
  %v2316 = vadd.f32 0.0, %v2315
  %v2317 = vpop.f32.mrf.mxu0
  %2318 = vmatprep.mubr.f32.mxu0 0.0
  %2319 = vmatmul.mubr.f32.gmra.mxu0 %v2051
  %v2320 = vpop.f32.mrf.mxu0
  %v2321 = vadd.f32 0.0, %v2320
  %v2322 = vpop.f32.mrf.mxu0
  %2323 = vmatprep.mubr.f32.mxu0 0.0
  %2324 = vmatmul.mubr.f32.gmra.mxu0 %v2054
  %v2325 = vpop.f32.mrf.mxu0
  %v2326 = vadd.f32 0.0, %v2325
  %v2327 = vpop.f32.mrf.mxu0
  %2328 = vmatprep.mubr.f32.mxu0 0.0
  %2329 = vmatmul.mubr.f32.gmra.mxu0 %v2057
  %v2330 = vpop.f32.mrf.mxu0
  %v2331 = vadd.f32 0.0, %v2330
  %v2332 = vpop.f32.mrf.mxu0
  %2333 = vmatprep.mubr.f32.mxu0 0.0
  %2334 = vmatmul.mubr.f32.gmra.mxu0 %v2060
  %v2335 = vpop.f32.mrf.mxu0
  %v2336 = vadd.f32 0.0, %v2335
  %v2337 = vpop.f32.mrf.mxu0
  %2338 = vmatprep.mubr.f32.mxu0 0.0
  %2339 = vmatmul.mubr.f32.gmra.mxu0 %v2063
  %v2340 = vpop.f32.mrf.mxu0
  %v2341 = vadd.f32 0.0, %v2340
  %v2342 = vpop.f32.mrf.mxu0
  %2343 = vmatprep.mubr.f32.mxu0 0.0
  %2344 = vmatmul.mubr.f32.gmra.mxu0 %v2066
  %v2345 = vpop.f32.mrf.mxu0
  %v2346 = vadd.f32 0.0, %v2345
  %v2347 = vpop.f32.mrf.mxu0
  %2348 = vmatprep.mubr.f32.mxu0 0.0
  %2349 = vmatmul.mubr.f32.gmra.mxu0 %v2069
  %v2350 = vpop.f32.mrf.mxu0
  %v2351 = vadd.f32 0.0, %v2350
  %v2352 = vpop.f32.mrf.mxu0
  %2353 = vmatprep.mubr.f32.mxu0 0.0
  %2354 = vmatmul.mubr.f32.gmra.mxu0 %v2072
  %v2355 = vpop.f32.mrf.mxu0
  %v2356 = vadd.f32 0.0, %v2355
  %v2357 = vpop.f32.mrf.mxu0
  %2358 = vmatprep.mubr.f32.mxu0 0.0
  %2359 = vmatmul.mubr.f32.gmra.mxu0 %v2075
  %v2360 = vpop.f32.mrf.mxu0
  %v2361 = vadd.f32 0.0, %v2360
  %v2362 = vpop.f32.mrf.mxu0
  %2363 = vmatprep.mubr.f32.mxu0 0.0
  %2364 = vmatmul.mubr.f32.gmra.mxu0 %v2078
  %v2365 = vpop.f32.mrf.mxu0
  %v2366 = vadd.f32 0.0, %v2365
  %v2367 = vpop.f32.mrf.mxu0
  %2368 = vmatprep.mubr.f32.mxu0 0.0
  %2369 = vmatmul.mubr.f32.gmra.mxu0 %v2081
  %v2370 = vpop.f32.mrf.mxu0
  %v2371 = vadd.f32 0.0, %v2370
  %v2372 = vpop.f32.mrf.mxu0
  %2373 = vmatprep.mubr.f32.mxu0 0.0
  %2374 = vmatmul.mubr.f32.gmra.mxu0 %v2084
  %v2375 = vpop.f32.mrf.mxu0
  %v2376 = vadd.f32 0.0, %v2375
  %v2377 = vpop.f32.mrf.mxu0
  %2378 = vmatprep.mubr.f32.mxu0 0.0
  %2379 = vmatmul.mubr.f32.gmra.mxu0 %v2087
  %v2380 = vpop.f32.mrf.mxu0
  %v2381 = vadd.f32 0.0, %v2380
  %v2382 = vpop.f32.mrf.mxu0
  %2383 = vmatprep.mubr.f32.mxu0 0.0
  %2384 = vmatmul.mubr.f32.gmra.mxu0 %v2090
  %v2385 = vpop.f32.mrf.mxu0
  %v2386 = vadd.f32 0.0, %v2385
  %v2387 = vpop.f32.mrf.mxu0
  %2388 = vmatprep.mubr.f32.mxu0 0.0
  %2389 = vmatmul.mubr.f32.gmra.mxu0 %v2093
  %v2390 = vpop.f32.mrf.mxu0
  %v2391 = vadd.f32 0.0, %v2390
  %v2392 = vpop.f32.mrf.mxu0
  %2393 = vmatprep.mubr.f32.mxu0 0.0
  %2394 = vmatmul.mubr.f32.gmra.mxu0 %v2096
  %v2395 = vpop.f32.mrf.mxu0
  %v2396 = vadd.f32 0.0, %v2395
  %v2397 = vpop.f32.mrf.mxu0
  %2398 = vmatprep.mubr.f32.mxu0 0.0
  %2399 = vmatmul.mubr.f32.gmra.mxu0 %v2099
  %v2400 = vpop.f32.mrf.mxu0
  %v2401 = vadd.f32 0.0, %v2400
  %v2402 = vpop.f32.mrf.mxu0
  %2403 = vmatprep.mubr.f32.mxu0 0.0
  %2404 = vmatmul.mubr.f32.gmra.mxu0 %v2102
  %v2405 = vpop.f32.mrf.mxu0
  %v2406 = vadd.f32 0.0, %v2405
  %v2407 = vpop.f32.mrf.mxu0
  %2408 = vmatprep.mubr.f32.mxu0 0.0
  %2409 = vmatmul.mubr.f32.gmra.mxu0 %v2105
  %v2410 = vpop.f32.mrf.mxu0
  %v2411 = vadd.f32 0.0, %v2410
  %v2412 = vpop.f32.mrf.mxu0
  %2413 = vmatprep.mubr.f32.mxu0 0.0
  %2414 = vmatmul.mubr.f32.gmra.mxu0 %v2108
  %v2415 = vpop.f32.mrf.mxu0
  %v2416 = vadd.f32 0.0, %v2415
  %v2417 = vpop.f32.mrf.mxu0
  %2418 = vmatprep.mubr.f32.mxu0 0.0
  %2419 = vmatmul.mubr.f32.gmra.mxu0 %v2111
  %v2420 = vpop.f32.mrf.mxu0
  %v2421 = vadd.f32 0.0, %v2420
  %v2422 = vpop.f32.mrf.mxu0
  %2423 = vmatprep.mubr.f32.mxu0 0.0
  %2424 = vmatmul.mubr.f32.gmra.mxu0 %v2114
  %v2425 = vpop.f32.mrf.mxu0
  %v2426 = vadd.f32 0.0, %v2425
  %v2427 = vpop.f32.mrf.mxu0
  %2428 = vmatprep.mubr.f32.mxu0 0.0
  %2429 = vmatmul.mubr.f32.gmra.mxu0 %v2117
  %v2430 = vpop.f32.mrf.mxu0
  %v2431 = vadd.f32 0.0, %v2430
  %v2432 = vpop.f32.mrf.mxu0
  %2433 = vmatprep.mubr.f32.mxu0 0.0
  %2434 = vmatmul.mubr.f32.gmra.mxu0 %v2120
  %v2435 = vpop.f32.mrf.mxu0
  %v2436 = vadd.f32 0.0, %v2435
  %v2437 = vpop.f32.mrf.mxu0
  %2438 = vmatprep.mubr.f32.mxu0 0.0
  %2439 = vmatmul.mubr.f32.gmra.mxu0 %v2123
  %v2440 = vpop.f32.mrf.mxu0
  %v2441 = vadd.f32 0.0, %v2440
  %v2442 = vpop.f32.mrf.mxu0
  %2443 = vmatprep.mubr.f32.mxu0 0.0
  %2444 = vmatmul.mubr.f32.gmra.mxu0 %v2126
  %v2445 = vpop.f32.mrf.mxu0
  %v2446 = vadd.f32 0.0, %v2445
  %v2447 = vpop.f32.mrf.mxu0
  %2448 = vmatprep.mubr.f32.mxu0 0.0
  %2449 = vmatmul.mubr.f32.gmra.mxu0 %v2129
  %v2450 = vpop.f32.mrf.mxu0
  %v2451 = vadd.f32 0.0, %v2450
  %v2452 = vpop.f32.mrf.mxu0
  %2453 = vmatprep.mubr.f32.mxu0 0.0
  %2454 = vmatmul.mubr.f32.gmra.mxu0 %v2132
  %v2455 = vpop.f32.mrf.mxu0
  %v2456 = vadd.f32 0.0, %v2455
  %v2457 = vpop.f32.mrf.mxu0
  %2458 = vmatprep.mubr.f32.mxu0 0.0
  %2459 = vmatmul.mubr.f32.gmra.mxu0 %v2135
  %v2460 = vpop.f32.mrf.mxu0
  %v2461 = vadd.f32 0.0, %v2460
  %v2462 = vpop.f32.mrf.mxu0
  %2463 = vmatprep.mubr.f32.mxu0 0.0
  %2464 = vmatmul.mubr.f32.gmra.mxu0 %v2138
  %v2465 = vpop.f32.mrf.mxu0
  %v2466 = vadd.f32 0.0, %v2465
  %v2467 = vpop.f32.mrf.mxu0
  %2468 = vmatprep.mubr.f32.mxu0 0.0
  %2469 = vmatmul.mubr.f32.gmra.mxu0 %v2141
  %v2470 = vpop.f32.mrf.mxu0
  %v2471 = vadd.f32 0.0, %v2470
  %v2472 = vpop.f32.mrf.mxu0
  %2473 = vmatprep.mubr.f32.mxu0 0.0
  %2474 = vmatmul.mubr.f32.gmra.mxu0 %v2144
  %v2475 = vpop.f32.mrf.mxu0
  %v2476 = vadd.f32 0.0, %v2475
  %v2477 = vpop.f32.mrf.mxu0
  %2478 = vmatprep.mubr.f32.mxu0 0.0
  %2479 = vmatmul.mubr.f32.gmra.mxu0 %v2147
  %v2480 = vpop.f32.mrf.mxu0
  %v2481 = vadd.f32 0.0, %v2480
  %v2482 = vpop.f32.mrf.mxu0
  %2483 = vmatprep.mubr.f32.mxu0 0.0
  %2484 = vmatmul.mubr.f32.gmra.mxu0 %v2150
  %v2485 = vpop.f32.mrf.mxu0
  %v2486 = vadd.f32 0.0, %v2485
  %v2487 = vpop.f32.mrf.mxu0
  %2488 = vmatprep.mubr.f32.mxu0 0.0
  %2489 = vmatmul.mubr.f32.gmra.mxu0 %v2153
  %v2490 = vpop.f32.mrf.mxu0
  %v2491 = vadd.f32 0.0, %v2490
  %v2492 = vpop.f32.mrf.mxu0
  %2493 = vmatprep.mubr.f32.mxu0 0.0
  %2494 = vmatmul.mubr.f32.gmra.mxu0 %v2156
  %v2495 = vpop.f32.mrf.mxu0
  %v2496 = vadd.f32 0.0, %v2495
  %v2497 = vpop.f32.mrf.mxu0
  %2498 = vmatprep.mubr.f32.mxu0 0.0
  %2499 = vmatmul.mubr.f32.gmra.mxu0 %v2159
  %v2500 = vpop.f32.mrf.mxu0
  %v2501 = vadd.f32 0.0, %v2500
  %v2502 = vpop.f32.mrf.mxu0
  %2503 = vmatprep.mubr.f32.mxu0 0.0
  %2504 = vmatmul.mubr.f32.gmra.mxu0 %v2162
  %v2505 = vpop.f32.mrf.mxu0
  %v2506 = vadd.f32 0.0, %v2505
  %v2507 = vpop.f32.mrf.mxu0
  %2508 = vmatprep.mubr.f32.mxu0 0.0
  %2509 = vmatmul.mubr.f32.gmra.mxu0 %v2165
  %v2510 = vpop.f32.mrf.mxu0
  %v2511 = vadd.f32 0.0, %v2510
  %v2512 = vpop.f32.mrf.mxu0
  %2513 = vmatprep.mubr.f32.mxu0 0.0
  %2514 = vmatmul.mubr.f32.gmra.mxu0 %v2168
  %v2515 = vpop.f32.mrf.mxu0
  %v2516 = vadd.f32 0.0, %v2515
  %v2517 = vpop.f32.mrf.mxu0
  %2518 = vmatprep.mubr.f32.mxu0 0.0
  %2519 = vmatmul.mubr.f32.gmra.mxu0 %v2171
  %v2520 = vpop.f32.mrf.mxu0
  %v2521 = vadd.f32 0.0, %v2520
  %v2522 = vpop.f32.mrf.mxu0
  %2523 = vmatprep.mubr.f32.mxu0 0.0
  %2524 = vmatmul.mubr.f32.gmra.mxu0 %v2174
  %v2525 = vpop.f32.mrf.mxu0
  %v2526 = vadd.f32 0.0, %v2525
  %v2527 = vpop.f32.mrf.mxu0
  %2528 = vmatprep.mubr.f32.mxu0 0.0
  %2529 = vmatmul.mubr.f32.gmra.mxu0 %v2177
  %v2530 = vpop.f32.mrf.mxu0
  %v2531 = vadd.f32 0.0, %v2530
  %v2532 = vpop.f32.mrf.mxu0
  %2533 = vmatprep.mubr.f32.mxu0 0.0
  %2534 = vmatmul.mubr.f32.gmra.mxu0 %v2180
  %v2535 = vpop.f32.mrf.mxu0
  %v2536 = vadd.f32 0.0, %v2535
  %v2537 = vpop.f32.mrf.mxu0
  %2538 = vmatprep.mubr.f32.mxu0 0.0
  %2539 = vmatmul.mubr.f32.gmra.mxu0 %v2183
  %v2540 = vpop.f32.mrf.mxu0
  %v2541 = vadd.f32 0.0, %v2540
  %v2542 = vpop.f32.mrf.mxu0
  %2543 = vmatprep.mubr.f32.mxu0 0.0
  %2544 = vmatmul.mubr.f32.gmra.mxu0 %v2186
  %v2545 = vpop.f32.mrf.mxu0
  %v2546 = vadd.f32 0.0, %v2545
  %v2547 = vpop.f32.mrf.mxu0
  %2548 = vmatprep.mubr.f32.mxu0 0.0
  %2549 = vmatmul.mubr.f32.gmra.mxu0 %v2189
  %v2550 = vpop.f32.mrf.mxu0
  %v2551 = vadd.f32 0.0, %v2550
  %v2552 = vpop.f32.mrf.mxu0
  %2553 = vmatprep.mubr.f32.mxu0 0.0
  %2554 = vmatmul.mubr.f32.gmra.mxu0 %v2192
  %v2555 = vpop.f32.mrf.mxu0
  %v2556 = vadd.f32 0.0, %v2555
  %v2557 = vpop.f32.mrf.mxu0
  %2558 = vmatprep.mubr.f32.mxu0 0.0
  %2559 = vmatmul.mubr.f32.gmra.mxu0 %v2195
  %v2560 = vpop.f32.mrf.mxu0
  %v2561 = vadd.f32 0.0, %v2560
  %v2562 = vpop.f32.mrf.mxu0
  %2563 = vmatprep.mubr.f32.mxu0 0.0
  %2564 = vmatmul.mubr.f32.gmra.mxu0 %v2198
  %v2565 = vpop.f32.mrf.mxu0
  %v2566 = vadd.f32 0.0, %v2565
  %v2567 = vpop.f32.mrf.mxu0
  %2568 = vmatprep.mubr.f32.mxu0 0.0
  %2569 = vmatmul.mubr.f32.gmra.mxu0 %v2201
  %v2570 = vpop.f32.mrf.mxu0
  %v2571 = vadd.f32 0.0, %v2570
  %v2572 = vpop.f32.mrf.mxu0
  %2573 = vmatprep.mubr.f32.mxu0 0.0
  %2574 = vmatmul.mubr.f32.gmra.mxu0 %v2204
  %v2575 = vpop.f32.mrf.mxu0
  %v2576 = vadd.f32 0.0, %v2575
  %v2577 = vpop.f32.mrf.mxu0
  %2578 = vmatprep.mubr.f32.mxu0 0.0
  %2579 = vmatmul.mubr.f32.gmra.mxu0 %v2207
  %v2580 = vpop.f32.mrf.mxu0
  %v2581 = vadd.f32 0.0, %v2580
  %v2582 = vpop.f32.mrf.mxu0
  %2583 = vmatprep.mubr.f32.mxu0 0.0
  %2584 = vmatmul.mubr.f32.gmra.mxu0 %v2210
  %v2585 = vpop.f32.mrf.mxu0
  %v2586 = vadd.f32 0.0, %v2585
  %v2587 = vpop.f32.mrf.mxu0
  %2588 = vmatprep.mubr.f32.mxu0 0.0
  %2589 = vmatmul.mubr.f32.gmra.mxu0 %v2213
  %v2590 = vpop.f32.mrf.mxu0
  %v2591 = vadd.f32 0.0, %v2590
  %v2592 = vpop.f32.mrf.mxu0
  %2593 = vmatprep.mubr.f32.mxu0 0.0
  %2594 = vmatmul.mubr.f32.gmra.mxu0 %v2216
  %v2595 = vpop.f32.mrf.mxu0
  %v2596 = vadd.f32 0.0, %v2595
  %v2597 = vpop.f32.mrf.mxu0
  %2598 = vmatprep.mubr.f32.mxu0 0.0
  %2599 = vmatmul.mubr.f32.gmra.mxu0 %v2219
  %v2600 = vpop.f32.mrf.mxu0
  %v2601 = vadd.f32 0.0, %v2600
  %v2602 = vpop.f32.mrf.mxu0
  %2603 = vmatprep.mubr.f32.mxu0 0.0
  %2604 = vmatmul.mubr.f32.gmra.mxu0 %v2222
  %v2605 = vpop.f32.mrf.mxu0
  %v2606 = vadd.f32 0.0, %v2605
  %v2607 = vpop.f32.mrf.mxu0
  %2608 = vdwg.mxu0
  %v2609 = vadd.f32 %v1959, %v2291
  %v2610 = vadd.f32 %v1960, %v2296
  %v2611 = vadd.f32 %v1961, %v2301
  %v2612 = vadd.f32 %v1962, %v2306
  %v2613 = vadd.f32 %v1963, %v2311
  %v2614 = vadd.f32 %v1964, %v2316
  %v2615 = vadd.f32 %v1965, %v2321
  %v2616 = vadd.f32 %v1966, %v2326
  %v2617 = vadd.f32 %v1967, %v2331
  %v2618 = vadd.f32 %v1968, %v2336
  %v2619 = vadd.f32 %v1969, %v2341
  %v2620 = vadd.f32 %v1970, %v2346
  %v2621 = vadd.f32 %v1971, %v2351
  %v2622 = vadd.f32 %v1972, %v2356
  %v2623 = vadd.f32 %v1973, %v2361
  %v2624 = vadd.f32 %v1974, %v2366
  %v2625 = vadd.f32 %v1975, %v2371
  %v2626 = vadd.f32 %v1976, %v2376
  %v2627 = vadd.f32 %v1977, %v2381
  %v2628 = vadd.f32 %v1978, %v2386
  %v2629 = vadd.f32 %v1979, %v2391
  %v2630 = vadd.f32 %v1980, %v2396
  %v2631 = vadd.f32 %v1981, %v2401
  %v2632 = vadd.f32 %v1982, %v2406
  %v2633 = vadd.f32 %v1983, %v2411
  %v2634 = vadd.f32 %v1984, %v2416
  %v2635 = vadd.f32 %v1985, %v2421
  %v2636 = vadd.f32 %v1986, %v2426
  %v2637 = vadd.f32 %v1987, %v2431
  %v2638 = vadd.f32 %v1988, %v2436
  %v2639 = vadd.f32 %v1989, %v2441
  %v2640 = vadd.f32 %v1990, %v2446
  %v2641 = vadd.f32 %v1991, %v2451
  %v2642 = vadd.f32 %v1992, %v2456
  %v2643 = vadd.f32 %v1993, %v2461
  %v2644 = vadd.f32 %v1994, %v2466
  %v2645 = vadd.f32 %v1995, %v2471
  %v2646 = vadd.f32 %v1996, %v2476
  %v2647 = vadd.f32 %v1997, %v2481
  %v2648 = vadd.f32 %v1998, %v2486
  %v2649 = vadd.f32 %v1999, %v2491
  %v2650 = vadd.f32 %v2000, %v2496
  %v2651 = vadd.f32 %v2001, %v2501
  %v2652 = vadd.f32 %v2002, %v2506
  %v2653 = vadd.f32 %v2003, %v2511
  %v2654 = vadd.f32 %v2004, %v2516
  %v2655 = vadd.f32 %v2005, %v2521
  %v2656 = vadd.f32 %v2006, %v2526
  %v2657 = vadd.f32 %v2007, %v2531
  %v2658 = vadd.f32 %v2008, %v2536
  %v2659 = vadd.f32 %v2009, %v2541
  %v2660 = vadd.f32 %v2010, %v2546
  %v2661 = vadd.f32 %v2011, %v2551
  %v2662 = vadd.f32 %v2012, %v2556
  %v2663 = vadd.f32 %v2013, %v2561
  %v2664 = vadd.f32 %v2014, %v2566
  %v2665 = vadd.f32 %v2015, %v2571
  %v2666 = vadd.f32 %v2016, %v2576
  %v2667 = vadd.f32 %v2017, %v2581
  %v2668 = vadd.f32 %v2018, %v2586
  %v2669 = vadd.f32 %v2019, %v2591
  %v2670 = vadd.f32 %v2020, %v2596
  %v2671 = vadd.f32 %v2021, %v2601
  %v2672 = vadd.f32 %v2022, %v2606
  %s2673 = scalar_lea.vmem %s3, 128
  %v2674 = vld [vmem:[%s2673] sm:$0xff]
  %v2675 = vld [vmem:[%s2673 + $0x8] sm:$0xff]
  %v2676 = vld [vmem:[%s2673 + $0x10] sm:$0xff]
  %v2677 = vld [vmem:[%s2673 + $0x18] sm:$0xff]
  %v2678 = vld [vmem:[%s2673 + $0x20] sm:$0xff]
  %v2679 = vld [vmem:[%s2673 + $0x28] sm:$0xff]
  %v2680 = vld [vmem:[%s2673 + $0x30] sm:$0xff]
  %v2681 = vld [vmem:[%s2673 + $0x38] sm:$0xff]
  %v2683 = vsel %vm1420, %v1395, 0
  %v2686 = vsel %vm1420, %v1396, 0
  %v2689 = vsel %vm1420, %v1397, 0
  %v2692 = vsel %vm1420, %v1398, 0
  %v2695 = vsel %vm1420, %v1399, 0
  %v2698 = vsel %vm1420, %v1400, 0
  %v2701 = vsel %vm1420, %v1401, 0
  %v2704 = vsel %vm1420, %v1402, 0
  %v2707 = vsel %vm1420, %v1403, 0
  %v2710 = vsel %vm1420, %v1404, 0
  %v2713 = vsel %vm1420, %v1405, 0
  %v2716 = vsel %vm1420, %v1406, 0
  %v2719 = vsel %vm1420, %v1407, 0
  %v2722 = vsel %vm1420, %v1408, 0
  %v2725 = vsel %vm1420, %v1409, 0
  %v2728 = vsel %vm1420, %v1410, 0
  %2730 = vmatprep.subr.mxu0 0.0
  %2731 = vmatpush1.msra.mxu0 0.0
  %2732 = vmatprep.subr.mxu0 0.0
  %2733 = vmatpush1.msra.mxu0 0.0
  %2734 = vmatprep.subr.mxu0 0.0
  %2735 = vmatpush1.msra.mxu0 0.0
  %2736 = vmatprep.subr.mxu0 0.0
  %2737 = vmatpush1.msra.mxu0 0.0
  %2738 = vmatprep.subr.mxu0 0.0
  %2739 = vmatpush1.msra.mxu0 0.0
  %2740 = vmatprep.subr.mxu0 0.0
  %2741 = vmatpush1.msra.mxu0 0.0
  %2742 = vmatprep.subr.mxu0 0.0
  %2743 = vmatpush1.msra.mxu0 0.0
  %2744 = vmatprep.subr.mxu0 0.0
  %2745 = vmatpush1.msra.mxu0 0.0
  %2746 = vmatprep.subr.mxu0 0.0
  %2747 = vmatpush1.msra.mxu0 %v2681
  %2748 = vmatprep.subr.mxu0 0.0
  %2749 = vmatpush1.msra.mxu0 %v2680
  %2750 = vmatprep.subr.mxu0 0.0
  %2751 = vmatpush1.msra.mxu0 %v2679
  %2752 = vmatprep.subr.mxu0 0.0
  %2753 = vmatpush1.msra.mxu0 %v2678
  %2754 = vmatprep.subr.mxu0 0.0
  %2755 = vmatpush1.msra.mxu0 %v2677
  %2756 = vmatprep.subr.mxu0 0.0
  %2757 = vmatpush1.msra.mxu0 %v2676
  %2758 = vmatprep.subr.mxu0 0.0
  %2759 = vmatpush1.msra.mxu0 %v2675
  %2760 = vmatprep.subr.mxu0 0.0
  %2761 = vmatpush1.msra.mxu0 %v2674
  %2762 = vmatprep.subr.mxu0 0.0
  %2763 = vmatpush2.msra.mxu0 0.0
  %2764 = vmatprep.subr.mxu0 0.0
  %2765 = vmatpush2.msra.mxu0 0.0
  %2766 = vmatprep.subr.mxu0 0.0
  %2767 = vmatpush2.msra.mxu0 0.0
  %2768 = vmatprep.subr.mxu0 0.0
  %2769 = vmatpush2.msra.mxu0 0.0
  %2770 = vmatprep.subr.mxu0 0.0
  %2771 = vmatpush2.msra.mxu0 0.0
  %2772 = vmatprep.subr.mxu0 0.0
  %2773 = vmatpush2.msra.mxu0 0.0
  %2774 = vmatprep.subr.mxu0 0.0
  %2775 = vmatpush2.msra.mxu0 0.0
  %2776 = vmatprep.subr.mxu0 0.0
  %2777 = vmatpush2.msra.mxu0 0.0
  %2778 = vmatprep.subr.mxu0 0.0
  %2779 = vmatpush2.msra.mxu0 0.0
  %2780 = vmatprep.subr.mxu0 0.0
  %2781 = vmatpush2.msra.mxu0 0.0
  %2782 = vmatprep.subr.mxu0 0.0
  %2783 = vmatpush2.msra.mxu0 0.0
  %2784 = vmatprep.subr.mxu0 0.0
  %2785 = vmatpush2.msra.mxu0 0.0
  %2786 = vmatprep.subr.mxu0 0.0
  %2787 = vmatpush2.msra.mxu0 0.0
  %2788 = vmatprep.subr.mxu0 0.0
  %2789 = vmatpush2.msra.mxu0 0.0
  %2790 = vmatprep.subr.mxu0 0.0
  %2791 = vmatpush2.msra.mxu0 0.0
  %2792 = vmatprep.subr.mxu0 0.0
  %2793 = vmatpush2.msra.mxu0 0.0
  %2794 = vmatprep.mubr.f32.mxu0 0.0
  %2795 = vmatmul.mubr.f32.gmra.mxu0 %v1425
  %v2796 = vpop.f32.mrf.mxu0
  %v2797 = vadd.f32 0.0, %v2796
  %v2798 = vpop.f32.mrf.mxu0
  %2799 = vmatprep.mubr.f32.mxu0 0.0
  %2800 = vmatmul.mubr.f32.gmra.mxu0 %v1428
  %v2801 = vpop.f32.mrf.mxu0
  %v2802 = vadd.f32 0.0, %v2801
  %v2803 = vpop.f32.mrf.mxu0
  %2804 = vmatprep.mubr.f32.mxu0 0.0
  %2805 = vmatmul.mubr.f32.gmra.mxu0 %v1431
  %v2806 = vpop.f32.mrf.mxu0
  %v2807 = vadd.f32 0.0, %v2806
  %v2808 = vpop.f32.mrf.mxu0
  %2809 = vmatprep.mubr.f32.mxu0 0.0
  %2810 = vmatmul.mubr.f32.gmra.mxu0 %v1434
  %v2811 = vpop.f32.mrf.mxu0
  %v2812 = vadd.f32 0.0, %v2811
  %v2813 = vpop.f32.mrf.mxu0
  %2814 = vmatprep.mubr.f32.mxu0 0.0
  %2815 = vmatmul.mubr.f32.gmra.mxu0 %v1437
  %v2816 = vpop.f32.mrf.mxu0
  %v2817 = vadd.f32 0.0, %v2816
  %v2818 = vpop.f32.mrf.mxu0
  %2819 = vmatprep.mubr.f32.mxu0 0.0
  %2820 = vmatmul.mubr.f32.gmra.mxu0 %v1440
  %v2821 = vpop.f32.mrf.mxu0
  %v2822 = vadd.f32 0.0, %v2821
  %v2823 = vpop.f32.mrf.mxu0
  %2824 = vmatprep.mubr.f32.mxu0 0.0
  %2825 = vmatmul.mubr.f32.gmra.mxu0 %v1443
  %v2826 = vpop.f32.mrf.mxu0
  %v2827 = vadd.f32 0.0, %v2826
  %v2828 = vpop.f32.mrf.mxu0
  %2829 = vmatprep.mubr.f32.mxu0 0.0
  %2830 = vmatmul.mubr.f32.gmra.mxu0 %v1446
  %v2831 = vpop.f32.mrf.mxu0
  %v2832 = vadd.f32 0.0, %v2831
  %v2833 = vpop.f32.mrf.mxu0
  %2834 = vmatprep.mubr.f32.mxu0 0.0
  %2835 = vmatmul.mubr.f32.gmra.mxu0 %v1449
  %v2836 = vpop.f32.mrf.mxu0
  %v2837 = vadd.f32 0.0, %v2836
  %v2838 = vpop.f32.mrf.mxu0
  %2839 = vmatprep.mubr.f32.mxu0 0.0
  %2840 = vmatmul.mubr.f32.gmra.mxu0 %v1452
  %v2841 = vpop.f32.mrf.mxu0
  %v2842 = vadd.f32 0.0, %v2841
  %v2843 = vpop.f32.mrf.mxu0
  %2844 = vmatprep.mubr.f32.mxu0 0.0
  %2845 = vmatmul.mubr.f32.gmra.mxu0 %v1455
  %v2846 = vpop.f32.mrf.mxu0
  %v2847 = vadd.f32 0.0, %v2846
  %v2848 = vpop.f32.mrf.mxu0
  %2849 = vmatprep.mubr.f32.mxu0 0.0
  %2850 = vmatmul.mubr.f32.gmra.mxu0 %v1458
  %v2851 = vpop.f32.mrf.mxu0
  %v2852 = vadd.f32 0.0, %v2851
  %v2853 = vpop.f32.mrf.mxu0
  %2854 = vmatprep.mubr.f32.mxu0 0.0
  %2855 = vmatmul.mubr.f32.gmra.mxu0 %v1461
  %v2856 = vpop.f32.mrf.mxu0
  %v2857 = vadd.f32 0.0, %v2856
  %v2858 = vpop.f32.mrf.mxu0
  %2859 = vmatprep.mubr.f32.mxu0 0.0
  %2860 = vmatmul.mubr.f32.gmra.mxu0 %v1464
  %v2861 = vpop.f32.mrf.mxu0
  %v2862 = vadd.f32 0.0, %v2861
  %v2863 = vpop.f32.mrf.mxu0
  %2864 = vmatprep.mubr.f32.mxu0 0.0
  %2865 = vmatmul.mubr.f32.gmra.mxu0 %v1467
  %v2866 = vpop.f32.mrf.mxu0
  %v2867 = vadd.f32 0.0, %v2866
  %v2868 = vpop.f32.mrf.mxu0
  %2869 = vmatprep.mubr.f32.mxu0 0.0
  %2870 = vmatmul.mubr.f32.gmra.mxu0 %v1470
  %v2871 = vpop.f32.mrf.mxu0
  %v2872 = vadd.f32 0.0, %v2871
  %v2873 = vpop.f32.mrf.mxu0
  %2874 = vmatprep.mubr.f32.mxu0 0.0
  %2875 = vmatmul.mubr.f32.gmra.mxu0 %v1473
  %v2876 = vpop.f32.mrf.mxu0
  %v2877 = vadd.f32 0.0, %v2876
  %v2878 = vpop.f32.mrf.mxu0
  %2879 = vmatprep.mubr.f32.mxu0 0.0
  %2880 = vmatmul.mubr.f32.gmra.mxu0 %v1476
  %v2881 = vpop.f32.mrf.mxu0
  %v2882 = vadd.f32 0.0, %v2881
  %v2883 = vpop.f32.mrf.mxu0
  %2884 = vmatprep.mubr.f32.mxu0 0.0
  %2885 = vmatmul.mubr.f32.gmra.mxu0 %v1479
  %v2886 = vpop.f32.mrf.mxu0
  %v2887 = vadd.f32 0.0, %v2886
  %v2888 = vpop.f32.mrf.mxu0
  %2889 = vmatprep.mubr.f32.mxu0 0.0
  %2890 = vmatmul.mubr.f32.gmra.mxu0 %v1482
  %v2891 = vpop.f32.mrf.mxu0
  %v2892 = vadd.f32 0.0, %v2891
  %v2893 = vpop.f32.mrf.mxu0
  %2894 = vmatprep.mubr.f32.mxu0 0.0
  %2895 = vmatmul.mubr.f32.gmra.mxu0 %v1485
  %v2896 = vpop.f32.mrf.mxu0
  %v2897 = vadd.f32 0.0, %v2896
  %v2898 = vpop.f32.mrf.mxu0
  %2899 = vmatprep.mubr.f32.mxu0 0.0
  %2900 = vmatmul.mubr.f32.gmra.mxu0 %v1488
  %v2901 = vpop.f32.mrf.mxu0
  %v2902 = vadd.f32 0.0, %v2901
  %v2903 = vpop.f32.mrf.mxu0
  %2904 = vmatprep.mubr.f32.mxu0 0.0
  %2905 = vmatmul.mubr.f32.gmra.mxu0 %v1491
  %v2906 = vpop.f32.mrf.mxu0
  %v2907 = vadd.f32 0.0, %v2906
  %v2908 = vpop.f32.mrf.mxu0
  %2909 = vmatprep.mubr.f32.mxu0 0.0
  %2910 = vmatmul.mubr.f32.gmra.mxu0 %v1494
  %v2911 = vpop.f32.mrf.mxu0
  %v2912 = vadd.f32 0.0, %v2911
  %v2913 = vpop.f32.mrf.mxu0
  %2914 = vmatprep.mubr.f32.mxu0 0.0
  %2915 = vmatmul.mubr.f32.gmra.mxu0 %v1497
  %v2916 = vpop.f32.mrf.mxu0
  %v2917 = vadd.f32 0.0, %v2916
  %v2918 = vpop.f32.mrf.mxu0
  %2919 = vmatprep.mubr.f32.mxu0 0.0
  %2920 = vmatmul.mubr.f32.gmra.mxu0 %v1500
  %v2921 = vpop.f32.mrf.mxu0
  %v2922 = vadd.f32 0.0, %v2921
  %v2923 = vpop.f32.mrf.mxu0
  %2924 = vmatprep.mubr.f32.mxu0 0.0
  %2925 = vmatmul.mubr.f32.gmra.mxu0 %v1503
  %v2926 = vpop.f32.mrf.mxu0
  %v2927 = vadd.f32 0.0, %v2926
  %v2928 = vpop.f32.mrf.mxu0
  %2929 = vmatprep.mubr.f32.mxu0 0.0
  %2930 = vmatmul.mubr.f32.gmra.mxu0 %v1506
  %v2931 = vpop.f32.mrf.mxu0
  %v2932 = vadd.f32 0.0, %v2931
  %v2933 = vpop.f32.mrf.mxu0
  %2934 = vmatprep.mubr.f32.mxu0 0.0
  %2935 = vmatmul.mubr.f32.gmra.mxu0 %v1509
  %v2936 = vpop.f32.mrf.mxu0
  %v2937 = vadd.f32 0.0, %v2936
  %v2938 = vpop.f32.mrf.mxu0
  %2939 = vmatprep.mubr.f32.mxu0 0.0
  %2940 = vmatmul.mubr.f32.gmra.mxu0 %v1512
  %v2941 = vpop.f32.mrf.mxu0
  %v2942 = vadd.f32 0.0, %v2941
  %v2943 = vpop.f32.mrf.mxu0
  %2944 = vmatprep.mubr.f32.mxu0 0.0
  %2945 = vmatmul.mubr.f32.gmra.mxu0 %v1515
  %v2946 = vpop.f32.mrf.mxu0
  %v2947 = vadd.f32 0.0, %v2946
  %v2948 = vpop.f32.mrf.mxu0
  %2949 = vmatprep.mubr.f32.mxu0 0.0
  %2950 = vmatmul.mubr.f32.gmra.mxu0 %v1518
  %v2951 = vpop.f32.mrf.mxu0
  %v2952 = vadd.f32 0.0, %v2951
  %v2953 = vpop.f32.mrf.mxu0
  %2954 = vmatprep.mubr.f32.mxu0 0.0
  %2955 = vmatmul.mubr.f32.gmra.mxu0 %v1521
  %v2956 = vpop.f32.mrf.mxu0
  %v2957 = vadd.f32 0.0, %v2956
  %v2958 = vpop.f32.mrf.mxu0
  %2959 = vmatprep.mubr.f32.mxu0 0.0
  %2960 = vmatmul.mubr.f32.gmra.mxu0 %v1524
  %v2961 = vpop.f32.mrf.mxu0
  %v2962 = vadd.f32 0.0, %v2961
  %v2963 = vpop.f32.mrf.mxu0
  %2964 = vmatprep.mubr.f32.mxu0 0.0
  %2965 = vmatmul.mubr.f32.gmra.mxu0 %v1527
  %v2966 = vpop.f32.mrf.mxu0
  %v2967 = vadd.f32 0.0, %v2966
  %v2968 = vpop.f32.mrf.mxu0
  %2969 = vmatprep.mubr.f32.mxu0 0.0
  %2970 = vmatmul.mubr.f32.gmra.mxu0 %v1530
  %v2971 = vpop.f32.mrf.mxu0
  %v2972 = vadd.f32 0.0, %v2971
  %v2973 = vpop.f32.mrf.mxu0
  %2974 = vmatprep.mubr.f32.mxu0 0.0
  %2975 = vmatmul.mubr.f32.gmra.mxu0 %v1533
  %v2976 = vpop.f32.mrf.mxu0
  %v2977 = vadd.f32 0.0, %v2976
  %v2978 = vpop.f32.mrf.mxu0
  %2979 = vmatprep.mubr.f32.mxu0 0.0
  %2980 = vmatmul.mubr.f32.gmra.mxu0 %v1536
  %v2981 = vpop.f32.mrf.mxu0
  %v2982 = vadd.f32 0.0, %v2981
  %v2983 = vpop.f32.mrf.mxu0
  %2984 = vmatprep.mubr.f32.mxu0 0.0
  %2985 = vmatmul.mubr.f32.gmra.mxu0 %v1539
  %v2986 = vpop.f32.mrf.mxu0
  %v2987 = vadd.f32 0.0, %v2986
  %v2988 = vpop.f32.mrf.mxu0
  %2989 = vmatprep.mubr.f32.mxu0 0.0
  %2990 = vmatmul.mubr.f32.gmra.mxu0 %v1542
  %v2991 = vpop.f32.mrf.mxu0
  %v2992 = vadd.f32 0.0, %v2991
  %v2993 = vpop.f32.mrf.mxu0
  %2994 = vmatprep.mubr.f32.mxu0 0.0
  %2995 = vmatmul.mubr.f32.gmra.mxu0 %v1545
  %v2996 = vpop.f32.mrf.mxu0
  %v2997 = vadd.f32 0.0, %v2996
  %v2998 = vpop.f32.mrf.mxu0
  %2999 = vmatprep.mubr.f32.mxu0 0.0
  %3000 = vmatmul.mubr.f32.gmra.mxu0 %v1548
  %v3001 = vpop.f32.mrf.mxu0
  %v3002 = vadd.f32 0.0, %v3001
  %v3003 = vpop.f32.mrf.mxu0
  %3004 = vmatprep.mubr.f32.mxu0 0.0
  %3005 = vmatmul.mubr.f32.gmra.mxu0 %v1551
  %v3006 = vpop.f32.mrf.mxu0
  %v3007 = vadd.f32 0.0, %v3006
  %v3008 = vpop.f32.mrf.mxu0
  %3009 = vmatprep.mubr.f32.mxu0 0.0
  %3010 = vmatmul.mubr.f32.gmra.mxu0 %v1554
  %v3011 = vpop.f32.mrf.mxu0
  %v3012 = vadd.f32 0.0, %v3011
  %v3013 = vpop.f32.mrf.mxu0
  %3014 = vmatprep.mubr.f32.mxu0 0.0
  %3015 = vmatmul.mubr.f32.gmra.mxu0 %v1557
  %v3016 = vpop.f32.mrf.mxu0
  %v3017 = vadd.f32 0.0, %v3016
  %v3018 = vpop.f32.mrf.mxu0
  %3019 = vmatprep.mubr.f32.mxu0 0.0
  %3020 = vmatmul.mubr.f32.gmra.mxu0 %v1560
  %v3021 = vpop.f32.mrf.mxu0
  %v3022 = vadd.f32 0.0, %v3021
  %v3023 = vpop.f32.mrf.mxu0
  %3024 = vmatprep.mubr.f32.mxu0 0.0
  %3025 = vmatmul.mubr.f32.gmra.mxu0 %v1563
  %v3026 = vpop.f32.mrf.mxu0
  %v3027 = vadd.f32 0.0, %v3026
  %v3028 = vpop.f32.mrf.mxu0
  %3029 = vmatprep.mubr.f32.mxu0 0.0
  %3030 = vmatmul.mubr.f32.gmra.mxu0 %v1566
  %v3031 = vpop.f32.mrf.mxu0
  %v3032 = vadd.f32 0.0, %v3031
  %v3033 = vpop.f32.mrf.mxu0
  %3034 = vmatprep.mubr.f32.mxu0 0.0
  %3035 = vmatmul.mubr.f32.gmra.mxu0 %v2683
  %v3036 = vpop.f32.mrf.mxu0
  %v3037 = vadd.f32 0.0, %v3036
  %v3038 = vpop.f32.mrf.mxu0
  %3039 = vmatprep.mubr.f32.mxu0 0.0
  %3040 = vmatmul.mubr.f32.gmra.mxu0 %v2686
  %v3041 = vpop.f32.mrf.mxu0
  %v3042 = vadd.f32 0.0, %v3041
  %v3043 = vpop.f32.mrf.mxu0
  %3044 = vmatprep.mubr.f32.mxu0 0.0
  %3045 = vmatmul.mubr.f32.gmra.mxu0 %v2689
  %v3046 = vpop.f32.mrf.mxu0
  %v3047 = vadd.f32 0.0, %v3046
  %v3048 = vpop.f32.mrf.mxu0
  %3049 = vmatprep.mubr.f32.mxu0 0.0
  %3050 = vmatmul.mubr.f32.gmra.mxu0 %v2692
  %v3051 = vpop.f32.mrf.mxu0
  %v3052 = vadd.f32 0.0, %v3051
  %v3053 = vpop.f32.mrf.mxu0
  %3054 = vmatprep.mubr.f32.mxu0 0.0
  %3055 = vmatmul.mubr.f32.gmra.mxu0 %v2695
  %v3056 = vpop.f32.mrf.mxu0
  %v3057 = vadd.f32 0.0, %v3056
  %v3058 = vpop.f32.mrf.mxu0
  %3059 = vmatprep.mubr.f32.mxu0 0.0
  %3060 = vmatmul.mubr.f32.gmra.mxu0 %v2698
  %v3061 = vpop.f32.mrf.mxu0
  %v3062 = vadd.f32 0.0, %v3061
  %v3063 = vpop.f32.mrf.mxu0
  %3064 = vmatprep.mubr.f32.mxu0 0.0
  %3065 = vmatmul.mubr.f32.gmra.mxu0 %v2701
  %v3066 = vpop.f32.mrf.mxu0
  %v3067 = vadd.f32 0.0, %v3066
  %v3068 = vpop.f32.mrf.mxu0
  %3069 = vmatprep.mubr.f32.mxu0 0.0
  %3070 = vmatmul.mubr.f32.gmra.mxu0 %v2704
  %v3071 = vpop.f32.mrf.mxu0
  %v3072 = vadd.f32 0.0, %v3071
  %v3073 = vpop.f32.mrf.mxu0
  %3074 = vmatprep.mubr.f32.mxu0 0.0
  %3075 = vmatmul.mubr.f32.gmra.mxu0 %v2707
  %v3076 = vpop.f32.mrf.mxu0
  %v3077 = vadd.f32 0.0, %v3076
  %v3078 = vpop.f32.mrf.mxu0
  %3079 = vmatprep.mubr.f32.mxu0 0.0
  %3080 = vmatmul.mubr.f32.gmra.mxu0 %v2710
  %v3081 = vpop.f32.mrf.mxu0
  %v3082 = vadd.f32 0.0, %v3081
  %v3083 = vpop.f32.mrf.mxu0
  %3084 = vmatprep.mubr.f32.mxu0 0.0
  %3085 = vmatmul.mubr.f32.gmra.mxu0 %v2713
  %v3086 = vpop.f32.mrf.mxu0
  %v3087 = vadd.f32 0.0, %v3086
  %v3088 = vpop.f32.mrf.mxu0
  %3089 = vmatprep.mubr.f32.mxu0 0.0
  %3090 = vmatmul.mubr.f32.gmra.mxu0 %v2716
  %v3091 = vpop.f32.mrf.mxu0
  %v3092 = vadd.f32 0.0, %v3091
  %v3093 = vpop.f32.mrf.mxu0
  %3094 = vmatprep.mubr.f32.mxu0 0.0
  %3095 = vmatmul.mubr.f32.gmra.mxu0 %v2719
  %v3096 = vpop.f32.mrf.mxu0
  %v3097 = vadd.f32 0.0, %v3096
  %v3098 = vpop.f32.mrf.mxu0
  %3099 = vmatprep.mubr.f32.mxu0 0.0
  %3100 = vmatmul.mubr.f32.gmra.mxu0 %v2722
  %v3101 = vpop.f32.mrf.mxu0
  %v3102 = vadd.f32 0.0, %v3101
  %v3103 = vpop.f32.mrf.mxu0
  %3104 = vmatprep.mubr.f32.mxu0 0.0
  %3105 = vmatmul.mubr.f32.gmra.mxu0 %v2725
  %v3106 = vpop.f32.mrf.mxu0
  %v3107 = vadd.f32 0.0, %v3106
  %v3108 = vpop.f32.mrf.mxu0
  %3109 = vmatprep.mubr.f32.mxu0 0.0
  %3110 = vmatmul.mubr.f32.gmra.mxu0 %v2728
  %v3111 = vpop.f32.mrf.mxu0
  %v3112 = vadd.f32 0.0, %v3111
  %v3113 = vpop.f32.mrf.mxu0
  %3114 = vdwg.mxu0
  %v3115 = vadd.f32 %v2609, %v2797
  %v3116 = vadd.f32 %v2610, %v2802
  %v3117 = vadd.f32 %v2611, %v2807
  %v3118 = vadd.f32 %v2612, %v2812
  %v3119 = vadd.f32 %v2613, %v2817
  %v3120 = vadd.f32 %v2614, %v2822
  %v3121 = vadd.f32 %v2615, %v2827
  %v3122 = vadd.f32 %v2616, %v2832
  %v3123 = vadd.f32 %v2617, %v2837
  %v3124 = vadd.f32 %v2618, %v2842
  %v3125 = vadd.f32 %v2619, %v2847
  %v3126 = vadd.f32 %v2620, %v2852
  %v3127 = vadd.f32 %v2621, %v2857
  %v3128 = vadd.f32 %v2622, %v2862
  %v3129 = vadd.f32 %v2623, %v2867
  %v3130 = vadd.f32 %v2624, %v2872
  %v3131 = vadd.f32 %v2625, %v2877
  %v3132 = vadd.f32 %v2626, %v2882
  %v3133 = vadd.f32 %v2627, %v2887
  %v3134 = vadd.f32 %v2628, %v2892
  %v3135 = vadd.f32 %v2629, %v2897
  %v3136 = vadd.f32 %v2630, %v2902
  %v3137 = vadd.f32 %v2631, %v2907
  %v3138 = vadd.f32 %v2632, %v2912
  %v3139 = vadd.f32 %v2633, %v2917
  %v3140 = vadd.f32 %v2634, %v2922
  %v3141 = vadd.f32 %v2635, %v2927
  %v3142 = vadd.f32 %v2636, %v2932
  %v3143 = vadd.f32 %v2637, %v2937
  %v3144 = vadd.f32 %v2638, %v2942
  %v3145 = vadd.f32 %v2639, %v2947
  %v3146 = vadd.f32 %v2640, %v2952
  %v3147 = vadd.f32 %v2641, %v2957
  %v3148 = vadd.f32 %v2642, %v2962
  %v3149 = vadd.f32 %v2643, %v2967
  %v3150 = vadd.f32 %v2644, %v2972
  %v3151 = vadd.f32 %v2645, %v2977
  %v3152 = vadd.f32 %v2646, %v2982
  %v3153 = vadd.f32 %v2647, %v2987
  %v3154 = vadd.f32 %v2648, %v2992
  %v3155 = vadd.f32 %v2649, %v2997
  %v3156 = vadd.f32 %v2650, %v3002
  %v3157 = vadd.f32 %v2651, %v3007
  %v3158 = vadd.f32 %v2652, %v3012
  %v3159 = vadd.f32 %v2653, %v3017
  %v3160 = vadd.f32 %v2654, %v3022
  %v3161 = vadd.f32 %v2655, %v3027
  %v3162 = vadd.f32 %v2656, %v3032
  %v3163 = vadd.f32 %v2657, %v3037
  %v3164 = vadd.f32 %v2658, %v3042
  %v3165 = vadd.f32 %v2659, %v3047
  %v3166 = vadd.f32 %v2660, %v3052
  %v3167 = vadd.f32 %v2661, %v3057
  %v3168 = vadd.f32 %v2662, %v3062
  %v3169 = vadd.f32 %v2663, %v3067
  %v3170 = vadd.f32 %v2664, %v3072
  %v3171 = vadd.f32 %v2665, %v3077
  %v3172 = vadd.f32 %v2666, %v3082
  %v3173 = vadd.f32 %v2667, %v3087
  %v3174 = vadd.f32 %v2668, %v3092
  %v3175 = vadd.f32 %v2669, %v3097
  %v3176 = vadd.f32 %v2670, %v3102
  %v3177 = vadd.f32 %v2671, %v3107
  %v3178 = vadd.f32 %v2672, %v3112
  %v3179 = vmax.f32 %v3115, 0.0
  %v3180 = vmax.f32 %v3116, 0.0
  %v3181 = vmax.f32 %v3117, 0.0
  %v3182 = vmax.f32 %v3118, 0.0
  %v3183 = vmax.f32 %v3119, 0.0
  %v3184 = vmax.f32 %v3120, 0.0
  %v3185 = vmax.f32 %v3121, 0.0
  %v3186 = vmax.f32 %v3122, 0.0
  %v3187 = vmax.f32 %v3123, 0.0
  %v3188 = vmax.f32 %v3124, 0.0
  %v3189 = vmax.f32 %v3125, 0.0
  %v3190 = vmax.f32 %v3126, 0.0
  %v3191 = vmax.f32 %v3127, 0.0
  %v3192 = vmax.f32 %v3128, 0.0
  %v3193 = vmax.f32 %v3129, 0.0
  %v3194 = vmax.f32 %v3130, 0.0
  %v3195 = vmax.f32 %v3131, 0.0
  %v3196 = vmax.f32 %v3132, 0.0
  %v3197 = vmax.f32 %v3133, 0.0
  %v3198 = vmax.f32 %v3134, 0.0
  %v3199 = vmax.f32 %v3135, 0.0
  %v3200 = vmax.f32 %v3136, 0.0
  %v3201 = vmax.f32 %v3137, 0.0
  %v3202 = vmax.f32 %v3138, 0.0
  %v3203 = vmax.f32 %v3139, 0.0
  %v3204 = vmax.f32 %v3140, 0.0
  %v3205 = vmax.f32 %v3141, 0.0
  %v3206 = vmax.f32 %v3142, 0.0
  %v3207 = vmax.f32 %v3143, 0.0
  %v3208 = vmax.f32 %v3144, 0.0
  %v3209 = vmax.f32 %v3145, 0.0
  %v3210 = vmax.f32 %v3146, 0.0
  %v3211 = vmax.f32 %v3147, 0.0
  %v3212 = vmax.f32 %v3148, 0.0
  %v3213 = vmax.f32 %v3149, 0.0
  %v3214 = vmax.f32 %v3150, 0.0
  %v3215 = vmax.f32 %v3151, 0.0
  %v3216 = vmax.f32 %v3152, 0.0
  %v3217 = vmax.f32 %v3153, 0.0
  %v3218 = vmax.f32 %v3154, 0.0
  %v3219 = vmax.f32 %v3155, 0.0
  %v3220 = vmax.f32 %v3156, 0.0
  %v3221 = vmax.f32 %v3157, 0.0
  %v3222 = vmax.f32 %v3158, 0.0
  %v3223 = vmax.f32 %v3159, 0.0
  %v3224 = vmax.f32 %v3160, 0.0
  %v3225 = vmax.f32 %v3161, 0.0
  %v3226 = vmax.f32 %v3162, 0.0
  %v3227 = vmax.f32 %v3163, 0.0
  %v3228 = vmax.f32 %v3164, 0.0
  %v3229 = vmax.f32 %v3165, 0.0
  %v3230 = vmax.f32 %v3166, 0.0
  %v3231 = vmax.f32 %v3167, 0.0
  %v3232 = vmax.f32 %v3168, 0.0
  %v3233 = vmax.f32 %v3169, 0.0
  %v3234 = vmax.f32 %v3170, 0.0
  %v3235 = vmax.f32 %v3171, 0.0
  %v3236 = vmax.f32 %v3172, 0.0
  %v3237 = vmax.f32 %v3173, 0.0
  %v3238 = vmax.f32 %v3174, 0.0
  %v3239 = vmax.f32 %v3175, 0.0
  %v3240 = vmax.f32 %v3176, 0.0
  %v3241 = vmax.f32 %v3177, 0.0
  %v3242 = vmax.f32 %v3178, 0.0
  %v3243 = vld [vmem:[%s5] sm:$0xff]
  %v3244 = vld [vmem:[%s5 + $0x8] sm:$0xff]
  %v3245 = vld [vmem:[%s5 + $0x10] sm:$0xff]
  %v3246 = vld [vmem:[%s5 + $0x18] sm:$0xff]
  %v3247 = vld [vmem:[%s5 + $0x20] sm:$0xff]
  %v3248 = vld [vmem:[%s5 + $0x28] sm:$0xff]
  %v3249 = vld [vmem:[%s5 + $0x30] sm:$0xff]
  %v3250 = vld [vmem:[%s5 + $0x38] sm:$0xff]
  %v3251 = vld [vmem:[%s5 + $0x40] sm:$0xff]
  %v3252 = vld [vmem:[%s5 + $0x48] sm:$0xff]
  %v3253 = vld [vmem:[%s5 + $0x50] sm:$0xff]
  %v3254 = vld [vmem:[%s5 + $0x58] sm:$0xff]
  %v3255 = vld [vmem:[%s5 + $0x60] sm:$0xff]
  %v3256 = vld [vmem:[%s5 + $0x68] sm:$0xff]
  %v3257 = vld [vmem:[%s5 + $0x70] sm:$0xff]
  %v3258 = vld [vmem:[%s5 + $0x78] sm:$0xff]
  %v3259 = vld [vmem:[%s5 + $0x80] sm:$0xff]
  %v3260 = vld [vmem:[%s5 + $0x88] sm:$0xff]
  %v3261 = vld [vmem:[%s5 + $0x90] sm:$0xff]
  %v3262 = vld [vmem:[%s5 + $0x98] sm:$0xff]
  %v3263 = vld [vmem:[%s5 + $0xa0] sm:$0xff]
  %v3264 = vld [vmem:[%s5 + $0xa8] sm:$0xff]
  %v3265 = vld [vmem:[%s5 + $0xb0] sm:$0xff]
  %v3266 = vld [vmem:[%s5 + $0xb8] sm:$0xff]
  %v3267 = vld [vmem:[%s5 + $0xc0] sm:$0xff]
  %v3268 = vld [vmem:[%s5 + $0xc8] sm:$0xff]
  %v3269 = vld [vmem:[%s5 + $0xd0] sm:$0xff]
  %v3270 = vld [vmem:[%s5 + $0xd8] sm:$0xff]
  %v3271 = vld [vmem:[%s5 + $0xe0] sm:$0xff]
  %v3272 = vld [vmem:[%s5 + $0xe8] sm:$0xff]
  %v3273 = vld [vmem:[%s5 + $0xf0] sm:$0xff]
  %v3274 = vld [vmem:[%s5 + $0xf8] sm:$0xff]
  %v3275 = vld [vmem:[%s5 + $0x100] sm:$0xff]
  %v3276 = vld [vmem:[%s5 + $0x108] sm:$0xff]
  %v3277 = vld [vmem:[%s5 + $0x110] sm:$0xff]
  %v3278 = vld [vmem:[%s5 + $0x118] sm:$0xff]
  %v3279 = vld [vmem:[%s5 + $0x120] sm:$0xff]
  %v3280 = vld [vmem:[%s5 + $0x128] sm:$0xff]
  %v3281 = vld [vmem:[%s5 + $0x130] sm:$0xff]
  %v3282 = vld [vmem:[%s5 + $0x138] sm:$0xff]
  %v3283 = vld [vmem:[%s5 + $0x140] sm:$0xff]
  %v3284 = vld [vmem:[%s5 + $0x148] sm:$0xff]
  %v3285 = vld [vmem:[%s5 + $0x150] sm:$0xff]
  %v3286 = vld [vmem:[%s5 + $0x158] sm:$0xff]
  %v3287 = vld [vmem:[%s5 + $0x160] sm:$0xff]
  %v3288 = vld [vmem:[%s5 + $0x168] sm:$0xff]
  %v3289 = vld [vmem:[%s5 + $0x170] sm:$0xff]
  %v3290 = vld [vmem:[%s5 + $0x178] sm:$0xff]
  %v3291 = vld [vmem:[%s5 + $0x180] sm:$0xff]
  %v3292 = vld [vmem:[%s5 + $0x188] sm:$0xff]
  %v3293 = vld [vmem:[%s5 + $0x190] sm:$0xff]
  %v3294 = vld [vmem:[%s5 + $0x198] sm:$0xff]
  %v3295 = vld [vmem:[%s5 + $0x1a0] sm:$0xff]
  %v3296 = vld [vmem:[%s5 + $0x1a8] sm:$0xff]
  %v3297 = vld [vmem:[%s5 + $0x1b0] sm:$0xff]
  %v3298 = vld [vmem:[%s5 + $0x1b8] sm:$0xff]
  %v3299 = vld [vmem:[%s5 + $0x1c0] sm:$0xff]
  %v3300 = vld [vmem:[%s5 + $0x1c8] sm:$0xff]
  %v3301 = vld [vmem:[%s5 + $0x1d0] sm:$0xff]
  %v3302 = vld [vmem:[%s5 + $0x1d8] sm:$0xff]
  %v3303 = vld [vmem:[%s5 + $0x1e0] sm:$0xff]
  %v3304 = vld [vmem:[%s5 + $0x1e8] sm:$0xff]
  %v3305 = vld [vmem:[%s5 + $0x1f0] sm:$0xff]
  %v3306 = vld [vmem:[%s5 + $0x1f8] sm:$0xff]
  %v3307 = vld [vmem:[%s5 + $0x200] sm:$0xff]
  %v3308 = vld [vmem:[%s5 + $0x208] sm:$0xff]
  %v3309 = vld [vmem:[%s5 + $0x210] sm:$0xff]
  %v3310 = vld [vmem:[%s5 + $0x218] sm:$0xff]
  %v3311 = vld [vmem:[%s5 + $0x220] sm:$0xff]
  %v3312 = vld [vmem:[%s5 + $0x228] sm:$0xff]
  %v3313 = vld [vmem:[%s5 + $0x230] sm:$0xff]
  %v3314 = vld [vmem:[%s5 + $0x238] sm:$0xff]
  %v3315 = vld [vmem:[%s5 + $0x240] sm:$0xff]
  %v3316 = vld [vmem:[%s5 + $0x248] sm:$0xff]
  %v3317 = vld [vmem:[%s5 + $0x250] sm:$0xff]
  %v3318 = vld [vmem:[%s5 + $0x258] sm:$0xff]
  %v3319 = vld [vmem:[%s5 + $0x260] sm:$0xff]
  %v3320 = vld [vmem:[%s5 + $0x268] sm:$0xff]
  %v3321 = vld [vmem:[%s5 + $0x270] sm:$0xff]
  %v3322 = vld [vmem:[%s5 + $0x278] sm:$0xff]
  %v3323 = vld [vmem:[%s5 + $0x280] sm:$0xff]
  %v3324 = vld [vmem:[%s5 + $0x288] sm:$0xff]
  %v3325 = vld [vmem:[%s5 + $0x290] sm:$0xff]
  %v3326 = vld [vmem:[%s5 + $0x298] sm:$0xff]
  %v3327 = vld [vmem:[%s5 + $0x2a0] sm:$0xff]
  %v3328 = vld [vmem:[%s5 + $0x2a8] sm:$0xff]
  %v3329 = vld [vmem:[%s5 + $0x2b0] sm:$0xff]
  %v3330 = vld [vmem:[%s5 + $0x2b8] sm:$0xff]
  %v3331 = vld [vmem:[%s5 + $0x2c0] sm:$0xff]
  %v3332 = vld [vmem:[%s5 + $0x2c8] sm:$0xff]
  %v3333 = vld [vmem:[%s5 + $0x2d0] sm:$0xff]
  %v3334 = vld [vmem:[%s5 + $0x2d8] sm:$0xff]
  %v3335 = vld [vmem:[%s5 + $0x2e0] sm:$0xff]
  %v3336 = vld [vmem:[%s5 + $0x2e8] sm:$0xff]
  %v3337 = vld [vmem:[%s5 + $0x2f0] sm:$0xff]
  %v3338 = vld [vmem:[%s5 + $0x2f8] sm:$0xff]
  %v3339 = vld [vmem:[%s6] sm:$0x3]
  %v3341 = vlaneseq
  %v3342 = vshrl.u32 %v3341, 7
  %v3343 = vsub.s32 0, %v3342
  %v3344 = vrot.slane %v3339, %v3343
  %v3345 = vlaneseq
  %v3346 = vshrl.u32 %v3345, 7
  %v3347 = vsub.s32 1, %v3346
  %v3348 = vrot.slane %v3339, %v3347
  %3351 = vmatprep.subr.mxu0 %v3274
  %3352 = vmatpush1.msra.mxu0 %v3273
  %3353 = vmatprep.subr.mxu0 %v3272
  %3354 = vmatpush1.msra.mxu0 %v3271
  %3355 = vmatprep.subr.mxu0 %v3270
  %3356 = vmatpush1.msra.mxu0 %v3269
  %3357 = vmatprep.subr.mxu0 %v3268
  %3358 = vmatpush1.msra.mxu0 %v3267
  %3359 = vmatprep.subr.mxu0 %v3266
  %3360 = vmatpush1.msra.mxu0 %v3265
  %3361 = vmatprep.subr.mxu0 %v3264
  %3362 = vmatpush1.msra.mxu0 %v3263
  %3363 = vmatprep.subr.mxu0 %v3262
  %3364 = vmatpush1.msra.mxu0 %v3261
  %3365 = vmatprep.subr.mxu0 %v3260
  %3366 = vmatpush1.msra.mxu0 %v3259
  %3367 = vmatprep.subr.mxu0 %v3258
  %3368 = vmatpush1.msra.mxu0 %v3257
  %3369 = vmatprep.subr.mxu0 %v3256
  %3370 = vmatpush1.msra.mxu0 %v3255
  %3371 = vmatprep.subr.mxu0 %v3254
  %3372 = vmatpush1.msra.mxu0 %v3253
  %3373 = vmatprep.subr.mxu0 %v3252
  %3374 = vmatpush1.msra.mxu0 %v3251
  %3375 = vmatprep.subr.mxu0 %v3250
  %3376 = vmatpush1.msra.mxu0 %v3249
  %3377 = vmatprep.subr.mxu0 %v3248
  %3378 = vmatpush1.msra.mxu0 %v3247
  %3379 = vmatprep.subr.mxu0 %v3246
  %3380 = vmatpush1.msra.mxu0 %v3245
  %3381 = vmatprep.subr.mxu0 %v3244
  %3382 = vmatpush1.msra.mxu0 %v3243
  %3383 = vmatprep.subr.mxu0 %v3306
  %3384 = vmatpush2.msra.mxu0 %v3305
  %3385 = vmatprep.subr.mxu0 %v3304
  %3386 = vmatpush2.msra.mxu0 %v3303
  %3387 = vmatprep.subr.mxu0 %v3302
  %3388 = vmatpush2.msra.mxu0 %v3301
  %3389 = vmatprep.subr.mxu0 %v3300
  %3390 = vmatpush2.msra.mxu0 %v3299
  %3391 = vmatprep.subr.mxu0 %v3298
  %3392 = vmatpush2.msra.mxu0 %v3297
  %3393 = vmatprep.subr.mxu0 %v3296
  %3394 = vmatpush2.msra.mxu0 %v3295
  %3395 = vmatprep.subr.mxu0 %v3294
  %3396 = vmatpush2.msra.mxu0 %v3293
  %3397 = vmatprep.subr.mxu0 %v3292
  %3398 = vmatpush2.msra.mxu0 %v3291
  %3399 = vmatprep.subr.mxu0 %v3290
  %3400 = vmatpush2.msra.mxu0 %v3289
  %3401 = vmatprep.subr.mxu0 %v3288
  %3402 = vmatpush2.msra.mxu0 %v3287
  %3403 = vmatprep.subr.mxu0 %v3286
  %3404 = vmatpush2.msra.mxu0 %v3285
  %3405 = vmatprep.subr.mxu0 %v3284
  %3406 = vmatpush2.msra.mxu0 %v3283
  %3407 = vmatprep.subr.mxu0 %v3282
  %3408 = vmatpush2.msra.mxu0 %v3281
  %3409 = vmatprep.subr.mxu0 %v3280
  %3410 = vmatpush2.msra.mxu0 %v3279
  %3411 = vmatprep.subr.mxu0 %v3278
  %3412 = vmatpush2.msra.mxu0 %v3277
  %3413 = vmatprep.subr.mxu0 %v3276
  %3414 = vmatpush2.msra.mxu0 %v3275
  %3415 = vmatprep.mubr.f32.mxu0 %v3179
  %3416 = vmatmul.mubr.f32.gmra.mxu0 0.0
  %v3417 = vpop.f32.mrf.mxu0
  %v3418 = vadd.f32 %v3344, %v3417
  %v3419 = vpop.f32.mrf.mxu0
  %v3420 = vadd.f32 %v3348, %v3419
  %3421 = vmatprep.mubr.f32.mxu0 %v3180
  %3422 = vmatmul.mubr.f32.gmra.mxu0 0.0
  %v3423 = vpop.f32.mrf.mxu0
  %v3424 = vadd.f32 %v3344, %v3423
  %v3425 = vpop.f32.mrf.mxu0
  %v3426 = vadd.f32 %v3348, %v3425
  %3427 = vmatprep.mubr.f32.mxu0 %v3181
  %3428 = vmatmul.mubr.f32.gmra.mxu0 0.0
  %v3429 = vpop.f32.mrf.mxu0
  %v3430 = vadd.f32 %v3344, %v3429
  %v3431 = vpop.f32.mrf.mxu0
  %v3432 = vadd.f32 %v3348, %v3431
  %3433 = vmatprep.mubr.f32.mxu0 %v3182
  %3434 = vmatmul.mubr.f32.gmra.mxu0 0.0
  %v3435 = vpop.f32.mrf.mxu0
  %v3436 = vadd.f32 %v3344, %v3435
  %v3437 = vpop.f32.mrf.mxu0
  %v3438 = vadd.f32 %v3348, %v3437
  %3439 = vmatprep.mubr.f32.mxu0 %v3183
  %3440 = vmatmul.mubr.f32.gmra.mxu0 0.0
  %v3441 = vpop.f32.mrf.mxu0
  %v3442 = vadd.f32 %v3344, %v3441
  %v3443 = vpop.f32.mrf.mxu0
  %v3444 = vadd.f32 %v3348, %v3443
  %3445 = vmatprep.mubr.f32.mxu0 %v3184
  %3446 = vmatmul.mubr.f32.gmra.mxu0 0.0
  %v3447 = vpop.f32.mrf.mxu0
  %v3448 = vadd.f32 %v3344, %v3447
  %v3449 = vpop.f32.mrf.mxu0
  %v3450 = vadd.f32 %v3348, %v3449
  %3451 = vmatprep.mubr.f32.mxu0 %v3185
  %3452 = vmatmul.mubr.f32.gmra.mxu0 0.0
  %v3453 = vpop.f32.mrf.mxu0
  %v3454 = vadd.f32 %v3344, %v3453
  %v3455 = vpop.f32.mrf.mxu0
  %v3456 = vadd.f32 %v3348, %v3455
  %3457 = vmatprep.mubr.f32.mxu0 %v3186
  %3458 = vmatmul.mubr.f32.gmra.mxu0 0.0
  %v3459 = vpop.f32.mrf.mxu0
  %v3460 = vadd.f32 %v3344, %v3459
  %v3461 = vpop.f32.mrf.mxu0
  %v3462 = vadd.f32 %v3348, %v3461
  %3463 = vmatprep.mubr.f32.mxu0 %v3187
  %3464 = vmatmul.mubr.f32.gmra.mxu0 0.0
  %v3465 = vpop.f32.mrf.mxu0
  %v3466 = vadd.f32 %v3344, %v3465
  %v3467 = vpop.f32.mrf.mxu0
  %v3468 = vadd.f32 %v3348, %v3467
  %3469 = vmatprep.mubr.f32.mxu0 %v3188
  %3470 = vmatmul.mubr.f32.gmra.mxu0 0.0
  %v3471 = vpop.f32.mrf.mxu0
  %v3472 = vadd.f32 %v3344, %v3471
  %v3473 = vpop.f32.mrf.mxu0
  %v3474 = vadd.f32 %v3348, %v3473
  %3475 = vmatprep.mubr.f32.mxu0 %v3189
  %3476 = vmatmul.mubr.f32.gmra.mxu0 0.0
  %v3477 = vpop.f32.mrf.mxu0
  %v3478 = vadd.f32 %v3344, %v3477
  %v3479 = vpop.f32.mrf.mxu0
  %v3480 = vadd.f32 %v3348, %v3479
  %3481 = vmatprep.mubr.f32.mxu0 %v3190
  %3482 = vmatmul.mubr.f32.gmra.mxu0 0.0
  %v3483 = vpop.f32.mrf.mxu0
  %v3484 = vadd.f32 %v3344, %v3483
  %v3485 = vpop.f32.mrf.mxu0
  %v3486 = vadd.f32 %v3348, %v3485
  %3487 = vmatprep.mubr.f32.mxu0 %v3191
  %3488 = vmatmul.mubr.f32.gmra.mxu0 0.0
  %v3489 = vpop.f32.mrf.mxu0
  %v3490 = vadd.f32 %v3344, %v3489
  %v3491 = vpop.f32.mrf.mxu0
  %v3492 = vadd.f32 %v3348, %v3491
  %3493 = vmatprep.mubr.f32.mxu0 %v3192
  %3494 = vmatmul.mubr.f32.gmra.mxu0 0.0
  %v3495 = vpop.f32.mrf.mxu0
  %v3496 = vadd.f32 %v3344, %v3495
  %v3497 = vpop.f32.mrf.mxu0
  %v3498 = vadd.f32 %v3348, %v3497
  %3499 = vmatprep.mubr.f32.mxu0 %v3193
  %3500 = vmatmul.mubr.f32.gmra.mxu0 0.0
  %v3501 = vpop.f32.mrf.mxu0
  %v3502 = vadd.f32 %v3344, %v3501
  %v3503 = vpop.f32.mrf.mxu0
  %v3504 = vadd.f32 %v3348, %v3503
  %3505 = vmatprep.mubr.f32.mxu0 %v3194
  %3506 = vmatmul.mubr.f32.gmra.mxu0 0.0
  %v3507 = vpop.f32.mrf.mxu0
  %v3508 = vadd.f32 %v3344, %v3507
  %v3509 = vpop.f32.mrf.mxu0
  %v3510 = vadd.f32 %v3348, %v3509
  %3511 = vmatprep.mubr.f32.mxu0 %v3211
  %3512 = vmatmul.mubr.f32.gmra.mxu0 %v3195
  %v3513 = vpop.f32.mrf.mxu0
  %v3514 = vadd.f32 %v3344, %v3513
  %v3515 = vpop.f32.mrf.mxu0
  %v3516 = vadd.f32 %v3348, %v3515
  %3517 = vmatprep.mubr.f32.mxu0 %v3212
  %3518 = vmatmul.mubr.f32.gmra.mxu0 %v3196
  %v3519 = vpop.f32.mrf.mxu0
  %v3520 = vadd.f32 %v3344, %v3519
  %v3521 = vpop.f32.mrf.mxu0
  %v3522 = vadd.f32 %v3348, %v3521
  %3523 = vmatprep.mubr.f32.mxu0 %v3213
  %3524 = vmatmul.mubr.f32.gmra.mxu0 %v3197
  %v3525 = vpop.f32.mrf.mxu0
  %v3526 = vadd.f32 %v3344, %v3525
  %v3527 = vpop.f32.mrf.mxu0
  %v3528 = vadd.f32 %v3348, %v3527
  %3529 = vmatprep.mubr.f32.mxu0 %v3214
  %3530 = vmatmul.mubr.f32.gmra.mxu0 %v3198
  %v3531 = vpop.f32.mrf.mxu0
  %v3532 = vadd.f32 %v3344, %v3531
  %v3533 = vpop.f32.mrf.mxu0
  %v3534 = vadd.f32 %v3348, %v3533
  %3535 = vmatprep.mubr.f32.mxu0 %v3215
  %3536 = vmatmul.mubr.f32.gmra.mxu0 %v3199
  %v3537 = vpop.f32.mrf.mxu0
  %v3538 = vadd.f32 %v3344, %v3537
  %v3539 = vpop.f32.mrf.mxu0
  %v3540 = vadd.f32 %v3348, %v3539
  %3541 = vmatprep.mubr.f32.mxu0 %v3216
  %3542 = vmatmul.mubr.f32.gmra.mxu0 %v3200
  %v3543 = vpop.f32.mrf.mxu0
  %v3544 = vadd.f32 %v3344, %v3543
  %v3545 = vpop.f32.mrf.mxu0
  %v3546 = vadd.f32 %v3348, %v3545
  %3547 = vmatprep.mubr.f32.mxu0 %v3217
  %3548 = vmatmul.mubr.f32.gmra.mxu0 %v3201
  %v3549 = vpop.f32.mrf.mxu0
  %v3550 = vadd.f32 %v3344, %v3549
  %v3551 = vpop.f32.mrf.mxu0
  %v3552 = vadd.f32 %v3348, %v3551
  %3553 = vmatprep.mubr.f32.mxu0 %v3218
  %3554 = vmatmul.mubr.f32.gmra.mxu0 %v3202
  %v3555 = vpop.f32.mrf.mxu0
  %v3556 = vadd.f32 %v3344, %v3555
  %v3557 = vpop.f32.mrf.mxu0
  %v3558 = vadd.f32 %v3348, %v3557
  %3559 = vmatprep.mubr.f32.mxu0 %v3219
  %3560 = vmatmul.mubr.f32.gmra.mxu0 %v3203
  %v3561 = vpop.f32.mrf.mxu0
  %v3562 = vadd.f32 %v3344, %v3561
  %v3563 = vpop.f32.mrf.mxu0
  %v3564 = vadd.f32 %v3348, %v3563
  %3565 = vmatprep.mubr.f32.mxu0 %v3220
  %3566 = vmatmul.mubr.f32.gmra.mxu0 %v3204
  %v3567 = vpop.f32.mrf.mxu0
  %v3568 = vadd.f32 %v3344, %v3567
  %v3569 = vpop.f32.mrf.mxu0
  %v3570 = vadd.f32 %v3348, %v3569
  %3571 = vmatprep.mubr.f32.mxu0 %v3221
  %3572 = vmatmul.mubr.f32.gmra.mxu0 %v3205
  %v3573 = vpop.f32.mrf.mxu0
  %v3574 = vadd.f32 %v3344, %v3573
  %v3575 = vpop.f32.mrf.mxu0
  %v3576 = vadd.f32 %v3348, %v3575
  %3577 = vmatprep.mubr.f32.mxu0 %v3222
  %3578 = vmatmul.mubr.f32.gmra.mxu0 %v3206
  %v3579 = vpop.f32.mrf.mxu0
  %v3580 = vadd.f32 %v3344, %v3579
  %v3581 = vpop.f32.mrf.mxu0
  %v3582 = vadd.f32 %v3348, %v3581
  %3583 = vmatprep.mubr.f32.mxu0 %v3223
  %3584 = vmatmul.mubr.f32.gmra.mxu0 %v3207
  %v3585 = vpop.f32.mrf.mxu0
  %v3586 = vadd.f32 %v3344, %v3585
  %v3587 = vpop.f32.mrf.mxu0
  %v3588 = vadd.f32 %v3348, %v3587
  %3589 = vmatprep.mubr.f32.mxu0 %v3224
  %3590 = vmatmul.mubr.f32.gmra.mxu0 %v3208
  %v3591 = vpop.f32.mrf.mxu0
  %v3592 = vadd.f32 %v3344, %v3591
  %v3593 = vpop.f32.mrf.mxu0
  %v3594 = vadd.f32 %v3348, %v3593
  %3595 = vmatprep.mubr.f32.mxu0 %v3225
  %3596 = vmatmul.mubr.f32.gmra.mxu0 %v3209
  %v3597 = vpop.f32.mrf.mxu0
  %v3598 = vadd.f32 %v3344, %v3597
  %v3599 = vpop.f32.mrf.mxu0
  %v3600 = vadd.f32 %v3348, %v3599
  %3601 = vmatprep.mubr.f32.mxu0 %v3226
  %3602 = vmatmul.mubr.f32.gmra.mxu0 %v3210
  %v3603 = vpop.f32.mrf.mxu0
  %v3604 = vadd.f32 %v3344, %v3603
  %v3605 = vpop.f32.mrf.mxu0
  %v3606 = vadd.f32 %v3348, %v3605
  %3607 = vdwg.mxu0
  %3608 = vmatprep.subr.mxu0 %v3338
  %3609 = vmatpush1.msra.mxu0 %v3337
  %3610 = vmatprep.subr.mxu0 %v3336
  %3611 = vmatpush1.msra.mxu0 %v3335
  %3612 = vmatprep.subr.mxu0 %v3334
  %3613 = vmatpush1.msra.mxu0 %v3333
  %3614 = vmatprep.subr.mxu0 %v3332
  %3615 = vmatpush1.msra.mxu0 %v3331
  %3616 = vmatprep.subr.mxu0 %v3330
  %3617 = vmatpush1.msra.mxu0 %v3329
  %3618 = vmatprep.subr.mxu0 %v3328
  %3619 = vmatpush1.msra.mxu0 %v3327
  %3620 = vmatprep.subr.mxu0 %v3326
  %3621 = vmatpush1.msra.mxu0 %v3325
  %3622 = vmatprep.subr.mxu0 %v3324
  %3623 = vmatpush1.msra.mxu0 %v3323
  %3624 = vmatprep.subr.mxu0 %v3322
  %3625 = vmatpush1.msra.mxu0 %v3321
  %3626 = vmatprep.subr.mxu0 %v3320
  %3627 = vmatpush1.msra.mxu0 %v3319
  %3628 = vmatprep.subr.mxu0 %v3318
  %3629 = vmatpush1.msra.mxu0 %v3317
  %3630 = vmatprep.subr.mxu0 %v3316
  %3631 = vmatpush1.msra.mxu0 %v3315
  %3632 = vmatprep.subr.mxu0 %v3314
  %3633 = vmatpush1.msra.mxu0 %v3313
  %3634 = vmatprep.subr.mxu0 %v3312
  %3635 = vmatpush1.msra.mxu0 %v3311
  %3636 = vmatprep.subr.mxu0 %v3310
  %3637 = vmatpush1.msra.mxu0 %v3309
  %3638 = vmatprep.subr.mxu0 %v3308
  %3639 = vmatpush1.msra.mxu0 %v3307
  %3640 = vmatprep.subr.mxu0 0.0
  %3641 = vmatpush2.msra.mxu0 0.0
  %3642 = vmatprep.subr.mxu0 0.0
  %3643 = vmatpush2.msra.mxu0 0.0
  %3644 = vmatprep.subr.mxu0 0.0
  %3645 = vmatpush2.msra.mxu0 0.0
  %3646 = vmatprep.subr.mxu0 0.0
  %3647 = vmatpush2.msra.mxu0 0.0
  %3648 = vmatprep.subr.mxu0 0.0
  %3649 = vmatpush2.msra.mxu0 0.0
  %3650 = vmatprep.subr.mxu0 0.0
  %3651 = vmatpush2.msra.mxu0 0.0
  %3652 = vmatprep.subr.mxu0 0.0
  %3653 = vmatpush2.msra.mxu0 0.0
  %3654 = vmatprep.subr.mxu0 0.0
  %3655 = vmatpush2.msra.mxu0 0.0
  %3656 = vmatprep.subr.mxu0 0.0
  %3657 = vmatpush2.msra.mxu0 0.0
  %3658 = vmatprep.subr.mxu0 0.0
  %3659 = vmatpush2.msra.mxu0 0.0
  %3660 = vmatprep.subr.mxu0 0.0
  %3661 = vmatpush2.msra.mxu0 0.0
  %3662 = vmatprep.subr.mxu0 0.0
  %3663 = vmatpush2.msra.mxu0 0.0
  %3664 = vmatprep.subr.mxu0 0.0
  %3665 = vmatpush2.msra.mxu0 0.0
  %3666 = vmatprep.subr.mxu0 0.0
  %3667 = vmatpush2.msra.mxu0 0.0
  %3668 = vmatprep.subr.mxu0 0.0
  %3669 = vmatpush2.msra.mxu0 0.0
  %3670 = vmatprep.subr.mxu0 0.0
  %3671 = vmatpush2.msra.mxu0 0.0
  %3672 = vmatprep.mubr.f32.mxu0 0.0
  %3673 = vmatmul.mubr.f32.gmra.mxu0 %v3195
  %v3674 = vpop.f32.mrf.mxu0
  %v3675 = vadd.f32 %v3418, %v3674
  %v3676 = vpop.f32.mrf.mxu0
  %v3677 = vadd.f32 %v3420, %v3676
  %3678 = vmatprep.mubr.f32.mxu0 0.0
  %3679 = vmatmul.mubr.f32.gmra.mxu0 %v3196
  %v3680 = vpop.f32.mrf.mxu0
  %v3681 = vadd.f32 %v3424, %v3680
  %v3682 = vpop.f32.mrf.mxu0
  %v3683 = vadd.f32 %v3426, %v3682
  %3684 = vmatprep.mubr.f32.mxu0 0.0
  %3685 = vmatmul.mubr.f32.gmra.mxu0 %v3197
  %v3686 = vpop.f32.mrf.mxu0
  %v3687 = vadd.f32 %v3430, %v3686
  %v3688 = vpop.f32.mrf.mxu0
  %v3689 = vadd.f32 %v3432, %v3688
  %3690 = vmatprep.mubr.f32.mxu0 0.0
  %3691 = vmatmul.mubr.f32.gmra.mxu0 %v3198
  %v3692 = vpop.f32.mrf.mxu0
  %v3693 = vadd.f32 %v3436, %v3692
  %v3694 = vpop.f32.mrf.mxu0
  %v3695 = vadd.f32 %v3438, %v3694
  %3696 = vmatprep.mubr.f32.mxu0 0.0
  %3697 = vmatmul.mubr.f32.gmra.mxu0 %v3199
  %v3698 = vpop.f32.mrf.mxu0
  %v3699 = vadd.f32 %v3442, %v3698
  %v3700 = vpop.f32.mrf.mxu0
  %v3701 = vadd.f32 %v3444, %v3700
  %3702 = vmatprep.mubr.f32.mxu0 0.0
  %3703 = vmatmul.mubr.f32.gmra.mxu0 %v3200
  %v3704 = vpop.f32.mrf.mxu0
  %v3705 = vadd.f32 %v3448, %v3704
  %v3706 = vpop.f32.mrf.mxu0
  %v3707 = vadd.f32 %v3450, %v3706
  %3708 = vmatprep.mubr.f32.mxu0 0.0
  %3709 = vmatmul.mubr.f32.gmra.mxu0 %v3201
  %v3710 = vpop.f32.mrf.mxu0
  %v3711 = vadd.f32 %v3454, %v3710
  %v3712 = vpop.f32.mrf.mxu0
  %v3713 = vadd.f32 %v3456, %v3712
  %3714 = vmatprep.mubr.f32.mxu0 0.0
  %3715 = vmatmul.mubr.f32.gmra.mxu0 %v3202
  %v3716 = vpop.f32.mrf.mxu0
  %v3717 = vadd.f32 %v3460, %v3716
  %v3718 = vpop.f32.mrf.mxu0
  %v3719 = vadd.f32 %v3462, %v3718
  %3720 = vmatprep.mubr.f32.mxu0 0.0
  %3721 = vmatmul.mubr.f32.gmra.mxu0 %v3203
  %v3722 = vpop.f32.mrf.mxu0
  %v3723 = vadd.f32 %v3466, %v3722
  %v3724 = vpop.f32.mrf.mxu0
  %v3725 = vadd.f32 %v3468, %v3724
  %3726 = vmatprep.mubr.f32.mxu0 0.0
  %3727 = vmatmul.mubr.f32.gmra.mxu0 %v3204
  %v3728 = vpop.f32.mrf.mxu0
  %v3729 = vadd.f32 %v3472, %v3728
  %v3730 = vpop.f32.mrf.mxu0
  %v3731 = vadd.f32 %v3474, %v3730
  %3732 = vmatprep.mubr.f32.mxu0 0.0
  %3733 = vmatmul.mubr.f32.gmra.mxu0 %v3205
  %v3734 = vpop.f32.mrf.mxu0
  %v3735 = vadd.f32 %v3478, %v3734
  %v3736 = vpop.f32.mrf.mxu0
  %v3737 = vadd.f32 %v3480, %v3736
  %3738 = vmatprep.mubr.f32.mxu0 0.0
  %3739 = vmatmul.mubr.f32.gmra.mxu0 %v3206
  %v3740 = vpop.f32.mrf.mxu0
  %v3741 = vadd.f32 %v3484, %v3740
  %v3742 = vpop.f32.mrf.mxu0
  %v3743 = vadd.f32 %v3486, %v3742
  %3744 = vmatprep.mubr.f32.mxu0 0.0
  %3745 = vmatmul.mubr.f32.gmra.mxu0 %v3207
  %v3746 = vpop.f32.mrf.mxu0
  %v3747 = vadd.f32 %v3490, %v3746
  %v3748 = vpop.f32.mrf.mxu0
  %v3749 = vadd.f32 %v3492, %v3748
  %3750 = vmatprep.mubr.f32.mxu0 0.0
  %3751 = vmatmul.mubr.f32.gmra.mxu0 %v3208
  %v3752 = vpop.f32.mrf.mxu0
  %v3753 = vadd.f32 %v3496, %v3752
  %v3754 = vpop.f32.mrf.mxu0
  %v3755 = vadd.f32 %v3498, %v3754
  %3756 = vmatprep.mubr.f32.mxu0 0.0
  %3757 = vmatmul.mubr.f32.gmra.mxu0 %v3209
  %v3758 = vpop.f32.mrf.mxu0
  %v3759 = vadd.f32 %v3502, %v3758
  %v3760 = vpop.f32.mrf.mxu0
  %v3761 = vadd.f32 %v3504, %v3760
  %3762 = vmatprep.mubr.f32.mxu0 0.0
  %3763 = vmatmul.mubr.f32.gmra.mxu0 %v3210
  %v3764 = vpop.f32.mrf.mxu0
  %v3765 = vadd.f32 %v3508, %v3764
  %v3766 = vpop.f32.mrf.mxu0
  %v3767 = vadd.f32 %v3510, %v3766
  %3768 = vmatprep.mubr.f32.mxu0 0.0
  %3769 = vmatmul.mubr.f32.gmra.mxu0 %v3227
  %v3770 = vpop.f32.mrf.mxu0
  %v3771 = vadd.f32 %v3514, %v3770
  %v3772 = vpop.f32.mrf.mxu0
  %v3773 = vadd.f32 %v3516, %v3772
  %3774 = vmatprep.mubr.f32.mxu0 0.0
  %3775 = vmatmul.mubr.f32.gmra.mxu0 %v3228
  %v3776 = vpop.f32.mrf.mxu0
  %v3777 = vadd.f32 %v3520, %v3776
  %v3778 = vpop.f32.mrf.mxu0
  %v3779 = vadd.f32 %v3522, %v3778
  %3780 = vmatprep.mubr.f32.mxu0 0.0
  %3781 = vmatmul.mubr.f32.gmra.mxu0 %v3229
  %v3782 = vpop.f32.mrf.mxu0
  %v3783 = vadd.f32 %v3526, %v3782
  %v3784 = vpop.f32.mrf.mxu0
  %v3785 = vadd.f32 %v3528, %v3784
  %3786 = vmatprep.mubr.f32.mxu0 0.0
  %3787 = vmatmul.mubr.f32.gmra.mxu0 %v3230
  %v3788 = vpop.f32.mrf.mxu0
  %v3789 = vadd.f32 %v3532, %v3788
  %v3790 = vpop.f32.mrf.mxu0
  %v3791 = vadd.f32 %v3534, %v3790
  %3792 = vmatprep.mubr.f32.mxu0 0.0
  %3793 = vmatmul.mubr.f32.gmra.mxu0 %v3231
  %v3794 = vpop.f32.mrf.mxu0
  %v3795 = vadd.f32 %v3538, %v3794
  %v3796 = vpop.f32.mrf.mxu0
  %v3797 = vadd.f32 %v3540, %v3796
  %3798 = vmatprep.mubr.f32.mxu0 0.0
  %3799 = vmatmul.mubr.f32.gmra.mxu0 %v3232
  %v3800 = vpop.f32.mrf.mxu0
  %v3801 = vadd.f32 %v3544, %v3800
  %v3802 = vpop.f32.mrf.mxu0
  %v3803 = vadd.f32 %v3546, %v3802
  %3804 = vmatprep.mubr.f32.mxu0 0.0
  %3805 = vmatmul.mubr.f32.gmra.mxu0 %v3233
  %v3806 = vpop.f32.mrf.mxu0
  %v3807 = vadd.f32 %v3550, %v3806
  %v3808 = vpop.f32.mrf.mxu0
  %v3809 = vadd.f32 %v3552, %v3808
  %3810 = vmatprep.mubr.f32.mxu0 0.0
  %3811 = vmatmul.mubr.f32.gmra.mxu0 %v3234
  %v3812 = vpop.f32.mrf.mxu0
  %v3813 = vadd.f32 %v3556, %v3812
  %v3814 = vpop.f32.mrf.mxu0
  %v3815 = vadd.f32 %v3558, %v3814
  %3816 = vmatprep.mubr.f32.mxu0 0.0
  %3817 = vmatmul.mubr.f32.gmra.mxu0 %v3235
  %v3818 = vpop.f32.mrf.mxu0
  %v3819 = vadd.f32 %v3562, %v3818
  %v3820 = vpop.f32.mrf.mxu0
  %v3821 = vadd.f32 %v3564, %v3820
  %3822 = vmatprep.mubr.f32.mxu0 0.0
  %3823 = vmatmul.mubr.f32.gmra.mxu0 %v3236
  %v3824 = vpop.f32.mrf.mxu0
  %v3825 = vadd.f32 %v3568, %v3824
  %v3826 = vpop.f32.mrf.mxu0
  %v3827 = vadd.f32 %v3570, %v3826
  %3828 = vmatprep.mubr.f32.mxu0 0.0
  %3829 = vmatmul.mubr.f32.gmra.mxu0 %v3237
  %v3830 = vpop.f32.mrf.mxu0
  %v3831 = vadd.f32 %v3574, %v3830
  %v3832 = vpop.f32.mrf.mxu0
  %v3833 = vadd.f32 %v3576, %v3832
  %3834 = vmatprep.mubr.f32.mxu0 0.0
  %3835 = vmatmul.mubr.f32.gmra.mxu0 %v3238
  %v3836 = vpop.f32.mrf.mxu0
  %v3837 = vadd.f32 %v3580, %v3836
  %v3838 = vpop.f32.mrf.mxu0
  %v3839 = vadd.f32 %v3582, %v3838
  %3840 = vmatprep.mubr.f32.mxu0 0.0
  %3841 = vmatmul.mubr.f32.gmra.mxu0 %v3239
  %v3842 = vpop.f32.mrf.mxu0
  %v3843 = vadd.f32 %v3586, %v3842
  %v3844 = vpop.f32.mrf.mxu0
  %v3845 = vadd.f32 %v3588, %v3844
  %3846 = vmatprep.mubr.f32.mxu0 0.0
  %3847 = vmatmul.mubr.f32.gmra.mxu0 %v3240
  %v3848 = vpop.f32.mrf.mxu0
  %v3849 = vadd.f32 %v3592, %v3848
  %v3850 = vpop.f32.mrf.mxu0
  %v3851 = vadd.f32 %v3594, %v3850
  %3852 = vmatprep.mubr.f32.mxu0 0.0
  %3853 = vmatmul.mubr.f32.gmra.mxu0 %v3241
  %v3854 = vpop.f32.mrf.mxu0
  %v3855 = vadd.f32 %v3598, %v3854
  %v3856 = vpop.f32.mrf.mxu0
  %v3857 = vadd.f32 %v3600, %v3856
  %3858 = vmatprep.mubr.f32.mxu0 0.0
  %3859 = vmatmul.mubr.f32.gmra.mxu0 %v3242
  %v3860 = vpop.f32.mrf.mxu0
  %v3861 = vadd.f32 %v3604, %v3860
  %v3862 = vpop.f32.mrf.mxu0
  %v3863 = vadd.f32 %v3606, %v3862
  %3864 = vdwg.mxu0
  %v3865 = vmax.f32 %v3675, 0.0
  %v3866 = vmax.f32 %v3677, 0.0
  %v3867 = vmax.f32 %v3681, 0.0
  %v3868 = vmax.f32 %v3683, 0.0
  %v3869 = vmax.f32 %v3687, 0.0
  %v3870 = vmax.f32 %v3689, 0.0
  %v3871 = vmax.f32 %v3693, 0.0
  %v3872 = vmax.f32 %v3695, 0.0
  %v3873 = vmax.f32 %v3699, 0.0
  %v3874 = vmax.f32 %v3701, 0.0
  %v3875 = vmax.f32 %v3705, 0.0
  %v3876 = vmax.f32 %v3707, 0.0
  %v3877 = vmax.f32 %v3711, 0.0
  %v3878 = vmax.f32 %v3713, 0.0
  %v3879 = vmax.f32 %v3717, 0.0
  %v3880 = vmax.f32 %v3719, 0.0
  %v3881 = vmax.f32 %v3723, 0.0
  %v3882 = vmax.f32 %v3725, 0.0
  %v3883 = vmax.f32 %v3729, 0.0
  %v3884 = vmax.f32 %v3731, 0.0
  %v3885 = vmax.f32 %v3735, 0.0
  %v3886 = vmax.f32 %v3737, 0.0
  %v3887 = vmax.f32 %v3741, 0.0
  %v3888 = vmax.f32 %v3743, 0.0
  %v3889 = vmax.f32 %v3747, 0.0
  %v3890 = vmax.f32 %v3749, 0.0
  %v3891 = vmax.f32 %v3753, 0.0
  %v3892 = vmax.f32 %v3755, 0.0
  %v3893 = vmax.f32 %v3759, 0.0
  %v3894 = vmax.f32 %v3761, 0.0
  %v3895 = vmax.f32 %v3765, 0.0
  %v3896 = vmax.f32 %v3767, 0.0
  %v3897 = vmax.f32 %v3771, 0.0
  %v3898 = vmax.f32 %v3773, 0.0
  %v3899 = vmax.f32 %v3777, 0.0
  %v3900 = vmax.f32 %v3779, 0.0
  %v3901 = vmax.f32 %v3783, 0.0
  %v3902 = vmax.f32 %v3785, 0.0
  %v3903 = vmax.f32 %v3789, 0.0
  %v3904 = vmax.f32 %v3791, 0.0
  %v3905 = vmax.f32 %v3795, 0.0
  %v3906 = vmax.f32 %v3797, 0.0
  %v3907 = vmax.f32 %v3801, 0.0
  %v3908 = vmax.f32 %v3803, 0.0
  %v3909 = vmax.f32 %v3807, 0.0
  %v3910 = vmax.f32 %v3809, 0.0
  %v3911 = vmax.f32 %v3813, 0.0
  %v3912 = vmax.f32 %v3815, 0.0
  %v3913 = vmax.f32 %v3819, 0.0
  %v3914 = vmax.f32 %v3821, 0.0
  %v3915 = vmax.f32 %v3825, 0.0
  %v3916 = vmax.f32 %v3827, 0.0
  %v3917 = vmax.f32 %v3831, 0.0
  %v3918 = vmax.f32 %v3833, 0.0
  %v3919 = vmax.f32 %v3837, 0.0
  %v3920 = vmax.f32 %v3839, 0.0
  %v3921 = vmax.f32 %v3843, 0.0
  %v3922 = vmax.f32 %v3845, 0.0
  %v3923 = vmax.f32 %v3849, 0.0
  %v3924 = vmax.f32 %v3851, 0.0
  %v3925 = vmax.f32 %v3855, 0.0
  %v3926 = vmax.f32 %v3857, 0.0
  %v3927 = vmax.f32 %v3861, 0.0
  %v3928 = vmax.f32 %v3863, 0.0
  %v3929 = vld [vmem:[%s7] sm:$0xff]
  %v3930 = vld [vmem:[%s7 + $0x8] sm:$0xff]
  %v3931 = vld [vmem:[%s7 + $0x10] sm:$0xff]
  %v3932 = vld [vmem:[%s7 + $0x18] sm:$0xff]
  %v3933 = vld [vmem:[%s7 + $0x20] sm:$0xff]
  %v3934 = vld [vmem:[%s7 + $0x28] sm:$0xff]
  %v3935 = vld [vmem:[%s7 + $0x30] sm:$0xff]
  %v3936 = vld [vmem:[%s7 + $0x38] sm:$0xff]
  %v3937 = vld [vmem:[%s7 + $0x40] sm:$0xff]
  %v3938 = vld [vmem:[%s7 + $0x48] sm:$0xff]
  %v3939 = vld [vmem:[%s7 + $0x50] sm:$0xff]
  %v3940 = vld [vmem:[%s7 + $0x58] sm:$0xff]
  %v3941 = vld [vmem:[%s7 + $0x60] sm:$0xff]
  %v3942 = vld [vmem:[%s7 + $0x68] sm:$0xff]
  %v3943 = vld [vmem:[%s7 + $0x70] sm:$0xff]
  %v3944 = vld [vmem:[%s7 + $0x78] sm:$0xff]
  %v3945 = vld [vmem:[%s7 + $0x80] sm:$0xff]
  %v3946 = vld [vmem:[%s7 + $0x88] sm:$0xff]
  %v3947 = vld [vmem:[%s7 + $0x90] sm:$0xff]
  %v3948 = vld [vmem:[%s7 + $0x98] sm:$0xff]
  %v3949 = vld [vmem:[%s7 + $0xa0] sm:$0xff]
  %v3950 = vld [vmem:[%s7 + $0xa8] sm:$0xff]
  %v3951 = vld [vmem:[%s7 + $0xb0] sm:$0xff]
  %v3952 = vld [vmem:[%s7 + $0xb8] sm:$0xff]
  %v3953 = vld [vmem:[%s7 + $0xc0] sm:$0xff]
  %v3954 = vld [vmem:[%s7 + $0xc8] sm:$0xff]
  %v3955 = vld [vmem:[%s7 + $0xd0] sm:$0xff]
  %v3956 = vld [vmem:[%s7 + $0xd8] sm:$0xff]
  %v3957 = vld [vmem:[%s7 + $0xe0] sm:$0xff]
  %v3958 = vld [vmem:[%s7 + $0xe8] sm:$0xff]
  %v3959 = vld [vmem:[%s7 + $0xf0] sm:$0xff]
  %v3960 = vld [vmem:[%s7 + $0xf8] sm:$0xff]
  %v3961 = vld [vmem:[%s8] sm:$0xff]
  %v3962 = vld [vmem:[%s8 + $0x8] sm:$0xff]
  %v3963 = vld [vmem:[%s8 + $0x10] sm:$0xff]
  %v3964 = vld [vmem:[%s8 + $0x18] sm:$0xff]
  %v3965 = vld [vmem:[%s8 + $0x20] sm:$0xff]
  %v3966 = vld [vmem:[%s8 + $0x28] sm:$0xff]
  %v3967 = vld [vmem:[%s8 + $0x30] sm:$0xff]
  %v3968 = vld [vmem:[%s8 + $0x38] sm:$0xff]
  %v3969 = vld [vmem:[%s8 + $0x40] sm:$0xff]
  %v3970 = vld [vmem:[%s8 + $0x48] sm:$0xff]
  %v3971 = vld [vmem:[%s8 + $0x50] sm:$0xff]
  %v3972 = vld [vmem:[%s8 + $0x58] sm:$0xff]
  %v3973 = vld [vmem:[%s8 + $0x60] sm:$0xff]
  %v3974 = vld [vmem:[%s8 + $0x68] sm:$0xff]
  %v3975 = vld [vmem:[%s8 + $0x70] sm:$0xff]
  %v3976 = vld [vmem:[%s8 + $0x78] sm:$0xff]
  %v3977 = vld [vmem:[%s8 + $0x80] sm:$0xff]
  %v3978 = vld [vmem:[%s8 + $0x88] sm:$0xff]
  %v3979 = vld [vmem:[%s8 + $0x90] sm:$0xff]
  %v3980 = vld [vmem:[%s8 + $0x98] sm:$0xff]
  %v3981 = vld [vmem:[%s8 + $0xa0] sm:$0xff]
  %v3982 = vld [vmem:[%s8 + $0xa8] sm:$0xff]
  %v3983 = vld [vmem:[%s8 + $0xb0] sm:$0xff]
  %v3984 = vld [vmem:[%s8 + $0xb8] sm:$0xff]
  %v3985 = vld [vmem:[%s8 + $0xc0] sm:$0xff]
  %v3986 = vld [vmem:[%s8 + $0xc8] sm:$0xff]
  %v3987 = vld [vmem:[%s8 + $0xd0] sm:$0xff]
  %v3988 = vld [vmem:[%s8 + $0xd8] sm:$0xff]
  %v3989 = vld [vmem:[%s8 + $0xe0] sm:$0xff]
  %v3990 = vld [vmem:[%s8 + $0xe8] sm:$0xff]
  %v3991 = vld [vmem:[%s8 + $0xf0] sm:$0xff]
  %v3992 = vld [vmem:[%s8 + $0xf8] sm:$0xff]
  %v3993 = vld [vmem:[%s8 + $0x100] sm:$0xff]
  %v3994 = vld [vmem:[%s8 + $0x108] sm:$0xff]
  %v3995 = vld [vmem:[%s8 + $0x110] sm:$0xff]
  %v3996 = vld [vmem:[%s8 + $0x118] sm:$0xff]
  %v3997 = vld [vmem:[%s8 + $0x120] sm:$0xff]
  %v3998 = vld [vmem:[%s8 + $0x128] sm:$0xff]
  %v3999 = vld [vmem:[%s8 + $0x130] sm:$0xff]
  %v4000 = vld [vmem:[%s8 + $0x138] sm:$0xff]
  %v4001 = vld [vmem:[%s8 + $0x140] sm:$0xff]
  %v4002 = vld [vmem:[%s8 + $0x148] sm:$0xff]
  %v4003 = vld [vmem:[%s8 + $0x150] sm:$0xff]
  %v4004 = vld [vmem:[%s8 + $0x158] sm:$0xff]
  %v4005 = vld [vmem:[%s8 + $0x160] sm:$0xff]
  %v4006 = vld [vmem:[%s8 + $0x168] sm:$0xff]
  %v4007 = vld [vmem:[%s8 + $0x170] sm:$0xff]
  %v4008 = vld [vmem:[%s8 + $0x178] sm:$0xff]
  %v4009 = vld [vmem:[%s8 + $0x180] sm:$0xff]
  %v4010 = vld [vmem:[%s8 + $0x188] sm:$0xff]
  %v4011 = vld [vmem:[%s8 + $0x190] sm:$0xff]
  %v4012 = vld [vmem:[%s8 + $0x198] sm:$0xff]
  %v4013 = vld [vmem:[%s8 + $0x1a0] sm:$0xff]
  %v4014 = vld [vmem:[%s8 + $0x1a8] sm:$0xff]
  %v4015 = vld [vmem:[%s8 + $0x1b0] sm:$0xff]
  %v4016 = vld [vmem:[%s8 + $0x1b8] sm:$0xff]
  %v4017 = vld [vmem:[%s8 + $0x1c0] sm:$0xff]
  %v4018 = vld [vmem:[%s8 + $0x1c8] sm:$0xff]
  %v4019 = vld [vmem:[%s8 + $0x1d0] sm:$0xff]
  %v4020 = vld [vmem:[%s8 + $0x1d8] sm:$0xff]
  %v4021 = vld [vmem:[%s8 + $0x1e0] sm:$0xff]
  %v4022 = vld [vmem:[%s8 + $0x1e8] sm:$0xff]
  %v4023 = vld [vmem:[%s8 + $0x1f0] sm:$0xff]
  %v4024 = vld [vmem:[%s8 + $0x1f8] sm:$0xff]
  %v4025 = vld [vmem:[%s9] sm:$0x1]
  %v4027 = vlaneseq
  %v4028 = vshrl.u32 %v4027, 7
  %v4029 = vsub.s32 0, %v4028
  %v4030 = vrot.slane %v4025, %v4029
  %4032 = vmatprep.subr.mxu0 0.0
  %4033 = vmatpush1.msra.mxu0 %v3944
  %4034 = vmatprep.subr.mxu0 0.0
  %4035 = vmatpush1.msra.mxu0 %v3943
  %4036 = vmatprep.subr.mxu0 0.0
  %4037 = vmatpush1.msra.mxu0 %v3942
  %4038 = vmatprep.subr.mxu0 0.0
  %4039 = vmatpush1.msra.mxu0 %v3941
  %4040 = vmatprep.subr.mxu0 0.0
  %4041 = vmatpush1.msra.mxu0 %v3940
  %4042 = vmatprep.subr.mxu0 0.0
  %4043 = vmatpush1.msra.mxu0 %v3939
  %4044 = vmatprep.subr.mxu0 0.0
  %4045 = vmatpush1.msra.mxu0 %v3938
  %4046 = vmatprep.subr.mxu0 0.0
  %4047 = vmatpush1.msra.mxu0 %v3937
  %4048 = vmatprep.subr.mxu0 0.0
  %4049 = vmatpush1.msra.mxu0 %v3936
  %4050 = vmatprep.subr.mxu0 0.0
  %4051 = vmatpush1.msra.mxu0 %v3935
  %4052 = vmatprep.subr.mxu0 0.0
  %4053 = vmatpush1.msra.mxu0 %v3934
  %4054 = vmatprep.subr.mxu0 0.0
  %4055 = vmatpush1.msra.mxu0 %v3933
  %4056 = vmatprep.subr.mxu0 0.0
  %4057 = vmatpush1.msra.mxu0 %v3932
  %4058 = vmatprep.subr.mxu0 0.0
  %4059 = vmatpush1.msra.mxu0 %v3931
  %4060 = vmatprep.subr.mxu0 0.0
  %4061 = vmatpush1.msra.mxu0 %v3930
  %4062 = vmatprep.subr.mxu0 0.0
  %4063 = vmatpush1.msra.mxu0 %v3929
  %4064 = vmatprep.subr.mxu0 0.0
  %4065 = vmatpush2.msra.mxu0 %v3960
  %4066 = vmatprep.subr.mxu0 0.0
  %4067 = vmatpush2.msra.mxu0 %v3959
  %4068 = vmatprep.subr.mxu0 0.0
  %4069 = vmatpush2.msra.mxu0 %v3958
  %4070 = vmatprep.subr.mxu0 0.0
  %4071 = vmatpush2.msra.mxu0 %v3957
  %4072 = vmatprep.subr.mxu0 0.0
  %4073 = vmatpush2.msra.mxu0 %v3956
  %4074 = vmatprep.subr.mxu0 0.0
  %4075 = vmatpush2.msra.mxu0 %v3955
  %4076 = vmatprep.subr.mxu0 0.0
  %4077 = vmatpush2.msra.mxu0 %v3954
  %4078 = vmatprep.subr.mxu0 0.0
  %4079 = vmatpush2.msra.mxu0 %v3953
  %4080 = vmatprep.subr.mxu0 0.0
  %4081 = vmatpush2.msra.mxu0 %v3952
  %4082 = vmatprep.subr.mxu0 0.0
  %4083 = vmatpush2.msra.mxu0 %v3951
  %4084 = vmatprep.subr.mxu0 0.0
  %4085 = vmatpush2.msra.mxu0 %v3950
  %4086 = vmatprep.subr.mxu0 0.0
  %4087 = vmatpush2.msra.mxu0 %v3949
  %4088 = vmatprep.subr.mxu0 0.0
  %4089 = vmatpush2.msra.mxu0 %v3948
  %4090 = vmatprep.subr.mxu0 0.0
  %4091 = vmatpush2.msra.mxu0 %v3947
  %4092 = vmatprep.subr.mxu0 0.0
  %4093 = vmatpush2.msra.mxu0 %v3946
  %4094 = vmatprep.subr.mxu0 0.0
  %4095 = vmatpush2.msra.mxu0 %v3945
  %4096 = vmatprep.mubr.f32.mxu0 %v3866
  %4097 = vmatmul.mubr.f32.gmra.mxu0 %v3865
  %v4098 = vpop.f32.mrf.mxu0
  %v4099 = vadd.f32 %v4030, %v4098
  %v4100 = vpop.f32.mrf.mxu0
  %4101 = vmatprep.mubr.f32.mxu0 %v3868
  %4102 = vmatmul.mubr.f32.gmra.mxu0 %v3867
  %v4103 = vpop.f32.mrf.mxu0
  %v4104 = vadd.f32 %v4030, %v4103
  %v4105 = vpop.f32.mrf.mxu0
  %4106 = vmatprep.mubr.f32.mxu0 %v3870
  %4107 = vmatmul.mubr.f32.gmra.mxu0 %v3869
  %v4108 = vpop.f32.mrf.mxu0
  %v4109 = vadd.f32 %v4030, %v4108
  %v4110 = vpop.f32.mrf.mxu0
  %4111 = vmatprep.mubr.f32.mxu0 %v3872
  %4112 = vmatmul.mubr.f32.gmra.mxu0 %v3871
  %v4113 = vpop.f32.mrf.mxu0
  %v4114 = vadd.f32 %v4030, %v4113
  %v4115 = vpop.f32.mrf.mxu0
  %4116 = vmatprep.mubr.f32.mxu0 %v3874
  %4117 = vmatmul.mubr.f32.gmra.mxu0 %v3873
  %v4118 = vpop.f32.mrf.mxu0
  %v4119 = vadd.f32 %v4030, %v4118
  %v4120 = vpop.f32.mrf.mxu0
  %4121 = vmatprep.mubr.f32.mxu0 %v3876
  %4122 = vmatmul.mubr.f32.gmra.mxu0 %v3875
  %v4123 = vpop.f32.mrf.mxu0
  %v4124 = vadd.f32 %v4030, %v4123
  %v4125 = vpop.f32.mrf.mxu0
  %4126 = vmatprep.mubr.f32.mxu0 %v3878
  %4127 = vmatmul.mubr.f32.gmra.mxu0 %v3877
  %v4128 = vpop.f32.mrf.mxu0
  %v4129 = vadd.f32 %v4030, %v4128
  %v4130 = vpop.f32.mrf.mxu0
  %4131 = vmatprep.mubr.f32.mxu0 %v3880
  %4132 = vmatmul.mubr.f32.gmra.mxu0 %v3879
  %v4133 = vpop.f32.mrf.mxu0
  %v4134 = vadd.f32 %v4030, %v4133
  %v4135 = vpop.f32.mrf.mxu0
  %4136 = vmatprep.mubr.f32.mxu0 %v3882
  %4137 = vmatmul.mubr.f32.gmra.mxu0 %v3881
  %v4138 = vpop.f32.mrf.mxu0
  %v4139 = vadd.f32 %v4030, %v4138
  %v4140 = vpop.f32.mrf.mxu0
  %4141 = vmatprep.mubr.f32.mxu0 %v3884
  %4142 = vmatmul.mubr.f32.gmra.mxu0 %v3883
  %v4143 = vpop.f32.mrf.mxu0
  %v4144 = vadd.f32 %v4030, %v4143
  %v4145 = vpop.f32.mrf.mxu0
  %4146 = vmatprep.mubr.f32.mxu0 %v3886
  %4147 = vmatmul.mubr.f32.gmra.mxu0 %v3885
  %v4148 = vpop.f32.mrf.mxu0
  %v4149 = vadd.f32 %v4030, %v4148
  %v4150 = vpop.f32.mrf.mxu0
  %4151 = vmatprep.mubr.f32.mxu0 %v3888
  %4152 = vmatmul.mubr.f32.gmra.mxu0 %v3887
  %v4153 = vpop.f32.mrf.mxu0
  %v4154 = vadd.f32 %v4030, %v4153
  %v4155 = vpop.f32.mrf.mxu0
  %4156 = vmatprep.mubr.f32.mxu0 %v3890
  %4157 = vmatmul.mubr.f32.gmra.mxu0 %v3889
  %v4158 = vpop.f32.mrf.mxu0
  %v4159 = vadd.f32 %v4030, %v4158
  %v4160 = vpop.f32.mrf.mxu0
  %4161 = vmatprep.mubr.f32.mxu0 %v3892
  %4162 = vmatmul.mubr.f32.gmra.mxu0 %v3891
  %v4163 = vpop.f32.mrf.mxu0
  %v4164 = vadd.f32 %v4030, %v4163
  %v4165 = vpop.f32.mrf.mxu0
  %4166 = vmatprep.mubr.f32.mxu0 %v3894
  %4167 = vmatmul.mubr.f32.gmra.mxu0 %v3893
  %v4168 = vpop.f32.mrf.mxu0
  %v4169 = vadd.f32 %v4030, %v4168
  %v4170 = vpop.f32.mrf.mxu0
  %4171 = vmatprep.mubr.f32.mxu0 %v3896
  %4172 = vmatmul.mubr.f32.gmra.mxu0 %v3895
  %v4173 = vpop.f32.mrf.mxu0
  %v4174 = vadd.f32 %v4030, %v4173
  %v4175 = vpop.f32.mrf.mxu0
  %4176 = vmatprep.mubr.f32.mxu0 %v3898
  %4177 = vmatmul.mubr.f32.gmra.mxu0 %v3897
  %v4178 = vpop.f32.mrf.mxu0
  %v4179 = vadd.f32 %v4030, %v4178
  %v4180 = vpop.f32.mrf.mxu0
  %4181 = vmatprep.mubr.f32.mxu0 %v3900
  %4182 = vmatmul.mubr.f32.gmra.mxu0 %v3899
  %v4183 = vpop.f32.mrf.mxu0
  %v4184 = vadd.f32 %v4030, %v4183
  %v4185 = vpop.f32.mrf.mxu0
  %4186 = vmatprep.mubr.f32.mxu0 %v3902
  %4187 = vmatmul.mubr.f32.gmra.mxu0 %v3901
  %v4188 = vpop.f32.mrf.mxu0
  %v4189 = vadd.f32 %v4030, %v4188
  %v4190 = vpop.f32.mrf.mxu0
  %4191 = vmatprep.mubr.f32.mxu0 %v3904
  %4192 = vmatmul.mubr.f32.gmra.mxu0 %v3903
  %v4193 = vpop.f32.mrf.mxu0
  %v4194 = vadd.f32 %v4030, %v4193
  %v4195 = vpop.f32.mrf.mxu0
  %4196 = vmatprep.mubr.f32.mxu0 %v3906
  %4197 = vmatmul.mubr.f32.gmra.mxu0 %v3905
  %v4198 = vpop.f32.mrf.mxu0
  %v4199 = vadd.f32 %v4030, %v4198
  %v4200 = vpop.f32.mrf.mxu0
  %4201 = vmatprep.mubr.f32.mxu0 %v3908
  %4202 = vmatmul.mubr.f32.gmra.mxu0 %v3907
  %v4203 = vpop.f32.mrf.mxu0
  %v4204 = vadd.f32 %v4030, %v4203
  %v4205 = vpop.f32.mrf.mxu0
  %4206 = vmatprep.mubr.f32.mxu0 %v3910
  %4207 = vmatmul.mubr.f32.gmra.mxu0 %v3909
  %v4208 = vpop.f32.mrf.mxu0
  %v4209 = vadd.f32 %v4030, %v4208
  %v4210 = vpop.f32.mrf.mxu0
  %4211 = vmatprep.mubr.f32.mxu0 %v3912
  %4212 = vmatmul.mubr.f32.gmra.mxu0 %v3911
  %v4213 = vpop.f32.mrf.mxu0
  %v4214 = vadd.f32 %v4030, %v4213
  %v4215 = vpop.f32.mrf.mxu0
  %4216 = vmatprep.mubr.f32.mxu0 %v3914
  %4217 = vmatmul.mubr.f32.gmra.mxu0 %v3913
  %v4218 = vpop.f32.mrf.mxu0
  %v4219 = vadd.f32 %v4030, %v4218
  %v4220 = vpop.f32.mrf.mxu0
  %4221 = vmatprep.mubr.f32.mxu0 %v3916
  %4222 = vmatmul.mubr.f32.gmra.mxu0 %v3915
  %v4223 = vpop.f32.mrf.mxu0
  %v4224 = vadd.f32 %v4030, %v4223
  %v4225 = vpop.f32.mrf.mxu0
  %4226 = vmatprep.mubr.f32.mxu0 %v3918
  %4227 = vmatmul.mubr.f32.gmra.mxu0 %v3917
  %v4228 = vpop.f32.mrf.mxu0
  %v4229 = vadd.f32 %v4030, %v4228
  %v4230 = vpop.f32.mrf.mxu0
  %4231 = vmatprep.mubr.f32.mxu0 %v3920
  %4232 = vmatmul.mubr.f32.gmra.mxu0 %v3919
  %v4233 = vpop.f32.mrf.mxu0
  %v4234 = vadd.f32 %v4030, %v4233
  %v4235 = vpop.f32.mrf.mxu0
  %4236 = vmatprep.mubr.f32.mxu0 %v3922
  %4237 = vmatmul.mubr.f32.gmra.mxu0 %v3921
  %v4238 = vpop.f32.mrf.mxu0
  %v4239 = vadd.f32 %v4030, %v4238
  %v4240 = vpop.f32.mrf.mxu0
  %4241 = vmatprep.mubr.f32.mxu0 %v3924
  %4242 = vmatmul.mubr.f32.gmra.mxu0 %v3923
  %v4243 = vpop.f32.mrf.mxu0
  %v4244 = vadd.f32 %v4030, %v4243
  %v4245 = vpop.f32.mrf.mxu0
  %4246 = vmatprep.mubr.f32.mxu0 %v3926
  %4247 = vmatmul.mubr.f32.gmra.mxu0 %v3925
  %v4248 = vpop.f32.mrf.mxu0
  %v4249 = vadd.f32 %v4030, %v4248
  %v4250 = vpop.f32.mrf.mxu0
  %4251 = vmatprep.mubr.f32.mxu0 %v3928
  %4252 = vmatmul.mubr.f32.gmra.mxu0 %v3927
  %v4253 = vpop.f32.mrf.mxu0
  %v4254 = vadd.f32 %v4030, %v4253
  %v4255 = vpop.f32.mrf.mxu0
  %4256 = vdwg.mxu0
  %v4257 = vmax.f32 %v4099, 0.0
  %v4258 = vmax.f32 %v4104, 0.0
  %v4259 = vmax.f32 %v4109, 0.0
  %v4260 = vmax.f32 %v4114, 0.0
  %v4261 = vmax.f32 %v4119, 0.0
  %v4262 = vmax.f32 %v4124, 0.0
  %v4263 = vmax.f32 %v4129, 0.0
  %v4264 = vmax.f32 %v4134, 0.0
  %v4265 = vmax.f32 %v4139, 0.0
  %v4266 = vmax.f32 %v4144, 0.0
  %v4267 = vmax.f32 %v4149, 0.0
  %v4268 = vmax.f32 %v4154, 0.0
  %v4269 = vmax.f32 %v4159, 0.0
  %v4270 = vmax.f32 %v4164, 0.0
  %v4271 = vmax.f32 %v4169, 0.0
  %v4272 = vmax.f32 %v4174, 0.0
  %v4273 = vmax.f32 %v4179, 0.0
  %v4274 = vmax.f32 %v4184, 0.0
  %v4275 = vmax.f32 %v4189, 0.0
  %v4276 = vmax.f32 %v4194, 0.0
  %v4277 = vmax.f32 %v4199, 0.0
  %v4278 = vmax.f32 %v4204, 0.0
  %v4279 = vmax.f32 %v4209, 0.0
  %v4280 = vmax.f32 %v4214, 0.0
  %v4281 = vmax.f32 %v4219, 0.0
  %v4282 = vmax.f32 %v4224, 0.0
  %v4283 = vmax.f32 %v4229, 0.0
  %v4284 = vmax.f32 %v4234, 0.0
  %v4285 = vmax.f32 %v4239, 0.0
  %v4286 = vmax.f32 %v4244, 0.0
  %v4287 = vmax.f32 %v4249, 0.0
  %v4288 = vmax.f32 %v4254, 0.0
  %4289 = vmatprep.subr.mxu0 0.0
  %4290 = vmatpush1.msra.mxu0 %v3976
  %4291 = vmatprep.subr.mxu0 0.0
  %4292 = vmatpush1.msra.mxu0 %v3975
  %4293 = vmatprep.subr.mxu0 0.0
  %4294 = vmatpush1.msra.mxu0 %v3974
  %4295 = vmatprep.subr.mxu0 0.0
  %4296 = vmatpush1.msra.mxu0 %v3973
  %4297 = vmatprep.subr.mxu0 0.0
  %4298 = vmatpush1.msra.mxu0 %v3972
  %4299 = vmatprep.subr.mxu0 0.0
  %4300 = vmatpush1.msra.mxu0 %v3971
  %4301 = vmatprep.subr.mxu0 0.0
  %4302 = vmatpush1.msra.mxu0 %v3970
  %4303 = vmatprep.subr.mxu0 0.0
  %4304 = vmatpush1.msra.mxu0 %v3969
  %4305 = vmatprep.subr.mxu0 0.0
  %4306 = vmatpush1.msra.mxu0 %v3968
  %4307 = vmatprep.subr.mxu0 0.0
  %4308 = vmatpush1.msra.mxu0 %v3967
  %4309 = vmatprep.subr.mxu0 0.0
  %4310 = vmatpush1.msra.mxu0 %v3966
  %4311 = vmatprep.subr.mxu0 0.0
  %4312 = vmatpush1.msra.mxu0 %v3965
  %4313 = vmatprep.subr.mxu0 0.0
  %4314 = vmatpush1.msra.mxu0 %v3964
  %4315 = vmatprep.subr.mxu0 0.0
  %4316 = vmatpush1.msra.mxu0 %v3963
  %4317 = vmatprep.subr.mxu0 0.0
  %4318 = vmatpush1.msra.mxu0 %v3962
  %4319 = vmatprep.subr.mxu0 0.0
  %4320 = vmatpush1.msra.mxu0 %v3961
  %4321 = vmatprep.subr.mxu0 0.0
  %4322 = vmatpush2.msra.mxu0 %v3992
  %4323 = vmatprep.subr.mxu0 0.0
  %4324 = vmatpush2.msra.mxu0 %v3991
  %4325 = vmatprep.subr.mxu0 0.0
  %4326 = vmatpush2.msra.mxu0 %v3990
  %4327 = vmatprep.subr.mxu0 0.0
  %4328 = vmatpush2.msra.mxu0 %v3989
  %4329 = vmatprep.subr.mxu0 0.0
  %4330 = vmatpush2.msra.mxu0 %v3988
  %4331 = vmatprep.subr.mxu0 0.0
  %4332 = vmatpush2.msra.mxu0 %v3987
  %4333 = vmatprep.subr.mxu0 0.0
  %4334 = vmatpush2.msra.mxu0 %v3986
  %4335 = vmatprep.subr.mxu0 0.0
  %4336 = vmatpush2.msra.mxu0 %v3985
  %4337 = vmatprep.subr.mxu0 0.0
  %4338 = vmatpush2.msra.mxu0 %v3984
  %4339 = vmatprep.subr.mxu0 0.0
  %4340 = vmatpush2.msra.mxu0 %v3983
  %4341 = vmatprep.subr.mxu0 0.0
  %4342 = vmatpush2.msra.mxu0 %v3982
  %4343 = vmatprep.subr.mxu0 0.0
  %4344 = vmatpush2.msra.mxu0 %v3981
  %4345 = vmatprep.subr.mxu0 0.0
  %4346 = vmatpush2.msra.mxu0 %v3980
  %4347 = vmatprep.subr.mxu0 0.0
  %4348 = vmatpush2.msra.mxu0 %v3979
  %4349 = vmatprep.subr.mxu0 0.0
  %4350 = vmatpush2.msra.mxu0 %v3978
  %4351 = vmatprep.subr.mxu0 0.0
  %4352 = vmatpush2.msra.mxu0 %v3977
  %4353 = vmatprep.mubr.f32.mxu0 %v3866
  %4354 = vmatmul.mubr.f32.gmra.mxu0 %v3865
  %v4355 = vpop.f32.mrf.mxu0
  %v4356 = vadd.f32 %v4030, %v4355
  %v4357 = vpop.f32.mrf.mxu0
  %4358 = vmatprep.mubr.f32.mxu0 %v3868
  %4359 = vmatmul.mubr.f32.gmra.mxu0 %v3867
  %v4360 = vpop.f32.mrf.mxu0
  %v4361 = vadd.f32 %v4030, %v4360
  %v4362 = vpop.f32.mrf.mxu0
  %4363 = vmatprep.mubr.f32.mxu0 %v3870
  %4364 = vmatmul.mubr.f32.gmra.mxu0 %v3869
  %v4365 = vpop.f32.mrf.mxu0
  %v4366 = vadd.f32 %v4030, %v4365
  %v4367 = vpop.f32.mrf.mxu0
  %4368 = vmatprep.mubr.f32.mxu0 %v3872
  %4369 = vmatmul.mubr.f32.gmra.mxu0 %v3871
  %v4370 = vpop.f32.mrf.mxu0
  %v4371 = vadd.f32 %v4030, %v4370
  %v4372 = vpop.f32.mrf.mxu0
  %4373 = vmatprep.mubr.f32.mxu0 %v3874
  %4374 = vmatmul.mubr.f32.gmra.mxu0 %v3873
  %v4375 = vpop.f32.mrf.mxu0
  %v4376 = vadd.f32 %v4030, %v4375
  %v4377 = vpop.f32.mrf.mxu0
  %4378 = vmatprep.mubr.f32.mxu0 %v3876
  %4379 = vmatmul.mubr.f32.gmra.mxu0 %v3875
  %v4380 = vpop.f32.mrf.mxu0
  %v4381 = vadd.f32 %v4030, %v4380
  %v4382 = vpop.f32.mrf.mxu0
  %4383 = vmatprep.mubr.f32.mxu0 %v3878
  %4384 = vmatmul.mubr.f32.gmra.mxu0 %v3877
  %v4385 = vpop.f32.mrf.mxu0
  %v4386 = vadd.f32 %v4030, %v4385
  %v4387 = vpop.f32.mrf.mxu0
  %4388 = vmatprep.mubr.f32.mxu0 %v3880
  %4389 = vmatmul.mubr.f32.gmra.mxu0 %v3879
  %v4390 = vpop.f32.mrf.mxu0
  %v4391 = vadd.f32 %v4030, %v4390
  %v4392 = vpop.f32.mrf.mxu0
  %4393 = vmatprep.mubr.f32.mxu0 %v3882
  %4394 = vmatmul.mubr.f32.gmra.mxu0 %v3881
  %v4395 = vpop.f32.mrf.mxu0
  %v4396 = vadd.f32 %v4030, %v4395
  %v4397 = vpop.f32.mrf.mxu0
  %4398 = vmatprep.mubr.f32.mxu0 %v3884
  %4399 = vmatmul.mubr.f32.gmra.mxu0 %v3883
  %v4400 = vpop.f32.mrf.mxu0
  %v4401 = vadd.f32 %v4030, %v4400
  %v4402 = vpop.f32.mrf.mxu0
  %4403 = vmatprep.mubr.f32.mxu0 %v3886
  %4404 = vmatmul.mubr.f32.gmra.mxu0 %v3885
  %v4405 = vpop.f32.mrf.mxu0
  %v4406 = vadd.f32 %v4030, %v4405
  %v4407 = vpop.f32.mrf.mxu0
  %4408 = vmatprep.mubr.f32.mxu0 %v3888
  %4409 = vmatmul.mubr.f32.gmra.mxu0 %v3887
  %v4410 = vpop.f32.mrf.mxu0
  %v4411 = vadd.f32 %v4030, %v4410
  %v4412 = vpop.f32.mrf.mxu0
  %4413 = vmatprep.mubr.f32.mxu0 %v3890
  %4414 = vmatmul.mubr.f32.gmra.mxu0 %v3889
  %v4415 = vpop.f32.mrf.mxu0
  %v4416 = vadd.f32 %v4030, %v4415
  %v4417 = vpop.f32.mrf.mxu0
  %4418 = vmatprep.mubr.f32.mxu0 %v3892
  %4419 = vmatmul.mubr.f32.gmra.mxu0 %v3891
  %v4420 = vpop.f32.mrf.mxu0
  %v4421 = vadd.f32 %v4030, %v4420
  %v4422 = vpop.f32.mrf.mxu0
  %4423 = vmatprep.mubr.f32.mxu0 %v3894
  %4424 = vmatmul.mubr.f32.gmra.mxu0 %v3893
  %v4425 = vpop.f32.mrf.mxu0
  %v4426 = vadd.f32 %v4030, %v4425
  %v4427 = vpop.f32.mrf.mxu0
  %4428 = vmatprep.mubr.f32.mxu0 %v3896
  %4429 = vmatmul.mubr.f32.gmra.mxu0 %v3895
  %v4430 = vpop.f32.mrf.mxu0
  %v4431 = vadd.f32 %v4030, %v4430
  %v4432 = vpop.f32.mrf.mxu0
  %4433 = vmatprep.mubr.f32.mxu0 %v3898
  %4434 = vmatmul.mubr.f32.gmra.mxu0 %v3897
  %v4435 = vpop.f32.mrf.mxu0
  %v4436 = vpop.f32.mrf.mxu0
  %4437 = vmatprep.mubr.f32.mxu0 %v3900
  %4438 = vmatmul.mubr.f32.gmra.mxu0 %v3899
  %v4439 = vpop.f32.mrf.mxu0
  %v4440 = vpop.f32.mrf.mxu0
  %4441 = vmatprep.mubr.f32.mxu0 %v3902
  %4442 = vmatmul.mubr.f32.gmra.mxu0 %v3901
  %v4443 = vpop.f32.mrf.mxu0
  %v4444 = vpop.f32.mrf.mxu0
  %4445 = vmatprep.mubr.f32.mxu0 %v3904
  %4446 = vmatmul.mubr.f32.gmra.mxu0 %v3903
  %v4447 = vpop.f32.mrf.mxu0
  %v4448 = vpop.f32.mrf.mxu0
  %4449 = vmatprep.mubr.f32.mxu0 %v3906
  %4450 = vmatmul.mubr.f32.gmra.mxu0 %v3905
  %v4451 = vpop.f32.mrf.mxu0
  %v4452 = vpop.f32.mrf.mxu0
  %4453 = vmatprep.mubr.f32.mxu0 %v3908
  %4454 = vmatmul.mubr.f32.gmra.mxu0 %v3907
  %v4455 = vpop.f32.mrf.mxu0
  %v4456 = vpop.f32.mrf.mxu0
  %4457 = vmatprep.mubr.f32.mxu0 %v3910
  %4458 = vmatmul.mubr.f32.gmra.mxu0 %v3909
  %v4459 = vpop.f32.mrf.mxu0
  %v4460 = vpop.f32.mrf.mxu0
  %4461 = vmatprep.mubr.f32.mxu0 %v3912
  %4462 = vmatmul.mubr.f32.gmra.mxu0 %v3911
  %v4463 = vpop.f32.mrf.mxu0
  %v4464 = vpop.f32.mrf.mxu0
  %4465 = vmatprep.mubr.f32.mxu0 %v3914
  %4466 = vmatmul.mubr.f32.gmra.mxu0 %v3913
  %v4467 = vpop.f32.mrf.mxu0
  %v4468 = vpop.f32.mrf.mxu0
  %4469 = vmatprep.mubr.f32.mxu0 %v3916
  %4470 = vmatmul.mubr.f32.gmra.mxu0 %v3915
  %v4471 = vpop.f32.mrf.mxu0
  %v4472 = vpop.f32.mrf.mxu0
  %4473 = vmatprep.mubr.f32.mxu0 %v3918
  %4474 = vmatmul.mubr.f32.gmra.mxu0 %v3917
  %v4475 = vpop.f32.mrf.mxu0
  %v4476 = vpop.f32.mrf.mxu0
  %4477 = vmatprep.mubr.f32.mxu0 %v3920
  %4478 = vmatmul.mubr.f32.gmra.mxu0 %v3919
  %v4479 = vpop.f32.mrf.mxu0
  %v4480 = vpop.f32.mrf.mxu0
  %4481 = vmatprep.mubr.f32.mxu0 %v3922
  %4482 = vmatmul.mubr.f32.gmra.mxu0 %v3921
  %v4483 = vpop.f32.mrf.mxu0
  %v4484 = vpop.f32.mrf.mxu0
  %4485 = vmatprep.mubr.f32.mxu0 %v3924
  %4486 = vmatmul.mubr.f32.gmra.mxu0 %v3923
  %v4487 = vpop.f32.mrf.mxu0
  %v4488 = vpop.f32.mrf.mxu0
  %4489 = vmatprep.mubr.f32.mxu0 %v3926
  %4490 = vmatmul.mubr.f32.gmra.mxu0 %v3925
  %v4491 = vpop.f32.mrf.mxu0
  %v4492 = vpop.f32.mrf.mxu0
  %4493 = vmatprep.mubr.f32.mxu0 %v3928
  %4494 = vmatmul.mubr.f32.gmra.mxu0 %v3927
  %v4495 = vpop.f32.mrf.mxu0
  %v4496 = vpop.f32.mrf.mxu0
  %4497 = vdwg.mxu0
  %4498 = vmatprep.subr.mxu0 0.0
  %4499 = vmatpush1.msra.mxu0 %v4008
  %4500 = vmatprep.subr.mxu0 0.0
  %4501 = vmatpush1.msra.mxu0 %v4007
  %4502 = vmatprep.subr.mxu0 0.0
  %4503 = vmatpush1.msra.mxu0 %v4006
  %4504 = vmatprep.subr.mxu0 0.0
  %4505 = vmatpush1.msra.mxu0 %v4005
  %4506 = vmatprep.subr.mxu0 0.0
  %4507 = vmatpush1.msra.mxu0 %v4004
  %4508 = vmatprep.subr.mxu0 0.0
  %4509 = vmatpush1.msra.mxu0 %v4003
  %4510 = vmatprep.subr.mxu0 0.0
  %4511 = vmatpush1.msra.mxu0 %v4002
  %4512 = vmatprep.subr.mxu0 0.0
  %4513 = vmatpush1.msra.mxu0 %v4001
  %4514 = vmatprep.subr.mxu0 0.0
  %4515 = vmatpush1.msra.mxu0 %v4000
  %4516 = vmatprep.subr.mxu0 0.0
  %4517 = vmatpush1.msra.mxu0 %v3999
  %4518 = vmatprep.subr.mxu0 0.0
  %4519 = vmatpush1.msra.mxu0 %v3998
  %4520 = vmatprep.subr.mxu0 0.0
  %4521 = vmatpush1.msra.mxu0 %v3997
  %4522 = vmatprep.subr.mxu0 0.0
  %4523 = vmatpush1.msra.mxu0 %v3996
  %4524 = vmatprep.subr.mxu0 0.0
  %4525 = vmatpush1.msra.mxu0 %v3995
  %4526 = vmatprep.subr.mxu0 0.0
  %4527 = vmatpush1.msra.mxu0 %v3994
  %4528 = vmatprep.subr.mxu0 0.0
  %4529 = vmatpush1.msra.mxu0 %v3993
  %4530 = vmatprep.subr.mxu0 0.0
  %4531 = vmatpush2.msra.mxu0 %v4024
  %4532 = vmatprep.subr.mxu0 0.0
  %4533 = vmatpush2.msra.mxu0 %v4023
  %4534 = vmatprep.subr.mxu0 0.0
  %4535 = vmatpush2.msra.mxu0 %v4022
  %4536 = vmatprep.subr.mxu0 0.0
  %4537 = vmatpush2.msra.mxu0 %v4021
  %4538 = vmatprep.subr.mxu0 0.0
  %4539 = vmatpush2.msra.mxu0 %v4020
  %4540 = vmatprep.subr.mxu0 0.0
  %4541 = vmatpush2.msra.mxu0 %v4019
  %4542 = vmatprep.subr.mxu0 0.0
  %4543 = vmatpush2.msra.mxu0 %v4018
  %4544 = vmatprep.subr.mxu0 0.0
  %4545 = vmatpush2.msra.mxu0 %v4017
  %4546 = vmatprep.subr.mxu0 0.0
  %4547 = vmatpush2.msra.mxu0 %v4016
  %4548 = vmatprep.subr.mxu0 0.0
  %4549 = vmatpush2.msra.mxu0 %v4015
  %4550 = vmatprep.subr.mxu0 0.0
  %4551 = vmatpush2.msra.mxu0 %v4014
  %4552 = vmatprep.subr.mxu0 0.0
  %4553 = vmatpush2.msra.mxu0 %v4013
  %4554 = vmatprep.subr.mxu0 0.0
  %4555 = vmatpush2.msra.mxu0 %v4012
  %4556 = vmatprep.subr.mxu0 0.0
  %4557 = vmatpush2.msra.mxu0 %v4011
  %4558 = vmatprep.subr.mxu0 0.0
  %4559 = vmatpush2.msra.mxu0 %v4010
  %4560 = vmatprep.subr.mxu0 0.0
  %4561 = vmatpush2.msra.mxu0 %v4009
  %4562 = vmatprep.mubr.f32.mxu0 %v3898
  %4563 = vmatmul.mubr.f32.gmra.mxu0 %v3897
  %v4564 = vpop.f32.mrf.mxu0
  %v4565 = vadd.f32 %v4356, %v4564
  %v4566 = vpop.f32.mrf.mxu0
  %4567 = vmatprep.mubr.f32.mxu0 %v3900
  %4568 = vmatmul.mubr.f32.gmra.mxu0 %v3899
  %v4569 = vpop.f32.mrf.mxu0
  %v4570 = vadd.f32 %v4361, %v4569
  %v4571 = vpop.f32.mrf.mxu0
  %4572 = vmatprep.mubr.f32.mxu0 %v3902
  %4573 = vmatmul.mubr.f32.gmra.mxu0 %v3901
  %v4574 = vpop.f32.mrf.mxu0
  %v4575 = vadd.f32 %v4366, %v4574
  %v4576 = vpop.f32.mrf.mxu0
  %4577 = vmatprep.mubr.f32.mxu0 %v3904
  %4578 = vmatmul.mubr.f32.gmra.mxu0 %v3903
  %v4579 = vpop.f32.mrf.mxu0
  %v4580 = vadd.f32 %v4371, %v4579
  %v4581 = vpop.f32.mrf.mxu0
  %4582 = vmatprep.mubr.f32.mxu0 %v3906
  %4583 = vmatmul.mubr.f32.gmra.mxu0 %v3905
  %v4584 = vpop.f32.mrf.mxu0
  %v4585 = vadd.f32 %v4376, %v4584
  %v4586 = vpop.f32.mrf.mxu0
  %4587 = vmatprep.mubr.f32.mxu0 %v3908
  %4588 = vmatmul.mubr.f32.gmra.mxu0 %v3907
  %v4589 = vpop.f32.mrf.mxu0
  %v4590 = vadd.f32 %v4381, %v4589
  %v4591 = vpop.f32.mrf.mxu0
  %4592 = vmatprep.mubr.f32.mxu0 %v3910
  %4593 = vmatmul.mubr.f32.gmra.mxu0 %v3909
  %v4594 = vpop.f32.mrf.mxu0
  %v4595 = vadd.f32 %v4386, %v4594
  %v4596 = vpop.f32.mrf.mxu0
  %4597 = vmatprep.mubr.f32.mxu0 %v3912
  %4598 = vmatmul.mubr.f32.gmra.mxu0 %v3911
  %v4599 = vpop.f32.mrf.mxu0
  %v4600 = vadd.f32 %v4391, %v4599
  %v4601 = vpop.f32.mrf.mxu0
  %4602 = vmatprep.mubr.f32.mxu0 %v3914
  %4603 = vmatmul.mubr.f32.gmra.mxu0 %v3913
  %v4604 = vpop.f32.mrf.mxu0
  %v4605 = vadd.f32 %v4396, %v4604
  %v4606 = vpop.f32.mrf.mxu0
  %4607 = vmatprep.mubr.f32.mxu0 %v3916
  %4608 = vmatmul.mubr.f32.gmra.mxu0 %v3915
  %v4609 = vpop.f32.mrf.mxu0
  %v4610 = vadd.f32 %v4401, %v4609
  %v4611 = vpop.f32.mrf.mxu0
  %4612 = vmatprep.mubr.f32.mxu0 %v3918
  %4613 = vmatmul.mubr.f32.gmra.mxu0 %v3917
  %v4614 = vpop.f32.mrf.mxu0
  %v4615 = vadd.f32 %v4406, %v4614
  %v4616 = vpop.f32.mrf.mxu0
  %4617 = vmatprep.mubr.f32.mxu0 %v3920
  %4618 = vmatmul.mubr.f32.gmra.mxu0 %v3919
  %v4619 = vpop.f32.mrf.mxu0
  %v4620 = vadd.f32 %v4411, %v4619
  %v4621 = vpop.f32.mrf.mxu0
  %4622 = vmatprep.mubr.f32.mxu0 %v3922
  %4623 = vmatmul.mubr.f32.gmra.mxu0 %v3921
  %v4624 = vpop.f32.mrf.mxu0
  %v4625 = vadd.f32 %v4416, %v4624
  %v4626 = vpop.f32.mrf.mxu0
  %4627 = vmatprep.mubr.f32.mxu0 %v3924
  %4628 = vmatmul.mubr.f32.gmra.mxu0 %v3923
  %v4629 = vpop.f32.mrf.mxu0
  %v4630 = vadd.f32 %v4421, %v4629
  %v4631 = vpop.f32.mrf.mxu0
  %4632 = vmatprep.mubr.f32.mxu0 %v3926
  %4633 = vmatmul.mubr.f32.gmra.mxu0 %v3925
  %v4634 = vpop.f32.mrf.mxu0
  %v4635 = vadd.f32 %v4426, %v4634
  %v4636 = vpop.f32.mrf.mxu0
  %4637 = vmatprep.mubr.f32.mxu0 %v3928
  %4638 = vmatmul.mubr.f32.gmra.mxu0 %v3927
  %v4639 = vpop.f32.mrf.mxu0
  %v4640 = vadd.f32 %v4431, %v4639
  %v4641 = vpop.f32.mrf.mxu0
  %4642 = vmatprep.mubr.f32.mxu0 0.0
  %4643 = vmatmul.mubr.f32.gmra.mxu0 0.0
  %v4644 = vpop.f32.mrf.mxu0
  %v4645 = vpop.f32.mrf.mxu0
  %4646 = vmatprep.mubr.f32.mxu0 0.0
  %4647 = vmatmul.mubr.f32.gmra.mxu0 0.0
  %v4648 = vpop.f32.mrf.mxu0
  %v4649 = vpop.f32.mrf.mxu0
  %4650 = vmatprep.mubr.f32.mxu0 0.0
  %4651 = vmatmul.mubr.f32.gmra.mxu0 0.0
  %v4652 = vpop.f32.mrf.mxu0
  %v4653 = vpop.f32.mrf.mxu0
  %4654 = vmatprep.mubr.f32.mxu0 0.0
  %4655 = vmatmul.mubr.f32.gmra.mxu0 0.0
  %v4656 = vpop.f32.mrf.mxu0
  %v4657 = vpop.f32.mrf.mxu0
  %4658 = vmatprep.mubr.f32.mxu0 0.0
  %4659 = vmatmul.mubr.f32.gmra.mxu0 0.0
  %v4660 = vpop.f32.mrf.mxu0
  %v4661 = vpop.f32.mrf.mxu0
  %4662 = vmatprep.mubr.f32.mxu0 0.0
  %4663 = vmatmul.mubr.f32.gmra.mxu0 0.0
  %v4664 = vpop.f32.mrf.mxu0
  %v4665 = vpop.f32.mrf.mxu0
  %4666 = vmatprep.mubr.f32.mxu0 0.0
  %4667 = vmatmul.mubr.f32.gmra.mxu0 0.0
  %v4668 = vpop.f32.mrf.mxu0
  %v4669 = vpop.f32.mrf.mxu0
  %4670 = vmatprep.mubr.f32.mxu0 0.0
  %4671 = vmatmul.mubr.f32.gmra.mxu0 0.0
  %v4672 = vpop.f32.mrf.mxu0
  %v4673 = vpop.f32.mrf.mxu0
  %4674 = vmatprep.mubr.f32.mxu0 0.0
  %4675 = vmatmul.mubr.f32.gmra.mxu0 0.0
  %v4676 = vpop.f32.mrf.mxu0
  %v4677 = vpop.f32.mrf.mxu0
  %4678 = vmatprep.mubr.f32.mxu0 0.0
  %4679 = vmatmul.mubr.f32.gmra.mxu0 0.0
  %v4680 = vpop.f32.mrf.mxu0
  %v4681 = vpop.f32.mrf.mxu0
  %4682 = vmatprep.mubr.f32.mxu0 0.0
  %4683 = vmatmul.mubr.f32.gmra.mxu0 0.0
  %v4684 = vpop.f32.mrf.mxu0
  %v4685 = vpop.f32.mrf.mxu0
  %4686 = vmatprep.mubr.f32.mxu0 0.0
  %4687 = vmatmul.mubr.f32.gmra.mxu0 0.0
  %v4688 = vpop.f32.mrf.mxu0
  %v4689 = vpop.f32.mrf.mxu0
  %4690 = vmatprep.mubr.f32.mxu0 0.0
  %4691 = vmatmul.mubr.f32.gmra.mxu0 0.0
  %v4692 = vpop.f32.mrf.mxu0
  %v4693 = vpop.f32.mrf.mxu0
  %4694 = vmatprep.mubr.f32.mxu0 0.0
  %4695 = vmatmul.mubr.f32.gmra.mxu0 0.0
  %v4696 = vpop.f32.mrf.mxu0
  %v4697 = vpop.f32.mrf.mxu0
  %4698 = vmatprep.mubr.f32.mxu0 0.0
  %4699 = vmatmul.mubr.f32.gmra.mxu0 0.0
  %v4700 = vpop.f32.mrf.mxu0
  %v4701 = vpop.f32.mrf.mxu0
  %4702 = vmatprep.mubr.f32.mxu0 0.0
  %4703 = vmatmul.mubr.f32.gmra.mxu0 0.0
  %v4704 = vpop.f32.mrf.mxu0
  %v4705 = vpop.f32.mrf.mxu0
  %4706 = vdwg.mxu0
  %v4707 = vmax.f32 %v4565, 0.0
  %v4708 = vmax.f32 %v4570, 0.0
  %v4709 = vmax.f32 %v4575, 0.0
  %v4710 = vmax.f32 %v4580, 0.0
  %v4711 = vmax.f32 %v4585, 0.0
  %v4712 = vmax.f32 %v4590, 0.0
  %v4713 = vmax.f32 %v4595, 0.0
  %v4714 = vmax.f32 %v4600, 0.0
  %v4715 = vmax.f32 %v4605, 0.0
  %v4716 = vmax.f32 %v4610, 0.0
  %v4717 = vmax.f32 %v4615, 0.0
  %v4718 = vmax.f32 %v4620, 0.0
  %v4719 = vmax.f32 %v4625, 0.0
  %v4720 = vmax.f32 %v4630, 0.0
  %v4721 = vmax.f32 %v4635, 0.0
  %v4722 = vmax.f32 %v4640, 0.0
  %v4723 = vld [vmem:[%s10] sm:$0xff]
  %v4724 = vld [vmem:[%s10 + $0x8] sm:$0xff]
  %v4725 = vld [vmem:[%s10 + $0x10] sm:$0xff]
  %v4726 = vld [vmem:[%s10 + $0x18] sm:$0xff]
  %v4727 = vld [vmem:[%s10 + $0x20] sm:$0xff]
  %v4728 = vld [vmem:[%s10 + $0x28] sm:$0xff]
  %v4729 = vld [vmem:[%s10 + $0x30] sm:$0xff]
  %v4730 = vld [vmem:[%s10 + $0x38] sm:$0xff]
  %v4731 = vld [vmem:[%s10 + $0x40] sm:$0xff]
  %v4732 = vld [vmem:[%s10 + $0x48] sm:$0xff]
  %v4733 = vld [vmem:[%s10 + $0x50] sm:$0xff]
  %v4734 = vld [vmem:[%s10 + $0x58] sm:$0xff]
  %v4735 = vld [vmem:[%s10 + $0x60] sm:$0xff]
  %v4736 = vld [vmem:[%s10 + $0x68] sm:$0xff]
  %v4737 = vld [vmem:[%s10 + $0x70] sm:$0xff]
  %v4738 = vld [vmem:[%s10 + $0x78] sm:$0xff]
  %v4739 = vld [vmem:[%s11] sm:$0xff]
  %v4740 = vld [vmem:[%s11 + $0x8] sm:$0xff]
  %v4741 = vld [vmem:[%s11 + $0x10] sm:$0xff]
  %v4742 = vld [vmem:[%s11 + $0x18] sm:$0xff]
  %v4743 = vld [vmem:[%s11 + $0x20] sm:$0xff]
  %v4744 = vld [vmem:[%s11 + $0x28] sm:$0xff]
  %v4745 = vld [vmem:[%s11 + $0x30] sm:$0xff]
  %v4746 = vld [vmem:[%s11 + $0x38] sm:$0xff]
  %v4747 = vld [vmem:[%s11 + $0x40] sm:$0xff]
  %v4748 = vld [vmem:[%s11 + $0x48] sm:$0xff]
  %v4749 = vld [vmem:[%s11 + $0x50] sm:$0xff]
  %v4750 = vld [vmem:[%s11 + $0x58] sm:$0xff]
  %v4751 = vld [vmem:[%s11 + $0x60] sm:$0xff]
  %v4752 = vld [vmem:[%s11 + $0x68] sm:$0xff]
  %v4753 = vld [vmem:[%s11 + $0x70] sm:$0xff]
  %v4754 = vld [vmem:[%s11 + $0x78] sm:$0xff]
  %v4755 = vld [vmem:[%s11 + $0x80] sm:$0xff]
  %v4756 = vld [vmem:[%s11 + $0x88] sm:$0xff]
  %v4757 = vld [vmem:[%s11 + $0x90] sm:$0xff]
  %v4758 = vld [vmem:[%s11 + $0x98] sm:$0xff]
  %v4759 = vld [vmem:[%s11 + $0xa0] sm:$0xff]
  %v4760 = vld [vmem:[%s11 + $0xa8] sm:$0xff]
  %v4761 = vld [vmem:[%s11 + $0xb0] sm:$0xff]
  %v4762 = vld [vmem:[%s11 + $0xb8] sm:$0xff]
  %v4763 = vld [vmem:[%s11 + $0xc0] sm:$0xff]
  %v4764 = vld [vmem:[%s11 + $0xc8] sm:$0xff]
  %v4765 = vld [vmem:[%s11 + $0xd0] sm:$0xff]
  %v4766 = vld [vmem:[%s11 + $0xd8] sm:$0xff]
  %v4767 = vld [vmem:[%s11 + $0xe0] sm:$0xff]
  %v4768 = vld [vmem:[%s11 + $0xe8] sm:$0xff]
  %v4769 = vld [vmem:[%s11 + $0xf0] sm:$0xff]
  %v4770 = vld [vmem:[%s11 + $0xf8] sm:$0xff]
  %v4771 = vld [vmem:[%s12] sm:$0x1]
  %v4773 = vlaneseq
  %v4774 = vshrl.u32 %v4773, 7
  %v4775 = vsub.s32 0, %v4774
  %v4776 = vrot.slane %v4771, %v4775
  %4778 = vmatprep.subr.mxu0 0.0
  %4779 = vmatpush1.msra.mxu0 %v4738
  %4780 = vmatprep.subr.mxu0 0.0
  %4781 = vmatpush1.msra.mxu0 %v4737
  %4782 = vmatprep.subr.mxu0 0.0
  %4783 = vmatpush1.msra.mxu0 %v4736
  %4784 = vmatprep.subr.mxu0 0.0
  %4785 = vmatpush1.msra.mxu0 %v4735
  %4786 = vmatprep.subr.mxu0 0.0
  %4787 = vmatpush1.msra.mxu0 %v4734
  %4788 = vmatprep.subr.mxu0 0.0
  %4789 = vmatpush1.msra.mxu0 %v4733
  %4790 = vmatprep.subr.mxu0 0.0
  %4791 = vmatpush1.msra.mxu0 %v4732
  %4792 = vmatprep.subr.mxu0 0.0
  %4793 = vmatpush1.msra.mxu0 %v4731
  %4794 = vmatprep.subr.mxu0 0.0
  %4795 = vmatpush1.msra.mxu0 %v4730
  %4796 = vmatprep.subr.mxu0 0.0
  %4797 = vmatpush1.msra.mxu0 %v4729
  %4798 = vmatprep.subr.mxu0 0.0
  %4799 = vmatpush1.msra.mxu0 %v4728
  %4800 = vmatprep.subr.mxu0 0.0
  %4801 = vmatpush1.msra.mxu0 %v4727
  %4802 = vmatprep.subr.mxu0 0.0
  %4803 = vmatpush1.msra.mxu0 %v4726
  %4804 = vmatprep.subr.mxu0 0.0
  %4805 = vmatpush1.msra.mxu0 %v4725
  %4806 = vmatprep.subr.mxu0 0.0
  %4807 = vmatpush1.msra.mxu0 %v4724
  %4808 = vmatprep.subr.mxu0 0.0
  %4809 = vmatpush1.msra.mxu0 %v4723
  %4810 = vmatprep.subr.mxu0 0.0
  %4811 = vmatpush2.msra.mxu0 0.0
  %4812 = vmatprep.subr.mxu0 0.0
  %4813 = vmatpush2.msra.mxu0 0.0
  %4814 = vmatprep.subr.mxu0 0.0
  %4815 = vmatpush2.msra.mxu0 0.0
  %4816 = vmatprep.subr.mxu0 0.0
  %4817 = vmatpush2.msra.mxu0 0.0
  %4818 = vmatprep.subr.mxu0 0.0
  %4819 = vmatpush2.msra.mxu0 0.0
  %4820 = vmatprep.subr.mxu0 0.0
  %4821 = vmatpush2.msra.mxu0 0.0
  %4822 = vmatprep.subr.mxu0 0.0
  %4823 = vmatpush2.msra.mxu0 0.0
  %4824 = vmatprep.subr.mxu0 0.0
  %4825 = vmatpush2.msra.mxu0 0.0
  %4826 = vmatprep.subr.mxu0 0.0
  %4827 = vmatpush2.msra.mxu0 0.0
  %4828 = vmatprep.subr.mxu0 0.0
  %4829 = vmatpush2.msra.mxu0 0.0
  %4830 = vmatprep.subr.mxu0 0.0
  %4831 = vmatpush2.msra.mxu0 0.0
  %4832 = vmatprep.subr.mxu0 0.0
  %4833 = vmatpush2.msra.mxu0 0.0
  %4834 = vmatprep.subr.mxu0 0.0
  %4835 = vmatpush2.msra.mxu0 0.0
  %4836 = vmatprep.subr.mxu0 0.0
  %4837 = vmatpush2.msra.mxu0 0.0
  %4838 = vmatprep.subr.mxu0 0.0
  %4839 = vmatpush2.msra.mxu0 0.0
  %4840 = vmatprep.subr.mxu0 0.0
  %4841 = vmatpush2.msra.mxu0 0.0
  %4842 = vmatprep.mubr.f32.mxu0 0.0
  %4843 = vmatmul.mubr.f32.gmra.mxu0 %v4257
  %v4844 = vpop.f32.mrf.mxu0
  %v4845 = vadd.f32 %v4776, %v4844
  %v4846 = vpop.f32.mrf.mxu0
  %4847 = vmatprep.mubr.f32.mxu0 0.0
  %4848 = vmatmul.mubr.f32.gmra.mxu0 %v4258
  %v4849 = vpop.f32.mrf.mxu0
  %v4850 = vadd.f32 %v4776, %v4849
  %v4851 = vpop.f32.mrf.mxu0
  %4852 = vmatprep.mubr.f32.mxu0 0.0
  %4853 = vmatmul.mubr.f32.gmra.mxu0 %v4259
  %v4854 = vpop.f32.mrf.mxu0
  %v4855 = vadd.f32 %v4776, %v4854
  %v4856 = vpop.f32.mrf.mxu0
  %4857 = vmatprep.mubr.f32.mxu0 0.0
  %4858 = vmatmul.mubr.f32.gmra.mxu0 %v4260
  %v4859 = vpop.f32.mrf.mxu0
  %v4860 = vadd.f32 %v4776, %v4859
  %v4861 = vpop.f32.mrf.mxu0
  %4862 = vmatprep.mubr.f32.mxu0 0.0
  %4863 = vmatmul.mubr.f32.gmra.mxu0 %v4261
  %v4864 = vpop.f32.mrf.mxu0
  %v4865 = vadd.f32 %v4776, %v4864
  %v4866 = vpop.f32.mrf.mxu0
  %4867 = vmatprep.mubr.f32.mxu0 0.0
  %4868 = vmatmul.mubr.f32.gmra.mxu0 %v4262
  %v4869 = vpop.f32.mrf.mxu0
  %v4870 = vadd.f32 %v4776, %v4869
  %v4871 = vpop.f32.mrf.mxu0
  %4872 = vmatprep.mubr.f32.mxu0 0.0
  %4873 = vmatmul.mubr.f32.gmra.mxu0 %v4263
  %v4874 = vpop.f32.mrf.mxu0
  %v4875 = vadd.f32 %v4776, %v4874
  %v4876 = vpop.f32.mrf.mxu0
  %4877 = vmatprep.mubr.f32.mxu0 0.0
  %4878 = vmatmul.mubr.f32.gmra.mxu0 %v4264
  %v4879 = vpop.f32.mrf.mxu0
  %v4880 = vadd.f32 %v4776, %v4879
  %v4881 = vpop.f32.mrf.mxu0
  %4882 = vmatprep.mubr.f32.mxu0 0.0
  %4883 = vmatmul.mubr.f32.gmra.mxu0 %v4265
  %v4884 = vpop.f32.mrf.mxu0
  %v4885 = vadd.f32 %v4776, %v4884
  %v4886 = vpop.f32.mrf.mxu0
  %4887 = vmatprep.mubr.f32.mxu0 0.0
  %4888 = vmatmul.mubr.f32.gmra.mxu0 %v4266
  %v4889 = vpop.f32.mrf.mxu0
  %v4890 = vadd.f32 %v4776, %v4889
  %v4891 = vpop.f32.mrf.mxu0
  %4892 = vmatprep.mubr.f32.mxu0 0.0
  %4893 = vmatmul.mubr.f32.gmra.mxu0 %v4267
  %v4894 = vpop.f32.mrf.mxu0
  %v4895 = vadd.f32 %v4776, %v4894
  %v4896 = vpop.f32.mrf.mxu0
  %4897 = vmatprep.mubr.f32.mxu0 0.0
  %4898 = vmatmul.mubr.f32.gmra.mxu0 %v4268
  %v4899 = vpop.f32.mrf.mxu0
  %v4900 = vadd.f32 %v4776, %v4899
  %v4901 = vpop.f32.mrf.mxu0
  %4902 = vmatprep.mubr.f32.mxu0 0.0
  %4903 = vmatmul.mubr.f32.gmra.mxu0 %v4269
  %v4904 = vpop.f32.mrf.mxu0
  %v4905 = vadd.f32 %v4776, %v4904
  %v4906 = vpop.f32.mrf.mxu0
  %4907 = vmatprep.mubr.f32.mxu0 0.0
  %4908 = vmatmul.mubr.f32.gmra.mxu0 %v4270
  %v4909 = vpop.f32.mrf.mxu0
  %v4910 = vadd.f32 %v4776, %v4909
  %v4911 = vpop.f32.mrf.mxu0
  %4912 = vmatprep.mubr.f32.mxu0 0.0
  %4913 = vmatmul.mubr.f32.gmra.mxu0 %v4271
  %v4914 = vpop.f32.mrf.mxu0
  %v4915 = vadd.f32 %v4776, %v4914
  %v4916 = vpop.f32.mrf.mxu0
  %4917 = vmatprep.mubr.f32.mxu0 0.0
  %4918 = vmatmul.mubr.f32.gmra.mxu0 %v4272
  %v4919 = vpop.f32.mrf.mxu0
  %v4920 = vadd.f32 %v4776, %v4919
  %v4921 = vpop.f32.mrf.mxu0
  %4922 = vmatprep.mubr.f32.mxu0 0.0
  %4923 = vmatmul.mubr.f32.gmra.mxu0 %v4707
  %v4924 = vpop.f32.mrf.mxu0
  %v4925 = vadd.f32 %v4776, %v4924
  %v4926 = vpop.f32.mrf.mxu0
  %4927 = vmatprep.mubr.f32.mxu0 0.0
  %4928 = vmatmul.mubr.f32.gmra.mxu0 %v4708
  %v4929 = vpop.f32.mrf.mxu0
  %v4930 = vadd.f32 %v4776, %v4929
  %v4931 = vpop.f32.mrf.mxu0
  %4932 = vmatprep.mubr.f32.mxu0 0.0
  %4933 = vmatmul.mubr.f32.gmra.mxu0 %v4709
  %v4934 = vpop.f32.mrf.mxu0
  %v4935 = vadd.f32 %v4776, %v4934
  %v4936 = vpop.f32.mrf.mxu0
  %4937 = vmatprep.mubr.f32.mxu0 0.0
  %4938 = vmatmul.mubr.f32.gmra.mxu0 %v4710
  %v4939 = vpop.f32.mrf.mxu0
  %v4940 = vadd.f32 %v4776, %v4939
  %v4941 = vpop.f32.mrf.mxu0
  %4942 = vmatprep.mubr.f32.mxu0 0.0
  %4943 = vmatmul.mubr.f32.gmra.mxu0 %v4711
  %v4944 = vpop.f32.mrf.mxu0
  %v4945 = vadd.f32 %v4776, %v4944
  %v4946 = vpop.f32.mrf.mxu0
  %4947 = vmatprep.mubr.f32.mxu0 0.0
  %4948 = vmatmul.mubr.f32.gmra.mxu0 %v4712
  %v4949 = vpop.f32.mrf.mxu0
  %v4950 = vadd.f32 %v4776, %v4949
  %v4951 = vpop.f32.mrf.mxu0
  %4952 = vmatprep.mubr.f32.mxu0 0.0
  %4953 = vmatmul.mubr.f32.gmra.mxu0 %v4713
  %v4954 = vpop.f32.mrf.mxu0
  %v4955 = vadd.f32 %v4776, %v4954
  %v4956 = vpop.f32.mrf.mxu0
  %4957 = vmatprep.mubr.f32.mxu0 0.0
  %4958 = vmatmul.mubr.f32.gmra.mxu0 %v4714
  %v4959 = vpop.f32.mrf.mxu0
  %v4960 = vadd.f32 %v4776, %v4959
  %v4961 = vpop.f32.mrf.mxu0
  %4962 = vmatprep.mubr.f32.mxu0 0.0
  %4963 = vmatmul.mubr.f32.gmra.mxu0 %v4715
  %v4964 = vpop.f32.mrf.mxu0
  %v4965 = vadd.f32 %v4776, %v4964
  %v4966 = vpop.f32.mrf.mxu0
  %4967 = vmatprep.mubr.f32.mxu0 0.0
  %4968 = vmatmul.mubr.f32.gmra.mxu0 %v4716
  %v4969 = vpop.f32.mrf.mxu0
  %v4970 = vadd.f32 %v4776, %v4969
  %v4971 = vpop.f32.mrf.mxu0
  %4972 = vmatprep.mubr.f32.mxu0 0.0
  %4973 = vmatmul.mubr.f32.gmra.mxu0 %v4717
  %v4974 = vpop.f32.mrf.mxu0
  %v4975 = vadd.f32 %v4776, %v4974
  %v4976 = vpop.f32.mrf.mxu0
  %4977 = vmatprep.mubr.f32.mxu0 0.0
  %4978 = vmatmul.mubr.f32.gmra.mxu0 %v4718
  %v4979 = vpop.f32.mrf.mxu0
  %v4980 = vadd.f32 %v4776, %v4979
  %v4981 = vpop.f32.mrf.mxu0
  %4982 = vmatprep.mubr.f32.mxu0 0.0
  %4983 = vmatmul.mubr.f32.gmra.mxu0 %v4719
  %v4984 = vpop.f32.mrf.mxu0
  %v4985 = vadd.f32 %v4776, %v4984
  %v4986 = vpop.f32.mrf.mxu0
  %4987 = vmatprep.mubr.f32.mxu0 0.0
  %4988 = vmatmul.mubr.f32.gmra.mxu0 %v4720
  %v4989 = vpop.f32.mrf.mxu0
  %v4990 = vadd.f32 %v4776, %v4989
  %v4991 = vpop.f32.mrf.mxu0
  %4992 = vmatprep.mubr.f32.mxu0 0.0
  %4993 = vmatmul.mubr.f32.gmra.mxu0 %v4721
  %v4994 = vpop.f32.mrf.mxu0
  %v4995 = vadd.f32 %v4776, %v4994
  %v4996 = vpop.f32.mrf.mxu0
  %4997 = vmatprep.mubr.f32.mxu0 0.0
  %4998 = vmatmul.mubr.f32.gmra.mxu0 %v4722
  %v4999 = vpop.f32.mrf.mxu0
  %v5000 = vadd.f32 %v4776, %v4999
  %v5001 = vpop.f32.mrf.mxu0
  %5002 = vmatprep.mubr.f32.mxu0 0.0
  %5003 = vmatmul.mubr.f32.gmra.mxu0 %v4273
  %v5004 = vpop.f32.mrf.mxu0
  %v5005 = vadd.f32 %v4776, %v5004
  %v5006 = vpop.f32.mrf.mxu0
  %5007 = vmatprep.mubr.f32.mxu0 0.0
  %5008 = vmatmul.mubr.f32.gmra.mxu0 %v4274
  %v5009 = vpop.f32.mrf.mxu0
  %v5010 = vadd.f32 %v4776, %v5009
  %v5011 = vpop.f32.mrf.mxu0
  %5012 = vmatprep.mubr.f32.mxu0 0.0
  %5013 = vmatmul.mubr.f32.gmra.mxu0 %v4275
  %v5014 = vpop.f32.mrf.mxu0
  %v5015 = vadd.f32 %v4776, %v5014
  %v5016 = vpop.f32.mrf.mxu0
  %5017 = vmatprep.mubr.f32.mxu0 0.0
  %5018 = vmatmul.mubr.f32.gmra.mxu0 %v4276
  %v5019 = vpop.f32.mrf.mxu0
  %v5020 = vadd.f32 %v4776, %v5019
  %v5021 = vpop.f32.mrf.mxu0
  %5022 = vmatprep.mubr.f32.mxu0 0.0
  %5023 = vmatmul.mubr.f32.gmra.mxu0 %v4277
  %v5024 = vpop.f32.mrf.mxu0
  %v5025 = vadd.f32 %v4776, %v5024
  %v5026 = vpop.f32.mrf.mxu0
  %5027 = vmatprep.mubr.f32.mxu0 0.0
  %5028 = vmatmul.mubr.f32.gmra.mxu0 %v4278
  %v5029 = vpop.f32.mrf.mxu0
  %v5030 = vadd.f32 %v4776, %v5029
  %v5031 = vpop.f32.mrf.mxu0
  %5032 = vmatprep.mubr.f32.mxu0 0.0
  %5033 = vmatmul.mubr.f32.gmra.mxu0 %v4279
  %v5034 = vpop.f32.mrf.mxu0
  %v5035 = vadd.f32 %v4776, %v5034
  %v5036 = vpop.f32.mrf.mxu0
  %5037 = vmatprep.mubr.f32.mxu0 0.0
  %5038 = vmatmul.mubr.f32.gmra.mxu0 %v4280
  %v5039 = vpop.f32.mrf.mxu0
  %v5040 = vadd.f32 %v4776, %v5039
  %v5041 = vpop.f32.mrf.mxu0
  %5042 = vmatprep.mubr.f32.mxu0 0.0
  %5043 = vmatmul.mubr.f32.gmra.mxu0 %v4281
  %v5044 = vpop.f32.mrf.mxu0
  %v5045 = vadd.f32 %v4776, %v5044
  %v5046 = vpop.f32.mrf.mxu0
  %5047 = vmatprep.mubr.f32.mxu0 0.0
  %5048 = vmatmul.mubr.f32.gmra.mxu0 %v4282
  %v5049 = vpop.f32.mrf.mxu0
  %v5050 = vadd.f32 %v4776, %v5049
  %v5051 = vpop.f32.mrf.mxu0
  %5052 = vmatprep.mubr.f32.mxu0 0.0
  %5053 = vmatmul.mubr.f32.gmra.mxu0 %v4283
  %v5054 = vpop.f32.mrf.mxu0
  %v5055 = vadd.f32 %v4776, %v5054
  %v5056 = vpop.f32.mrf.mxu0
  %5057 = vmatprep.mubr.f32.mxu0 0.0
  %5058 = vmatmul.mubr.f32.gmra.mxu0 %v4284
  %v5059 = vpop.f32.mrf.mxu0
  %v5060 = vadd.f32 %v4776, %v5059
  %v5061 = vpop.f32.mrf.mxu0
  %5062 = vmatprep.mubr.f32.mxu0 0.0
  %5063 = vmatmul.mubr.f32.gmra.mxu0 %v4285
  %v5064 = vpop.f32.mrf.mxu0
  %v5065 = vadd.f32 %v4776, %v5064
  %v5066 = vpop.f32.mrf.mxu0
  %5067 = vmatprep.mubr.f32.mxu0 0.0
  %5068 = vmatmul.mubr.f32.gmra.mxu0 %v4286
  %v5069 = vpop.f32.mrf.mxu0
  %v5070 = vadd.f32 %v4776, %v5069
  %v5071 = vpop.f32.mrf.mxu0
  %5072 = vmatprep.mubr.f32.mxu0 0.0
  %5073 = vmatmul.mubr.f32.gmra.mxu0 %v4287
  %v5074 = vpop.f32.mrf.mxu0
  %v5075 = vadd.f32 %v4776, %v5074
  %v5076 = vpop.f32.mrf.mxu0
  %5077 = vmatprep.mubr.f32.mxu0 0.0
  %5078 = vmatmul.mubr.f32.gmra.mxu0 %v4288
  %v5079 = vpop.f32.mrf.mxu0
  %v5080 = vadd.f32 %v4776, %v5079
  %v5081 = vpop.f32.mrf.mxu0
  %5082 = vdwg.mxu0
  %v5083 = vmax.f32 %v4845, 0.0
  %v5084 = vmax.f32 %v4850, 0.0
  %v5085 = vmax.f32 %v4855, 0.0
  %v5086 = vmax.f32 %v4860, 0.0
  %v5087 = vmax.f32 %v4865, 0.0
  %v5088 = vmax.f32 %v4870, 0.0
  %v5089 = vmax.f32 %v4875, 0.0
  %v5090 = vmax.f32 %v4880, 0.0
  %v5091 = vmax.f32 %v4885, 0.0
  %v5092 = vmax.f32 %v4890, 0.0
  %v5093 = vmax.f32 %v4895, 0.0
  %v5094 = vmax.f32 %v4900, 0.0
  %v5095 = vmax.f32 %v4905, 0.0
  %v5096 = vmax.f32 %v4910, 0.0
  %v5097 = vmax.f32 %v4915, 0.0
  %v5098 = vmax.f32 %v4920, 0.0
  %v5099 = vmax.f32 %v4925, 0.0
  %v5100 = vmax.f32 %v4930, 0.0
  %v5101 = vmax.f32 %v4935, 0.0
  %v5102 = vmax.f32 %v4940, 0.0
  %v5103 = vmax.f32 %v4945, 0.0
  %v5104 = vmax.f32 %v4950, 0.0
  %v5105 = vmax.f32 %v4955, 0.0
  %v5106 = vmax.f32 %v4960, 0.0
  %v5107 = vmax.f32 %v4965, 0.0
  %v5108 = vmax.f32 %v4970, 0.0
  %v5109 = vmax.f32 %v4975, 0.0
  %v5110 = vmax.f32 %v4980, 0.0
  %v5111 = vmax.f32 %v4985, 0.0
  %v5112 = vmax.f32 %v4990, 0.0
  %v5113 = vmax.f32 %v4995, 0.0
  %v5114 = vmax.f32 %v5000, 0.0
  %v5115 = vmax.f32 %v5005, 0.0
  %v5116 = vmax.f32 %v5010, 0.0
  %v5117 = vmax.f32 %v5015, 0.0
  %v5118 = vmax.f32 %v5020, 0.0
  %v5119 = vmax.f32 %v5025, 0.0
  %v5120 = vmax.f32 %v5030, 0.0
  %v5121 = vmax.f32 %v5035, 0.0
  %v5122 = vmax.f32 %v5040, 0.0
  %v5123 = vmax.f32 %v5045, 0.0
  %v5124 = vmax.f32 %v5050, 0.0
  %v5125 = vmax.f32 %v5055, 0.0
  %v5126 = vmax.f32 %v5060, 0.0
  %v5127 = vmax.f32 %v5065, 0.0
  %v5128 = vmax.f32 %v5070, 0.0
  %v5129 = vmax.f32 %v5075, 0.0
  %v5130 = vmax.f32 %v5080, 0.0
  %5131 = vmatprep.subr.mxu0 0.0
  %5132 = vmatpush1.msra.mxu0 %v4754
  %5133 = vmatprep.subr.mxu0 0.0
  %5134 = vmatpush1.msra.mxu0 %v4753
  %5135 = vmatprep.subr.mxu0 0.0
  %5136 = vmatpush1.msra.mxu0 %v4752
  %5137 = vmatprep.subr.mxu0 0.0
  %5138 = vmatpush1.msra.mxu0 %v4751
  %5139 = vmatprep.subr.mxu0 0.0
  %5140 = vmatpush1.msra.mxu0 %v4750
  %5141 = vmatprep.subr.mxu0 0.0
  %5142 = vmatpush1.msra.mxu0 %v4749
  %5143 = vmatprep.subr.mxu0 0.0
  %5144 = vmatpush1.msra.mxu0 %v4748
  %5145 = vmatprep.subr.mxu0 0.0
  %5146 = vmatpush1.msra.mxu0 %v4747
  %5147 = vmatprep.subr.mxu0 0.0
  %5148 = vmatpush1.msra.mxu0 %v4746
  %5149 = vmatprep.subr.mxu0 0.0
  %5150 = vmatpush1.msra.mxu0 %v4745
  %5151 = vmatprep.subr.mxu0 0.0
  %5152 = vmatpush1.msra.mxu0 %v4744
  %5153 = vmatprep.subr.mxu0 0.0
  %5154 = vmatpush1.msra.mxu0 %v4743
  %5155 = vmatprep.subr.mxu0 0.0
  %5156 = vmatpush1.msra.mxu0 %v4742
  %5157 = vmatprep.subr.mxu0 0.0
  %5158 = vmatpush1.msra.mxu0 %v4741
  %5159 = vmatprep.subr.mxu0 0.0
  %5160 = vmatpush1.msra.mxu0 %v4740
  %5161 = vmatprep.subr.mxu0 0.0
  %5162 = vmatpush1.msra.mxu0 %v4739
  %5163 = vmatprep.subr.mxu0 0.0
  %5164 = vmatpush2.msra.mxu0 %v4770
  %5165 = vmatprep.subr.mxu0 0.0
  %5166 = vmatpush2.msra.mxu0 %v4769
  %5167 = vmatprep.subr.mxu0 0.0
  %5168 = vmatpush2.msra.mxu0 %v4768
  %5169 = vmatprep.subr.mxu0 0.0
  %5170 = vmatpush2.msra.mxu0 %v4767
  %5171 = vmatprep.subr.mxu0 0.0
  %5172 = vmatpush2.msra.mxu0 %v4766
  %5173 = vmatprep.subr.mxu0 0.0
  %5174 = vmatpush2.msra.mxu0 %v4765
  %5175 = vmatprep.subr.mxu0 0.0
  %5176 = vmatpush2.msra.mxu0 %v4764
  %5177 = vmatprep.subr.mxu0 0.0
  %5178 = vmatpush2.msra.mxu0 %v4763
  %5179 = vmatprep.subr.mxu0 0.0
  %5180 = vmatpush2.msra.mxu0 %v4762
  %5181 = vmatprep.subr.mxu0 0.0
  %5182 = vmatpush2.msra.mxu0 %v4761
  %5183 = vmatprep.subr.mxu0 0.0
  %5184 = vmatpush2.msra.mxu0 %v4760
  %5185 = vmatprep.subr.mxu0 0.0
  %5186 = vmatpush2.msra.mxu0 %v4759
  %5187 = vmatprep.subr.mxu0 0.0
  %5188 = vmatpush2.msra.mxu0 %v4758
  %5189 = vmatprep.subr.mxu0 0.0
  %5190 = vmatpush2.msra.mxu0 %v4757
  %5191 = vmatprep.subr.mxu0 0.0
  %5192 = vmatpush2.msra.mxu0 %v4756
  %5193 = vmatprep.subr.mxu0 0.0
  %5194 = vmatpush2.msra.mxu0 %v4755
  %5195 = vmatprep.mubr.f32.mxu0 %v4707
  %5196 = vmatmul.mubr.f32.gmra.mxu0 %v4257
  %v5197 = vpop.f32.mrf.mxu0
  %v5198 = vadd.f32 %v4776, %v5197
  %v5199 = vpop.f32.mrf.mxu0
  %5200 = vmatprep.mubr.f32.mxu0 %v4708
  %5201 = vmatmul.mubr.f32.gmra.mxu0 %v4258
  %v5202 = vpop.f32.mrf.mxu0
  %v5203 = vadd.f32 %v4776, %v5202
  %v5204 = vpop.f32.mrf.mxu0
  %5205 = vmatprep.mubr.f32.mxu0 %v4709
  %5206 = vmatmul.mubr.f32.gmra.mxu0 %v4259
  %v5207 = vpop.f32.mrf.mxu0
  %v5208 = vadd.f32 %v4776, %v5207
  %v5209 = vpop.f32.mrf.mxu0
  %5210 = vmatprep.mubr.f32.mxu0 %v4710
  %5211 = vmatmul.mubr.f32.gmra.mxu0 %v4260
  %v5212 = vpop.f32.mrf.mxu0
  %v5213 = vadd.f32 %v4776, %v5212
  %v5214 = vpop.f32.mrf.mxu0
  %5215 = vmatprep.mubr.f32.mxu0 %v4711
  %5216 = vmatmul.mubr.f32.gmra.mxu0 %v4261
  %v5217 = vpop.f32.mrf.mxu0
  %v5218 = vadd.f32 %v4776, %v5217
  %v5219 = vpop.f32.mrf.mxu0
  %5220 = vmatprep.mubr.f32.mxu0 %v4712
  %5221 = vmatmul.mubr.f32.gmra.mxu0 %v4262
  %v5222 = vpop.f32.mrf.mxu0
  %v5223 = vadd.f32 %v4776, %v5222
  %v5224 = vpop.f32.mrf.mxu0
  %5225 = vmatprep.mubr.f32.mxu0 %v4713
  %5226 = vmatmul.mubr.f32.gmra.mxu0 %v4263
  %v5227 = vpop.f32.mrf.mxu0
  %v5228 = vadd.f32 %v4776, %v5227
  %v5229 = vpop.f32.mrf.mxu0
  %5230 = vmatprep.mubr.f32.mxu0 %v4714
  %5231 = vmatmul.mubr.f32.gmra.mxu0 %v4264
  %v5232 = vpop.f32.mrf.mxu0
  %v5233 = vadd.f32 %v4776, %v5232
  %v5234 = vpop.f32.mrf.mxu0
  %5235 = vmatprep.mubr.f32.mxu0 %v4715
  %5236 = vmatmul.mubr.f32.gmra.mxu0 %v4265
  %v5237 = vpop.f32.mrf.mxu0
  %v5238 = vadd.f32 %v4776, %v5237
  %v5239 = vpop.f32.mrf.mxu0
  %5240 = vmatprep.mubr.f32.mxu0 %v4716
  %5241 = vmatmul.mubr.f32.gmra.mxu0 %v4266
  %v5242 = vpop.f32.mrf.mxu0
  %v5243 = vadd.f32 %v4776, %v5242
  %v5244 = vpop.f32.mrf.mxu0
  %5245 = vmatprep.mubr.f32.mxu0 %v4717
  %5246 = vmatmul.mubr.f32.gmra.mxu0 %v4267
  %v5247 = vpop.f32.mrf.mxu0
  %v5248 = vadd.f32 %v4776, %v5247
  %v5249 = vpop.f32.mrf.mxu0
  %5250 = vmatprep.mubr.f32.mxu0 %v4718
  %5251 = vmatmul.mubr.f32.gmra.mxu0 %v4268
  %v5252 = vpop.f32.mrf.mxu0
  %v5253 = vadd.f32 %v4776, %v5252
  %v5254 = vpop.f32.mrf.mxu0
  %5255 = vmatprep.mubr.f32.mxu0 %v4719
  %5256 = vmatmul.mubr.f32.gmra.mxu0 %v4269
  %v5257 = vpop.f32.mrf.mxu0
  %v5258 = vadd.f32 %v4776, %v5257
  %v5259 = vpop.f32.mrf.mxu0
  %5260 = vmatprep.mubr.f32.mxu0 %v4720
  %5261 = vmatmul.mubr.f32.gmra.mxu0 %v4270
  %v5262 = vpop.f32.mrf.mxu0
  %v5263 = vadd.f32 %v4776, %v5262
  %v5264 = vpop.f32.mrf.mxu0
  %5265 = vmatprep.mubr.f32.mxu0 %v4721
  %5266 = vmatmul.mubr.f32.gmra.mxu0 %v4271
  %v5267 = vpop.f32.mrf.mxu0
  %v5268 = vadd.f32 %v4776, %v5267
  %v5269 = vpop.f32.mrf.mxu0
  %5270 = vmatprep.mubr.f32.mxu0 %v4722
  %5271 = vmatmul.mubr.f32.gmra.mxu0 %v4272
  %v5272 = vpop.f32.mrf.mxu0
  %v5273 = vadd.f32 %v4776, %v5272
  %v5274 = vpop.f32.mrf.mxu0
  %5275 = vmatprep.mubr.f32.mxu0 %v4273
  %5276 = vmatmul.mubr.f32.gmra.mxu0 %v4707
  %v5277 = vpop.f32.mrf.mxu0
  %v5278 = vadd.f32 %v4776, %v5277
  %v5279 = vpop.f32.mrf.mxu0
  %5280 = vmatprep.mubr.f32.mxu0 %v4274
  %5281 = vmatmul.mubr.f32.gmra.mxu0 %v4708
  %v5282 = vpop.f32.mrf.mxu0
  %v5283 = vadd.f32 %v4776, %v5282
  %v5284 = vpop.f32.mrf.mxu0
  %5285 = vmatprep.mubr.f32.mxu0 %v4275
  %5286 = vmatmul.mubr.f32.gmra.mxu0 %v4709
  %v5287 = vpop.f32.mrf.mxu0
  %v5288 = vadd.f32 %v4776, %v5287
  %v5289 = vpop.f32.mrf.mxu0
  %5290 = vmatprep.mubr.f32.mxu0 %v4276
  %5291 = vmatmul.mubr.f32.gmra.mxu0 %v4710
  %v5292 = vpop.f32.mrf.mxu0
  %v5293 = vadd.f32 %v4776, %v5292
  %v5294 = vpop.f32.mrf.mxu0
  %5295 = vmatprep.mubr.f32.mxu0 %v4277
  %5296 = vmatmul.mubr.f32.gmra.mxu0 %v4711
  %v5297 = vpop.f32.mrf.mxu0
  %v5298 = vadd.f32 %v4776, %v5297
  %v5299 = vpop.f32.mrf.mxu0
  %5300 = vmatprep.mubr.f32.mxu0 %v4278
  %5301 = vmatmul.mubr.f32.gmra.mxu0 %v4712
  %v5302 = vpop.f32.mrf.mxu0
  %v5303 = vadd.f32 %v4776, %v5302
  %v5304 = vpop.f32.mrf.mxu0
  %5305 = vmatprep.mubr.f32.mxu0 %v4279
  %5306 = vmatmul.mubr.f32.gmra.mxu0 %v4713
  %v5307 = vpop.f32.mrf.mxu0
  %v5308 = vadd.f32 %v4776, %v5307
  %v5309 = vpop.f32.mrf.mxu0
  %5310 = vmatprep.mubr.f32.mxu0 %v4280
  %5311 = vmatmul.mubr.f32.gmra.mxu0 %v4714
  %v5312 = vpop.f32.mrf.mxu0
  %v5313 = vadd.f32 %v4776, %v5312
  %v5314 = vpop.f32.mrf.mxu0
  %5315 = vmatprep.mubr.f32.mxu0 %v4281
  %5316 = vmatmul.mubr.f32.gmra.mxu0 %v4715
  %v5317 = vpop.f32.mrf.mxu0
  %v5318 = vadd.f32 %v4776, %v5317
  %v5319 = vpop.f32.mrf.mxu0
  %5320 = vmatprep.mubr.f32.mxu0 %v4282
  %5321 = vmatmul.mubr.f32.gmra.mxu0 %v4716
  %v5322 = vpop.f32.mrf.mxu0
  %v5323 = vadd.f32 %v4776, %v5322
  %v5324 = vpop.f32.mrf.mxu0
  %5325 = vmatprep.mubr.f32.mxu0 %v4283
  %5326 = vmatmul.mubr.f32.gmra.mxu0 %v4717
  %v5327 = vpop.f32.mrf.mxu0
  %v5328 = vadd.f32 %v4776, %v5327
  %v5329 = vpop.f32.mrf.mxu0
  %5330 = vmatprep.mubr.f32.mxu0 %v4284
  %5331 = vmatmul.mubr.f32.gmra.mxu0 %v4718
  %v5332 = vpop.f32.mrf.mxu0
  %v5333 = vadd.f32 %v4776, %v5332
  %v5334 = vpop.f32.mrf.mxu0
  %5335 = vmatprep.mubr.f32.mxu0 %v4285
  %5336 = vmatmul.mubr.f32.gmra.mxu0 %v4719
  %v5337 = vpop.f32.mrf.mxu0
  %v5338 = vadd.f32 %v4776, %v5337
  %v5339 = vpop.f32.mrf.mxu0
  %5340 = vmatprep.mubr.f32.mxu0 %v4286
  %5341 = vmatmul.mubr.f32.gmra.mxu0 %v4720
  %v5342 = vpop.f32.mrf.mxu0
  %v5343 = vadd.f32 %v4776, %v5342
  %v5344 = vpop.f32.mrf.mxu0
  %5345 = vmatprep.mubr.f32.mxu0 %v4287
  %5346 = vmatmul.mubr.f32.gmra.mxu0 %v4721
  %v5347 = vpop.f32.mrf.mxu0
  %v5348 = vadd.f32 %v4776, %v5347
  %v5349 = vpop.f32.mrf.mxu0
  %5350 = vmatprep.mubr.f32.mxu0 %v4288
  %5351 = vmatmul.mubr.f32.gmra.mxu0 %v4722
  %v5352 = vpop.f32.mrf.mxu0
  %v5353 = vadd.f32 %v4776, %v5352
  %v5354 = vpop.f32.mrf.mxu0
  %5355 = vmatprep.mubr.f32.mxu0 0.0
  %5356 = vmatmul.mubr.f32.gmra.mxu0 %v4273
  %v5357 = vpop.f32.mrf.mxu0
  %v5358 = vpop.f32.mrf.mxu0
  %5359 = vmatprep.mubr.f32.mxu0 0.0
  %5360 = vmatmul.mubr.f32.gmra.mxu0 %v4274
  %v5361 = vpop.f32.mrf.mxu0
  %v5362 = vpop.f32.mrf.mxu0
  %5363 = vmatprep.mubr.f32.mxu0 0.0
  %5364 = vmatmul.mubr.f32.gmra.mxu0 %v4275
  %v5365 = vpop.f32.mrf.mxu0
  %v5366 = vpop.f32.mrf.mxu0
  %5367 = vmatprep.mubr.f32.mxu0 0.0
  %5368 = vmatmul.mubr.f32.gmra.mxu0 %v4276
  %v5369 = vpop.f32.mrf.mxu0
  %v5370 = vpop.f32.mrf.mxu0
  %5371 = vmatprep.mubr.f32.mxu0 0.0
  %5372 = vmatmul.mubr.f32.gmra.mxu0 %v4277
  %v5373 = vpop.f32.mrf.mxu0
  %v5374 = vpop.f32.mrf.mxu0
  %5375 = vmatprep.mubr.f32.mxu0 0.0
  %5376 = vmatmul.mubr.f32.gmra.mxu0 %v4278
  %v5377 = vpop.f32.mrf.mxu0
  %v5378 = vpop.f32.mrf.mxu0
  %5379 = vmatprep.mubr.f32.mxu0 0.0
  %5380 = vmatmul.mubr.f32.gmra.mxu0 %v4279
  %v5381 = vpop.f32.mrf.mxu0
  %v5382 = vpop.f32.mrf.mxu0
  %5383 = vmatprep.mubr.f32.mxu0 0.0
  %5384 = vmatmul.mubr.f32.gmra.mxu0 %v4280
  %v5385 = vpop.f32.mrf.mxu0
  %v5386 = vpop.f32.mrf.mxu0
  %5387 = vmatprep.mubr.f32.mxu0 0.0
  %5388 = vmatmul.mubr.f32.gmra.mxu0 %v4281
  %v5389 = vpop.f32.mrf.mxu0
  %v5390 = vpop.f32.mrf.mxu0
  %5391 = vmatprep.mubr.f32.mxu0 0.0
  %5392 = vmatmul.mubr.f32.gmra.mxu0 %v4282
  %v5393 = vpop.f32.mrf.mxu0
  %v5394 = vpop.f32.mrf.mxu0
  %5395 = vmatprep.mubr.f32.mxu0 0.0
  %5396 = vmatmul.mubr.f32.gmra.mxu0 %v4283
  %v5397 = vpop.f32.mrf.mxu0
  %v5398 = vpop.f32.mrf.mxu0
  %5399 = vmatprep.mubr.f32.mxu0 0.0
  %5400 = vmatmul.mubr.f32.gmra.mxu0 %v4284
  %v5401 = vpop.f32.mrf.mxu0
  %v5402 = vpop.f32.mrf.mxu0
  %5403 = vmatprep.mubr.f32.mxu0 0.0
  %5404 = vmatmul.mubr.f32.gmra.mxu0 %v4285
  %v5405 = vpop.f32.mrf.mxu0
  %v5406 = vpop.f32.mrf.mxu0
  %5407 = vmatprep.mubr.f32.mxu0 0.0
  %5408 = vmatmul.mubr.f32.gmra.mxu0 %v4286
  %v5409 = vpop.f32.mrf.mxu0
  %v5410 = vpop.f32.mrf.mxu0
  %5411 = vmatprep.mubr.f32.mxu0 0.0
  %5412 = vmatmul.mubr.f32.gmra.mxu0 %v4287
  %v5413 = vpop.f32.mrf.mxu0
  %v5414 = vpop.f32.mrf.mxu0
  %5415 = vmatprep.mubr.f32.mxu0 0.0
  %5416 = vmatmul.mubr.f32.gmra.mxu0 %v4288
  %v5417 = vpop.f32.mrf.mxu0
  %v5418 = vpop.f32.mrf.mxu0
  %5419 = vdwg.mxu0
  %v5420 = vmax.f32 %v5198, 0.0
  %v5421 = vmax.f32 %v5203, 0.0
  %v5422 = vmax.f32 %v5208, 0.0
  %v5423 = vmax.f32 %v5213, 0.0
  %v5424 = vmax.f32 %v5218, 0.0
  %v5425 = vmax.f32 %v5223, 0.0
  %v5426 = vmax.f32 %v5228, 0.0
  %v5427 = vmax.f32 %v5233, 0.0
  %v5428 = vmax.f32 %v5238, 0.0
  %v5429 = vmax.f32 %v5243, 0.0
  %v5430 = vmax.f32 %v5248, 0.0
  %v5431 = vmax.f32 %v5253, 0.0
  %v5432 = vmax.f32 %v5258, 0.0
  %v5433 = vmax.f32 %v5263, 0.0
  %v5434 = vmax.f32 %v5268, 0.0
  %v5435 = vmax.f32 %v5273, 0.0
  %v5436 = vmax.f32 %v5278, 0.0
  %v5437 = vmax.f32 %v5283, 0.0
  %v5438 = vmax.f32 %v5288, 0.0
  %v5439 = vmax.f32 %v5293, 0.0
  %v5440 = vmax.f32 %v5298, 0.0
  %v5441 = vmax.f32 %v5303, 0.0
  %v5442 = vmax.f32 %v5308, 0.0
  %v5443 = vmax.f32 %v5313, 0.0
  %v5444 = vmax.f32 %v5318, 0.0
  %v5445 = vmax.f32 %v5323, 0.0
  %v5446 = vmax.f32 %v5328, 0.0
  %v5447 = vmax.f32 %v5333, 0.0
  %v5448 = vmax.f32 %v5338, 0.0
  %v5449 = vmax.f32 %v5343, 0.0
  %v5450 = vmax.f32 %v5348, 0.0
  %v5451 = vmax.f32 %v5353, 0.0
  %v5452 = vld [vmem:[%s15] sm:$0x1]
  %v5453 = vld [vmem:[%s13] sm:$0xff]
  %v5454 = vld [vmem:[%s13 + $0x8] sm:$0xff]
  %v5455 = vld [vmem:[%s13 + $0x10] sm:$0xff]
  %v5456 = vld [vmem:[%s13 + $0x18] sm:$0xff]
  %v5457 = vld [vmem:[%s13 + $0x20] sm:$0xff]
  %v5458 = vld [vmem:[%s13 + $0x28] sm:$0xff]
  %v5459 = vld [vmem:[%s13 + $0x30] sm:$0xff]
  %v5460 = vld [vmem:[%s13 + $0x38] sm:$0xff]
  %s5461 = scalar_lea.vmem %s13, 64
  %v5462 = vld [vmem:[%s5461] sm:$0xff]
  %v5463 = vld [vmem:[%s5461 + $0x8] sm:$0xff]
  %v5464 = vld [vmem:[%s5461 + $0x10] sm:$0xff]
  %v5465 = vld [vmem:[%s5461 + $0x18] sm:$0xff]
  %v5466 = vld [vmem:[%s5461 + $0x20] sm:$0xff]
  %v5467 = vld [vmem:[%s5461 + $0x28] sm:$0xff]
  %v5468 = vld [vmem:[%s5461 + $0x30] sm:$0xff]
  %v5469 = vld [vmem:[%s5461 + $0x38] sm:$0xff]
  %v5471 = vsel %vm1420, %v5083, 0
  %v5474 = vsel %vm1420, %v5084, 0
  %v5477 = vsel %vm1420, %v5085, 0
  %v5480 = vsel %vm1420, %v5086, 0
  %v5483 = vsel %vm1420, %v5087, 0
  %v5486 = vsel %vm1420, %v5088, 0
  %v5489 = vsel %vm1420, %v5089, 0
  %v5492 = vsel %vm1420, %v5090, 0
  %v5495 = vsel %vm1420, %v5091, 0
  %v5498 = vsel %vm1420, %v5092, 0
  %v5501 = vsel %vm1420, %v5093, 0
  %v5504 = vsel %vm1420, %v5094, 0
  %v5507 = vsel %vm1420, %v5095, 0
  %v5510 = vsel %vm1420, %v5096, 0
  %v5513 = vsel %vm1420, %v5097, 0
  %v5516 = vsel %vm1420, %v5098, 0
  %v5519 = vsel %vm1420, %v5420, 0
  %v5522 = vsel %vm1420, %v5421, 0
  %v5525 = vsel %vm1420, %v5422, 0
  %v5528 = vsel %vm1420, %v5423, 0
  %v5531 = vsel %vm1420, %v5424, 0
  %v5534 = vsel %vm1420, %v5425, 0
  %v5537 = vsel %vm1420, %v5426, 0
  %v5540 = vsel %vm1420, %v5427, 0
  %v5543 = vsel %vm1420, %v5428, 0
  %v5546 = vsel %vm1420, %v5429, 0
  %v5549 = vsel %vm1420, %v5430, 0
  %v5552 = vsel %vm1420, %v5431, 0
  %v5555 = vsel %vm1420, %v5432, 0
  %v5558 = vsel %vm1420, %v5433, 0
  %v5561 = vsel %vm1420, %v5434, 0
  %v5564 = vsel %vm1420, %v5435, 0
  %v5567 = vsel %vm1420, %v5099, 0
  %v5570 = vsel %vm1420, %v5100, 0
  %v5573 = vsel %vm1420, %v5101, 0
  %v5576 = vsel %vm1420, %v5102, 0
  %v5579 = vsel %vm1420, %v5103, 0
  %v5582 = vsel %vm1420, %v5104, 0
  %v5585 = vsel %vm1420, %v5105, 0
  %v5588 = vsel %vm1420, %v5106, 0
  %v5591 = vsel %vm1420, %v5107, 0
  %v5594 = vsel %vm1420, %v5108, 0
  %v5597 = vsel %vm1420, %v5109, 0
  %v5600 = vsel %vm1420, %v5110, 0
  %v5603 = vsel %vm1420, %v5111, 0
  %v5606 = vsel %vm1420, %v5112, 0
  %v5609 = vsel %vm1420, %v5113, 0
  %v5612 = vsel %vm1420, %v5114, 0
  %v5615 = vsel %vm1420, %v5436, 0
  %v5618 = vsel %vm1420, %v5437, 0
  %v5621 = vsel %vm1420, %v5438, 0
  %v5624 = vsel %vm1420, %v5439, 0
  %v5627 = vsel %vm1420, %v5440, 0
  %v5630 = vsel %vm1420, %v5441, 0
  %v5633 = vsel %vm1420, %v5442, 0
  %v5636 = vsel %vm1420, %v5443, 0
  %v5639 = vsel %vm1420, %v5444, 0
  %v5642 = vsel %vm1420, %v5445, 0
  %v5645 = vsel %vm1420, %v5446, 0
  %v5648 = vsel %vm1420, %v5447, 0
  %v5651 = vsel %vm1420, %v5448, 0
  %v5654 = vsel %vm1420, %v5449, 0
  %v5657 = vsel %vm1420, %v5450, 0
  %v5660 = vsel %vm1420, %v5451, 0
  %5662 = vmatprep.subr.mxu0 0.0
  %5663 = vmatpush1.msra.mxu0 0.0
  %5664 = vmatprep.subr.mxu0 0.0
  %5665 = vmatpush1.msra.mxu0 0.0
  %5666 = vmatprep.subr.mxu0 0.0
  %5667 = vmatpush1.msra.mxu0 0.0
  %5668 = vmatprep.subr.mxu0 0.0
  %5669 = vmatpush1.msra.mxu0 0.0
  %5670 = vmatprep.subr.mxu0 0.0
  %5671 = vmatpush1.msra.mxu0 0.0
  %5672 = vmatprep.subr.mxu0 0.0
  %5673 = vmatpush1.msra.mxu0 0.0
  %5674 = vmatprep.subr.mxu0 0.0
  %5675 = vmatpush1.msra.mxu0 0.0
  %5676 = vmatprep.subr.mxu0 0.0
  %5677 = vmatpush1.msra.mxu0 0.0
  %5678 = vmatprep.subr.mxu0 0.0
  %5679 = vmatpush1.msra.mxu0 %v5469
  %5680 = vmatprep.subr.mxu0 0.0
  %5681 = vmatpush1.msra.mxu0 %v5468
  %5682 = vmatprep.subr.mxu0 0.0
  %5683 = vmatpush1.msra.mxu0 %v5467
  %5684 = vmatprep.subr.mxu0 0.0
  %5685 = vmatpush1.msra.mxu0 %v5466
  %5686 = vmatprep.subr.mxu0 0.0
  %5687 = vmatpush1.msra.mxu0 %v5465
  %5688 = vmatprep.subr.mxu0 0.0
  %5689 = vmatpush1.msra.mxu0 %v5464
  %5690 = vmatprep.subr.mxu0 0.0
  %5691 = vmatpush1.msra.mxu0 %v5463
  %5692 = vmatprep.subr.mxu0 0.0
  %5693 = vmatpush1.msra.mxu0 %v5462
  %5694 = vmatprep.subr.mxu0 0.0
  %5695 = vmatpush2.msra.mxu0 0.0
  %5696 = vmatprep.subr.mxu0 0.0
  %5697 = vmatpush2.msra.mxu0 0.0
  %5698 = vmatprep.subr.mxu0 0.0
  %5699 = vmatpush2.msra.mxu0 0.0
  %5700 = vmatprep.subr.mxu0 0.0
  %5701 = vmatpush2.msra.mxu0 0.0
  %5702 = vmatprep.subr.mxu0 0.0
  %5703 = vmatpush2.msra.mxu0 0.0
  %5704 = vmatprep.subr.mxu0 0.0
  %5705 = vmatpush2.msra.mxu0 0.0
  %5706 = vmatprep.subr.mxu0 0.0
  %5707 = vmatpush2.msra.mxu0 0.0
  %5708 = vmatprep.subr.mxu0 0.0
  %5709 = vmatpush2.msra.mxu0 0.0
  %5710 = vmatprep.subr.mxu0 0.0
  %5711 = vmatpush2.msra.mxu0 0.0
  %5712 = vmatprep.subr.mxu0 0.0
  %5713 = vmatpush2.msra.mxu0 0.0
  %5714 = vmatprep.subr.mxu0 0.0
  %5715 = vmatpush2.msra.mxu0 0.0
  %5716 = vmatprep.subr.mxu0 0.0
  %5717 = vmatpush2.msra.mxu0 0.0
  %5718 = vmatprep.subr.mxu0 0.0
  %5719 = vmatpush2.msra.mxu0 0.0
  %5720 = vmatprep.subr.mxu0 0.0
  %5721 = vmatpush2.msra.mxu0 0.0
  %5722 = vmatprep.subr.mxu0 0.0
  %5723 = vmatpush2.msra.mxu0 0.0
  %5724 = vmatprep.subr.mxu0 0.0
  %5725 = vmatpush2.msra.mxu0 0.0
  %5726 = vmatprep.mubr.f32.mxu0 0.0
  %5727 = vmatmul.mubr.f32.gmra.mxu0 %v1422
  %v5728 = vpop.f32.mrf.mxu0
  %v5729 = vadd.f32 0.0, %v5728
  %v5730 = vpop.f32.mrf.mxu0
  %5731 = vmatprep.mubr.f32.mxu0 0.0
  %5732 = vmatmul.mubr.f32.gmra.mxu0 %v1422
  %v5733 = vpop.f32.mrf.mxu0
  %v5734 = vadd.f32 0.0, %v5733
  %v5735 = vpop.f32.mrf.mxu0
  %5736 = vmatprep.mubr.f32.mxu0 0.0
  %5737 = vmatmul.mubr.f32.gmra.mxu0 %v1422
  %v5738 = vpop.f32.mrf.mxu0
  %v5739 = vadd.f32 0.0, %v5738
  %v5740 = vpop.f32.mrf.mxu0
  %5741 = vmatprep.mubr.f32.mxu0 0.0
  %5742 = vmatmul.mubr.f32.gmra.mxu0 %v1422
  %v5743 = vpop.f32.mrf.mxu0
  %v5744 = vadd.f32 0.0, %v5743
  %v5745 = vpop.f32.mrf.mxu0
  %5746 = vmatprep.mubr.f32.mxu0 0.0
  %5747 = vmatmul.mubr.f32.gmra.mxu0 %v1422
  %v5748 = vpop.f32.mrf.mxu0
  %v5749 = vadd.f32 0.0, %v5748
  %v5750 = vpop.f32.mrf.mxu0
  %5751 = vmatprep.mubr.f32.mxu0 0.0
  %5752 = vmatmul.mubr.f32.gmra.mxu0 %v1422
  %v5753 = vpop.f32.mrf.mxu0
  %v5754 = vadd.f32 0.0, %v5753
  %v5755 = vpop.f32.mrf.mxu0
  %5756 = vmatprep.mubr.f32.mxu0 0.0
  %5757 = vmatmul.mubr.f32.gmra.mxu0 %v1422
  %v5758 = vpop.f32.mrf.mxu0
  %v5759 = vadd.f32 0.0, %v5758
  %v5760 = vpop.f32.mrf.mxu0
  %5761 = vmatprep.mubr.f32.mxu0 0.0
  %5762 = vmatmul.mubr.f32.gmra.mxu0 %v1422
  %v5763 = vpop.f32.mrf.mxu0
  %v5764 = vadd.f32 0.0, %v5763
  %v5765 = vpop.f32.mrf.mxu0
  %5766 = vmatprep.mubr.f32.mxu0 0.0
  %5767 = vmatmul.mubr.f32.gmra.mxu0 %v1422
  %v5768 = vpop.f32.mrf.mxu0
  %v5769 = vadd.f32 0.0, %v5768
  %v5770 = vpop.f32.mrf.mxu0
  %5771 = vmatprep.mubr.f32.mxu0 0.0
  %5772 = vmatmul.mubr.f32.gmra.mxu0 %v1422
  %v5773 = vpop.f32.mrf.mxu0
  %v5774 = vadd.f32 0.0, %v5773
  %v5775 = vpop.f32.mrf.mxu0
  %5776 = vmatprep.mubr.f32.mxu0 0.0
  %5777 = vmatmul.mubr.f32.gmra.mxu0 %v1422
  %v5778 = vpop.f32.mrf.mxu0
  %v5779 = vadd.f32 0.0, %v5778
  %v5780 = vpop.f32.mrf.mxu0
  %5781 = vmatprep.mubr.f32.mxu0 0.0
  %5782 = vmatmul.mubr.f32.gmra.mxu0 %v1422
  %v5783 = vpop.f32.mrf.mxu0
  %v5784 = vadd.f32 0.0, %v5783
  %v5785 = vpop.f32.mrf.mxu0
  %5786 = vmatprep.mubr.f32.mxu0 0.0
  %5787 = vmatmul.mubr.f32.gmra.mxu0 %v1422
  %v5788 = vpop.f32.mrf.mxu0
  %v5789 = vadd.f32 0.0, %v5788
  %v5790 = vpop.f32.mrf.mxu0
  %5791 = vmatprep.mubr.f32.mxu0 0.0
  %5792 = vmatmul.mubr.f32.gmra.mxu0 %v1422
  %v5793 = vpop.f32.mrf.mxu0
  %v5794 = vadd.f32 0.0, %v5793
  %v5795 = vpop.f32.mrf.mxu0
  %5796 = vmatprep.mubr.f32.mxu0 0.0
  %5797 = vmatmul.mubr.f32.gmra.mxu0 %v1422
  %v5798 = vpop.f32.mrf.mxu0
  %v5799 = vadd.f32 0.0, %v5798
  %v5800 = vpop.f32.mrf.mxu0
  %5801 = vmatprep.mubr.f32.mxu0 0.0
  %5802 = vmatmul.mubr.f32.gmra.mxu0 %v1422
  %v5803 = vpop.f32.mrf.mxu0
  %v5804 = vadd.f32 0.0, %v5803
  %v5805 = vpop.f32.mrf.mxu0
  %5806 = vmatprep.mubr.f32.mxu0 0.0
  %5807 = vmatmul.mubr.f32.gmra.mxu0 %v5471
  %v5808 = vpop.f32.mrf.mxu0
  %v5809 = vadd.f32 0.0, %v5808
  %v5810 = vpop.f32.mrf.mxu0
  %5811 = vmatprep.mubr.f32.mxu0 0.0
  %5812 = vmatmul.mubr.f32.gmra.mxu0 %v5474
  %v5813 = vpop.f32.mrf.mxu0
  %v5814 = vadd.f32 0.0, %v5813
  %v5815 = vpop.f32.mrf.mxu0
  %5816 = vmatprep.mubr.f32.mxu0 0.0
  %5817 = vmatmul.mubr.f32.gmra.mxu0 %v5477
  %v5818 = vpop.f32.mrf.mxu0
  %v5819 = vadd.f32 0.0, %v5818
  %v5820 = vpop.f32.mrf.mxu0
  %5821 = vmatprep.mubr.f32.mxu0 0.0
  %5822 = vmatmul.mubr.f32.gmra.mxu0 %v5480
  %v5823 = vpop.f32.mrf.mxu0
  %v5824 = vadd.f32 0.0, %v5823
  %v5825 = vpop.f32.mrf.mxu0
  %5826 = vmatprep.mubr.f32.mxu0 0.0
  %5827 = vmatmul.mubr.f32.gmra.mxu0 %v5483
  %v5828 = vpop.f32.mrf.mxu0
  %v5829 = vadd.f32 0.0, %v5828
  %v5830 = vpop.f32.mrf.mxu0
  %5831 = vmatprep.mubr.f32.mxu0 0.0
  %5832 = vmatmul.mubr.f32.gmra.mxu0 %v5486
  %v5833 = vpop.f32.mrf.mxu0
  %v5834 = vadd.f32 0.0, %v5833
  %v5835 = vpop.f32.mrf.mxu0
  %5836 = vmatprep.mubr.f32.mxu0 0.0
  %5837 = vmatmul.mubr.f32.gmra.mxu0 %v5489
  %v5838 = vpop.f32.mrf.mxu0
  %v5839 = vadd.f32 0.0, %v5838
  %v5840 = vpop.f32.mrf.mxu0
  %5841 = vmatprep.mubr.f32.mxu0 0.0
  %5842 = vmatmul.mubr.f32.gmra.mxu0 %v5492
  %v5843 = vpop.f32.mrf.mxu0
  %v5844 = vadd.f32 0.0, %v5843
  %v5845 = vpop.f32.mrf.mxu0
  %5846 = vmatprep.mubr.f32.mxu0 0.0
  %5847 = vmatmul.mubr.f32.gmra.mxu0 %v5495
  %v5848 = vpop.f32.mrf.mxu0
  %v5849 = vadd.f32 0.0, %v5848
  %v5850 = vpop.f32.mrf.mxu0
  %5851 = vmatprep.mubr.f32.mxu0 0.0
  %5852 = vmatmul.mubr.f32.gmra.mxu0 %v5498
  %v5853 = vpop.f32.mrf.mxu0
  %v5854 = vadd.f32 0.0, %v5853
  %v5855 = vpop.f32.mrf.mxu0
  %5856 = vmatprep.mubr.f32.mxu0 0.0
  %5857 = vmatmul.mubr.f32.gmra.mxu0 %v5501
  %v5858 = vpop.f32.mrf.mxu0
  %v5859 = vadd.f32 0.0, %v5858
  %v5860 = vpop.f32.mrf.mxu0
  %5861 = vmatprep.mubr.f32.mxu0 0.0
  %5862 = vmatmul.mubr.f32.gmra.mxu0 %v5504
  %v5863 = vpop.f32.mrf.mxu0
  %v5864 = vadd.f32 0.0, %v5863
  %v5865 = vpop.f32.mrf.mxu0
  %5866 = vmatprep.mubr.f32.mxu0 0.0
  %5867 = vmatmul.mubr.f32.gmra.mxu0 %v5507
  %v5868 = vpop.f32.mrf.mxu0
  %v5869 = vadd.f32 0.0, %v5868
  %v5870 = vpop.f32.mrf.mxu0
  %5871 = vmatprep.mubr.f32.mxu0 0.0
  %5872 = vmatmul.mubr.f32.gmra.mxu0 %v5510
  %v5873 = vpop.f32.mrf.mxu0
  %v5874 = vadd.f32 0.0, %v5873
  %v5875 = vpop.f32.mrf.mxu0
  %5876 = vmatprep.mubr.f32.mxu0 0.0
  %5877 = vmatmul.mubr.f32.gmra.mxu0 %v5513
  %v5878 = vpop.f32.mrf.mxu0
  %v5879 = vadd.f32 0.0, %v5878
  %v5880 = vpop.f32.mrf.mxu0
  %5881 = vmatprep.mubr.f32.mxu0 0.0
  %5882 = vmatmul.mubr.f32.gmra.mxu0 %v5516
  %v5883 = vpop.f32.mrf.mxu0
  %v5884 = vadd.f32 0.0, %v5883
  %v5885 = vpop.f32.mrf.mxu0
  %5886 = vmatprep.mubr.f32.mxu0 0.0
  %5887 = vmatmul.mubr.f32.gmra.mxu0 %v5519
  %v5888 = vpop.f32.mrf.mxu0
  %v5889 = vadd.f32 0.0, %v5888
  %v5890 = vpop.f32.mrf.mxu0
  %5891 = vmatprep.mubr.f32.mxu0 0.0
  %5892 = vmatmul.mubr.f32.gmra.mxu0 %v5522
  %v5893 = vpop.f32.mrf.mxu0
  %v5894 = vadd.f32 0.0, %v5893
  %v5895 = vpop.f32.mrf.mxu0
  %5896 = vmatprep.mubr.f32.mxu0 0.0
  %5897 = vmatmul.mubr.f32.gmra.mxu0 %v5525
  %v5898 = vpop.f32.mrf.mxu0
  %v5899 = vadd.f32 0.0, %v5898
  %v5900 = vpop.f32.mrf.mxu0
  %5901 = vmatprep.mubr.f32.mxu0 0.0
  %5902 = vmatmul.mubr.f32.gmra.mxu0 %v5528
  %v5903 = vpop.f32.mrf.mxu0
  %v5904 = vadd.f32 0.0, %v5903
  %v5905 = vpop.f32.mrf.mxu0
  %5906 = vmatprep.mubr.f32.mxu0 0.0
  %5907 = vmatmul.mubr.f32.gmra.mxu0 %v5531
  %v5908 = vpop.f32.mrf.mxu0
  %v5909 = vadd.f32 0.0, %v5908
  %v5910 = vpop.f32.mrf.mxu0
  %5911 = vmatprep.mubr.f32.mxu0 0.0
  %5912 = vmatmul.mubr.f32.gmra.mxu0 %v5534
  %v5913 = vpop.f32.mrf.mxu0
  %v5914 = vadd.f32 0.0, %v5913
  %v5915 = vpop.f32.mrf.mxu0
  %5916 = vmatprep.mubr.f32.mxu0 0.0
  %5917 = vmatmul.mubr.f32.gmra.mxu0 %v5537
  %v5918 = vpop.f32.mrf.mxu0
  %v5919 = vadd.f32 0.0, %v5918
  %v5920 = vpop.f32.mrf.mxu0
  %5921 = vmatprep.mubr.f32.mxu0 0.0
  %5922 = vmatmul.mubr.f32.gmra.mxu0 %v5540
  %v5923 = vpop.f32.mrf.mxu0
  %v5924 = vadd.f32 0.0, %v5923
  %v5925 = vpop.f32.mrf.mxu0
  %5926 = vmatprep.mubr.f32.mxu0 0.0
  %5927 = vmatmul.mubr.f32.gmra.mxu0 %v5543
  %v5928 = vpop.f32.mrf.mxu0
  %v5929 = vadd.f32 0.0, %v5928
  %v5930 = vpop.f32.mrf.mxu0
  %5931 = vmatprep.mubr.f32.mxu0 0.0
  %5932 = vmatmul.mubr.f32.gmra.mxu0 %v5546
  %v5933 = vpop.f32.mrf.mxu0
  %v5934 = vadd.f32 0.0, %v5933
  %v5935 = vpop.f32.mrf.mxu0
  %5936 = vmatprep.mubr.f32.mxu0 0.0
  %5937 = vmatmul.mubr.f32.gmra.mxu0 %v5549
  %v5938 = vpop.f32.mrf.mxu0
  %v5939 = vadd.f32 0.0, %v5938
  %v5940 = vpop.f32.mrf.mxu0
  %5941 = vmatprep.mubr.f32.mxu0 0.0
  %5942 = vmatmul.mubr.f32.gmra.mxu0 %v5552
  %v5943 = vpop.f32.mrf.mxu0
  %v5944 = vadd.f32 0.0, %v5943
  %v5945 = vpop.f32.mrf.mxu0
  %5946 = vmatprep.mubr.f32.mxu0 0.0
  %5947 = vmatmul.mubr.f32.gmra.mxu0 %v5555
  %v5948 = vpop.f32.mrf.mxu0
  %v5949 = vadd.f32 0.0, %v5948
  %v5950 = vpop.f32.mrf.mxu0
  %5951 = vmatprep.mubr.f32.mxu0 0.0
  %5952 = vmatmul.mubr.f32.gmra.mxu0 %v5558
  %v5953 = vpop.f32.mrf.mxu0
  %v5954 = vadd.f32 0.0, %v5953
  %v5955 = vpop.f32.mrf.mxu0
  %5956 = vmatprep.mubr.f32.mxu0 0.0
  %5957 = vmatmul.mubr.f32.gmra.mxu0 %v5561
  %v5958 = vpop.f32.mrf.mxu0
  %v5959 = vadd.f32 0.0, %v5958
  %v5960 = vpop.f32.mrf.mxu0
  %5961 = vmatprep.mubr.f32.mxu0 0.0
  %5962 = vmatmul.mubr.f32.gmra.mxu0 %v5564
  %v5963 = vpop.f32.mrf.mxu0
  %v5964 = vadd.f32 0.0, %v5963
  %v5965 = vpop.f32.mrf.mxu0
  %5966 = vmatprep.mubr.f32.mxu0 0.0
  %5967 = vmatmul.mubr.f32.gmra.mxu0 %v5567
  %v5968 = vpop.f32.mrf.mxu0
  %v5969 = vadd.f32 0.0, %v5968
  %v5970 = vpop.f32.mrf.mxu0
  %5971 = vmatprep.mubr.f32.mxu0 0.0
  %5972 = vmatmul.mubr.f32.gmra.mxu0 %v5570
  %v5973 = vpop.f32.mrf.mxu0
  %v5974 = vadd.f32 0.0, %v5973
  %v5975 = vpop.f32.mrf.mxu0
  %5976 = vmatprep.mubr.f32.mxu0 0.0
  %5977 = vmatmul.mubr.f32.gmra.mxu0 %v5573
  %v5978 = vpop.f32.mrf.mxu0
  %v5979 = vadd.f32 0.0, %v5978
  %v5980 = vpop.f32.mrf.mxu0
  %5981 = vmatprep.mubr.f32.mxu0 0.0
  %5982 = vmatmul.mubr.f32.gmra.mxu0 %v5576
  %v5983 = vpop.f32.mrf.mxu0
  %v5984 = vadd.f32 0.0, %v5983
  %v5985 = vpop.f32.mrf.mxu0
  %5986 = vmatprep.mubr.f32.mxu0 0.0
  %5987 = vmatmul.mubr.f32.gmra.mxu0 %v5579
  %v5988 = vpop.f32.mrf.mxu0
  %v5989 = vadd.f32 0.0, %v5988
  %v5990 = vpop.f32.mrf.mxu0
  %5991 = vmatprep.mubr.f32.mxu0 0.0
  %5992 = vmatmul.mubr.f32.gmra.mxu0 %v5582
  %v5993 = vpop.f32.mrf.mxu0
  %v5994 = vadd.f32 0.0, %v5993
  %v5995 = vpop.f32.mrf.mxu0
  %5996 = vmatprep.mubr.f32.mxu0 0.0
  %5997 = vmatmul.mubr.f32.gmra.mxu0 %v5585
  %v5998 = vpop.f32.mrf.mxu0
  %v5999 = vadd.f32 0.0, %v5998
  %v6000 = vpop.f32.mrf.mxu0
  %6001 = vmatprep.mubr.f32.mxu0 0.0
  %6002 = vmatmul.mubr.f32.gmra.mxu0 %v5588
  %v6003 = vpop.f32.mrf.mxu0
  %v6004 = vadd.f32 0.0, %v6003
  %v6005 = vpop.f32.mrf.mxu0
  %6006 = vmatprep.mubr.f32.mxu0 0.0
  %6007 = vmatmul.mubr.f32.gmra.mxu0 %v5591
  %v6008 = vpop.f32.mrf.mxu0
  %v6009 = vadd.f32 0.0, %v6008
  %v6010 = vpop.f32.mrf.mxu0
  %6011 = vmatprep.mubr.f32.mxu0 0.0
  %6012 = vmatmul.mubr.f32.gmra.mxu0 %v5594
  %v6013 = vpop.f32.mrf.mxu0
  %v6014 = vadd.f32 0.0, %v6013
  %v6015 = vpop.f32.mrf.mxu0
  %6016 = vmatprep.mubr.f32.mxu0 0.0
  %6017 = vmatmul.mubr.f32.gmra.mxu0 %v5597
  %v6018 = vpop.f32.mrf.mxu0
  %v6019 = vadd.f32 0.0, %v6018
  %v6020 = vpop.f32.mrf.mxu0
  %6021 = vmatprep.mubr.f32.mxu0 0.0
  %6022 = vmatmul.mubr.f32.gmra.mxu0 %v5600
  %v6023 = vpop.f32.mrf.mxu0
  %v6024 = vadd.f32 0.0, %v6023
  %v6025 = vpop.f32.mrf.mxu0
  %6026 = vmatprep.mubr.f32.mxu0 0.0
  %6027 = vmatmul.mubr.f32.gmra.mxu0 %v5603
  %v6028 = vpop.f32.mrf.mxu0
  %v6029 = vadd.f32 0.0, %v6028
  %v6030 = vpop.f32.mrf.mxu0
  %6031 = vmatprep.mubr.f32.mxu0 0.0
  %6032 = vmatmul.mubr.f32.gmra.mxu0 %v5606
  %v6033 = vpop.f32.mrf.mxu0
  %v6034 = vadd.f32 0.0, %v6033
  %v6035 = vpop.f32.mrf.mxu0
  %6036 = vmatprep.mubr.f32.mxu0 0.0
  %6037 = vmatmul.mubr.f32.gmra.mxu0 %v5609
  %v6038 = vpop.f32.mrf.mxu0
  %v6039 = vadd.f32 0.0, %v6038
  %v6040 = vpop.f32.mrf.mxu0
  %6041 = vmatprep.mubr.f32.mxu0 0.0
  %6042 = vmatmul.mubr.f32.gmra.mxu0 %v5612
  %v6043 = vpop.f32.mrf.mxu0
  %v6044 = vadd.f32 0.0, %v6043
  %v6045 = vpop.f32.mrf.mxu0
  %6046 = vmatprep.mubr.f32.mxu0 0.0
  %6047 = vmatmul.mubr.f32.gmra.mxu0 %v5615
  %v6048 = vpop.f32.mrf.mxu0
  %v6049 = vadd.f32 0.0, %v6048
  %v6050 = vpop.f32.mrf.mxu0
  %6051 = vmatprep.mubr.f32.mxu0 0.0
  %6052 = vmatmul.mubr.f32.gmra.mxu0 %v5618
  %v6053 = vpop.f32.mrf.mxu0
  %v6054 = vadd.f32 0.0, %v6053
  %v6055 = vpop.f32.mrf.mxu0
  %6056 = vmatprep.mubr.f32.mxu0 0.0
  %6057 = vmatmul.mubr.f32.gmra.mxu0 %v5621
  %v6058 = vpop.f32.mrf.mxu0
  %v6059 = vadd.f32 0.0, %v6058
  %v6060 = vpop.f32.mrf.mxu0
  %6061 = vmatprep.mubr.f32.mxu0 0.0
  %6062 = vmatmul.mubr.f32.gmra.mxu0 %v5624
  %v6063 = vpop.f32.mrf.mxu0
  %v6064 = vadd.f32 0.0, %v6063
  %v6065 = vpop.f32.mrf.mxu0
  %6066 = vmatprep.mubr.f32.mxu0 0.0
  %6067 = vmatmul.mubr.f32.gmra.mxu0 %v5627
  %v6068 = vpop.f32.mrf.mxu0
  %v6069 = vadd.f32 0.0, %v6068
  %v6070 = vpop.f32.mrf.mxu0
  %6071 = vmatprep.mubr.f32.mxu0 0.0
  %6072 = vmatmul.mubr.f32.gmra.mxu0 %v5630
  %v6073 = vpop.f32.mrf.mxu0
  %v6074 = vadd.f32 0.0, %v6073
  %v6075 = vpop.f32.mrf.mxu0
  %6076 = vmatprep.mubr.f32.mxu0 0.0
  %6077 = vmatmul.mubr.f32.gmra.mxu0 %v5633
  %v6078 = vpop.f32.mrf.mxu0
  %v6079 = vadd.f32 0.0, %v6078
  %v6080 = vpop.f32.mrf.mxu0
  %6081 = vmatprep.mubr.f32.mxu0 0.0
  %6082 = vmatmul.mubr.f32.gmra.mxu0 %v5636
  %v6083 = vpop.f32.mrf.mxu0
  %v6084 = vadd.f32 0.0, %v6083
  %v6085 = vpop.f32.mrf.mxu0
  %6086 = vmatprep.mubr.f32.mxu0 0.0
  %6087 = vmatmul.mubr.f32.gmra.mxu0 %v5639
  %v6088 = vpop.f32.mrf.mxu0
  %v6089 = vadd.f32 0.0, %v6088
  %v6090 = vpop.f32.mrf.mxu0
  %6091 = vmatprep.mubr.f32.mxu0 0.0
  %6092 = vmatmul.mubr.f32.gmra.mxu0 %v5642
  %v6093 = vpop.f32.mrf.mxu0
  %v6094 = vadd.f32 0.0, %v6093
  %v6095 = vpop.f32.mrf.mxu0
  %6096 = vmatprep.mubr.f32.mxu0 0.0
  %6097 = vmatmul.mubr.f32.gmra.mxu0 %v5645
  %v6098 = vpop.f32.mrf.mxu0
  %v6099 = vadd.f32 0.0, %v6098
  %v6100 = vpop.f32.mrf.mxu0
  %6101 = vmatprep.mubr.f32.mxu0 0.0
  %6102 = vmatmul.mubr.f32.gmra.mxu0 %v5648
  %v6103 = vpop.f32.mrf.mxu0
  %v6104 = vadd.f32 0.0, %v6103
  %v6105 = vpop.f32.mrf.mxu0
  %6106 = vmatprep.mubr.f32.mxu0 0.0
  %6107 = vmatmul.mubr.f32.gmra.mxu0 %v5651
  %v6108 = vpop.f32.mrf.mxu0
  %v6109 = vadd.f32 0.0, %v6108
  %v6110 = vpop.f32.mrf.mxu0
  %6111 = vmatprep.mubr.f32.mxu0 0.0
  %6112 = vmatmul.mubr.f32.gmra.mxu0 %v5654
  %v6113 = vpop.f32.mrf.mxu0
  %v6114 = vadd.f32 0.0, %v6113
  %v6115 = vpop.f32.mrf.mxu0
  %6116 = vmatprep.mubr.f32.mxu0 0.0
  %6117 = vmatmul.mubr.f32.gmra.mxu0 %v5657
  %v6118 = vpop.f32.mrf.mxu0
  %v6119 = vadd.f32 0.0, %v6118
  %v6120 = vpop.f32.mrf.mxu0
  %6121 = vmatprep.mubr.f32.mxu0 0.0
  %6122 = vmatmul.mubr.f32.gmra.mxu0 %v5660
  %v6123 = vpop.f32.mrf.mxu0
  %v6124 = vadd.f32 0.0, %v6123
  %v6125 = vpop.f32.mrf.mxu0
  %6126 = vdwg.mxu0
  %v6128 = vsel %vm1420, %v5115, 0
  %v6131 = vsel %vm1420, %v5116, 0
  %v6134 = vsel %vm1420, %v5117, 0
  %v6137 = vsel %vm1420, %v5118, 0
  %v6140 = vsel %vm1420, %v5119, 0
  %v6143 = vsel %vm1420, %v5120, 0
  %v6146 = vsel %vm1420, %v5121, 0
  %v6149 = vsel %vm1420, %v5122, 0
  %v6152 = vsel %vm1420, %v5123, 0
  %v6155 = vsel %vm1420, %v5124, 0
  %v6158 = vsel %vm1420, %v5125, 0
  %v6161 = vsel %vm1420, %v5126, 0
  %v6164 = vsel %vm1420, %v5127, 0
  %v6167 = vsel %vm1420, %v5128, 0
  %v6170 = vsel %vm1420, %v5129, 0
  %v6173 = vsel %vm1420, %v5130, 0
  %6175 = vmatprep.subr.mxu0 0.0
  %6176 = vmatpush1.msra.mxu0 0.0
  %6177 = vmatprep.subr.mxu0 0.0
  %6178 = vmatpush1.msra.mxu0 0.0
  %6179 = vmatprep.subr.mxu0 0.0
  %6180 = vmatpush1.msra.mxu0 0.0
  %6181 = vmatprep.subr.mxu0 0.0
  %6182 = vmatpush1.msra.mxu0 0.0
  %6183 = vmatprep.subr.mxu0 0.0
  %6184 = vmatpush1.msra.mxu0 0.0
  %6185 = vmatprep.subr.mxu0 0.0
  %6186 = vmatpush1.msra.mxu0 0.0
  %6187 = vmatprep.subr.mxu0 0.0
  %6188 = vmatpush1.msra.mxu0 0.0
  %6189 = vmatprep.subr.mxu0 0.0
  %6190 = vmatpush1.msra.mxu0 0.0
  %6191 = vmatprep.subr.mxu0 0.0
  %6192 = vmatpush1.msra.mxu0 %v5460
  %6193 = vmatprep.subr.mxu0 0.0
  %6194 = vmatpush1.msra.mxu0 %v5459
  %6195 = vmatprep.subr.mxu0 0.0
  %6196 = vmatpush1.msra.mxu0 %v5458
  %6197 = vmatprep.subr.mxu0 0.0
  %6198 = vmatpush1.msra.mxu0 %v5457
  %6199 = vmatprep.subr.mxu0 0.0
  %6200 = vmatpush1.msra.mxu0 %v5456
  %6201 = vmatprep.subr.mxu0 0.0
  %6202 = vmatpush1.msra.mxu0 %v5455
  %6203 = vmatprep.subr.mxu0 0.0
  %6204 = vmatpush1.msra.mxu0 %v5454
  %6205 = vmatprep.subr.mxu0 0.0
  %6206 = vmatpush1.msra.mxu0 %v5453
  %6207 = vmatprep.subr.mxu0 0.0
  %6208 = vmatpush2.msra.mxu0 0.0
  %6209 = vmatprep.subr.mxu0 0.0
  %6210 = vmatpush2.msra.mxu0 0.0
  %6211 = vmatprep.subr.mxu0 0.0
  %6212 = vmatpush2.msra.mxu0 0.0
  %6213 = vmatprep.subr.mxu0 0.0
  %6214 = vmatpush2.msra.mxu0 0.0
  %6215 = vmatprep.subr.mxu0 0.0
  %6216 = vmatpush2.msra.mxu0 0.0
  %6217 = vmatprep.subr.mxu0 0.0
  %6218 = vmatpush2.msra.mxu0 0.0
  %6219 = vmatprep.subr.mxu0 0.0
  %6220 = vmatpush2.msra.mxu0 0.0
  %6221 = vmatprep.subr.mxu0 0.0
  %6222 = vmatpush2.msra.mxu0 0.0
  %6223 = vmatprep.subr.mxu0 0.0
  %6224 = vmatpush2.msra.mxu0 0.0
  %6225 = vmatprep.subr.mxu0 0.0
  %6226 = vmatpush2.msra.mxu0 0.0
  %6227 = vmatprep.subr.mxu0 0.0
  %6228 = vmatpush2.msra.mxu0 0.0
  %6229 = vmatprep.subr.mxu0 0.0
  %6230 = vmatpush2.msra.mxu0 0.0
  %6231 = vmatprep.subr.mxu0 0.0
  %6232 = vmatpush2.msra.mxu0 0.0
  %6233 = vmatprep.subr.mxu0 0.0
  %6234 = vmatpush2.msra.mxu0 0.0
  %6235 = vmatprep.subr.mxu0 0.0
  %6236 = vmatpush2.msra.mxu0 0.0
  %6237 = vmatprep.subr.mxu0 0.0
  %6238 = vmatpush2.msra.mxu0 0.0
  %6239 = vmatprep.mubr.f32.mxu0 0.0
  %6240 = vmatmul.mubr.f32.gmra.mxu0 %v5471
  %v6241 = vpop.f32.mrf.mxu0
  %v6242 = vadd.f32 %v5729, %v6241
  %v6243 = vpop.f32.mrf.mxu0
  %6244 = vmatprep.mubr.f32.mxu0 0.0
  %6245 = vmatmul.mubr.f32.gmra.mxu0 %v5474
  %v6246 = vpop.f32.mrf.mxu0
  %v6247 = vadd.f32 %v5734, %v6246
  %v6248 = vpop.f32.mrf.mxu0
  %6249 = vmatprep.mubr.f32.mxu0 0.0
  %6250 = vmatmul.mubr.f32.gmra.mxu0 %v5477
  %v6251 = vpop.f32.mrf.mxu0
  %v6252 = vadd.f32 %v5739, %v6251
  %v6253 = vpop.f32.mrf.mxu0
  %6254 = vmatprep.mubr.f32.mxu0 0.0
  %6255 = vmatmul.mubr.f32.gmra.mxu0 %v5480
  %v6256 = vpop.f32.mrf.mxu0
  %v6257 = vadd.f32 %v5744, %v6256
  %v6258 = vpop.f32.mrf.mxu0
  %6259 = vmatprep.mubr.f32.mxu0 0.0
  %6260 = vmatmul.mubr.f32.gmra.mxu0 %v5483
  %v6261 = vpop.f32.mrf.mxu0
  %v6262 = vadd.f32 %v5749, %v6261
  %v6263 = vpop.f32.mrf.mxu0
  %6264 = vmatprep.mubr.f32.mxu0 0.0
  %6265 = vmatmul.mubr.f32.gmra.mxu0 %v5486
  %v6266 = vpop.f32.mrf.mxu0
  %v6267 = vadd.f32 %v5754, %v6266
  %v6268 = vpop.f32.mrf.mxu0
  %6269 = vmatprep.mubr.f32.mxu0 0.0
  %6270 = vmatmul.mubr.f32.gmra.mxu0 %v5489
  %v6271 = vpop.f32.mrf.mxu0
  %v6272 = vadd.f32 %v5759, %v6271
  %v6273 = vpop.f32.mrf.mxu0
  %6274 = vmatprep.mubr.f32.mxu0 0.0
  %6275 = vmatmul.mubr.f32.gmra.mxu0 %v5492
  %v6276 = vpop.f32.mrf.mxu0
  %v6277 = vadd.f32 %v5764, %v6276
  %v6278 = vpop.f32.mrf.mxu0
  %6279 = vmatprep.mubr.f32.mxu0 0.0
  %6280 = vmatmul.mubr.f32.gmra.mxu0 %v5495
  %v6281 = vpop.f32.mrf.mxu0
  %v6282 = vadd.f32 %v5769, %v6281
  %v6283 = vpop.f32.mrf.mxu0
  %6284 = vmatprep.mubr.f32.mxu0 0.0
  %6285 = vmatmul.mubr.f32.gmra.mxu0 %v5498
  %v6286 = vpop.f32.mrf.mxu0
  %v6287 = vadd.f32 %v5774, %v6286
  %v6288 = vpop.f32.mrf.mxu0
  %6289 = vmatprep.mubr.f32.mxu0 0.0
  %6290 = vmatmul.mubr.f32.gmra.mxu0 %v5501
  %v6291 = vpop.f32.mrf.mxu0
  %v6292 = vadd.f32 %v5779, %v6291
  %v6293 = vpop.f32.mrf.mxu0
  %6294 = vmatprep.mubr.f32.mxu0 0.0
  %6295 = vmatmul.mubr.f32.gmra.mxu0 %v5504
  %v6296 = vpop.f32.mrf.mxu0
  %v6297 = vadd.f32 %v5784, %v6296
  %v6298 = vpop.f32.mrf.mxu0
  %6299 = vmatprep.mubr.f32.mxu0 0.0
  %6300 = vmatmul.mubr.f32.gmra.mxu0 %v5507
  %v6301 = vpop.f32.mrf.mxu0
  %v6302 = vadd.f32 %v5789, %v6301
  %v6303 = vpop.f32.mrf.mxu0
  %6304 = vmatprep.mubr.f32.mxu0 0.0
  %6305 = vmatmul.mubr.f32.gmra.mxu0 %v5510
  %v6306 = vpop.f32.mrf.mxu0
  %v6307 = vadd.f32 %v5794, %v6306
  %v6308 = vpop.f32.mrf.mxu0
  %6309 = vmatprep.mubr.f32.mxu0 0.0
  %6310 = vmatmul.mubr.f32.gmra.mxu0 %v5513
  %v6311 = vpop.f32.mrf.mxu0
  %v6312 = vadd.f32 %v5799, %v6311
  %v6313 = vpop.f32.mrf.mxu0
  %6314 = vmatprep.mubr.f32.mxu0 0.0
  %6315 = vmatmul.mubr.f32.gmra.mxu0 %v5516
  %v6316 = vpop.f32.mrf.mxu0
  %v6317 = vadd.f32 %v5804, %v6316
  %v6318 = vpop.f32.mrf.mxu0
  %6319 = vmatprep.mubr.f32.mxu0 0.0
  %6320 = vmatmul.mubr.f32.gmra.mxu0 %v5519
  %v6321 = vpop.f32.mrf.mxu0
  %v6322 = vadd.f32 %v5809, %v6321
  %v6323 = vpop.f32.mrf.mxu0
  %6324 = vmatprep.mubr.f32.mxu0 0.0
  %6325 = vmatmul.mubr.f32.gmra.mxu0 %v5522
  %v6326 = vpop.f32.mrf.mxu0
  %v6327 = vadd.f32 %v5814, %v6326
  %v6328 = vpop.f32.mrf.mxu0
  %6329 = vmatprep.mubr.f32.mxu0 0.0
  %6330 = vmatmul.mubr.f32.gmra.mxu0 %v5525
  %v6331 = vpop.f32.mrf.mxu0
  %v6332 = vadd.f32 %v5819, %v6331
  %v6333 = vpop.f32.mrf.mxu0
  %6334 = vmatprep.mubr.f32.mxu0 0.0
  %6335 = vmatmul.mubr.f32.gmra.mxu0 %v5528
  %v6336 = vpop.f32.mrf.mxu0
  %v6337 = vadd.f32 %v5824, %v6336
  %v6338 = vpop.f32.mrf.mxu0
  %6339 = vmatprep.mubr.f32.mxu0 0.0
  %6340 = vmatmul.mubr.f32.gmra.mxu0 %v5531
  %v6341 = vpop.f32.mrf.mxu0
  %v6342 = vadd.f32 %v5829, %v6341
  %v6343 = vpop.f32.mrf.mxu0
  %6344 = vmatprep.mubr.f32.mxu0 0.0
  %6345 = vmatmul.mubr.f32.gmra.mxu0 %v5534
  %v6346 = vpop.f32.mrf.mxu0
  %v6347 = vadd.f32 %v5834, %v6346
  %v6348 = vpop.f32.mrf.mxu0
  %6349 = vmatprep.mubr.f32.mxu0 0.0
  %6350 = vmatmul.mubr.f32.gmra.mxu0 %v5537
  %v6351 = vpop.f32.mrf.mxu0
  %v6352 = vadd.f32 %v5839, %v6351
  %v6353 = vpop.f32.mrf.mxu0
  %6354 = vmatprep.mubr.f32.mxu0 0.0
  %6355 = vmatmul.mubr.f32.gmra.mxu0 %v5540
  %v6356 = vpop.f32.mrf.mxu0
  %v6357 = vadd.f32 %v5844, %v6356
  %v6358 = vpop.f32.mrf.mxu0
  %6359 = vmatprep.mubr.f32.mxu0 0.0
  %6360 = vmatmul.mubr.f32.gmra.mxu0 %v5543
  %v6361 = vpop.f32.mrf.mxu0
  %v6362 = vadd.f32 %v5849, %v6361
  %v6363 = vpop.f32.mrf.mxu0
  %6364 = vmatprep.mubr.f32.mxu0 0.0
  %6365 = vmatmul.mubr.f32.gmra.mxu0 %v5546
  %v6366 = vpop.f32.mrf.mxu0
  %v6367 = vadd.f32 %v5854, %v6366
  %v6368 = vpop.f32.mrf.mxu0
  %6369 = vmatprep.mubr.f32.mxu0 0.0
  %6370 = vmatmul.mubr.f32.gmra.mxu0 %v5549
  %v6371 = vpop.f32.mrf.mxu0
  %v6372 = vadd.f32 %v5859, %v6371
  %v6373 = vpop.f32.mrf.mxu0
  %6374 = vmatprep.mubr.f32.mxu0 0.0
  %6375 = vmatmul.mubr.f32.gmra.mxu0 %v5552
  %v6376 = vpop.f32.mrf.mxu0
  %v6377 = vadd.f32 %v5864, %v6376
  %v6378 = vpop.f32.mrf.mxu0
  %6379 = vmatprep.mubr.f32.mxu0 0.0
  %6380 = vmatmul.mubr.f32.gmra.mxu0 %v5555
  %v6381 = vpop.f32.mrf.mxu0
  %v6382 = vadd.f32 %v5869, %v6381
  %v6383 = vpop.f32.mrf.mxu0
  %6384 = vmatprep.mubr.f32.mxu0 0.0
  %6385 = vmatmul.mubr.f32.gmra.mxu0 %v5558
  %v6386 = vpop.f32.mrf.mxu0
  %v6387 = vadd.f32 %v5874, %v6386
  %v6388 = vpop.f32.mrf.mxu0
  %6389 = vmatprep.mubr.f32.mxu0 0.0
  %6390 = vmatmul.mubr.f32.gmra.mxu0 %v5561
  %v6391 = vpop.f32.mrf.mxu0
  %v6392 = vadd.f32 %v5879, %v6391
  %v6393 = vpop.f32.mrf.mxu0
  %6394 = vmatprep.mubr.f32.mxu0 0.0
  %6395 = vmatmul.mubr.f32.gmra.mxu0 %v5564
  %v6396 = vpop.f32.mrf.mxu0
  %v6397 = vadd.f32 %v5884, %v6396
  %v6398 = vpop.f32.mrf.mxu0
  %6399 = vmatprep.mubr.f32.mxu0 0.0
  %6400 = vmatmul.mubr.f32.gmra.mxu0 %v5567
  %v6401 = vpop.f32.mrf.mxu0
  %v6402 = vadd.f32 %v5889, %v6401
  %v6403 = vpop.f32.mrf.mxu0
  %6404 = vmatprep.mubr.f32.mxu0 0.0
  %6405 = vmatmul.mubr.f32.gmra.mxu0 %v5570
  %v6406 = vpop.f32.mrf.mxu0
  %v6407 = vadd.f32 %v5894, %v6406
  %v6408 = vpop.f32.mrf.mxu0
  %6409 = vmatprep.mubr.f32.mxu0 0.0
  %6410 = vmatmul.mubr.f32.gmra.mxu0 %v5573
  %v6411 = vpop.f32.mrf.mxu0
  %v6412 = vadd.f32 %v5899, %v6411
  %v6413 = vpop.f32.mrf.mxu0
  %6414 = vmatprep.mubr.f32.mxu0 0.0
  %6415 = vmatmul.mubr.f32.gmra.mxu0 %v5576
  %v6416 = vpop.f32.mrf.mxu0
  %v6417 = vadd.f32 %v5904, %v6416
  %v6418 = vpop.f32.mrf.mxu0
  %6419 = vmatprep.mubr.f32.mxu0 0.0
  %6420 = vmatmul.mubr.f32.gmra.mxu0 %v5579
  %v6421 = vpop.f32.mrf.mxu0
  %v6422 = vadd.f32 %v5909, %v6421
  %v6423 = vpop.f32.mrf.mxu0
  %6424 = vmatprep.mubr.f32.mxu0 0.0
  %6425 = vmatmul.mubr.f32.gmra.mxu0 %v5582
  %v6426 = vpop.f32.mrf.mxu0
  %v6427 = vadd.f32 %v5914, %v6426
  %v6428 = vpop.f32.mrf.mxu0
  %6429 = vmatprep.mubr.f32.mxu0 0.0
  %6430 = vmatmul.mubr.f32.gmra.mxu0 %v5585
  %v6431 = vpop.f32.mrf.mxu0
  %v6432 = vadd.f32 %v5919, %v6431
  %v6433 = vpop.f32.mrf.mxu0
  %6434 = vmatprep.mubr.f32.mxu0 0.0
  %6435 = vmatmul.mubr.f32.gmra.mxu0 %v5588
  %v6436 = vpop.f32.mrf.mxu0
  %v6437 = vadd.f32 %v5924, %v6436
  %v6438 = vpop.f32.mrf.mxu0
  %6439 = vmatprep.mubr.f32.mxu0 0.0
  %6440 = vmatmul.mubr.f32.gmra.mxu0 %v5591
  %v6441 = vpop.f32.mrf.mxu0
  %v6442 = vadd.f32 %v5929, %v6441
  %v6443 = vpop.f32.mrf.mxu0
  %6444 = vmatprep.mubr.f32.mxu0 0.0
  %6445 = vmatmul.mubr.f32.gmra.mxu0 %v5594
  %v6446 = vpop.f32.mrf.mxu0
  %v6447 = vadd.f32 %v5934, %v6446
  %v6448 = vpop.f32.mrf.mxu0
  %6449 = vmatprep.mubr.f32.mxu0 0.0
  %6450 = vmatmul.mubr.f32.gmra.mxu0 %v5597
  %v6451 = vpop.f32.mrf.mxu0
  %v6452 = vadd.f32 %v5939, %v6451
  %v6453 = vpop.f32.mrf.mxu0
  %6454 = vmatprep.mubr.f32.mxu0 0.0
  %6455 = vmatmul.mubr.f32.gmra.mxu0 %v5600
  %v6456 = vpop.f32.mrf.mxu0
  %v6457 = vadd.f32 %v5944, %v6456
  %v6458 = vpop.f32.mrf.mxu0
  %6459 = vmatprep.mubr.f32.mxu0 0.0
  %6460 = vmatmul.mubr.f32.gmra.mxu0 %v5603
  %v6461 = vpop.f32.mrf.mxu0
  %v6462 = vadd.f32 %v5949, %v6461
  %v6463 = vpop.f32.mrf.mxu0
  %6464 = vmatprep.mubr.f32.mxu0 0.0
  %6465 = vmatmul.mubr.f32.gmra.mxu0 %v5606
  %v6466 = vpop.f32.mrf.mxu0
  %v6467 = vadd.f32 %v5954, %v6466
  %v6468 = vpop.f32.mrf.mxu0
  %6469 = vmatprep.mubr.f32.mxu0 0.0
  %6470 = vmatmul.mubr.f32.gmra.mxu0 %v5609
  %v6471 = vpop.f32.mrf.mxu0
  %v6472 = vadd.f32 %v5959, %v6471
  %v6473 = vpop.f32.mrf.mxu0
  %6474 = vmatprep.mubr.f32.mxu0 0.0
  %6475 = vmatmul.mubr.f32.gmra.mxu0 %v5612
  %v6476 = vpop.f32.mrf.mxu0
  %v6477 = vadd.f32 %v5964, %v6476
  %v6478 = vpop.f32.mrf.mxu0
  %6479 = vmatprep.mubr.f32.mxu0 0.0
  %6480 = vmatmul.mubr.f32.gmra.mxu0 %v5615
  %v6481 = vpop.f32.mrf.mxu0
  %v6482 = vadd.f32 %v5969, %v6481
  %v6483 = vpop.f32.mrf.mxu0
  %6484 = vmatprep.mubr.f32.mxu0 0.0
  %6485 = vmatmul.mubr.f32.gmra.mxu0 %v5618
  %v6486 = vpop.f32.mrf.mxu0
  %v6487 = vadd.f32 %v5974, %v6486
  %v6488 = vpop.f32.mrf.mxu0
  %6489 = vmatprep.mubr.f32.mxu0 0.0
  %6490 = vmatmul.mubr.f32.gmra.mxu0 %v5621
  %v6491 = vpop.f32.mrf.mxu0
  %v6492 = vadd.f32 %v5979, %v6491
  %v6493 = vpop.f32.mrf.mxu0
  %6494 = vmatprep.mubr.f32.mxu0 0.0
  %6495 = vmatmul.mubr.f32.gmra.mxu0 %v5624
  %v6496 = vpop.f32.mrf.mxu0
  %v6497 = vadd.f32 %v5984, %v6496
  %v6498 = vpop.f32.mrf.mxu0
  %6499 = vmatprep.mubr.f32.mxu0 0.0
  %6500 = vmatmul.mubr.f32.gmra.mxu0 %v5627
  %v6501 = vpop.f32.mrf.mxu0
  %v6502 = vadd.f32 %v5989, %v6501
  %v6503 = vpop.f32.mrf.mxu0
  %6504 = vmatprep.mubr.f32.mxu0 0.0
  %6505 = vmatmul.mubr.f32.gmra.mxu0 %v5630
  %v6506 = vpop.f32.mrf.mxu0
  %v6507 = vadd.f32 %v5994, %v6506
  %v6508 = vpop.f32.mrf.mxu0
  %6509 = vmatprep.mubr.f32.mxu0 0.0
  %6510 = vmatmul.mubr.f32.gmra.mxu0 %v5633
  %v6511 = vpop.f32.mrf.mxu0
  %v6512 = vadd.f32 %v5999, %v6511
  %v6513 = vpop.f32.mrf.mxu0
  %6514 = vmatprep.mubr.f32.mxu0 0.0
  %6515 = vmatmul.mubr.f32.gmra.mxu0 %v5636
  %v6516 = vpop.f32.mrf.mxu0
  %v6517 = vadd.f32 %v6004, %v6516
  %v6518 = vpop.f32.mrf.mxu0
  %6519 = vmatprep.mubr.f32.mxu0 0.0
  %6520 = vmatmul.mubr.f32.gmra.mxu0 %v5639
  %v6521 = vpop.f32.mrf.mxu0
  %v6522 = vadd.f32 %v6009, %v6521
  %v6523 = vpop.f32.mrf.mxu0
  %6524 = vmatprep.mubr.f32.mxu0 0.0
  %6525 = vmatmul.mubr.f32.gmra.mxu0 %v5642
  %v6526 = vpop.f32.mrf.mxu0
  %v6527 = vadd.f32 %v6014, %v6526
  %v6528 = vpop.f32.mrf.mxu0
  %6529 = vmatprep.mubr.f32.mxu0 0.0
  %6530 = vmatmul.mubr.f32.gmra.mxu0 %v5645
  %v6531 = vpop.f32.mrf.mxu0
  %v6532 = vadd.f32 %v6019, %v6531
  %v6533 = vpop.f32.mrf.mxu0
  %6534 = vmatprep.mubr.f32.mxu0 0.0
  %6535 = vmatmul.mubr.f32.gmra.mxu0 %v5648
  %v6536 = vpop.f32.mrf.mxu0
  %v6537 = vadd.f32 %v6024, %v6536
  %v6538 = vpop.f32.mrf.mxu0
  %6539 = vmatprep.mubr.f32.mxu0 0.0
  %6540 = vmatmul.mubr.f32.gmra.mxu0 %v5651
  %v6541 = vpop.f32.mrf.mxu0
  %v6542 = vadd.f32 %v6029, %v6541
  %v6543 = vpop.f32.mrf.mxu0
  %6544 = vmatprep.mubr.f32.mxu0 0.0
  %6545 = vmatmul.mubr.f32.gmra.mxu0 %v5654
  %v6546 = vpop.f32.mrf.mxu0
  %v6547 = vadd.f32 %v6034, %v6546
  %v6548 = vpop.f32.mrf.mxu0
  %6549 = vmatprep.mubr.f32.mxu0 0.0
  %6550 = vmatmul.mubr.f32.gmra.mxu0 %v5657
  %v6551 = vpop.f32.mrf.mxu0
  %v6552 = vadd.f32 %v6039, %v6551
  %v6553 = vpop.f32.mrf.mxu0
  %6554 = vmatprep.mubr.f32.mxu0 0.0
  %6555 = vmatmul.mubr.f32.gmra.mxu0 %v5660
  %v6556 = vpop.f32.mrf.mxu0
  %v6557 = vadd.f32 %v6044, %v6556
  %v6558 = vpop.f32.mrf.mxu0
  %6559 = vmatprep.mubr.f32.mxu0 0.0
  %6560 = vmatmul.mubr.f32.gmra.mxu0 %v6128
  %v6561 = vpop.f32.mrf.mxu0
  %v6562 = vadd.f32 %v6049, %v6561
  %v6563 = vpop.f32.mrf.mxu0
  %6564 = vmatprep.mubr.f32.mxu0 0.0
  %6565 = vmatmul.mubr.f32.gmra.mxu0 %v6131
  %v6566 = vpop.f32.mrf.mxu0
  %v6567 = vadd.f32 %v6054, %v6566
  %v6568 = vpop.f32.mrf.mxu0
  %6569 = vmatprep.mubr.f32.mxu0 0.0
  %6570 = vmatmul.mubr.f32.gmra.mxu0 %v6134
  %v6571 = vpop.f32.mrf.mxu0
  %v6572 = vadd.f32 %v6059, %v6571
  %v6573 = vpop.f32.mrf.mxu0
  %6574 = vmatprep.mubr.f32.mxu0 0.0
  %6575 = vmatmul.mubr.f32.gmra.mxu0 %v6137
  %v6576 = vpop.f32.mrf.mxu0
  %v6577 = vadd.f32 %v6064, %v6576
  %v6578 = vpop.f32.mrf.mxu0
  %6579 = vmatprep.mubr.f32.mxu0 0.0
  %6580 = vmatmul.mubr.f32.gmra.mxu0 %v6140
  %v6581 = vpop.f32.mrf.mxu0
  %v6582 = vadd.f32 %v6069, %v6581
  %v6583 = vpop.f32.mrf.mxu0
  %6584 = vmatprep.mubr.f32.mxu0 0.0
  %6585 = vmatmul.mubr.f32.gmra.mxu0 %v6143
  %v6586 = vpop.f32.mrf.mxu0
  %v6587 = vadd.f32 %v6074, %v6586
  %v6588 = vpop.f32.mrf.mxu0
  %6589 = vmatprep.mubr.f32.mxu0 0.0
  %6590 = vmatmul.mubr.f32.gmra.mxu0 %v6146
  %v6591 = vpop.f32.mrf.mxu0
  %v6592 = vadd.f32 %v6079, %v6591
  %v6593 = vpop.f32.mrf.mxu0
  %6594 = vmatprep.mubr.f32.mxu0 0.0
  %6595 = vmatmul.mubr.f32.gmra.mxu0 %v6149
  %v6596 = vpop.f32.mrf.mxu0
  %v6597 = vadd.f32 %v6084, %v6596
  %v6598 = vpop.f32.mrf.mxu0
  %6599 = vmatprep.mubr.f32.mxu0 0.0
  %6600 = vmatmul.mubr.f32.gmra.mxu0 %v6152
  %v6601 = vpop.f32.mrf.mxu0
  %v6602 = vadd.f32 %v6089, %v6601
  %v6603 = vpop.f32.mrf.mxu0
  %6604 = vmatprep.mubr.f32.mxu0 0.0
  %6605 = vmatmul.mubr.f32.gmra.mxu0 %v6155
  %v6606 = vpop.f32.mrf.mxu0
  %v6607 = vadd.f32 %v6094, %v6606
  %v6608 = vpop.f32.mrf.mxu0
  %6609 = vmatprep.mubr.f32.mxu0 0.0
  %6610 = vmatmul.mubr.f32.gmra.mxu0 %v6158
  %v6611 = vpop.f32.mrf.mxu0
  %v6612 = vadd.f32 %v6099, %v6611
  %v6613 = vpop.f32.mrf.mxu0
  %6614 = vmatprep.mubr.f32.mxu0 0.0
  %6615 = vmatmul.mubr.f32.gmra.mxu0 %v6161
  %v6616 = vpop.f32.mrf.mxu0
  %v6617 = vadd.f32 %v6104, %v6616
  %v6618 = vpop.f32.mrf.mxu0
  %6619 = vmatprep.mubr.f32.mxu0 0.0
  %6620 = vmatmul.mubr.f32.gmra.mxu0 %v6164
  %v6621 = vpop.f32.mrf.mxu0
  %v6622 = vadd.f32 %v6109, %v6621
  %v6623 = vpop.f32.mrf.mxu0
  %6624 = vmatprep.mubr.f32.mxu0 0.0
  %6625 = vmatmul.mubr.f32.gmra.mxu0 %v6167
  %v6626 = vpop.f32.mrf.mxu0
  %v6627 = vadd.f32 %v6114, %v6626
  %v6628 = vpop.f32.mrf.mxu0
  %6629 = vmatprep.mubr.f32.mxu0 0.0
  %6630 = vmatmul.mubr.f32.gmra.mxu0 %v6170
  %v6631 = vpop.f32.mrf.mxu0
  %v6632 = vadd.f32 %v6119, %v6631
  %v6633 = vpop.f32.mrf.mxu0
  %6634 = vmatprep.mubr.f32.mxu0 0.0
  %6635 = vmatmul.mubr.f32.gmra.mxu0 %v6173
  %v6636 = vpop.f32.mrf.mxu0
  %v6637 = vadd.f32 %v6124, %v6636
  %v6638 = vpop.f32.mrf.mxu0
  %6639 = vdwg.mxu0
  %v6641 = vlaneseq
  %v6642 = vshrl.u32 %v6641, 7
  %v6643 = vsub.s32 0, %v6642
  %v6644 = vrot.slane %v5452, %v6643
  %v6646 = vadd.f32 %v6242, %v6644
  %v6647 = vadd.f32 %v6247, %v6644
  %v6648 = vadd.f32 %v6252, %v6644
  %v6649 = vadd.f32 %v6257, %v6644
  %v6650 = vadd.f32 %v6262, %v6644
  %v6651 = vadd.f32 %v6267, %v6644
  %v6652 = vadd.f32 %v6272, %v6644
  %v6653 = vadd.f32 %v6277, %v6644
  %v6654 = vadd.f32 %v6282, %v6644
  %v6655 = vadd.f32 %v6287, %v6644
  %v6656 = vadd.f32 %v6292, %v6644
  %v6657 = vadd.f32 %v6297, %v6644
  %v6658 = vadd.f32 %v6302, %v6644
  %v6659 = vadd.f32 %v6307, %v6644
  %v6660 = vadd.f32 %v6312, %v6644
  %v6661 = vadd.f32 %v6317, %v6644
  %v6662 = vadd.f32 %v6322, %v6644
  %v6663 = vadd.f32 %v6327, %v6644
  %v6664 = vadd.f32 %v6332, %v6644
  %v6665 = vadd.f32 %v6337, %v6644
  %v6666 = vadd.f32 %v6342, %v6644
  %v6667 = vadd.f32 %v6347, %v6644
  %v6668 = vadd.f32 %v6352, %v6644
  %v6669 = vadd.f32 %v6357, %v6644
  %v6670 = vadd.f32 %v6362, %v6644
  %v6671 = vadd.f32 %v6367, %v6644
  %v6672 = vadd.f32 %v6372, %v6644
  %v6673 = vadd.f32 %v6377, %v6644
  %v6674 = vadd.f32 %v6382, %v6644
  %v6675 = vadd.f32 %v6387, %v6644
  %v6676 = vadd.f32 %v6392, %v6644
  %v6677 = vadd.f32 %v6397, %v6644
  %v6678 = vadd.f32 %v6402, %v6644
  %v6679 = vadd.f32 %v6407, %v6644
  %v6680 = vadd.f32 %v6412, %v6644
  %v6681 = vadd.f32 %v6417, %v6644
  %v6682 = vadd.f32 %v6422, %v6644
  %v6683 = vadd.f32 %v6427, %v6644
  %v6684 = vadd.f32 %v6432, %v6644
  %v6685 = vadd.f32 %v6437, %v6644
  %v6686 = vadd.f32 %v6442, %v6644
  %v6687 = vadd.f32 %v6447, %v6644
  %v6688 = vadd.f32 %v6452, %v6644
  %v6689 = vadd.f32 %v6457, %v6644
  %v6690 = vadd.f32 %v6462, %v6644
  %v6691 = vadd.f32 %v6467, %v6644
  %v6692 = vadd.f32 %v6472, %v6644
  %v6693 = vadd.f32 %v6477, %v6644
  %v6694 = vadd.f32 %v6482, %v6644
  %v6695 = vadd.f32 %v6487, %v6644
  %v6696 = vadd.f32 %v6492, %v6644
  %v6697 = vadd.f32 %v6497, %v6644
  %v6698 = vadd.f32 %v6502, %v6644
  %v6699 = vadd.f32 %v6507, %v6644
  %v6700 = vadd.f32 %v6512, %v6644
  %v6701 = vadd.f32 %v6517, %v6644
  %v6702 = vadd.f32 %v6522, %v6644
  %v6703 = vadd.f32 %v6527, %v6644
  %v6704 = vadd.f32 %v6532, %v6644
  %v6705 = vadd.f32 %v6537, %v6644
  %v6706 = vadd.f32 %v6542, %v6644
  %v6707 = vadd.f32 %v6547, %v6644
  %v6708 = vadd.f32 %v6552, %v6644
  %v6709 = vadd.f32 %v6557, %v6644
  %v6710 = vadd.f32 %v6562, %v6644
  %v6711 = vadd.f32 %v6567, %v6644
  %v6712 = vadd.f32 %v6572, %v6644
  %v6713 = vadd.f32 %v6577, %v6644
  %v6714 = vadd.f32 %v6582, %v6644
  %v6715 = vadd.f32 %v6587, %v6644
  %v6716 = vadd.f32 %v6592, %v6644
  %v6717 = vadd.f32 %v6597, %v6644
  %v6718 = vadd.f32 %v6602, %v6644
  %v6719 = vadd.f32 %v6607, %v6644
  %v6720 = vadd.f32 %v6612, %v6644
  %v6721 = vadd.f32 %v6617, %v6644
  %v6722 = vadd.f32 %v6622, %v6644
  %v6723 = vadd.f32 %v6627, %v6644
  %v6724 = vadd.f32 %v6632, %v6644
  %v6725 = vadd.f32 %v6637, %v6644
  %v6726 = vld [vmem:[%s14] sm:$0xff]
  %v6727 = vld [vmem:[%s14 + $0x8] sm:$0xff]
  %v6728 = vld [vmem:[%s14 + $0x10] sm:$0xff]
  %v6729 = vld [vmem:[%s14 + $0x18] sm:$0xff]
  %v6730 = vld [vmem:[%s14 + $0x20] sm:$0xff]
  %v6731 = vld [vmem:[%s14 + $0x28] sm:$0xff]
  %v6732 = vld [vmem:[%s14 + $0x30] sm:$0xff]
  %v6733 = vld [vmem:[%s14 + $0x38] sm:$0xff]
  %s6734 = scalar_lea.vmem %s14, 64
  %v6735 = vld [vmem:[%s6734] sm:$0xff]
  %v6736 = vld [vmem:[%s6734 + $0x8] sm:$0xff]
  %v6737 = vld [vmem:[%s6734 + $0x10] sm:$0xff]
  %v6738 = vld [vmem:[%s6734 + $0x18] sm:$0xff]
  %v6739 = vld [vmem:[%s6734 + $0x20] sm:$0xff]
  %v6740 = vld [vmem:[%s6734 + $0x28] sm:$0xff]
  %v6741 = vld [vmem:[%s6734 + $0x30] sm:$0xff]
  %v6742 = vld [vmem:[%s6734 + $0x38] sm:$0xff]
  %6743 = vmatprep.subr.mxu0 0.0
  %6744 = vmatpush1.msra.mxu0 0.0
  %6745 = vmatprep.subr.mxu0 0.0
  %6746 = vmatpush1.msra.mxu0 0.0
  %6747 = vmatprep.subr.mxu0 0.0
  %6748 = vmatpush1.msra.mxu0 0.0
  %6749 = vmatprep.subr.mxu0 0.0
  %6750 = vmatpush1.msra.mxu0 0.0
  %6751 = vmatprep.subr.mxu0 0.0
  %6752 = vmatpush1.msra.mxu0 0.0
  %6753 = vmatprep.subr.mxu0 0.0
  %6754 = vmatpush1.msra.mxu0 0.0
  %6755 = vmatprep.subr.mxu0 0.0
  %6756 = vmatpush1.msra.mxu0 0.0
  %6757 = vmatprep.subr.mxu0 0.0
  %6758 = vmatpush1.msra.mxu0 0.0
  %6759 = vmatprep.subr.mxu0 0.0
  %6760 = vmatpush1.msra.mxu0 %v6742
  %6761 = vmatprep.subr.mxu0 0.0
  %6762 = vmatpush1.msra.mxu0 %v6741
  %6763 = vmatprep.subr.mxu0 0.0
  %6764 = vmatpush1.msra.mxu0 %v6740
  %6765 = vmatprep.subr.mxu0 0.0
  %6766 = vmatpush1.msra.mxu0 %v6739
  %6767 = vmatprep.subr.mxu0 0.0
  %6768 = vmatpush1.msra.mxu0 %v6738
  %6769 = vmatprep.subr.mxu0 0.0
  %6770 = vmatpush1.msra.mxu0 %v6737
  %6771 = vmatprep.subr.mxu0 0.0
  %6772 = vmatpush1.msra.mxu0 %v6736
  %6773 = vmatprep.subr.mxu0 0.0
  %6774 = vmatpush1.msra.mxu0 %v6735
  %6775 = vmatprep.subr.mxu0 0.0
  %6776 = vmatpush2.msra.mxu0 0.0
  %6777 = vmatprep.subr.mxu0 0.0
  %6778 = vmatpush2.msra.mxu0 0.0
  %6779 = vmatprep.subr.mxu0 0.0
  %6780 = vmatpush2.msra.mxu0 0.0
  %6781 = vmatprep.subr.mxu0 0.0
  %6782 = vmatpush2.msra.mxu0 0.0
  %6783 = vmatprep.subr.mxu0 0.0
  %6784 = vmatpush2.msra.mxu0 0.0
  %6785 = vmatprep.subr.mxu0 0.0
  %6786 = vmatpush2.msra.mxu0 0.0
  %6787 = vmatprep.subr.mxu0 0.0
  %6788 = vmatpush2.msra.mxu0 0.0
  %6789 = vmatprep.subr.mxu0 0.0
  %6790 = vmatpush2.msra.mxu0 0.0
  %6791 = vmatprep.subr.mxu0 0.0
  %6792 = vmatpush2.msra.mxu0 0.0
  %6793 = vmatprep.subr.mxu0 0.0
  %6794 = vmatpush2.msra.mxu0 0.0
  %6795 = vmatprep.subr.mxu0 0.0
  %6796 = vmatpush2.msra.mxu0 0.0
  %6797 = vmatprep.subr.mxu0 0.0
  %6798 = vmatpush2.msra.mxu0 0.0
  %6799 = vmatprep.subr.mxu0 0.0
  %6800 = vmatpush2.msra.mxu0 0.0
  %6801 = vmatprep.subr.mxu0 0.0
  %6802 = vmatpush2.msra.mxu0 0.0
  %6803 = vmatprep.subr.mxu0 0.0
  %6804 = vmatpush2.msra.mxu0 0.0
  %6805 = vmatprep.subr.mxu0 0.0
  %6806 = vmatpush2.msra.mxu0 0.0
  %6807 = vmatprep.mubr.f32.mxu0 0.0
  %6808 = vmatmul.mubr.f32.gmra.mxu0 %v5519
  %v6809 = vpop.f32.mrf.mxu0
  %v6810 = vadd.f32 0.0, %v6809
  %v6811 = vpop.f32.mrf.mxu0
  %6812 = vmatprep.mubr.f32.mxu0 0.0
  %6813 = vmatmul.mubr.f32.gmra.mxu0 %v5522
  %v6814 = vpop.f32.mrf.mxu0
  %v6815 = vadd.f32 0.0, %v6814
  %v6816 = vpop.f32.mrf.mxu0
  %6817 = vmatprep.mubr.f32.mxu0 0.0
  %6818 = vmatmul.mubr.f32.gmra.mxu0 %v5525
  %v6819 = vpop.f32.mrf.mxu0
  %v6820 = vadd.f32 0.0, %v6819
  %v6821 = vpop.f32.mrf.mxu0
  %6822 = vmatprep.mubr.f32.mxu0 0.0
  %6823 = vmatmul.mubr.f32.gmra.mxu0 %v5528
  %v6824 = vpop.f32.mrf.mxu0
  %v6825 = vadd.f32 0.0, %v6824
  %v6826 = vpop.f32.mrf.mxu0
  %6827 = vmatprep.mubr.f32.mxu0 0.0
  %6828 = vmatmul.mubr.f32.gmra.mxu0 %v5531
  %v6829 = vpop.f32.mrf.mxu0
  %v6830 = vadd.f32 0.0, %v6829
  %v6831 = vpop.f32.mrf.mxu0
  %6832 = vmatprep.mubr.f32.mxu0 0.0
  %6833 = vmatmul.mubr.f32.gmra.mxu0 %v5534
  %v6834 = vpop.f32.mrf.mxu0
  %v6835 = vadd.f32 0.0, %v6834
  %v6836 = vpop.f32.mrf.mxu0
  %6837 = vmatprep.mubr.f32.mxu0 0.0
  %6838 = vmatmul.mubr.f32.gmra.mxu0 %v5537
  %v6839 = vpop.f32.mrf.mxu0
  %v6840 = vadd.f32 0.0, %v6839
  %v6841 = vpop.f32.mrf.mxu0
  %6842 = vmatprep.mubr.f32.mxu0 0.0
  %6843 = vmatmul.mubr.f32.gmra.mxu0 %v5540
  %v6844 = vpop.f32.mrf.mxu0
  %v6845 = vadd.f32 0.0, %v6844
  %v6846 = vpop.f32.mrf.mxu0
  %6847 = vmatprep.mubr.f32.mxu0 0.0
  %6848 = vmatmul.mubr.f32.gmra.mxu0 %v5543
  %v6849 = vpop.f32.mrf.mxu0
  %v6850 = vadd.f32 0.0, %v6849
  %v6851 = vpop.f32.mrf.mxu0
  %6852 = vmatprep.mubr.f32.mxu0 0.0
  %6853 = vmatmul.mubr.f32.gmra.mxu0 %v5546
  %v6854 = vpop.f32.mrf.mxu0
  %v6855 = vadd.f32 0.0, %v6854
  %v6856 = vpop.f32.mrf.mxu0
  %6857 = vmatprep.mubr.f32.mxu0 0.0
  %6858 = vmatmul.mubr.f32.gmra.mxu0 %v5549
  %v6859 = vpop.f32.mrf.mxu0
  %v6860 = vadd.f32 0.0, %v6859
  %v6861 = vpop.f32.mrf.mxu0
  %6862 = vmatprep.mubr.f32.mxu0 0.0
  %6863 = vmatmul.mubr.f32.gmra.mxu0 %v5552
  %v6864 = vpop.f32.mrf.mxu0
  %v6865 = vadd.f32 0.0, %v6864
  %v6866 = vpop.f32.mrf.mxu0
  %6867 = vmatprep.mubr.f32.mxu0 0.0
  %6868 = vmatmul.mubr.f32.gmra.mxu0 %v5555
  %v6869 = vpop.f32.mrf.mxu0
  %v6870 = vadd.f32 0.0, %v6869
  %v6871 = vpop.f32.mrf.mxu0
  %6872 = vmatprep.mubr.f32.mxu0 0.0
  %6873 = vmatmul.mubr.f32.gmra.mxu0 %v5558
  %v6874 = vpop.f32.mrf.mxu0
  %v6875 = vadd.f32 0.0, %v6874
  %v6876 = vpop.f32.mrf.mxu0
  %6877 = vmatprep.mubr.f32.mxu0 0.0
  %6878 = vmatmul.mubr.f32.gmra.mxu0 %v5561
  %v6879 = vpop.f32.mrf.mxu0
  %v6880 = vadd.f32 0.0, %v6879
  %v6881 = vpop.f32.mrf.mxu0
  %6882 = vmatprep.mubr.f32.mxu0 0.0
  %6883 = vmatmul.mubr.f32.gmra.mxu0 %v5564
  %v6884 = vpop.f32.mrf.mxu0
  %v6885 = vadd.f32 0.0, %v6884
  %v6886 = vpop.f32.mrf.mxu0
  %6887 = vmatprep.mubr.f32.mxu0 0.0
  %6888 = vmatmul.mubr.f32.gmra.mxu0 %v5567
  %v6889 = vpop.f32.mrf.mxu0
  %v6890 = vadd.f32 0.0, %v6889
  %v6891 = vpop.f32.mrf.mxu0
  %6892 = vmatprep.mubr.f32.mxu0 0.0
  %6893 = vmatmul.mubr.f32.gmra.mxu0 %v5570
  %v6894 = vpop.f32.mrf.mxu0
  %v6895 = vadd.f32 0.0, %v6894
  %v6896 = vpop.f32.mrf.mxu0
  %6897 = vmatprep.mubr.f32.mxu0 0.0
  %6898 = vmatmul.mubr.f32.gmra.mxu0 %v5573
  %v6899 = vpop.f32.mrf.mxu0
  %v6900 = vadd.f32 0.0, %v6899
  %v6901 = vpop.f32.mrf.mxu0
  %6902 = vmatprep.mubr.f32.mxu0 0.0
  %6903 = vmatmul.mubr.f32.gmra.mxu0 %v5576
  %v6904 = vpop.f32.mrf.mxu0
  %v6905 = vadd.f32 0.0, %v6904
  %v6906 = vpop.f32.mrf.mxu0
  %6907 = vmatprep.mubr.f32.mxu0 0.0
  %6908 = vmatmul.mubr.f32.gmra.mxu0 %v5579
  %v6909 = vpop.f32.mrf.mxu0
  %v6910 = vadd.f32 0.0, %v6909
  %v6911 = vpop.f32.mrf.mxu0
  %6912 = vmatprep.mubr.f32.mxu0 0.0
  %6913 = vmatmul.mubr.f32.gmra.mxu0 %v5582
  %v6914 = vpop.f32.mrf.mxu0
  %v6915 = vadd.f32 0.0, %v6914
  %v6916 = vpop.f32.mrf.mxu0
  %6917 = vmatprep.mubr.f32.mxu0 0.0
  %6918 = vmatmul.mubr.f32.gmra.mxu0 %v5585
  %v6919 = vpop.f32.mrf.mxu0
  %v6920 = vadd.f32 0.0, %v6919
  %v6921 = vpop.f32.mrf.mxu0
  %6922 = vmatprep.mubr.f32.mxu0 0.0
  %6923 = vmatmul.mubr.f32.gmra.mxu0 %v5588
  %v6924 = vpop.f32.mrf.mxu0
  %v6925 = vadd.f32 0.0, %v6924
  %v6926 = vpop.f32.mrf.mxu0
  %6927 = vmatprep.mubr.f32.mxu0 0.0
  %6928 = vmatmul.mubr.f32.gmra.mxu0 %v5591
  %v6929 = vpop.f32.mrf.mxu0
  %v6930 = vadd.f32 0.0, %v6929
  %v6931 = vpop.f32.mrf.mxu0
  %6932 = vmatprep.mubr.f32.mxu0 0.0
  %6933 = vmatmul.mubr.f32.gmra.mxu0 %v5594
  %v6934 = vpop.f32.mrf.mxu0
  %v6935 = vadd.f32 0.0, %v6934
  %v6936 = vpop.f32.mrf.mxu0
  %6937 = vmatprep.mubr.f32.mxu0 0.0
  %6938 = vmatmul.mubr.f32.gmra.mxu0 %v5597
  %v6939 = vpop.f32.mrf.mxu0
  %v6940 = vadd.f32 0.0, %v6939
  %v6941 = vpop.f32.mrf.mxu0
  %6942 = vmatprep.mubr.f32.mxu0 0.0
  %6943 = vmatmul.mubr.f32.gmra.mxu0 %v5600
  %v6944 = vpop.f32.mrf.mxu0
  %v6945 = vadd.f32 0.0, %v6944
  %v6946 = vpop.f32.mrf.mxu0
  %6947 = vmatprep.mubr.f32.mxu0 0.0
  %6948 = vmatmul.mubr.f32.gmra.mxu0 %v5603
  %v6949 = vpop.f32.mrf.mxu0
  %v6950 = vadd.f32 0.0, %v6949
  %v6951 = vpop.f32.mrf.mxu0
  %6952 = vmatprep.mubr.f32.mxu0 0.0
  %6953 = vmatmul.mubr.f32.gmra.mxu0 %v5606
  %v6954 = vpop.f32.mrf.mxu0
  %v6955 = vadd.f32 0.0, %v6954
  %v6956 = vpop.f32.mrf.mxu0
  %6957 = vmatprep.mubr.f32.mxu0 0.0
  %6958 = vmatmul.mubr.f32.gmra.mxu0 %v5609
  %v6959 = vpop.f32.mrf.mxu0
  %v6960 = vadd.f32 0.0, %v6959
  %v6961 = vpop.f32.mrf.mxu0
  %6962 = vmatprep.mubr.f32.mxu0 0.0
  %6963 = vmatmul.mubr.f32.gmra.mxu0 %v5612
  %v6964 = vpop.f32.mrf.mxu0
  %v6965 = vadd.f32 0.0, %v6964
  %v6966 = vpop.f32.mrf.mxu0
  %6967 = vmatprep.mubr.f32.mxu0 0.0
  %6968 = vmatmul.mubr.f32.gmra.mxu0 %v5615
  %v6969 = vpop.f32.mrf.mxu0
  %v6970 = vadd.f32 0.0, %v6969
  %v6971 = vpop.f32.mrf.mxu0
  %6972 = vmatprep.mubr.f32.mxu0 0.0
  %6973 = vmatmul.mubr.f32.gmra.mxu0 %v5618
  %v6974 = vpop.f32.mrf.mxu0
  %v6975 = vadd.f32 0.0, %v6974
  %v6976 = vpop.f32.mrf.mxu0
  %6977 = vmatprep.mubr.f32.mxu0 0.0
  %6978 = vmatmul.mubr.f32.gmra.mxu0 %v5621
  %v6979 = vpop.f32.mrf.mxu0
  %v6980 = vadd.f32 0.0, %v6979
  %v6981 = vpop.f32.mrf.mxu0
  %6982 = vmatprep.mubr.f32.mxu0 0.0
  %6983 = vmatmul.mubr.f32.gmra.mxu0 %v5624
  %v6984 = vpop.f32.mrf.mxu0
  %v6985 = vadd.f32 0.0, %v6984
  %v6986 = vpop.f32.mrf.mxu0
  %6987 = vmatprep.mubr.f32.mxu0 0.0
  %6988 = vmatmul.mubr.f32.gmra.mxu0 %v5627
  %v6989 = vpop.f32.mrf.mxu0
  %v6990 = vadd.f32 0.0, %v6989
  %v6991 = vpop.f32.mrf.mxu0
  %6992 = vmatprep.mubr.f32.mxu0 0.0
  %6993 = vmatmul.mubr.f32.gmra.mxu0 %v5630
  %v6994 = vpop.f32.mrf.mxu0
  %v6995 = vadd.f32 0.0, %v6994
  %v6996 = vpop.f32.mrf.mxu0
  %6997 = vmatprep.mubr.f32.mxu0 0.0
  %6998 = vmatmul.mubr.f32.gmra.mxu0 %v5633
  %v6999 = vpop.f32.mrf.mxu0
  %v7000 = vadd.f32 0.0, %v6999
  %v7001 = vpop.f32.mrf.mxu0
  %7002 = vmatprep.mubr.f32.mxu0 0.0
  %7003 = vmatmul.mubr.f32.gmra.mxu0 %v5636
  %v7004 = vpop.f32.mrf.mxu0
  %v7005 = vadd.f32 0.0, %v7004
  %v7006 = vpop.f32.mrf.mxu0
  %7007 = vmatprep.mubr.f32.mxu0 0.0
  %7008 = vmatmul.mubr.f32.gmra.mxu0 %v5639
  %v7009 = vpop.f32.mrf.mxu0
  %v7010 = vadd.f32 0.0, %v7009
  %v7011 = vpop.f32.mrf.mxu0
  %7012 = vmatprep.mubr.f32.mxu0 0.0
  %7013 = vmatmul.mubr.f32.gmra.mxu0 %v5642
  %v7014 = vpop.f32.mrf.mxu0
  %v7015 = vadd.f32 0.0, %v7014
  %v7016 = vpop.f32.mrf.mxu0
  %7017 = vmatprep.mubr.f32.mxu0 0.0
  %7018 = vmatmul.mubr.f32.gmra.mxu0 %v5645
  %v7019 = vpop.f32.mrf.mxu0
  %v7020 = vadd.f32 0.0, %v7019
  %v7021 = vpop.f32.mrf.mxu0
  %7022 = vmatprep.mubr.f32.mxu0 0.0
  %7023 = vmatmul.mubr.f32.gmra.mxu0 %v5648
  %v7024 = vpop.f32.mrf.mxu0
  %v7025 = vadd.f32 0.0, %v7024
  %v7026 = vpop.f32.mrf.mxu0
  %7027 = vmatprep.mubr.f32.mxu0 0.0
  %7028 = vmatmul.mubr.f32.gmra.mxu0 %v5651
  %v7029 = vpop.f32.mrf.mxu0
  %v7030 = vadd.f32 0.0, %v7029
  %v7031 = vpop.f32.mrf.mxu0
  %7032 = vmatprep.mubr.f32.mxu0 0.0
  %7033 = vmatmul.mubr.f32.gmra.mxu0 %v5654
  %v7034 = vpop.f32.mrf.mxu0
  %v7035 = vadd.f32 0.0, %v7034
  %v7036 = vpop.f32.mrf.mxu0
  %7037 = vmatprep.mubr.f32.mxu0 0.0
  %7038 = vmatmul.mubr.f32.gmra.mxu0 %v5657
  %v7039 = vpop.f32.mrf.mxu0
  %v7040 = vadd.f32 0.0, %v7039
  %v7041 = vpop.f32.mrf.mxu0
  %7042 = vmatprep.mubr.f32.mxu0 0.0
  %7043 = vmatmul.mubr.f32.gmra.mxu0 %v5660
  %v7044 = vpop.f32.mrf.mxu0
  %v7045 = vadd.f32 0.0, %v7044
  %v7046 = vpop.f32.mrf.mxu0
  %7047 = vmatprep.mubr.f32.mxu0 0.0
  %7048 = vmatmul.mubr.f32.gmra.mxu0 %v6128
  %v7049 = vpop.f32.mrf.mxu0
  %v7050 = vadd.f32 0.0, %v7049
  %v7051 = vpop.f32.mrf.mxu0
  %7052 = vmatprep.mubr.f32.mxu0 0.0
  %7053 = vmatmul.mubr.f32.gmra.mxu0 %v6131
  %v7054 = vpop.f32.mrf.mxu0
  %v7055 = vadd.f32 0.0, %v7054
  %v7056 = vpop.f32.mrf.mxu0
  %7057 = vmatprep.mubr.f32.mxu0 0.0
  %7058 = vmatmul.mubr.f32.gmra.mxu0 %v6134
  %v7059 = vpop.f32.mrf.mxu0
  %v7060 = vadd.f32 0.0, %v7059
  %v7061 = vpop.f32.mrf.mxu0
  %7062 = vmatprep.mubr.f32.mxu0 0.0
  %7063 = vmatmul.mubr.f32.gmra.mxu0 %v6137
  %v7064 = vpop.f32.mrf.mxu0
  %v7065 = vadd.f32 0.0, %v7064
  %v7066 = vpop.f32.mrf.mxu0
  %7067 = vmatprep.mubr.f32.mxu0 0.0
  %7068 = vmatmul.mubr.f32.gmra.mxu0 %v6140
  %v7069 = vpop.f32.mrf.mxu0
  %v7070 = vadd.f32 0.0, %v7069
  %v7071 = vpop.f32.mrf.mxu0
  %7072 = vmatprep.mubr.f32.mxu0 0.0
  %7073 = vmatmul.mubr.f32.gmra.mxu0 %v6143
  %v7074 = vpop.f32.mrf.mxu0
  %v7075 = vadd.f32 0.0, %v7074
  %v7076 = vpop.f32.mrf.mxu0
  %7077 = vmatprep.mubr.f32.mxu0 0.0
  %7078 = vmatmul.mubr.f32.gmra.mxu0 %v6146
  %v7079 = vpop.f32.mrf.mxu0
  %v7080 = vadd.f32 0.0, %v7079
  %v7081 = vpop.f32.mrf.mxu0
  %7082 = vmatprep.mubr.f32.mxu0 0.0
  %7083 = vmatmul.mubr.f32.gmra.mxu0 %v6149
  %v7084 = vpop.f32.mrf.mxu0
  %v7085 = vadd.f32 0.0, %v7084
  %v7086 = vpop.f32.mrf.mxu0
  %7087 = vmatprep.mubr.f32.mxu0 0.0
  %7088 = vmatmul.mubr.f32.gmra.mxu0 %v6152
  %v7089 = vpop.f32.mrf.mxu0
  %v7090 = vadd.f32 0.0, %v7089
  %v7091 = vpop.f32.mrf.mxu0
  %7092 = vmatprep.mubr.f32.mxu0 0.0
  %7093 = vmatmul.mubr.f32.gmra.mxu0 %v6155
  %v7094 = vpop.f32.mrf.mxu0
  %v7095 = vadd.f32 0.0, %v7094
  %v7096 = vpop.f32.mrf.mxu0
  %7097 = vmatprep.mubr.f32.mxu0 0.0
  %7098 = vmatmul.mubr.f32.gmra.mxu0 %v6158
  %v7099 = vpop.f32.mrf.mxu0
  %v7100 = vadd.f32 0.0, %v7099
  %v7101 = vpop.f32.mrf.mxu0
  %7102 = vmatprep.mubr.f32.mxu0 0.0
  %7103 = vmatmul.mubr.f32.gmra.mxu0 %v6161
  %v7104 = vpop.f32.mrf.mxu0
  %v7105 = vadd.f32 0.0, %v7104
  %v7106 = vpop.f32.mrf.mxu0
  %7107 = vmatprep.mubr.f32.mxu0 0.0
  %7108 = vmatmul.mubr.f32.gmra.mxu0 %v6164
  %v7109 = vpop.f32.mrf.mxu0
  %v7110 = vadd.f32 0.0, %v7109
  %v7111 = vpop.f32.mrf.mxu0
  %7112 = vmatprep.mubr.f32.mxu0 0.0
  %7113 = vmatmul.mubr.f32.gmra.mxu0 %v6167
  %v7114 = vpop.f32.mrf.mxu0
  %v7115 = vadd.f32 0.0, %v7114
  %v7116 = vpop.f32.mrf.mxu0
  %7117 = vmatprep.mubr.f32.mxu0 0.0
  %7118 = vmatmul.mubr.f32.gmra.mxu0 %v6170
  %v7119 = vpop.f32.mrf.mxu0
  %v7120 = vadd.f32 0.0, %v7119
  %v7121 = vpop.f32.mrf.mxu0
  %7122 = vmatprep.mubr.f32.mxu0 0.0
  %7123 = vmatmul.mubr.f32.gmra.mxu0 %v6173
  %v7124 = vpop.f32.mrf.mxu0
  %v7125 = vadd.f32 0.0, %v7124
  %v7126 = vpop.f32.mrf.mxu0
  %7127 = vmatprep.mubr.f32.mxu0 0.0
  %7128 = vmatmul.mubr.f32.gmra.mxu0 %v1422
  %v7129 = vpop.f32.mrf.mxu0
  %v7130 = vadd.f32 0.0, %v7129
  %v7131 = vpop.f32.mrf.mxu0
  %7132 = vmatprep.mubr.f32.mxu0 0.0
  %7133 = vmatmul.mubr.f32.gmra.mxu0 %v1422
  %v7134 = vpop.f32.mrf.mxu0
  %v7135 = vadd.f32 0.0, %v7134
  %v7136 = vpop.f32.mrf.mxu0
  %7137 = vmatprep.mubr.f32.mxu0 0.0
  %7138 = vmatmul.mubr.f32.gmra.mxu0 %v1422
  %v7139 = vpop.f32.mrf.mxu0
  %v7140 = vadd.f32 0.0, %v7139
  %v7141 = vpop.f32.mrf.mxu0
  %7142 = vmatprep.mubr.f32.mxu0 0.0
  %7143 = vmatmul.mubr.f32.gmra.mxu0 %v1422
  %v7144 = vpop.f32.mrf.mxu0
  %v7145 = vadd.f32 0.0, %v7144
  %v7146 = vpop.f32.mrf.mxu0
  %7147 = vmatprep.mubr.f32.mxu0 0.0
  %7148 = vmatmul.mubr.f32.gmra.mxu0 %v1422
  %v7149 = vpop.f32.mrf.mxu0
  %v7150 = vadd.f32 0.0, %v7149
  %v7151 = vpop.f32.mrf.mxu0
  %7152 = vmatprep.mubr.f32.mxu0 0.0
  %7153 = vmatmul.mubr.f32.gmra.mxu0 %v1422
  %v7154 = vpop.f32.mrf.mxu0
  %v7155 = vadd.f32 0.0, %v7154
  %v7156 = vpop.f32.mrf.mxu0
  %7157 = vmatprep.mubr.f32.mxu0 0.0
  %7158 = vmatmul.mubr.f32.gmra.mxu0 %v1422
  %v7159 = vpop.f32.mrf.mxu0
  %v7160 = vadd.f32 0.0, %v7159
  %v7161 = vpop.f32.mrf.mxu0
  %7162 = vmatprep.mubr.f32.mxu0 0.0
  %7163 = vmatmul.mubr.f32.gmra.mxu0 %v1422
  %v7164 = vpop.f32.mrf.mxu0
  %v7165 = vadd.f32 0.0, %v7164
  %v7166 = vpop.f32.mrf.mxu0
  %7167 = vmatprep.mubr.f32.mxu0 0.0
  %7168 = vmatmul.mubr.f32.gmra.mxu0 %v1422
  %v7169 = vpop.f32.mrf.mxu0
  %v7170 = vadd.f32 0.0, %v7169
  %v7171 = vpop.f32.mrf.mxu0
  %7172 = vmatprep.mubr.f32.mxu0 0.0
  %7173 = vmatmul.mubr.f32.gmra.mxu0 %v1422
  %v7174 = vpop.f32.mrf.mxu0
  %v7175 = vadd.f32 0.0, %v7174
  %v7176 = vpop.f32.mrf.mxu0
  %7177 = vmatprep.mubr.f32.mxu0 0.0
  %7178 = vmatmul.mubr.f32.gmra.mxu0 %v1422
  %v7179 = vpop.f32.mrf.mxu0
  %v7180 = vadd.f32 0.0, %v7179
  %v7181 = vpop.f32.mrf.mxu0
  %7182 = vmatprep.mubr.f32.mxu0 0.0
  %7183 = vmatmul.mubr.f32.gmra.mxu0 %v1422
  %v7184 = vpop.f32.mrf.mxu0
  %v7185 = vadd.f32 0.0, %v7184
  %v7186 = vpop.f32.mrf.mxu0
  %7187 = vmatprep.mubr.f32.mxu0 0.0
  %7188 = vmatmul.mubr.f32.gmra.mxu0 %v1422
  %v7189 = vpop.f32.mrf.mxu0
  %v7190 = vadd.f32 0.0, %v7189
  %v7191 = vpop.f32.mrf.mxu0
  %7192 = vmatprep.mubr.f32.mxu0 0.0
  %7193 = vmatmul.mubr.f32.gmra.mxu0 %v1422
  %v7194 = vpop.f32.mrf.mxu0
  %v7195 = vadd.f32 0.0, %v7194
  %v7196 = vpop.f32.mrf.mxu0
  %7197 = vmatprep.mubr.f32.mxu0 0.0
  %7198 = vmatmul.mubr.f32.gmra.mxu0 %v1422
  %v7199 = vpop.f32.mrf.mxu0
  %v7200 = vadd.f32 0.0, %v7199
  %v7201 = vpop.f32.mrf.mxu0
  %7202 = vmatprep.mubr.f32.mxu0 0.0
  %7203 = vmatmul.mubr.f32.gmra.mxu0 %v1422
  %v7204 = vpop.f32.mrf.mxu0
  %v7205 = vadd.f32 0.0, %v7204
  %v7206 = vpop.f32.mrf.mxu0
  %7207 = vdwg.mxu0
  %7208 = vmatprep.subr.mxu0 0.0
  %7209 = vmatpush1.msra.mxu0 0.0
  %7210 = vmatprep.subr.mxu0 0.0
  %7211 = vmatpush1.msra.mxu0 0.0
  %7212 = vmatprep.subr.mxu0 0.0
  %7213 = vmatpush1.msra.mxu0 0.0
  %7214 = vmatprep.subr.mxu0 0.0
  %7215 = vmatpush1.msra.mxu0 0.0
  %7216 = vmatprep.subr.mxu0 0.0
  %7217 = vmatpush1.msra.mxu0 0.0
  %7218 = vmatprep.subr.mxu0 0.0
  %7219 = vmatpush1.msra.mxu0 0.0
  %7220 = vmatprep.subr.mxu0 0.0
  %7221 = vmatpush1.msra.mxu0 0.0
  %7222 = vmatprep.subr.mxu0 0.0
  %7223 = vmatpush1.msra.mxu0 0.0
  %7224 = vmatprep.subr.mxu0 0.0
  %7225 = vmatpush1.msra.mxu0 %v6733
  %7226 = vmatprep.subr.mxu0 0.0
  %7227 = vmatpush1.msra.mxu0 %v6732
  %7228 = vmatprep.subr.mxu0 0.0
  %7229 = vmatpush1.msra.mxu0 %v6731
  %7230 = vmatprep.subr.mxu0 0.0
  %7231 = vmatpush1.msra.mxu0 %v6730
  %7232 = vmatprep.subr.mxu0 0.0
  %7233 = vmatpush1.msra.mxu0 %v6729
  %7234 = vmatprep.subr.mxu0 0.0
  %7235 = vmatpush1.msra.mxu0 %v6728
  %7236 = vmatprep.subr.mxu0 0.0
  %7237 = vmatpush1.msra.mxu0 %v6727
  %7238 = vmatprep.subr.mxu0 0.0
  %7239 = vmatpush1.msra.mxu0 %v6726
  %7240 = vmatprep.subr.mxu0 0.0
  %7241 = vmatpush2.msra.mxu0 0.0
  %7242 = vmatprep.subr.mxu0 0.0
  %7243 = vmatpush2.msra.mxu0 0.0
  %7244 = vmatprep.subr.mxu0 0.0
  %7245 = vmatpush2.msra.mxu0 0.0
  %7246 = vmatprep.subr.mxu0 0.0
  %7247 = vmatpush2.msra.mxu0 0.0
  %7248 = vmatprep.subr.mxu0 0.0
  %7249 = vmatpush2.msra.mxu0 0.0
  %7250 = vmatprep.subr.mxu0 0.0
  %7251 = vmatpush2.msra.mxu0 0.0
  %7252 = vmatprep.subr.mxu0 0.0
  %7253 = vmatpush2.msra.mxu0 0.0
  %7254 = vmatprep.subr.mxu0 0.0
  %7255 = vmatpush2.msra.mxu0 0.0
  %7256 = vmatprep.subr.mxu0 0.0
  %7257 = vmatpush2.msra.mxu0 0.0
  %7258 = vmatprep.subr.mxu0 0.0
  %7259 = vmatpush2.msra.mxu0 0.0
  %7260 = vmatprep.subr.mxu0 0.0
  %7261 = vmatpush2.msra.mxu0 0.0
  %7262 = vmatprep.subr.mxu0 0.0
  %7263 = vmatpush2.msra.mxu0 0.0
  %7264 = vmatprep.subr.mxu0 0.0
  %7265 = vmatpush2.msra.mxu0 0.0
  %7266 = vmatprep.subr.mxu0 0.0
  %7267 = vmatpush2.msra.mxu0 0.0
  %7268 = vmatprep.subr.mxu0 0.0
  %7269 = vmatpush2.msra.mxu0 0.0
  %7270 = vmatprep.subr.mxu0 0.0
  %7271 = vmatpush2.msra.mxu0 0.0
  %7272 = vmatprep.mubr.f32.mxu0 0.0
  %7273 = vmatmul.mubr.f32.gmra.mxu0 %v5471
  %v7274 = vpop.f32.mrf.mxu0
  %v7275 = vadd.f32 %v6810, %v7274
  %v7276 = vpop.f32.mrf.mxu0
  %7277 = vmatprep.mubr.f32.mxu0 0.0
  %7278 = vmatmul.mubr.f32.gmra.mxu0 %v5474
  %v7279 = vpop.f32.mrf.mxu0
  %v7280 = vadd.f32 %v6815, %v7279
  %v7281 = vpop.f32.mrf.mxu0
  %7282 = vmatprep.mubr.f32.mxu0 0.0
  %7283 = vmatmul.mubr.f32.gmra.mxu0 %v5477
  %v7284 = vpop.f32.mrf.mxu0
  %v7285 = vadd.f32 %v6820, %v7284
  %v7286 = vpop.f32.mrf.mxu0
  %7287 = vmatprep.mubr.f32.mxu0 0.0
  %7288 = vmatmul.mubr.f32.gmra.mxu0 %v5480
  %v7289 = vpop.f32.mrf.mxu0
  %v7290 = vadd.f32 %v6825, %v7289
  %v7291 = vpop.f32.mrf.mxu0
  %7292 = vmatprep.mubr.f32.mxu0 0.0
  %7293 = vmatmul.mubr.f32.gmra.mxu0 %v5483
  %v7294 = vpop.f32.mrf.mxu0
  %v7295 = vadd.f32 %v6830, %v7294
  %v7296 = vpop.f32.mrf.mxu0
  %7297 = vmatprep.mubr.f32.mxu0 0.0
  %7298 = vmatmul.mubr.f32.gmra.mxu0 %v5486
  %v7299 = vpop.f32.mrf.mxu0
  %v7300 = vadd.f32 %v6835, %v7299
  %v7301 = vpop.f32.mrf.mxu0
  %7302 = vmatprep.mubr.f32.mxu0 0.0
  %7303 = vmatmul.mubr.f32.gmra.mxu0 %v5489
  %v7304 = vpop.f32.mrf.mxu0
  %v7305 = vadd.f32 %v6840, %v7304
  %v7306 = vpop.f32.mrf.mxu0
  %7307 = vmatprep.mubr.f32.mxu0 0.0
  %7308 = vmatmul.mubr.f32.gmra.mxu0 %v5492
  %v7309 = vpop.f32.mrf.mxu0
  %v7310 = vadd.f32 %v6845, %v7309
  %v7311 = vpop.f32.mrf.mxu0
  %7312 = vmatprep.mubr.f32.mxu0 0.0
  %7313 = vmatmul.mubr.f32.gmra.mxu0 %v5495
  %v7314 = vpop.f32.mrf.mxu0
  %v7315 = vadd.f32 %v6850, %v7314
  %v7316 = vpop.f32.mrf.mxu0
  %7317 = vmatprep.mubr.f32.mxu0 0.0
  %7318 = vmatmul.mubr.f32.gmra.mxu0 %v5498
  %v7319 = vpop.f32.mrf.mxu0
  %v7320 = vadd.f32 %v6855, %v7319
  %v7321 = vpop.f32.mrf.mxu0
  %7322 = vmatprep.mubr.f32.mxu0 0.0
  %7323 = vmatmul.mubr.f32.gmra.mxu0 %v5501
  %v7324 = vpop.f32.mrf.mxu0
  %v7325 = vadd.f32 %v6860, %v7324
  %v7326 = vpop.f32.mrf.mxu0
  %7327 = vmatprep.mubr.f32.mxu0 0.0
  %7328 = vmatmul.mubr.f32.gmra.mxu0 %v5504
  %v7329 = vpop.f32.mrf.mxu0
  %v7330 = vadd.f32 %v6865, %v7329
  %v7331 = vpop.f32.mrf.mxu0
  %7332 = vmatprep.mubr.f32.mxu0 0.0
  %7333 = vmatmul.mubr.f32.gmra.mxu0 %v5507
  %v7334 = vpop.f32.mrf.mxu0
  %v7335 = vadd.f32 %v6870, %v7334
  %v7336 = vpop.f32.mrf.mxu0
  %7337 = vmatprep.mubr.f32.mxu0 0.0
  %7338 = vmatmul.mubr.f32.gmra.mxu0 %v5510
  %v7339 = vpop.f32.mrf.mxu0
  %v7340 = vadd.f32 %v6875, %v7339
  %v7341 = vpop.f32.mrf.mxu0
  %7342 = vmatprep.mubr.f32.mxu0 0.0
  %7343 = vmatmul.mubr.f32.gmra.mxu0 %v5513
  %v7344 = vpop.f32.mrf.mxu0
  %v7345 = vadd.f32 %v6880, %v7344
  %v7346 = vpop.f32.mrf.mxu0
  %7347 = vmatprep.mubr.f32.mxu0 0.0
  %7348 = vmatmul.mubr.f32.gmra.mxu0 %v5516
  %v7349 = vpop.f32.mrf.mxu0
  %v7350 = vadd.f32 %v6885, %v7349
  %v7351 = vpop.f32.mrf.mxu0
  %7352 = vmatprep.mubr.f32.mxu0 0.0
  %7353 = vmatmul.mubr.f32.gmra.mxu0 %v5519
  %v7354 = vpop.f32.mrf.mxu0
  %v7355 = vadd.f32 %v6890, %v7354
  %v7356 = vpop.f32.mrf.mxu0
  %7357 = vmatprep.mubr.f32.mxu0 0.0
  %7358 = vmatmul.mubr.f32.gmra.mxu0 %v5522
  %v7359 = vpop.f32.mrf.mxu0
  %v7360 = vadd.f32 %v6895, %v7359
  %v7361 = vpop.f32.mrf.mxu0
  %7362 = vmatprep.mubr.f32.mxu0 0.0
  %7363 = vmatmul.mubr.f32.gmra.mxu0 %v5525
  %v7364 = vpop.f32.mrf.mxu0
  %v7365 = vadd.f32 %v6900, %v7364
  %v7366 = vpop.f32.mrf.mxu0
  %7367 = vmatprep.mubr.f32.mxu0 0.0
  %7368 = vmatmul.mubr.f32.gmra.mxu0 %v5528
  %v7369 = vpop.f32.mrf.mxu0
  %v7370 = vadd.f32 %v6905, %v7369
  %v7371 = vpop.f32.mrf.mxu0
  %7372 = vmatprep.mubr.f32.mxu0 0.0
  %7373 = vmatmul.mubr.f32.gmra.mxu0 %v5531
  %v7374 = vpop.f32.mrf.mxu0
  %v7375 = vadd.f32 %v6910, %v7374
  %v7376 = vpop.f32.mrf.mxu0
  %7377 = vmatprep.mubr.f32.mxu0 0.0
  %7378 = vmatmul.mubr.f32.gmra.mxu0 %v5534
  %v7379 = vpop.f32.mrf.mxu0
  %v7380 = vadd.f32 %v6915, %v7379
  %v7381 = vpop.f32.mrf.mxu0
  %7382 = vmatprep.mubr.f32.mxu0 0.0
  %7383 = vmatmul.mubr.f32.gmra.mxu0 %v5537
  %v7384 = vpop.f32.mrf.mxu0
  %v7385 = vadd.f32 %v6920, %v7384
  %v7386 = vpop.f32.mrf.mxu0
  %7387 = vmatprep.mubr.f32.mxu0 0.0
  %7388 = vmatmul.mubr.f32.gmra.mxu0 %v5540
  %v7389 = vpop.f32.mrf.mxu0
  %v7390 = vadd.f32 %v6925, %v7389
  %v7391 = vpop.f32.mrf.mxu0
  %7392 = vmatprep.mubr.f32.mxu0 0.0
  %7393 = vmatmul.mubr.f32.gmra.mxu0 %v5543
  %v7394 = vpop.f32.mrf.mxu0
  %v7395 = vadd.f32 %v6930, %v7394
  %v7396 = vpop.f32.mrf.mxu0
  %7397 = vmatprep.mubr.f32.mxu0 0.0
  %7398 = vmatmul.mubr.f32.gmra.mxu0 %v5546
  %v7399 = vpop.f32.mrf.mxu0
  %v7400 = vadd.f32 %v6935, %v7399
  %v7401 = vpop.f32.mrf.mxu0
  %7402 = vmatprep.mubr.f32.mxu0 0.0
  %7403 = vmatmul.mubr.f32.gmra.mxu0 %v5549
  %v7404 = vpop.f32.mrf.mxu0
  %v7405 = vadd.f32 %v6940, %v7404
  %v7406 = vpop.f32.mrf.mxu0
  %7407 = vmatprep.mubr.f32.mxu0 0.0
  %7408 = vmatmul.mubr.f32.gmra.mxu0 %v5552
  %v7409 = vpop.f32.mrf.mxu0
  %v7410 = vadd.f32 %v6945, %v7409
  %v7411 = vpop.f32.mrf.mxu0
  %7412 = vmatprep.mubr.f32.mxu0 0.0
  %7413 = vmatmul.mubr.f32.gmra.mxu0 %v5555
  %v7414 = vpop.f32.mrf.mxu0
  %v7415 = vadd.f32 %v6950, %v7414
  %v7416 = vpop.f32.mrf.mxu0
  %7417 = vmatprep.mubr.f32.mxu0 0.0
  %7418 = vmatmul.mubr.f32.gmra.mxu0 %v5558
  %v7419 = vpop.f32.mrf.mxu0
  %v7420 = vadd.f32 %v6955, %v7419
  %v7421 = vpop.f32.mrf.mxu0
  %7422 = vmatprep.mubr.f32.mxu0 0.0
  %7423 = vmatmul.mubr.f32.gmra.mxu0 %v5561
  %v7424 = vpop.f32.mrf.mxu0
  %v7425 = vadd.f32 %v6960, %v7424
  %v7426 = vpop.f32.mrf.mxu0
  %7427 = vmatprep.mubr.f32.mxu0 0.0
  %7428 = vmatmul.mubr.f32.gmra.mxu0 %v5564
  %v7429 = vpop.f32.mrf.mxu0
  %v7430 = vadd.f32 %v6965, %v7429
  %v7431 = vpop.f32.mrf.mxu0
  %7432 = vmatprep.mubr.f32.mxu0 0.0
  %7433 = vmatmul.mubr.f32.gmra.mxu0 %v5567
  %v7434 = vpop.f32.mrf.mxu0
  %v7435 = vadd.f32 %v6970, %v7434
  %v7436 = vpop.f32.mrf.mxu0
  %7437 = vmatprep.mubr.f32.mxu0 0.0
  %7438 = vmatmul.mubr.f32.gmra.mxu0 %v5570
  %v7439 = vpop.f32.mrf.mxu0
  %v7440 = vadd.f32 %v6975, %v7439
  %v7441 = vpop.f32.mrf.mxu0
  %7442 = vmatprep.mubr.f32.mxu0 0.0
  %7443 = vmatmul.mubr.f32.gmra.mxu0 %v5573
  %v7444 = vpop.f32.mrf.mxu0
  %v7445 = vadd.f32 %v6980, %v7444
  %v7446 = vpop.f32.mrf.mxu0
  %7447 = vmatprep.mubr.f32.mxu0 0.0
  %7448 = vmatmul.mubr.f32.gmra.mxu0 %v5576
  %v7449 = vpop.f32.mrf.mxu0
  %v7450 = vadd.f32 %v6985, %v7449
  %v7451 = vpop.f32.mrf.mxu0
  %7452 = vmatprep.mubr.f32.mxu0 0.0
  %7453 = vmatmul.mubr.f32.gmra.mxu0 %v5579
  %v7454 = vpop.f32.mrf.mxu0
  %v7455 = vadd.f32 %v6990, %v7454
  %v7456 = vpop.f32.mrf.mxu0
  %7457 = vmatprep.mubr.f32.mxu0 0.0
  %7458 = vmatmul.mubr.f32.gmra.mxu0 %v5582
  %v7459 = vpop.f32.mrf.mxu0
  %v7460 = vadd.f32 %v6995, %v7459
  %v7461 = vpop.f32.mrf.mxu0
  %7462 = vmatprep.mubr.f32.mxu0 0.0
  %7463 = vmatmul.mubr.f32.gmra.mxu0 %v5585
  %v7464 = vpop.f32.mrf.mxu0
  %v7465 = vadd.f32 %v7000, %v7464
  %v7466 = vpop.f32.mrf.mxu0
  %7467 = vmatprep.mubr.f32.mxu0 0.0
  %7468 = vmatmul.mubr.f32.gmra.mxu0 %v5588
  %v7469 = vpop.f32.mrf.mxu0
  %v7470 = vadd.f32 %v7005, %v7469
  %v7471 = vpop.f32.mrf.mxu0
  %7472 = vmatprep.mubr.f32.mxu0 0.0
  %7473 = vmatmul.mubr.f32.gmra.mxu0 %v5591
  %v7474 = vpop.f32.mrf.mxu0
  %v7475 = vadd.f32 %v7010, %v7474
  %v7476 = vpop.f32.mrf.mxu0
  %7477 = vmatprep.mubr.f32.mxu0 0.0
  %7478 = vmatmul.mubr.f32.gmra.mxu0 %v5594
  %v7479 = vpop.f32.mrf.mxu0
  %v7480 = vadd.f32 %v7015, %v7479
  %v7481 = vpop.f32.mrf.mxu0
  %7482 = vmatprep.mubr.f32.mxu0 0.0
  %7483 = vmatmul.mubr.f32.gmra.mxu0 %v5597
  %v7484 = vpop.f32.mrf.mxu0
  %v7485 = vadd.f32 %v7020, %v7484
  %v7486 = vpop.f32.mrf.mxu0
  %7487 = vmatprep.mubr.f32.mxu0 0.0
  %7488 = vmatmul.mubr.f32.gmra.mxu0 %v5600
  %v7489 = vpop.f32.mrf.mxu0
  %v7490 = vadd.f32 %v7025, %v7489
  %v7491 = vpop.f32.mrf.mxu0
  %7492 = vmatprep.mubr.f32.mxu0 0.0
  %7493 = vmatmul.mubr.f32.gmra.mxu0 %v5603
  %v7494 = vpop.f32.mrf.mxu0
  %v7495 = vadd.f32 %v7030, %v7494
  %v7496 = vpop.f32.mrf.mxu0
  %7497 = vmatprep.mubr.f32.mxu0 0.0
  %7498 = vmatmul.mubr.f32.gmra.mxu0 %v5606
  %v7499 = vpop.f32.mrf.mxu0
  %v7500 = vadd.f32 %v7035, %v7499
  %v7501 = vpop.f32.mrf.mxu0
  %7502 = vmatprep.mubr.f32.mxu0 0.0
  %7503 = vmatmul.mubr.f32.gmra.mxu0 %v5609
  %v7504 = vpop.f32.mrf.mxu0
  %v7505 = vadd.f32 %v7040, %v7504
  %v7506 = vpop.f32.mrf.mxu0
  %7507 = vmatprep.mubr.f32.mxu0 0.0
  %7508 = vmatmul.mubr.f32.gmra.mxu0 %v5612
  %v7509 = vpop.f32.mrf.mxu0
  %v7510 = vadd.f32 %v7045, %v7509
  %v7511 = vpop.f32.mrf.mxu0
  %7512 = vmatprep.mubr.f32.mxu0 0.0
  %7513 = vmatmul.mubr.f32.gmra.mxu0 %v5615
  %v7514 = vpop.f32.mrf.mxu0
  %v7515 = vadd.f32 %v7050, %v7514
  %v7516 = vpop.f32.mrf.mxu0
  %7517 = vmatprep.mubr.f32.mxu0 0.0
  %7518 = vmatmul.mubr.f32.gmra.mxu0 %v5618
  %v7519 = vpop.f32.mrf.mxu0
  %v7520 = vadd.f32 %v7055, %v7519
  %v7521 = vpop.f32.mrf.mxu0
  %7522 = vmatprep.mubr.f32.mxu0 0.0
  %7523 = vmatmul.mubr.f32.gmra.mxu0 %v5621
  %v7524 = vpop.f32.mrf.mxu0
  %v7525 = vadd.f32 %v7060, %v7524
  %v7526 = vpop.f32.mrf.mxu0
  %7527 = vmatprep.mubr.f32.mxu0 0.0
  %7528 = vmatmul.mubr.f32.gmra.mxu0 %v5624
  %v7529 = vpop.f32.mrf.mxu0
  %v7530 = vadd.f32 %v7065, %v7529
  %v7531 = vpop.f32.mrf.mxu0
  %7532 = vmatprep.mubr.f32.mxu0 0.0
  %7533 = vmatmul.mubr.f32.gmra.mxu0 %v5627
  %v7534 = vpop.f32.mrf.mxu0
  %v7535 = vadd.f32 %v7070, %v7534
  %v7536 = vpop.f32.mrf.mxu0
  %7537 = vmatprep.mubr.f32.mxu0 0.0
  %7538 = vmatmul.mubr.f32.gmra.mxu0 %v5630
  %v7539 = vpop.f32.mrf.mxu0
  %v7540 = vadd.f32 %v7075, %v7539
  %v7541 = vpop.f32.mrf.mxu0
  %7542 = vmatprep.mubr.f32.mxu0 0.0
  %7543 = vmatmul.mubr.f32.gmra.mxu0 %v5633
  %v7544 = vpop.f32.mrf.mxu0
  %v7545 = vadd.f32 %v7080, %v7544
  %v7546 = vpop.f32.mrf.mxu0
  %7547 = vmatprep.mubr.f32.mxu0 0.0
  %7548 = vmatmul.mubr.f32.gmra.mxu0 %v5636
  %v7549 = vpop.f32.mrf.mxu0
  %v7550 = vadd.f32 %v7085, %v7549
  %v7551 = vpop.f32.mrf.mxu0
  %7552 = vmatprep.mubr.f32.mxu0 0.0
  %7553 = vmatmul.mubr.f32.gmra.mxu0 %v5639
  %v7554 = vpop.f32.mrf.mxu0
  %v7555 = vadd.f32 %v7090, %v7554
  %v7556 = vpop.f32.mrf.mxu0
  %7557 = vmatprep.mubr.f32.mxu0 0.0
  %7558 = vmatmul.mubr.f32.gmra.mxu0 %v5642
  %v7559 = vpop.f32.mrf.mxu0
  %v7560 = vadd.f32 %v7095, %v7559
  %v7561 = vpop.f32.mrf.mxu0
  %7562 = vmatprep.mubr.f32.mxu0 0.0
  %7563 = vmatmul.mubr.f32.gmra.mxu0 %v5645
  %v7564 = vpop.f32.mrf.mxu0
  %v7565 = vadd.f32 %v7100, %v7564
  %v7566 = vpop.f32.mrf.mxu0
  %7567 = vmatprep.mubr.f32.mxu0 0.0
  %7568 = vmatmul.mubr.f32.gmra.mxu0 %v5648
  %v7569 = vpop.f32.mrf.mxu0
  %v7570 = vadd.f32 %v7105, %v7569
  %v7571 = vpop.f32.mrf.mxu0
  %7572 = vmatprep.mubr.f32.mxu0 0.0
  %7573 = vmatmul.mubr.f32.gmra.mxu0 %v5651
  %v7574 = vpop.f32.mrf.mxu0
  %v7575 = vadd.f32 %v7110, %v7574
  %v7576 = vpop.f32.mrf.mxu0
  %7577 = vmatprep.mubr.f32.mxu0 0.0
  %7578 = vmatmul.mubr.f32.gmra.mxu0 %v5654
  %v7579 = vpop.f32.mrf.mxu0
  %v7580 = vadd.f32 %v7115, %v7579
  %v7581 = vpop.f32.mrf.mxu0
  %7582 = vmatprep.mubr.f32.mxu0 0.0
  %7583 = vmatmul.mubr.f32.gmra.mxu0 %v5657
  %v7584 = vpop.f32.mrf.mxu0
  %v7585 = vadd.f32 %v7120, %v7584
  %v7586 = vpop.f32.mrf.mxu0
  %7587 = vmatprep.mubr.f32.mxu0 0.0
  %7588 = vmatmul.mubr.f32.gmra.mxu0 %v5660
  %v7589 = vpop.f32.mrf.mxu0
  %v7590 = vadd.f32 %v7125, %v7589
  %v7591 = vpop.f32.mrf.mxu0
  %7592 = vmatprep.mubr.f32.mxu0 0.0
  %7593 = vmatmul.mubr.f32.gmra.mxu0 %v6128
  %v7594 = vpop.f32.mrf.mxu0
  %v7595 = vadd.f32 %v7130, %v7594
  %v7596 = vpop.f32.mrf.mxu0
  %7597 = vmatprep.mubr.f32.mxu0 0.0
  %7598 = vmatmul.mubr.f32.gmra.mxu0 %v6131
  %v7599 = vpop.f32.mrf.mxu0
  %v7600 = vadd.f32 %v7135, %v7599
  %v7601 = vpop.f32.mrf.mxu0
  %7602 = vmatprep.mubr.f32.mxu0 0.0
  %7603 = vmatmul.mubr.f32.gmra.mxu0 %v6134
  %v7604 = vpop.f32.mrf.mxu0
  %v7605 = vadd.f32 %v7140, %v7604
  %v7606 = vpop.f32.mrf.mxu0
  %7607 = vmatprep.mubr.f32.mxu0 0.0
  %7608 = vmatmul.mubr.f32.gmra.mxu0 %v6137
  %v7609 = vpop.f32.mrf.mxu0
  %v7610 = vadd.f32 %v7145, %v7609
  %v7611 = vpop.f32.mrf.mxu0
  %7612 = vmatprep.mubr.f32.mxu0 0.0
  %7613 = vmatmul.mubr.f32.gmra.mxu0 %v6140
  %v7614 = vpop.f32.mrf.mxu0
  %v7615 = vadd.f32 %v7150, %v7614
  %v7616 = vpop.f32.mrf.mxu0
  %7617 = vmatprep.mubr.f32.mxu0 0.0
  %7618 = vmatmul.mubr.f32.gmra.mxu0 %v6143
  %v7619 = vpop.f32.mrf.mxu0
  %v7620 = vadd.f32 %v7155, %v7619
  %v7621 = vpop.f32.mrf.mxu0
  %7622 = vmatprep.mubr.f32.mxu0 0.0
  %7623 = vmatmul.mubr.f32.gmra.mxu0 %v6146
  %v7624 = vpop.f32.mrf.mxu0
  %v7625 = vadd.f32 %v7160, %v7624
  %v7626 = vpop.f32.mrf.mxu0
  %7627 = vmatprep.mubr.f32.mxu0 0.0
  %7628 = vmatmul.mubr.f32.gmra.mxu0 %v6149
  %v7629 = vpop.f32.mrf.mxu0
  %v7630 = vadd.f32 %v7165, %v7629
  %v7631 = vpop.f32.mrf.mxu0
  %7632 = vmatprep.mubr.f32.mxu0 0.0
  %7633 = vmatmul.mubr.f32.gmra.mxu0 %v6152
  %v7634 = vpop.f32.mrf.mxu0
  %v7635 = vadd.f32 %v7170, %v7634
  %v7636 = vpop.f32.mrf.mxu0
  %7637 = vmatprep.mubr.f32.mxu0 0.0
  %7638 = vmatmul.mubr.f32.gmra.mxu0 %v6155
  %v7639 = vpop.f32.mrf.mxu0
  %v7640 = vadd.f32 %v7175, %v7639
  %v7641 = vpop.f32.mrf.mxu0
  %7642 = vmatprep.mubr.f32.mxu0 0.0
  %7643 = vmatmul.mubr.f32.gmra.mxu0 %v6158
  %v7644 = vpop.f32.mrf.mxu0
  %v7645 = vadd.f32 %v7180, %v7644
  %v7646 = vpop.f32.mrf.mxu0
  %7647 = vmatprep.mubr.f32.mxu0 0.0
  %7648 = vmatmul.mubr.f32.gmra.mxu0 %v6161
  %v7649 = vpop.f32.mrf.mxu0
  %v7650 = vadd.f32 %v7185, %v7649
  %v7651 = vpop.f32.mrf.mxu0
  %7652 = vmatprep.mubr.f32.mxu0 0.0
  %7653 = vmatmul.mubr.f32.gmra.mxu0 %v6164
  %v7654 = vpop.f32.mrf.mxu0
  %v7655 = vadd.f32 %v7190, %v7654
  %v7656 = vpop.f32.mrf.mxu0
  %7657 = vmatprep.mubr.f32.mxu0 0.0
  %7658 = vmatmul.mubr.f32.gmra.mxu0 %v6167
  %v7659 = vpop.f32.mrf.mxu0
  %v7660 = vadd.f32 %v7195, %v7659
  %v7661 = vpop.f32.mrf.mxu0
  %7662 = vmatprep.mubr.f32.mxu0 0.0
  %7663 = vmatmul.mubr.f32.gmra.mxu0 %v6170
  %v7664 = vpop.f32.mrf.mxu0
  %v7665 = vadd.f32 %v7200, %v7664
  %v7666 = vpop.f32.mrf.mxu0
  %7667 = vmatprep.mubr.f32.mxu0 0.0
  %7668 = vmatmul.mubr.f32.gmra.mxu0 %v6173
  %v7669 = vpop.f32.mrf.mxu0
  %v7670 = vadd.f32 %v7205, %v7669
  %v7671 = vpop.f32.mrf.mxu0
  %7672 = vdwg.mxu0
  %v7673 = vadd.f32 %v7275, %v6644
  %v7674 = vadd.f32 %v7280, %v6644
  %v7675 = vadd.f32 %v7285, %v6644
  %v7676 = vadd.f32 %v7290, %v6644
  %v7677 = vadd.f32 %v7295, %v6644
  %v7678 = vadd.f32 %v7300, %v6644
  %v7679 = vadd.f32 %v7305, %v6644
  %v7680 = vadd.f32 %v7310, %v6644
  %v7681 = vadd.f32 %v7315, %v6644
  %v7682 = vadd.f32 %v7320, %v6644
  %v7683 = vadd.f32 %v7325, %v6644
  %v7684 = vadd.f32 %v7330, %v6644
  %v7685 = vadd.f32 %v7335, %v6644
  %v7686 = vadd.f32 %v7340, %v6644
  %v7687 = vadd.f32 %v7345, %v6644
  %v7688 = vadd.f32 %v7350, %v6644
  %v7689 = vadd.f32 %v7355, %v6644
  %v7690 = vadd.f32 %v7360, %v6644
  %v7691 = vadd.f32 %v7365, %v6644
  %v7692 = vadd.f32 %v7370, %v6644
  %v7693 = vadd.f32 %v7375, %v6644
  %v7694 = vadd.f32 %v7380, %v6644
  %v7695 = vadd.f32 %v7385, %v6644
  %v7696 = vadd.f32 %v7390, %v6644
  %v7697 = vadd.f32 %v7395, %v6644
  %v7698 = vadd.f32 %v7400, %v6644
  %v7699 = vadd.f32 %v7405, %v6644
  %v7700 = vadd.f32 %v7410, %v6644
  %v7701 = vadd.f32 %v7415, %v6644
  %v7702 = vadd.f32 %v7420, %v6644
  %v7703 = vadd.f32 %v7425, %v6644
  %v7704 = vadd.f32 %v7430, %v6644
  %v7705 = vadd.f32 %v7435, %v6644
  %v7706 = vadd.f32 %v7440, %v6644
  %v7707 = vadd.f32 %v7445, %v6644
  %v7708 = vadd.f32 %v7450, %v6644
  %v7709 = vadd.f32 %v7455, %v6644
  %v7710 = vadd.f32 %v7460, %v6644
  %v7711 = vadd.f32 %v7465, %v6644
  %v7712 = vadd.f32 %v7470, %v6644
  %v7713 = vadd.f32 %v7475, %v6644
  %v7714 = vadd.f32 %v7480, %v6644
  %v7715 = vadd.f32 %v7485, %v6644
  %v7716 = vadd.f32 %v7490, %v6644
  %v7717 = vadd.f32 %v7495, %v6644
  %v7718 = vadd.f32 %v7500, %v6644
  %v7719 = vadd.f32 %v7505, %v6644
  %v7720 = vadd.f32 %v7510, %v6644
  %v7721 = vadd.f32 %v7515, %v6644
  %v7722 = vadd.f32 %v7520, %v6644
  %v7723 = vadd.f32 %v7525, %v6644
  %v7724 = vadd.f32 %v7530, %v6644
  %v7725 = vadd.f32 %v7535, %v6644
  %v7726 = vadd.f32 %v7540, %v6644
  %v7727 = vadd.f32 %v7545, %v6644
  %v7728 = vadd.f32 %v7550, %v6644
  %v7729 = vadd.f32 %v7555, %v6644
  %v7730 = vadd.f32 %v7560, %v6644
  %v7731 = vadd.f32 %v7565, %v6644
  %v7732 = vadd.f32 %v7570, %v6644
  %v7733 = vadd.f32 %v7575, %v6644
  %v7734 = vadd.f32 %v7580, %v6644
  %v7735 = vadd.f32 %v7585, %v6644
  %v7736 = vadd.f32 %v7590, %v6644
  %v7737 = vadd.f32 %v7595, %v6644
  %v7738 = vadd.f32 %v7600, %v6644
  %v7739 = vadd.f32 %v7605, %v6644
  %v7740 = vadd.f32 %v7610, %v6644
  %v7741 = vadd.f32 %v7615, %v6644
  %v7742 = vadd.f32 %v7620, %v6644
  %v7743 = vadd.f32 %v7625, %v6644
  %v7744 = vadd.f32 %v7630, %v6644
  %v7745 = vadd.f32 %v7635, %v6644
  %v7746 = vadd.f32 %v7640, %v6644
  %v7747 = vadd.f32 %v7645, %v6644
  %v7748 = vadd.f32 %v7650, %v6644
  %v7749 = vadd.f32 %v7655, %v6644
  %v7750 = vadd.f32 %v7660, %v6644
  %v7751 = vadd.f32 %v7665, %v6644
  %v7752 = vadd.f32 %v7670, %v6644
  %7753 = vxpose.xlu0.b32.start [1/16] %v6646, 128
  %7754 = vxpose.xlu0.b32.cont [2/16] %v6647, 128
  %7755 = vxpose.xlu0.b32.cont [3/16] %v6648, 128
  %7756 = vxpose.xlu0.b32.cont [4/16] %v6649, 128
  %7757 = vxpose.xlu0.b32.cont [5/16] %v6650, 128
  %7758 = vxpose.xlu0.b32.cont [6/16] %v6651, 128
  %7759 = vxpose.xlu0.b32.cont [7/16] %v6652, 128
  %7760 = vxpose.xlu0.b32.cont [8/16] %v6653, 128
  %7761 = vxpose.xlu0.b32.cont [9/16] %v6654, 128
  %7762 = vxpose.xlu0.b32.cont [10/16] %v6655, 128
  %7763 = vxpose.xlu0.b32.cont [11/16] %v6656, 128
  %7764 = vxpose.xlu0.b32.cont [12/16] %v6657, 128
  %7765 = vxpose.xlu0.b32.cont [13/16] %v6658, 128
  %7766 = vxpose.xlu0.b32.cont [14/16] %v6659, 128
  %7767 = vxpose.xlu0.b32.cont [15/16] %v6660, 128
  %7768 = vxpose.xlu0.b32.end [16/16] %v6661, 128
  %v7769 = vpop.trf.xlu0
  %v7770 = vpop.trf.xlu0
  %v7771 = vpop.trf.xlu0
  %v7772 = vpop.trf.xlu0
  %v7773 = vpop.trf.xlu0
  %v7774 = vpop.trf.xlu0
  %v7775 = vpop.trf.xlu0
  %v7776 = vpop.trf.xlu0
  %v7777 = vpop.trf.xlu0
  %v7778 = vpop.trf.xlu0
  %v7779 = vpop.trf.xlu0
  %v7780 = vpop.trf.xlu0
  %v7781 = vpop.trf.xlu0
  %v7782 = vpop.trf.xlu0
  %v7783 = vpop.trf.xlu0
  %v7784 = vpop.trf.xlu0
  %7785 = vxpose.xlu0.b32.start [1/16] %v6662, 128
  %7786 = vxpose.xlu0.b32.cont [2/16] %v6663, 128
  %7787 = vxpose.xlu0.b32.cont [3/16] %v6664, 128
  %7788 = vxpose.xlu0.b32.cont [4/16] %v6665, 128
  %7789 = vxpose.xlu0.b32.cont [5/16] %v6666, 128
  %7790 = vxpose.xlu0.b32.cont [6/16] %v6667, 128
  %7791 = vxpose.xlu0.b32.cont [7/16] %v6668, 128
  %7792 = vxpose.xlu0.b32.cont [8/16] %v6669, 128
  %7793 = vxpose.xlu0.b32.cont [9/16] %v6670, 128
  %7794 = vxpose.xlu0.b32.cont [10/16] %v6671, 128
  %7795 = vxpose.xlu0.b32.cont [11/16] %v6672, 128
  %7796 = vxpose.xlu0.b32.cont [12/16] %v6673, 128
  %7797 = vxpose.xlu0.b32.cont [13/16] %v6674, 128
  %7798 = vxpose.xlu0.b32.cont [14/16] %v6675, 128
  %7799 = vxpose.xlu0.b32.cont [15/16] %v6676, 128
  %7800 = vxpose.xlu0.b32.end [16/16] %v6677, 128
  %v7801 = vpop.trf.xlu0
  %v7802 = vpop.trf.xlu0
  %v7803 = vpop.trf.xlu0
  %v7804 = vpop.trf.xlu0
  %v7805 = vpop.trf.xlu0
  %v7806 = vpop.trf.xlu0
  %v7807 = vpop.trf.xlu0
  %v7808 = vpop.trf.xlu0
  %v7809 = vpop.trf.xlu0
  %v7810 = vpop.trf.xlu0
  %v7811 = vpop.trf.xlu0
  %v7812 = vpop.trf.xlu0
  %v7813 = vpop.trf.xlu0
  %v7814 = vpop.trf.xlu0
  %v7815 = vpop.trf.xlu0
  %v7816 = vpop.trf.xlu0
  %7817 = vxpose.xlu0.b32.start [1/16] %v6678, 128
  %7818 = vxpose.xlu0.b32.cont [2/16] %v6679, 128
  %7819 = vxpose.xlu0.b32.cont [3/16] %v6680, 128
  %7820 = vxpose.xlu0.b32.cont [4/16] %v6681, 128
  %7821 = vxpose.xlu0.b32.cont [5/16] %v6682, 128
  %7822 = vxpose.xlu0.b32.cont [6/16] %v6683, 128
  %7823 = vxpose.xlu0.b32.cont [7/16] %v6684, 128
  %7824 = vxpose.xlu0.b32.cont [8/16] %v6685, 128
  %7825 = vxpose.xlu0.b32.cont [9/16] %v6686, 128
  %7826 = vxpose.xlu0.b32.cont [10/16] %v6687, 128
  %7827 = vxpose.xlu0.b32.cont [11/16] %v6688, 128
  %7828 = vxpose.xlu0.b32.cont [12/16] %v6689, 128
  %7829 = vxpose.xlu0.b32.cont [13/16] %v6690, 128
  %7830 = vxpose.xlu0.b32.cont [14/16] %v6691, 128
  %7831 = vxpose.xlu0.b32.cont [15/16] %v6692, 128
  %7832 = vxpose.xlu0.b32.end [16/16] %v6693, 128
  %v7833 = vpop.trf.xlu0
  %v7834 = vpop.trf.xlu0
  %v7835 = vpop.trf.xlu0
  %v7836 = vpop.trf.xlu0
  %v7837 = vpop.trf.xlu0
  %v7838 = vpop.trf.xlu0
  %v7839 = vpop.trf.xlu0
  %v7840 = vpop.trf.xlu0
  %v7841 = vpop.trf.xlu0
  %v7842 = vpop.trf.xlu0
  %v7843 = vpop.trf.xlu0
  %v7844 = vpop.trf.xlu0
  %v7845 = vpop.trf.xlu0
  %v7846 = vpop.trf.xlu0
  %v7847 = vpop.trf.xlu0
  %v7848 = vpop.trf.xlu0
  %7849 = vxpose.xlu0.b32.start [1/16] %v6694, 128
  %7850 = vxpose.xlu0.b32.cont [2/16] %v6695, 128
  %7851 = vxpose.xlu0.b32.cont [3/16] %v6696, 128
  %7852 = vxpose.xlu0.b32.cont [4/16] %v6697, 128
  %7853 = vxpose.xlu0.b32.cont [5/16] %v6698, 128
  %7854 = vxpose.xlu0.b32.cont [6/16] %v6699, 128
  %7855 = vxpose.xlu0.b32.cont [7/16] %v6700, 128
  %7856 = vxpose.xlu0.b32.cont [8/16] %v6701, 128
  %7857 = vxpose.xlu0.b32.cont [9/16] %v6702, 128
  %7858 = vxpose.xlu0.b32.cont [10/16] %v6703, 128
  %7859 = vxpose.xlu0.b32.cont [11/16] %v6704, 128
  %7860 = vxpose.xlu0.b32.cont [12/16] %v6705, 128
  %7861 = vxpose.xlu0.b32.cont [13/16] %v6706, 128
  %7862 = vxpose.xlu0.b32.cont [14/16] %v6707, 128
  %7863 = vxpose.xlu0.b32.cont [15/16] %v6708, 128
  %7864 = vxpose.xlu0.b32.end [16/16] %v6709, 128
  %v7865 = vpop.trf.xlu0
  %v7866 = vpop.trf.xlu0
  %v7867 = vpop.trf.xlu0
  %v7868 = vpop.trf.xlu0
  %v7869 = vpop.trf.xlu0
  %v7870 = vpop.trf.xlu0
  %v7871 = vpop.trf.xlu0
  %v7872 = vpop.trf.xlu0
  %v7873 = vpop.trf.xlu0
  %v7874 = vpop.trf.xlu0
  %v7875 = vpop.trf.xlu0
  %v7876 = vpop.trf.xlu0
  %v7877 = vpop.trf.xlu0
  %v7878 = vpop.trf.xlu0
  %v7879 = vpop.trf.xlu0
  %v7880 = vpop.trf.xlu0
  %7881 = vxpose.xlu0.b32.start [1/16] %v6710, 128
  %7882 = vxpose.xlu0.b32.cont [2/16] %v6711, 128
  %7883 = vxpose.xlu0.b32.cont [3/16] %v6712, 128
  %7884 = vxpose.xlu0.b32.cont [4/16] %v6713, 128
  %7885 = vxpose.xlu0.b32.cont [5/16] %v6714, 128
  %7886 = vxpose.xlu0.b32.cont [6/16] %v6715, 128
  %7887 = vxpose.xlu0.b32.cont [7/16] %v6716, 128
  %7888 = vxpose.xlu0.b32.cont [8/16] %v6717, 128
  %7889 = vxpose.xlu0.b32.cont [9/16] %v6718, 128
  %7890 = vxpose.xlu0.b32.cont [10/16] %v6719, 128
  %7891 = vxpose.xlu0.b32.cont [11/16] %v6720, 128
  %7892 = vxpose.xlu0.b32.cont [12/16] %v6721, 128
  %7893 = vxpose.xlu0.b32.cont [13/16] %v6722, 128
  %7894 = vxpose.xlu0.b32.cont [14/16] %v6723, 128
  %7895 = vxpose.xlu0.b32.cont [15/16] %v6724, 128
  %7896 = vxpose.xlu0.b32.end [16/16] %v6725, 128
  %v7897 = vpop.trf.xlu0
  %v7898 = vpop.trf.xlu0
  %v7899 = vpop.trf.xlu0
  %v7900 = vpop.trf.xlu0
  %v7901 = vpop.trf.xlu0
  %v7902 = vpop.trf.xlu0
  %v7903 = vpop.trf.xlu0
  %v7904 = vpop.trf.xlu0
  %v7905 = vpop.trf.xlu0
  %v7906 = vpop.trf.xlu0
  %v7907 = vpop.trf.xlu0
  %v7908 = vpop.trf.xlu0
  %v7909 = vpop.trf.xlu0
  %v7910 = vpop.trf.xlu0
  %v7911 = vpop.trf.xlu0
  %v7912 = vpop.trf.xlu0
  %7913 = vxpose.xlu0.b32.start [1/16] %v7673, 128
  %7914 = vxpose.xlu0.b32.cont [2/16] %v7674, 128
  %7915 = vxpose.xlu0.b32.cont [3/16] %v7675, 128
  %7916 = vxpose.xlu0.b32.cont [4/16] %v7676, 128
  %7917 = vxpose.xlu0.b32.cont [5/16] %v7677, 128
  %7918 = vxpose.xlu0.b32.cont [6/16] %v7678, 128
  %7919 = vxpose.xlu0.b32.cont [7/16] %v7679, 128
  %7920 = vxpose.xlu0.b32.cont [8/16] %v7680, 128
  %7921 = vxpose.xlu0.b32.cont [9/16] %v7681, 128
  %7922 = vxpose.xlu0.b32.cont [10/16] %v7682, 128
  %7923 = vxpose.xlu0.b32.cont [11/16] %v7683, 128
  %7924 = vxpose.xlu0.b32.cont [12/16] %v7684, 128
  %7925 = vxpose.xlu0.b32.cont [13/16] %v7685, 128
  %7926 = vxpose.xlu0.b32.cont [14/16] %v7686, 128
  %7927 = vxpose.xlu0.b32.cont [15/16] %v7687, 128
  %7928 = vxpose.xlu0.b32.end [16/16] %v7688, 128
  %v7929 = vpop.trf.xlu0
  %v7930 = vpop.trf.xlu0
  %v7931 = vpop.trf.xlu0
  %v7932 = vpop.trf.xlu0
  %v7933 = vpop.trf.xlu0
  %v7934 = vpop.trf.xlu0
  %v7935 = vpop.trf.xlu0
  %v7936 = vpop.trf.xlu0
  %v7937 = vpop.trf.xlu0
  %v7938 = vpop.trf.xlu0
  %v7939 = vpop.trf.xlu0
  %v7940 = vpop.trf.xlu0
  %v7941 = vpop.trf.xlu0
  %v7942 = vpop.trf.xlu0
  %v7943 = vpop.trf.xlu0
  %v7944 = vpop.trf.xlu0
  %7945 = vxpose.xlu0.b32.start [1/16] %v7689, 128
  %7946 = vxpose.xlu0.b32.cont [2/16] %v7690, 128
  %7947 = vxpose.xlu0.b32.cont [3/16] %v7691, 128
  %7948 = vxpose.xlu0.b32.cont [4/16] %v7692, 128
  %7949 = vxpose.xlu0.b32.cont [5/16] %v7693, 128
  %7950 = vxpose.xlu0.b32.cont [6/16] %v7694, 128
  %7951 = vxpose.xlu0.b32.cont [7/16] %v7695, 128
  %7952 = vxpose.xlu0.b32.cont [8/16] %v7696, 128
  %7953 = vxpose.xlu0.b32.cont [9/16] %v7697, 128
  %7954 = vxpose.xlu0.b32.cont [10/16] %v7698, 128
  %7955 = vxpose.xlu0.b32.cont [11/16] %v7699, 128
  %7956 = vxpose.xlu0.b32.cont [12/16] %v7700, 128
  %7957 = vxpose.xlu0.b32.cont [13/16] %v7701, 128
  %7958 = vxpose.xlu0.b32.cont [14/16] %v7702, 128
  %7959 = vxpose.xlu0.b32.cont [15/16] %v7703, 128
  %7960 = vxpose.xlu0.b32.end [16/16] %v7704, 128
  %v7961 = vpop.trf.xlu0
  %v7962 = vpop.trf.xlu0
  %v7963 = vpop.trf.xlu0
  %v7964 = vpop.trf.xlu0
  %v7965 = vpop.trf.xlu0
  %v7966 = vpop.trf.xlu0
  %v7967 = vpop.trf.xlu0
  %v7968 = vpop.trf.xlu0
  %v7969 = vpop.trf.xlu0
  %v7970 = vpop.trf.xlu0
  %v7971 = vpop.trf.xlu0
  %v7972 = vpop.trf.xlu0
  %v7973 = vpop.trf.xlu0
  %v7974 = vpop.trf.xlu0
  %v7975 = vpop.trf.xlu0
  %v7976 = vpop.trf.xlu0
  %7977 = vxpose.xlu0.b32.start [1/16] %v7705, 128
  %7978 = vxpose.xlu0.b32.cont [2/16] %v7706, 128
  %7979 = vxpose.xlu0.b32.cont [3/16] %v7707, 128
  %7980 = vxpose.xlu0.b32.cont [4/16] %v7708, 128
  %7981 = vxpose.xlu0.b32.cont [5/16] %v7709, 128
  %7982 = vxpose.xlu0.b32.cont [6/16] %v7710, 128
  %7983 = vxpose.xlu0.b32.cont [7/16] %v7711, 128
  %7984 = vxpose.xlu0.b32.cont [8/16] %v7712, 128
  %7985 = vxpose.xlu0.b32.cont [9/16] %v7713, 128
  %7986 = vxpose.xlu0.b32.cont [10/16] %v7714, 128
  %7987 = vxpose.xlu0.b32.cont [11/16] %v7715, 128
  %7988 = vxpose.xlu0.b32.cont [12/16] %v7716, 128
  %7989 = vxpose.xlu0.b32.cont [13/16] %v7717, 128
  %7990 = vxpose.xlu0.b32.cont [14/16] %v7718, 128
  %7991 = vxpose.xlu0.b32.cont [15/16] %v7719, 128
  %7992 = vxpose.xlu0.b32.end [16/16] %v7720, 128
  %v7993 = vpop.trf.xlu0
  %v7994 = vpop.trf.xlu0
  %v7995 = vpop.trf.xlu0
  %v7996 = vpop.trf.xlu0
  %v7997 = vpop.trf.xlu0
  %v7998 = vpop.trf.xlu0
  %v7999 = vpop.trf.xlu0
  %v8000 = vpop.trf.xlu0
  %v8001 = vpop.trf.xlu0
  %v8002 = vpop.trf.xlu0
  %v8003 = vpop.trf.xlu0
  %v8004 = vpop.trf.xlu0
  %v8005 = vpop.trf.xlu0
  %v8006 = vpop.trf.xlu0
  %v8007 = vpop.trf.xlu0
  %v8008 = vpop.trf.xlu0
  %8009 = vxpose.xlu0.b32.start [1/16] %v7721, 128
  %8010 = vxpose.xlu0.b32.cont [2/16] %v7722, 128
  %8011 = vxpose.xlu0.b32.cont [3/16] %v7723, 128
  %8012 = vxpose.xlu0.b32.cont [4/16] %v7724, 128
  %8013 = vxpose.xlu0.b32.cont [5/16] %v7725, 128
  %8014 = vxpose.xlu0.b32.cont [6/16] %v7726, 128
  %8015 = vxpose.xlu0.b32.cont [7/16] %v7727, 128
  %8016 = vxpose.xlu0.b32.cont [8/16] %v7728, 128
  %8017 = vxpose.xlu0.b32.cont [9/16] %v7729, 128
  %8018 = vxpose.xlu0.b32.cont [10/16] %v7730, 128
  %8019 = vxpose.xlu0.b32.cont [11/16] %v7731, 128
  %8020 = vxpose.xlu0.b32.cont [12/16] %v7732, 128
  %8021 = vxpose.xlu0.b32.cont [13/16] %v7733, 128
  %8022 = vxpose.xlu0.b32.cont [14/16] %v7734, 128
  %8023 = vxpose.xlu0.b32.cont [15/16] %v7735, 128
  %8024 = vxpose.xlu0.b32.end [16/16] %v7736, 128
  %v8025 = vpop.trf.xlu0
  %v8026 = vpop.trf.xlu0
  %v8027 = vpop.trf.xlu0
  %v8028 = vpop.trf.xlu0
  %v8029 = vpop.trf.xlu0
  %v8030 = vpop.trf.xlu0
  %v8031 = vpop.trf.xlu0
  %v8032 = vpop.trf.xlu0
  %v8033 = vpop.trf.xlu0
  %v8034 = vpop.trf.xlu0
  %v8035 = vpop.trf.xlu0
  %v8036 = vpop.trf.xlu0
  %v8037 = vpop.trf.xlu0
  %v8038 = vpop.trf.xlu0
  %v8039 = vpop.trf.xlu0
  %v8040 = vpop.trf.xlu0
  %8041 = vxpose.xlu0.b32.start [1/16] %v7737, 128
  %8042 = vxpose.xlu0.b32.cont [2/16] %v7738, 128
  %8043 = vxpose.xlu0.b32.cont [3/16] %v7739, 128
  %8044 = vxpose.xlu0.b32.cont [4/16] %v7740, 128
  %8045 = vxpose.xlu0.b32.cont [5/16] %v7741, 128
  %8046 = vxpose.xlu0.b32.cont [6/16] %v7742, 128
  %8047 = vxpose.xlu0.b32.cont [7/16] %v7743, 128
  %8048 = vxpose.xlu0.b32.cont [8/16] %v7744, 128
  %8049 = vxpose.xlu0.b32.cont [9/16] %v7745, 128
  %8050 = vxpose.xlu0.b32.cont [10/16] %v7746, 128
  %8051 = vxpose.xlu0.b32.cont [11/16] %v7747, 128
  %8052 = vxpose.xlu0.b32.cont [12/16] %v7748, 128
  %8053 = vxpose.xlu0.b32.cont [13/16] %v7749, 128
  %8054 = vxpose.xlu0.b32.cont [14/16] %v7750, 128
  %8055 = vxpose.xlu0.b32.cont [15/16] %v7751, 128
  %8056 = vxpose.xlu0.b32.end [16/16] %v7752, 128
  %v8057 = vpop.trf.xlu0
  %v8058 = vpop.trf.xlu0
  %v8059 = vpop.trf.xlu0
  %v8060 = vpop.trf.xlu0
  %v8061 = vpop.trf.xlu0
  %v8062 = vpop.trf.xlu0
  %v8063 = vpop.trf.xlu0
  %v8064 = vpop.trf.xlu0
  %v8065 = vpop.trf.xlu0
  %v8066 = vpop.trf.xlu0
  %v8067 = vpop.trf.xlu0
  %v8068 = vpop.trf.xlu0
  %v8069 = vpop.trf.xlu0
  %v8070 = vpop.trf.xlu0
  %v8071 = vpop.trf.xlu0
  %v8072 = vpop.trf.xlu0
  %8073 = vst [vmem:[%s16] sm:$0xff] %v7769
  %8074 = vst [vmem:[%s16 + $0x8] sm:$0xff] %v7801
  %8075 = vst [vmem:[%s16 + $0x10] sm:$0xff] %v7833
  %8076 = vst [vmem:[%s16 + $0x18] sm:$0xff] %v7865
  %8077 = vst [vmem:[%s16 + $0x20] sm:$0xff] %v7897
  %8078 = vst [vmem:[%s17] sm:$0xff] %v7929
  %8079 = vst [vmem:[%s17 + $0x8] sm:$0xff] %v7961
  %8080 = vst [vmem:[%s17 + $0x10] sm:$0xff] %v7993
  %8081 = vst [vmem:[%s17 + $0x18] sm:$0xff] %v8025
  %8082 = vst [vmem:[%s17 + $0x20] sm:$0xff] %v8057
  // Predicated region
  $region66: #{vertice_net_forward.1} parent=0 // pred_check
    _
  $region67: #{vertice_net_forward.1} parent=0 // pred_check_branch
    %8084 = sbr.rel (0) target = $region69
  $region68: #{vertice_net_forward.1} parent=0 // pred_region
    _
  $region69: #{vertice_net_forward.1} parent=0 // pred_fallthru
    _
  // Predicated region
  $region70: #{vertice_net_forward.1} parent=0 // pred_check
    _
  $region71: #{vertice_net_forward.1} parent=0 // pred_check_branch
    %8086 = sbr.rel (0) target = $region73
  $region72: #{vertice_net_forward.1} parent=0 // pred_region
    _
  $region73: #{vertice_net_forward.1} parent=0 // pred_fallthru
    _
  // Predicated region
  $region74: #{vertice_net_forward.1} parent=0 // pred_check
    _
  $region75: #{vertice_net_forward.1} parent=0 // pred_check_branch
    %8088 = sbr.rel (0) target = $region77
  $region76: #{vertice_net_forward.1} parent=0 // pred_region
    _
  $region77: #{vertice_net_forward.1} parent=0 // pred_fallthru
    _
  // Predicated region
  $region78: #{vertice_net_forward.1} parent=0 // pred_check
    _
  $region79: #{vertice_net_forward.1} parent=0 // pred_check_branch
    %8090 = sbr.rel (0) target = $region81
  $region80: #{vertice_net_forward.1} parent=0 // pred_region
    _
  $region81: #{vertice_net_forward.1} parent=0 // pred_fallthru
    _

</llo_original>
